<compile_context>
chip_gen: v6e
topology: v6e:2x2x1
jax: 0.10.0
libtpu: 0.0.40
codegen_flags: <defaults>
</compile_context>

<pallas_src>
import math

import jax
import jax.numpy as jnp
import numpy as np
from jax import lax
from jax.experimental import pallas as pl
from jax.experimental.pallas import tpu as pltpu


def _lane_repeat(x, reps):
    """Repeat a lane-replicated (rows, 128) stat along the lane axis."""
    if reps == 1:
        return x
    return jnp.concatenate([x] * reps, axis=1)


# -----------------------------------------------------------------------------
# Kernel 1: per-channel sum / sum-of-squares, tiled over HW (accumulator in the
# resident output block; HW axis is the "arbitrary" reduction axis).
# -----------------------------------------------------------------------------
def gn_sums_kernel(x_ref, sum_ref, ss_ref):
    t = pl.program_id(1)

    @pl.when(t == 0)
    def _():
        sum_ref[...] = jnp.zeros_like(sum_ref)
        ss_ref[...] = jnp.zeros_like(ss_ref)

    x = x_ref[0]                                          # (C, tg) f32
    sum_ref[0] += jnp.sum(x, axis=1, keepdims=True)       # (C, 1)
    ss_ref[0] += jnp.sum(x * x, axis=1, keepdims=True)    # (C, 1)


# -----------------------------------------------------------------------------
# Kernel 2: normalize + fused QKV projections.
#   K is produced channel-major via Wk @ h (row-major weight, no transpose);
#   Q and V are produced token-major via one fused h^T @ [Wq^T/sqrt(C) | Wv^T].
# -----------------------------------------------------------------------------
def qkv_proj_kernel(x_ref, scale_ref, shift_ref, wqv_ref, bqv_ref, wk_ref,
                    bk_ref, q_ref, k_ref, v_ref):
    c = wk_ref.shape[0]
    h = x_ref[0] * scale_ref[0] + shift_ref[0]            # (C, tr) f32, channel-major
    h_bf = h.astype(jnp.bfloat16)

    # K, channel-major: Wk @ h  -> (C, tr)
    k = jnp.dot(wk_ref[...], h_bf,
                preferred_element_type=jnp.float32) + bk_ref[...]
    k_ref[0] = k.astype(jnp.bfloat16)

    # Q and V, token-major: h^T @ [Wq^T*s | Wv^T]  -> (tr, 2C)   (XLU transpose)
    h_t = jnp.transpose(h, (1, 0)).astype(jnp.bfloat16)   # (tr, C)
    qv = jnp.dot(h_t, wqv_ref[...],
                 preferred_element_type=jnp.float32) + bqv_ref[...]
    qv = qv.astype(jnp.bfloat16)
    q_ref[0] = qv[:, :c]
    v_ref[0] = qv[:, c:]


# -----------------------------------------------------------------------------
# Kernel 3: flash attention (online softmax over KV tiles) + proj_out + bias
# + residual, writing the output channel-major (NCHW) directly.
# -----------------------------------------------------------------------------
def flash_attn_proj_kernel(x_ref, q_ref, k_ref, v_ref, wp_ref, bp_ref, o_ref,
                           m_sc, l_sc, acc_sc):
    ki = pl.program_id(2)

    @pl.when(ki == 0)
    def _():
        m_sc[...] = jnp.full(m_sc.shape, -jnp.inf, dtype=jnp.float32)
        l_sc[...] = jnp.zeros(l_sc.shape, dtype=jnp.float32)
        acc_sc[...] = jnp.zeros(acc_sc.shape, dtype=jnp.float32)

    q = q_ref[0]                                          # (tq, C) bf16 (pre-scaled by 1/sqrt(C))
    k = k_ref[0]                                          # (C, tk) bf16 channel-major
    v = v_ref[0]                                          # (tk, C) bf16
    c = q.shape[1]
    tk = k.shape[1]
    c_rep = c // 128
    k_rep = tk // 128

    # S = Q @ K  -- both operands already oriented for the MXU, no transpose.
    s = jnp.dot(q, k, preferred_element_type=jnp.float32)          # (tq, tk) f32

    m_prev = m_sc[...]                                              # (tq, 128) lane-replicated
    m_next = jnp.maximum(m_prev, jnp.max(s, axis=-1, keepdims=True))
    alpha = jnp.exp(m_prev - m_next)                                # (tq, 128)
    p = jnp.exp(s - _lane_repeat(m_next, k_rep))                    # (tq, tk)
    l_sc[...] = alpha * l_sc[...] + jnp.sum(p, axis=-1, keepdims=True)
    acc_sc[...] = acc_sc[...] * _lane_repeat(alpha, c_rep) + jnp.dot(
        p.astype(jnp.bfloat16), v, preferred_element_type=jnp.float32)
    m_sc[...] = m_next

    @pl.when(ki == pl.num_programs(2) - 1)
    def _():
        inv_l = pl.reciprocal(l_sc[...], approx=True)               # (tq, 128)
        a = acc_sc[...] * _lane_repeat(inv_l, c_rep)                # (tq, C) f32
        a_t = jnp.transpose(a, (1, 0)).astype(jnp.bfloat16)         # (C, tq)  XLU transpose
        o = jnp.dot(wp_ref[...], a_t,
                    preferred_element_type=jnp.float32)             # (C, tq)  Wp row-major
        o_ref[0] = x_ref[0] + o + bp_ref[...]                       # residual + bias (f32)


# -----------------------------------------------------------------------------
# VMEM budget: scale with the chip generation (v5e/v6e: 128 MiB, v7x: 64 MiB).
# -----------------------------------------------------------------------------
def _default_vmem_limit():
    try:
        return int(pltpu.get_tpu_info().vmem_capacity_bytes * 3 // 4)
    except Exception:
        return 48 * 1024 * 1024


# -----------------------------------------------------------------------------
# Wrapper: NCHW in / NCHW out (no HBM transpose passes, only reshapes).
# -----------------------------------------------------------------------------
def attn_block_forward(x_nchw, params, *, num_groups=32, eps=1e-6,
                       gn_tile=512, row_tile=512, q_tile=512, kv_tile=512):
    B, C, H, W = x_nchw.shape
    HW = H * W
    G = num_groups
    assert C % G == 0
    # TODO(synk): C < 128 (e.g. 64) would need channel-axis zero padding (with
    # masked GroupNorm stats) to stay lane-dense; not implemented.
    assert C % 128 == 0, "channels must be a multiple of 128 for lane-dense tiles"
    assert HW % 128 == 0, "H*W must be a multiple of 128"

    tg = min(gn_tile, HW)
    tr = min(row_tile, HW)
    tq = min(q_tile, HW)
    tk = min(kv_tile, HW)
    for t in (tg, tr, tq, tk):
        assert HW % t == 0 and t % 128 == 0

    # NCHW -> [B, C, HW] is a pure reshape; kernels transpose tiles in-register.
    x = x_nchw.reshape(B, C, HW).astype(jnp.float32)

    vmem_limit = _default_vmem_limit()

    # ---- kernel 1: per-channel sum / sum-of-squares (tiled over HW) ----------
    ch_sum, ch_ss = pl.pallas_call(
        gn_sums_kernel,
        out_shape=(jax.ShapeDtypeStruct((B, C, 1), jnp.float32),
                   jax.ShapeDtypeStruct((B, C, 1), jnp.float32)),
        grid=(B, HW // tg),
        in_specs=[pl.BlockSpec((1, C, tg), lambda b, t: (b, 0, t))],
        out_specs=(pl.BlockSpec((1, C, 1), lambda b, t: (b, 0, 0)),
                   pl.BlockSpec((1, C, 1), lambda b, t: (b, 0, 0))),
        compiler_params=pltpu.CompilerParams(
            dimension_semantics=("parallel", "arbitrary"),
            vmem_limit_bytes=vmem_limit),
    )(x)

    # Tiny O(B*C) GroupNorm finalize (group reduce + affine fold) in plain jnp.
    # Single-pass variance (E[x^2] - E[x]^2) with f32 accumulation throughout.
    cg = C // G
    n = float(HW * cg)
    gamma = params["gamma"].astype(jnp.float32)
    beta = params["beta"].astype(jnp.float32)
    g_sum = ch_sum.reshape(B, G, cg).sum(axis=-1)                   # (B, G)
    g_ss = ch_ss.reshape(B, G, cg).sum(axis=-1)
    g_mean = g_sum / n
    g_var = g_ss / n - g_mean * g_mean
    mean_c = jnp.repeat(g_mean, cg, axis=1).reshape(B, C, 1)
    inv_c = jnp.repeat(lax.rsqrt(g_var + eps), cg, axis=1).reshape(B, C, 1)
    gn_scale = inv_c * gamma.reshape(1, C, 1)
    gn_shift = beta.reshape(1, C, 1) - mean_c * gn_scale

    # Weight preprocessing (folded once, outside the kernels).
    attn_scale = 1.0 / math.sqrt(C)
    wqv = jnp.concatenate([params["wq"].T * attn_scale, params["wv"].T],
                          axis=1).astype(jnp.bfloat16)              # (C, 2C)
    bqv = jnp.concatenate([params["bq"] * attn_scale, params["bv"]],
                          axis=0).reshape(1, 2 * C).astype(jnp.float32)
    wk = params["wk"].astype(jnp.bfloat16)                          # (C, C) row-major
    bk = params["bk"].reshape(C, 1).astype(jnp.float32)
    wp = params["wp"].astype(jnp.bfloat16)                          # (C, C) row-major
    bp = params["bp"].reshape(C, 1).astype(jnp.float32)

    # ---- kernel 2: normalize + fused QKV projections --------------------------
    # TODO(synk): mark grid-invariant weight operands with
    # pipeline_mode=pl.Buffered(1) once single-buffering is verified on the
    # target jax version (saves ~1-2 MiB of VMEM at C=512).
    q, k, v = pl.pallas_call(
        qkv_proj_kernel,
        out_shape=(jax.ShapeDtypeStruct((B, HW, C), jnp.bfloat16),   # Q token-major
                   jax.ShapeDtypeStruct((B, C, HW), jnp.bfloat16),   # K channel-major
                   jax.ShapeDtypeStruct((B, HW, C), jnp.bfloat16)),  # V token-major
        grid=(B, HW // tr),
        in_specs=[
            pl.BlockSpec((1, C, tr), lambda b, r: (b, 0, r)),        # x (NCHW layout)
            pl.BlockSpec((1, C, 1), lambda b, r: (b, 0, 0)),         # scale
            pl.BlockSpec((1, C, 1), lambda b, r: (b, 0, 0)),         # shift
            pl.BlockSpec((C, 2 * C), lambda b, r: (0, 0)),           # [Wq^T*s | Wv^T]
            pl.BlockSpec((1, 2 * C), lambda b, r: (0, 0)),           # [bq*s | bv]
            pl.BlockSpec((C, C), lambda b, r: (0, 0)),               # Wk (row-major)
            pl.BlockSpec((C, 1), lambda b, r: (0, 0)),               # bk
        ],
        out_specs=(pl.BlockSpec((1, tr, C), lambda b, r: (b, r, 0)),
                   pl.BlockSpec((1, C, tr), lambda b, r: (b, 0, r)),
                   pl.BlockSpec((1, tr, C), lambda b, r: (b, r, 0))),
        compiler_params=pltpu.CompilerParams(
            dimension_semantics=("parallel", "parallel"),
            vmem_limit_bytes=vmem_limit),
    )(x, gn_scale, gn_shift, wqv, bqv, wk, bk)

    # ---- kernel 3: flash attention + proj_out + bias + residual ---------------
    out = pl.pallas_call(
        flash_attn_proj_kernel,
        out_shape=jax.ShapeDtypeStruct((B, C, HW), jnp.float32),
        grid=(B, HW // tq, HW // tk),
        in_specs=[
            pl.BlockSpec((1, C, tq), lambda b, qi, ki: (b, 0, qi)),  # residual x (NCHW)
            pl.BlockSpec((1, tq, C), lambda b, qi, ki: (b, qi, 0)),  # Q token-major
            pl.BlockSpec((1, C, tk), lambda b, qi, ki: (b, 0, ki)),  # K channel-major
            pl.BlockSpec((1, tk, C), lambda b, qi, ki: (b, ki, 0)),  # V token-major
            pl.BlockSpec((C, C), lambda b, qi, ki: (0, 0)),          # Wp (row-major)
            pl.BlockSpec((C, 1), lambda b, qi, ki: (0, 0)),          # bp
        ],
        out_specs=pl.BlockSpec((1, C, tq), lambda b, qi, ki: (b, 0, qi)),
        scratch_shapes=[
            pltpu.VMEM((tq, 128), jnp.float32),    # running max   (lane-replicated)
            pltpu.VMEM((tq, 128), jnp.float32),    # running denom (lane-replicated)
            pltpu.VMEM((tq, C), jnp.float32),      # running numerator (token-major)
        ],
        compiler_params=pltpu.CompilerParams(
            dimension_semantics=("parallel", "parallel", "arbitrary"),
            vmem_limit_bytes=vmem_limit),
    )(x, q, k, v, wp, bp)

    # [B, C, HW] -> NCHW is again a pure reshape.
    return out.reshape(B, C, H, W)


# -----------------------------------------------------------------------------
# Pure-JAX f32 reference (mirrors the PyTorch module exactly).
# -----------------------------------------------------------------------------
def attn_block_reference(x_nchw, params, *, num_groups=32, eps=1e-6):
    B, C, H, W = x_nchw.shape
    G = num_groups
    xr = x_nchw.reshape(B, G, -1)
    mean = xr.mean(axis=-1, keepdims=True)
    var = xr.var(axis=-1, keepdims=True)
    hn = ((xr - mean) / jnp.sqrt(var + eps)).reshape(B, C, H, W)
    hn = hn * params["gamma"][None, :, None, None] + params["beta"][None, :, None, None]
    conv1 = lambda h, w, b: jnp.einsum("oc,bchw->bohw", w, h) + b[None, :, None, None]
    q = conv1(hn, params["wq"], params["bq"])
    k = conv1(hn, params["wk"], params["bk"])
    v = conv1(hn, params["wv"], params["bv"])
    tok = lambda t: jnp.transpose(t, (0, 2, 3, 1)).reshape(B, H * W, C)
    qs, ks, vs = tok(q), tok(k), tok(v)
    scores = jnp.einsum("bqc,bkc->bqk", qs, ks) / math.sqrt(C)
    p = jax.nn.softmax(scores, axis=-1)
    a = jnp.einsum("bqk,bkc->bqc", p, vs)
    a = jnp.transpose(a.reshape(B, H, W, C), (0, 3, 1, 2))
    o = conv1(a, params["wp"], params["bp"])
    return x_nchw + o


if __name__ == "__main__":
    # C=128 keeps the channel axis lane-dense and divisible by the 32 GroupNorm
    # groups; H=W=32 -> HW=1024 exercises the multi-tile paths of all three
    # kernels (2 GN tiles, 2 row tiles, 2x2 flash q/kv tiles) at the 512 tiles.
    B, C, H, W = 2, 128, 32, 32

    key = jax.random.PRNGKey(0)
    kx, kp = jax.random.split(key)
    x = jax.random.normal(kx, (B, C, H, W), dtype=jnp.float32)

    ks = jax.random.split(kp, 10)
    s = 1.0 / math.sqrt(C)
    params = {
        "gamma": 1.0 + 0.1 * jax.random.normal(ks[0], (C,), jnp.float32),
        "beta": 0.1 * jax.random.normal(ks[1], (C,), jnp.float32),
        "wq": s * jax.random.normal(ks[2], (C, C), jnp.float32),
        "bq": 0.05 * jax.random.normal(ks[3], (C,), jnp.float32),
        "wk": s * jax.random.normal(ks[4], (C, C), jnp.float32),
        "bk": 0.05 * jax.random.normal(ks[5], (C,), jnp.float32),
        "wv": s * jax.random.normal(ks[6], (C, C), jnp.float32),
        "bv": 0.05 * jax.random.normal(ks[7], (C,), jnp.float32),
        "wp": s * jax.random.normal(ks[8], (C, C), jnp.float32),
        "bp": 0.05 * jax.random.normal(ks[9], (C,), jnp.float32),
    }

    fwd = jax.jit(attn_block_forward,
                  static_argnames=("num_groups", "eps", "gn_tile",
                                   "row_tile", "q_tile", "kv_tile"))
    out = jax.block_until_ready(fwd(x, params))
    ref = jax.block_until_ready(attn_block_reference(x, params))

    # bf16 MXU operands (f32 accumulation) vs. a pure-f32 reference.
    np.testing.assert_allclose(np.asarray(out), np.asarray(ref),
                               rtol=5e-2, atol=5e-2)
    print("KERNEL_OK")
</pallas_src>

<mosaic_0001>
module attributes {stable_mosaic.version = 11 : i64} {
  func.func @gn_sums_kernel(%arg0: i32, %arg1: i32, %arg2: memref<1x128x512xf32, #tpu.memory_space<vmem>>, %arg3: memref<1x128x1xf32, #tpu.memory_space<vmem>>, %arg4: memref<1x128x1xf32, #tpu.memory_space<vmem>>) attributes {dimension_semantics = [#tpu.dimension_semantics<parallel>, #tpu.dimension_semantics<arbitrary>], iteration_bounds = array<i64: 2, 2>, scalar_prefetch = 0 : i64, scratch_operands = 0 : i64, tpu.core_type = #tpu.core_type<tc>, window_params = [{transform_indices = @transform_0, window_bounds = array<i64: 1, 128, 512>}, {transform_indices = @transform_1, window_bounds = array<i64: 1, 128, 1>}, {transform_indices = @transform_2, window_bounds = array<i64: 1, 128, 1>}]} {
    %c0_i32 = arith.constant 0 : i32
    %0 = arith.cmpi eq, %arg1, %c0_i32 : i32
    %1 = arith.extui %0 : i1 to i32
    %c0_i32_0 = arith.constant 0 : i32
    %2 = arith.cmpi ne, %1, %c0_i32_0 : i32
    scf.if %2 {
      %cst_16 = arith.constant 0.000000e+00 : f32
      %22 = vector.broadcast %cst_16 : f32 to vector<1x128x1xf32>
      %c0_17 = arith.constant 0 : index
      %c0_18 = arith.constant 0 : index
      %c0_19 = arith.constant 0 : index
      %23 = vector.load %arg3[%c0_17, %c0_18, %c0_19] : memref<1x128x1xf32, #tpu.memory_space<vmem>>, vector<1x128x1xf32>
      tpu.vector_store %arg3[%c0_17, %c0_18, %c0_19], %22 {strides = array<i32>} : memref<1x128x1xf32, #tpu.memory_space<vmem>>, vector<1x128x1xf32>,
      %cst_20 = arith.constant 0.000000e+00 : f32
      %24 = vector.broadcast %cst_20 : f32 to vector<1x128x1xf32>
      %c0_21 = arith.constant 0 : index
      %c0_22 = arith.constant 0 : index
      %c0_23 = arith.constant 0 : index
      %25 = vector.load %arg4[%c0_21, %c0_22, %c0_23] : memref<1x128x1xf32, #tpu.memory_space<vmem>>, vector<1x128x1xf32>
      tpu.vector_store %arg4[%c0_21, %c0_22, %c0_23], %24 {strides = array<i32>} : memref<1x128x1xf32, #tpu.memory_space<vmem>>, vector<1x128x1xf32>,
    } else {
    }
    %c0 = arith.constant 0 : index
    %c0_1 = arith.constant 0 : index
    %c0_2 = arith.constant 0 : index
    %3 = vector.load %arg2[%c0, %c0_1, %c0_2] : memref<1x128x512xf32, #tpu.memory_space<vmem>>, vector<1x128x512xf32>
    %4 = vector.shape_cast %3 : vector<1x128x512xf32> to vector<128x512xf32>
    %c0_3 = arith.constant 0 : index
    %c0_4 = arith.constant 0 : index
    %c0_5 = arith.constant 0 : index
    %5 = vector.load %arg3[%c0_3, %c0_4, %c0_5] : memref<1x128x1xf32, #tpu.memory_space<vmem>>, vector<1x128x1xf32>
    %6 = vector.shape_cast %5 : vector<1x128x1xf32> to vector<128x1xf32>
    %cst = arith.constant dense<0.000000e+00> : vector<128xf32>
    %7 = vector.multi_reduction <add>, %4, %cst [1] : vector<128x512xf32> to vector<128xf32>
    %8 = vector.shape_cast %7 : vector<128xf32> to vector<128x1xf32>
    %9 = arith.addf %6, %8 : vector<128x1xf32>
    %c0_6 = arith.constant 0 : index
    %c0_7 = arith.constant 0 : index
    %c0_8 = arith.constant 0 : index
    %10 = vector.load %arg3[%c0_6, %c0_7, %c0_8] : memref<1x128x1xf32, #tpu.memory_space<vmem>>, vector<1x128x1xf32>
    %11 = vector.shape_cast %10 : vector<1x128x1xf32> to vector<128x1xf32>
    %12 = vector.shape_cast %9 : vector<128x1xf32> to vector<1x128x1xf32>
    tpu.vector_store %arg3[%c0_6, %c0_7, %c0_8], %12 {strides = array<i32>} : memref<1x128x1xf32, #tpu.memory_space<vmem>>, vector<1x128x1xf32>,
    %c0_9 = arith.constant 0 : index
    %c0_10 = arith.constant 0 : index
    %c0_11 = arith.constant 0 : index
    %13 = vector.load %arg4[%c0_9, %c0_10, %c0_11] : memref<1x128x1xf32, #tpu.memory_space<vmem>>, vector<1x128x1xf32>
    %14 = vector.shape_cast %13 : vector<1x128x1xf32> to vector<128x1xf32>
    %15 = arith.mulf %4, %4 : vector<128x512xf32>
    %cst_12 = arith.constant dense<0.000000e+00> : vector<128xf32>
    %16 = vector.multi_reduction <add>, %15, %cst_12 [1] : vector<128x512xf32> to vector<128xf32>
    %17 = vector.shape_cast %16 : vector<128xf32> to vector<128x1xf32>
    %18 = arith.addf %14, %17 : vector<128x1xf32>
    %c0_13 = arith.constant 0 : index
    %c0_14 = arith.constant 0 : index
    %c0_15 = arith.constant 0 : index
    %19 = vector.load %arg4[%c0_13, %c0_14, %c0_15] : memref<1x128x1xf32, #tpu.memory_space<vmem>>, vector<1x128x1xf32>
    %20 = vector.shape_cast %19 : vector<1x128x1xf32> to vector<128x1xf32>
    %21 = vector.shape_cast %18 : vector<128x1xf32> to vector<1x128x1xf32>
    tpu.vector_store %arg4[%c0_13, %c0_14, %c0_15], %21 {strides = array<i32>} : memref<1x128x1xf32, #tpu.memory_space<vmem>>, vector<1x128x1xf32>,
    return
  }
  func.func @transform_0(%arg0: i32, %arg1: i32) -> (i32, i32, i32) {
    %c0_i32 = arith.constant 0 : i32
    %c0_i32_0 = arith.constant 0 : i32
    return %arg0, %c0_i32, %arg1 : i32, i32, i32
  }
  func.func @transform_1(%arg0: i32, %arg1: i32) -> (i32, i32, i32) {
    %c0_i32 = arith.constant 0 : i32
    %c0_i32_0 = arith.constant 0 : i32
    %c0_i32_1 = arith.constant 0 : i32
    return %arg0, %c0_i32, %c0_i32_0 : i32, i32, i32
  }
  func.func @transform_2(%arg0: i32, %arg1: i32) -> (i32, i32, i32) {
    %c0_i32 = arith.constant 0 : i32
    %c0_i32_0 = arith.constant 0 : i32
    %c0_i32_1 = arith.constant 0 : i32
    return %arg0, %c0_i32, %c0_i32_0 : i32, i32, i32
  }
}

module attributes {stable_mosaic.version = 11 : i64} {
  func.func @qkv_proj_kernel(%arg0: i32, %arg1: i32, %arg2: memref<1x128x512xf32, #tpu.memory_space<vmem>>, %arg3: memref<1x128x1xf32, #tpu.memory_space<vmem>>, %arg4: memref<1x128x1xf32, #tpu.memory_space<vmem>>, %arg5: memref<128x256xbf16, #tpu.memory_space<vmem>>, %arg6: memref<1x256xf32, #tpu.memory_space<vmem>>, %arg7: memref<128x128xbf16, #tpu.memory_space<vmem>>, %arg8: memref<128x1xf32, #tpu.memory_space<vmem>>, %arg9: memref<1x512x128xbf16, #tpu.memory_space<vmem>>, %arg10: memref<1x128x512xbf16, #tpu.memory_space<vmem>>, %arg11: memref<1x512x128xbf16, #tpu.memory_space<vmem>>) attributes {dimension_semantics = [#tpu.dimension_semantics<parallel>, #tpu.dimension_semantics<parallel>], iteration_bounds = array<i64: 2, 2>, scalar_prefetch = 0 : i64, scratch_operands = 0 : i64, tpu.core_type = #tpu.core_type<tc>, window_params = [{transform_indices = @transform_0, window_bounds = array<i64: 1, 128, 512>}, {transform_indices = @transform_1, window_bounds = array<i64: 1, 128, 1>}, {transform_indices = @transform_2, window_bounds = array<i64: 1, 128, 1>}, {pipeline_mode = #tpu.pipeline_mode<synchronous>, transform_indices = @transform_3, window_bounds = array<i64: 128, 256>}, {pipeline_mode = #tpu.pipeline_mode<synchronous>, transform_indices = @transform_4, window_bounds = array<i64: 1, 256>}, {pipeline_mode = #tpu.pipeline_mode<synchronous>, transform_indices = @transform_5, window_bounds = array<i64: 128, 128>}, {pipeline_mode = #tpu.pipeline_mode<synchronous>, transform_indices = @transform_6, window_bounds = array<i64: 128, 1>}, {transform_indices = @transform_7, window_bounds = array<i64: 1, 512, 128>}, {transform_indices = @transform_8, window_bounds = array<i64: 1, 128, 512>}, {transform_indices = @transform_9, window_bounds = array<i64: 1, 512, 128>}]} {
    %c0 = arith.constant 0 : index
    %c0_0 = arith.constant 0 : index
    %c0_1 = arith.constant 0 : index
    %0 = vector.load %arg2[%c0, %c0_0, %c0_1] : memref<1x128x512xf32, #tpu.memory_space<vmem>>, vector<1x128x512xf32>
    %1 = vector.shape_cast %0 : vector<1x128x512xf32> to vector<128x512xf32>
    %c0_2 = arith.constant 0 : index
    %c0_3 = arith.constant 0 : index
    %c0_4 = arith.constant 0 : index
    %2 = vector.load %arg3[%c0_2, %c0_3, %c0_4] : memref<1x128x1xf32, #tpu.memory_space<vmem>>, vector<1x128x1xf32>
    %3 = vector.shape_cast %2 : vector<1x128x1xf32> to vector<128x1xf32>
    %4 = vector.broadcast %3 : vector<128x1xf32> to vector<128x512xf32>
    %5 = arith.mulf %1, %4 : vector<128x512xf32>
    %c0_5 = arith.constant 0 : index
    %c0_6 = arith.constant 0 : index
    %c0_7 = arith.constant 0 : index
    %6 = vector.load %arg4[%c0_5, %c0_6, %c0_7] : memref<1x128x1xf32, #tpu.memory_space<vmem>>, vector<1x128x1xf32>
    %7 = vector.shape_cast %6 : vector<1x128x1xf32> to vector<128x1xf32>
    %8 = vector.broadcast %7 : vector<128x1xf32> to vector<128x512xf32>
    %9 = arith.addf %5, %8 : vector<128x512xf32>
    %10 = arith.truncf %9 : vector<128x512xf32> to vector<128x512xbf16>
    %c0_8 = arith.constant 0 : index
    %c0_9 = arith.constant 0 : index
    %11 = vector.load %arg7[%c0_8, %c0_9] : memref<128x128xbf16, #tpu.memory_space<vmem>>, vector<128x128xbf16>
    %cst = arith.constant dense<0.000000e+00> : vector<128x512xf32>
    %12 = tpu.matmul %11, %10, %cst {dimension_numbers = #tpu.dot_dimension_numbers<[1], [0], [0], [1], [0, 0, 1, 1], [], []>} : vector<128x128xbf16>, vector<128x512xbf16>, vector<128x512xf32> -> vector<128x512xf32>
    %c0_10 = arith.constant 0 : index
    %c0_11 = arith.constant 0 : index
    %13 = vector.load %arg8[%c0_10, %c0_11] : memref<128x1xf32, #tpu.memory_space<vmem>>, vector<128x1xf32>
    %14 = vector.broadcast %13 : vector<128x1xf32> to vector<128x512xf32>
    %15 = arith.addf %12, %14 : vector<128x512xf32>
    %16 = arith.truncf %15 : vector<128x512xf32> to vector<128x512xbf16>
    %c0_12 = arith.constant 0 : index
    %c0_13 = arith.constant 0 : index
    %c0_14 = arith.constant 0 : index
    %17 = vector.load %arg10[%c0_12, %c0_13, %c0_14] : memref<1x128x512xbf16, #tpu.memory_space<vmem>>, vector<1x128x512xbf16>
    %18 = vector.shape_cast %17 : vector<1x128x512xbf16> to vector<128x512xbf16>
    %19 = vector.shape_cast %16 : vector<128x512xbf16> to vector<1x128x512xbf16>
    tpu.vector_store %arg10[%c0_12, %c0_13, %c0_14], %19 {strides = array<i32>} : memref<1x128x512xbf16, #tpu.memory_space<vmem>>, vector<1x128x512xbf16>,
    %20 = tpu.transpose %9, [1, 0] : vector<128x512xf32> -> vector<512x128xf32>
    %21 = arith.truncf %20 : vector<512x128xf32> to vector<512x128xbf16>
    %c0_15 = arith.constant 0 : index
    %c0_16 = arith.constant 0 : index
    %22 = vector.load %arg5[%c0_15, %c0_16] : memref<128x256xbf16, #tpu.memory_space<vmem>>, vector<128x256xbf16>
    %cst_17 = arith.constant dense<0.000000e+00> : vector<512x256xf32>
    %23 = tpu.matmul %21, %22, %cst_17 {dimension_numbers = #tpu.dot_dimension_numbers<[1], [0], [0], [1], [0, 0, 1, 1], [], []>} : vector<512x128xbf16>, vector<128x256xbf16>, vector<512x256xf32> -> vector<512x256xf32>
    %c0_18 = arith.constant 0 : index
    %c0_19 = arith.constant 0 : index
    %24 = vector.load %arg6[%c0_18, %c0_19] : memref<1x256xf32, #tpu.memory_space<vmem>>, vector<1x256xf32>
    %25 = vector.broadcast %24 : vector<1x256xf32> to vector<512x256xf32>
    %26 = arith.addf %23, %25 : vector<512x256xf32>
    %27 = arith.truncf %26 : vector<512x256xf32> to vector<512x256xbf16>
    %28 = vector.extract_strided_slice %27 {offsets = [0, 0], sizes = [512, 128], strides = [1, 1]} : vector<512x256xbf16> to vector<512x128xbf16>
    %c0_20 = arith.constant 0 : index
    %c0_21 = arith.constant 0 : index
    %c0_22 = arith.constant 0 : index
    %29 = vector.load %arg9[%c0_20, %c0_21, %c0_22] : memref<1x512x128xbf16, #tpu.memory_space<vmem>>, vector<1x512x128xbf16>
    %30 = vector.shape_cast %29 : vector<1x512x128xbf16> to vector<512x128xbf16>
    %31 = vector.shape_cast %28 : vector<512x128xbf16> to vector<1x512x128xbf16>
    tpu.vector_store %arg9[%c0_20, %c0_21, %c0_22], %31 {strides = array<i32>} : memref<1x512x128xbf16, #tpu.memory_space<vmem>>, vector<1x512x128xbf16>,
    %32 = vector.extract_strided_slice %27 {offsets = [0, 128], sizes = [512, 128], strides = [1, 1]} : vector<512x256xbf16> to vector<512x128xbf16>
    %c0_23 = arith.constant 0 : index
    %c0_24 = arith.constant 0 : index
    %c0_25 = arith.constant 0 : index
    %33 = vector.load %arg11[%c0_23, %c0_24, %c0_25] : memref<1x512x128xbf16, #tpu.memory_space<vmem>>, vector<1x512x128xbf16>
    %34 = vector.shape_cast %33 : vector<1x512x128xbf16> to vector<512x128xbf16>
    %35 = vector.shape_cast %32 : vector<512x128xbf16> to vector<1x512x128xbf16>
    tpu.vector_store %arg11[%c0_23, %c0_24, %c0_25], %35 {strides = array<i32>} : memref<1x512x128xbf16, #tpu.memory_space<vmem>>, vector<1x512x128xbf16>,
    return
  }
  func.func @transform_0(%arg0: i32, %arg1: i32) -> (i32, i32, i32) {
    %c0_i32 = arith.constant 0 : i32
    %c0_i32_0 = arith.constant 0 : i32
    return %arg0, %c0_i32, %arg1 : i32, i32, i32
  }
  func.func @transform_1(%arg0: i32, %arg1: i32) -> (i32, i32, i32) {
    %c0_i32 = arith.constant 0 : i32
    %c0_i32_0 = arith.constant 0 : i32
    %c0_i32_1 = arith.constant 0 : i32
    return %arg0, %c0_i32, %c0_i32_0 : i32, i32, i32
  }
  func.func @transform_2(%arg0: i32, %arg1: i32) -> (i32, i32, i32) {
    %c0_i32 = arith.constant 0 : i32
    %c0_i32_0 = arith.constant 0 : i32
    %c0_i32_1 = arith.constant 0 : i32
    return %arg0, %c0_i32, %c0_i32_0 : i32, i32, i32
  }
  func.func @transform_3(%arg0: i32, %arg1: i32) -> (i32, i32) {
    %c0_i32 = arith.constant 0 : i32
    %c0_i32_0 = arith.constant 0 : i32
    %c0_i32_1 = arith.constant 0 : i32
    return %c0_i32, %c0_i32_0 : i32, i32
  }
  func.func @transform_4(%arg0: i32, %arg1: i32) -> (i32, i32) {
    %c0_i32 = arith.constant 0 : i32
    %c0_i32_0 = arith.constant 0 : i32
    %c0_i32_1 = arith.constant 0 : i32
    return %c0_i32, %c0_i32_0 : i32, i32
  }
  func.func @transform_5(%arg0: i32, %arg1: i32) -> (i32, i32) {
    %c0_i32 = arith.constant 0 : i32
    %c0_i32_0 = arith.constant 0 : i32
    %c0_i32_1 = arith.constant 0 : i32
    return %c0_i32, %c0_i32_0 : i32, i32
  }
  func.func @transform_6(%arg0: i32, %arg1: i32) -> (i32, i32) {
    %c0_i32 = arith.constant 0 : i32
    %c0_i32_0 = arith.constant 0 : i32
    %c0_i32_1 = arith.constant 0 : i32
    return %c0_i32, %c0_i32_0 : i32, i32
  }
  func.func @transform_7(%arg0: i32, %arg1: i32) -> (i32, i32, i32) {
    %c0_i32 = arith.constant 0 : i32
    %c0_i32_0 = arith.constant 0 : i32
    return %arg0, %arg1, %c0_i32 : i32, i32, i32
  }
  func.func @transform_8(%arg0: i32, %arg1: i32) -> (i32, i32, i32) {
    %c0_i32 = arith.constant 0 : i32
    %c0_i32_0 = arith.constant 0 : i32
    return %arg0, %c0_i32, %arg1 : i32, i32, i32
  }
  func.func @transform_9(%arg0: i32, %arg1: i32) -> (i32, i32, i32) {
    %c0_i32 = arith.constant 0 : i32
    %c0_i32_0 = arith.constant 0 : i32
    return %arg0, %arg1, %c0_i32 : i32, i32, i32
  }
}

module attributes {stable_mosaic.version = 11 : i64} {
  func.func @flash_attn_proj_kernel(%arg0: i32, %arg1: i32, %arg2: i32, %arg3: memref<1x128x512xf32, #tpu.memory_space<vmem>>, %arg4: memref<1x512x128xbf16, #tpu.memory_space<vmem>>, %arg5: memref<1x128x512xbf16, #tpu.memory_space<vmem>>, %arg6: memref<1x512x128xbf16, #tpu.memory_space<vmem>>, %arg7: memref<128x128xbf16, #tpu.memory_space<vmem>>, %arg8: memref<128x1xf32, #tpu.memory_space<vmem>>, %arg9: memref<1x128x512xf32, #tpu.memory_space<vmem>>, %arg10: memref<512x128xf32, #tpu.memory_space<vmem>>, %arg11: memref<512x128xf32, #tpu.memory_space<vmem>>, %arg12: memref<512x128xf32, #tpu.memory_space<vmem>>) attributes {dimension_semantics = [#tpu.dimension_semantics<parallel>, #tpu.dimension_semantics<parallel>, #tpu.dimension_semantics<arbitrary>], iteration_bounds = array<i64: 2, 2, 2>, scalar_prefetch = 0 : i64, scratch_operands = 3 : i64, tpu.core_type = #tpu.core_type<tc>, window_params = [{transform_indices = @transform_0, window_bounds = array<i64: 1, 128, 512>}, {transform_indices = @transform_1, window_bounds = array<i64: 1, 512, 128>}, {transform_indices = @transform_2, window_bounds = array<i64: 1, 128, 512>}, {transform_indices = @transform_3, window_bounds = array<i64: 1, 512, 128>}, {pipeline_mode = #tpu.pipeline_mode<synchronous>, transform_indices = @transform_4, window_bounds = array<i64: 128, 128>}, {pipeline_mode = #tpu.pipeline_mode<synchronous>, transform_indices = @transform_5, window_bounds = array<i64: 128, 1>}, {transform_indices = @transform_6, window_bounds = array<i64: 1, 128, 512>}]} {
    %c0_i32 = arith.constant 0 : i32
    %0 = arith.cmpi eq, %arg2, %c0_i32 : i32
    %1 = arith.extui %0 : i1 to i32
    %c0_i32_0 = arith.constant 0 : i32
    %2 = arith.cmpi ne, %1, %c0_i32_0 : i32
    scf.if %2 {
      %cst_25 = arith.constant 0xFF800000 : f32
      %37 = vector.broadcast %cst_25 : f32 to vector<512x128xf32>
      %c0_26 = arith.constant 0 : index
      %c0_27 = arith.constant 0 : index
      %38 = vector.load %arg10[%c0_26, %c0_27] : memref<512x128xf32, #tpu.memory_space<vmem>>, vector<512x128xf32>
      tpu.vector_store %arg10[%c0_26, %c0_27], %37 {strides = array<i32>} : memref<512x128xf32, #tpu.memory_space<vmem>>, vector<512x128xf32>,
      %cst_28 = arith.constant 0.000000e+00 : f32
      %39 = vector.broadcast %cst_28 : f32 to vector<512x128xf32>
      %c0_29 = arith.constant 0 : index
      %c0_30 = arith.constant 0 : index
      %40 = vector.load %arg11[%c0_29, %c0_30] : memref<512x128xf32, #tpu.memory_space<vmem>>, vector<512x128xf32>
      tpu.vector_store %arg11[%c0_29, %c0_30], %39 {strides = array<i32>} : memref<512x128xf32, #tpu.memory_space<vmem>>, vector<512x128xf32>,
      %cst_31 = arith.constant 0.000000e+00 : f32
      %41 = vector.broadcast %cst_31 : f32 to vector<512x128xf32>
      %c0_32 = arith.constant 0 : index
      %c0_33 = arith.constant 0 : index
      %42 = vector.load %arg12[%c0_32, %c0_33] : memref<512x128xf32, #tpu.memory_space<vmem>>, vector<512x128xf32>
      tpu.vector_store %arg12[%c0_32, %c0_33], %41 {strides = array<i32>} : memref<512x128xf32, #tpu.memory_space<vmem>>, vector<512x128xf32>,
    } else {
    }
    %c0 = arith.constant 0 : index
    %c0_1 = arith.constant 0 : index
    %c0_2 = arith.constant 0 : index
    %3 = vector.load %arg4[%c0, %c0_1, %c0_2] : memref<1x512x128xbf16, #tpu.memory_space<vmem>>, vector<1x512x128xbf16>
    %4 = vector.shape_cast %3 : vector<1x512x128xbf16> to vector<512x128xbf16>
    %c0_3 = arith.constant 0 : index
    %c0_4 = arith.constant 0 : index
    %c0_5 = arith.constant 0 : index
    %5 = vector.load %arg5[%c0_3, %c0_4, %c0_5] : memref<1x128x512xbf16, #tpu.memory_space<vmem>>, vector<1x128x512xbf16>
    %6 = vector.shape_cast %5 : vector<1x128x512xbf16> to vector<128x512xbf16>
    %c0_6 = arith.constant 0 : index
    %c0_7 = arith.constant 0 : index
    %c0_8 = arith.constant 0 : index
    %7 = vector.load %arg6[%c0_6, %c0_7, %c0_8] : memref<1x512x128xbf16, #tpu.memory_space<vmem>>, vector<1x512x128xbf16>
    %8 = vector.shape_cast %7 : vector<1x512x128xbf16> to vector<512x128xbf16>
    %cst = arith.constant dense<0.000000e+00> : vector<512x512xf32>
    %9 = tpu.matmul %4, %6, %cst {dimension_numbers = #tpu.dot_dimension_numbers<[1], [0], [0], [1], [0, 0, 1, 1], [], []>} : vector<512x128xbf16>, vector<128x512xbf16>, vector<512x512xf32> -> vector<512x512xf32>
    %c0_9 = arith.constant 0 : index
    %c0_10 = arith.constant 0 : index
    %10 = vector.load %arg10[%c0_9, %c0_10] : memref<512x128xf32, #tpu.memory_space<vmem>>, vector<512x128xf32>
    %cst_11 = arith.constant dense<0xFF800000> : vector<512xf32>
    %11 = vector.multi_reduction <maximumf>, %9, %cst_11 [1] : vector<512x512xf32> to vector<512xf32>
    %12 = vector.shape_cast %11 : vector<512xf32> to vector<512x1xf32>
    %13 = vector.broadcast %12 : vector<512x1xf32> to vector<512x128xf32>
    %14 = arith.maximumf %10, %13 : vector<512x128xf32>
    %15 = arith.subf %10, %14 : vector<512x128xf32>
    %16 = math.exp %15 : vector<512x128xf32>
    %17 = tpu.concatenate %14, %14, %14, %14 in 1 : vector<512x128xf32>, vector<512x128xf32>, vector<512x128xf32>, vector<512x128xf32> -> vector<512x512xf32>
    %18 = arith.subf %9, %17 : vector<512x512xf32>
    %19 = math.exp %18 : vector<512x512xf32>
    %c0_12 = arith.constant 0 : index
    %c0_13 = arith.constant 0 : index
    %20 = vector.load %arg11[%c0_12, %c0_13] : memref<512x128xf32, #tpu.memory_space<vmem>>, vector<512x128xf32>
    %21 = arith.mulf %16, %20 : vector<512x128xf32>
    %cst_14 = arith.constant dense<0.000000e+00> : vector<512xf32>
    %22 = vector.multi_reduction <add>, %19, %cst_14 [1] : vector<512x512xf32> to vector<512xf32>
    %23 = vector.shape_cast %22 : vector<512xf32> to vector<512x1xf32>
    %24 = vector.broadcast %23 : vector<512x1xf32> to vector<512x128xf32>
    %25 = arith.addf %21, %24 : vector<512x128xf32>
    %c0_15 = arith.constant 0 : index
    %c0_16 = arith.constant 0 : index
    %26 = vector.load %arg11[%c0_15, %c0_16] : memref<512x128xf32, #tpu.memory_space<vmem>>, vector<512x128xf32>
    tpu.vector_store %arg11[%c0_15, %c0_16], %25 {strides = array<i32>} : memref<512x128xf32, #tpu.memory_space<vmem>>, vector<512x128xf32>,
    %c0_17 = arith.constant 0 : index
    %c0_18 = arith.constant 0 : index
    %27 = vector.load %arg12[%c0_17, %c0_18] : memref<512x128xf32, #tpu.memory_space<vmem>>, vector<512x128xf32>
    %28 = arith.mulf %27, %16 : vector<512x128xf32>
    %29 = arith.truncf %19 : vector<512x512xf32> to vector<512x512xbf16>
    %cst_19 = arith.constant dense<0.000000e+00> : vector<512x128xf32>
    %30 = tpu.matmul %29, %8, %cst_19 {dimension_numbers = #tpu.dot_dimension_numbers<[1], [0], [0], [1], [0, 0, 1, 1], [], []>} : vector<512x512xbf16>, vector<512x128xbf16>, vector<512x128xf32> -> vector<512x128xf32>
    %31 = arith.addf %28, %30 : vector<512x128xf32>
    %c0_20 = arith.constant 0 : index
    %c0_21 = arith.constant 0 : index
    %32 = vector.load %arg12[%c0_20, %c0_21] : memref<512x128xf32, #tpu.memory_space<vmem>>, vector<512x128xf32>
    tpu.vector_store %arg12[%c0_20, %c0_21], %31 {strides = array<i32>} : memref<512x128xf32, #tpu.memory_space<vmem>>, vector<512x128xf32>,
    %c0_22 = arith.constant 0 : index
    %c0_23 = arith.constant 0 : index
    %33 = vector.load %arg10[%c0_22, %c0_23] : memref<512x128xf32, #tpu.memory_space<vmem>>, vector<512x128xf32>
    tpu.vector_store %arg10[%c0_22, %c0_23], %14 {strides = array<i32>} : memref<512x128xf32, #tpu.memory_space<vmem>>, vector<512x128xf32>,
    %c1_i32 = arith.constant 1 : i32
    %34 = arith.cmpi eq, %arg2, %c1_i32 : i32
    %35 = arith.extui %34 : i1 to i32
    %c0_i32_24 = arith.constant 0 : i32
    %36 = arith.cmpi ne, %35, %c0_i32_24 : i32
    scf.if %36 {
      %c0_25 = arith.constant 0 : index
      %c0_26 = arith.constant 0 : index
      %37 = vector.load %arg11[%c0_25, %c0_26] : memref<512x128xf32, #tpu.memory_space<vmem>>, vector<512x128xf32>
      %38 = tpu.reciprocal %37 {approx = true} : vector<512x128xf32> -> vector<512x128xf32>
      %c0_27 = arith.constant 0 : index
      %c0_28 = arith.constant 0 : index
      %39 = vector.load %arg12[%c0_27, %c0_28] : memref<512x128xf32, #tpu.memory_space<vmem>>, vector<512x128xf32>
      %40 = arith.mulf %39, %38 : vector<512x128xf32>
      %41 = tpu.transpose %40, [1, 0] : vector<512x128xf32> -> vector<128x512xf32>
      %42 = arith.truncf %41 : vector<128x512xf32> to vector<128x512xbf16>
      %c0_29 = arith.constant 0 : index
      %c0_30 = arith.constant 0 : index
      %43 = vector.load %arg7[%c0_29, %c0_30] : memref<128x128xbf16, #tpu.memory_space<vmem>>, vector<128x128xbf16>
      %cst_31 = arith.constant dense<0.000000e+00> : vector<128x512xf32>
      %44 = tpu.matmul %43, %42, %cst_31 {dimension_numbers = #tpu.dot_dimension_numbers<[1], [0], [0], [1], [0, 0, 1, 1], [], []>} : vector<128x128xbf16>, vector<128x512xbf16>, vector<128x512xf32> -> vector<128x512xf32>
      %c0_32 = arith.constant 0 : index
      %c0_33 = arith.constant 0 : index
      %c0_34 = arith.constant 0 : index
      %45 = vector.load %arg3[%c0_32, %c0_33, %c0_34] : memref<1x128x512xf32, #tpu.memory_space<vmem>>, vector<1x128x512xf32>
      %46 = vector.shape_cast %45 : vector<1x128x512xf32> to vector<128x512xf32>
      %47 = arith.addf %46, %44 : vector<128x512xf32>
      %c0_35 = arith.constant 0 : index
      %c0_36 = arith.constant 0 : index
      %48 = vector.load %arg8[%c0_35, %c0_36] : memref<128x1xf32, #tpu.memory_space<vmem>>, vector<128x1xf32>
      %49 = vector.broadcast %48 : vector<128x1xf32> to vector<128x512xf32>
      %50 = arith.addf %47, %49 : vector<128x512xf32>
      %c0_37 = arith.constant 0 : index
      %c0_38 = arith.constant 0 : index
      %c0_39 = arith.constant 0 : index
      %51 = vector.load %arg9[%c0_37, %c0_38, %c0_39] : memref<1x128x512xf32, #tpu.memory_space<vmem>>, vector<1x128x512xf32>
      %52 = vector.shape_cast %51 : vector<1x128x512xf32> to vector<128x512xf32>
      %53 = vector.shape_cast %50 : vector<128x512xf32> to vector<1x128x512xf32>
      tpu.vector_store %arg9[%c0_37, %c0_38, %c0_39], %53 {strides = array<i32>} : memref<1x128x512xf32, #tpu.memory_space<vmem>>, vector<1x128x512xf32>,
    } else {
    }
    return
  }
  func.func @transform_0(%arg0: i32, %arg1: i32, %arg2: i32) -> (i32, i32, i32) {
    %c0_i32 = arith.constant 0 : i32
    %c0_i32_0 = arith.constant 0 : i32
    return %arg0, %c0_i32, %arg1 : i32, i32, i32
  }
  func.func @transform_1(%arg0: i32, %arg1: i32, %arg2: i32) -> (i32, i32, i32) {
    %c0_i32 = arith.constant 0 : i32
    %c0_i32_0 = arith.constant 0 : i32
    return %arg0, %arg1, %c0_i32 : i32, i32, i32
  }
  func.func @transform_2(%arg0: i32, %arg1: i32, %arg2: i32) -> (i32, i32, i32) {
    %c0_i32 = arith.constant 0 : i32
    %c0_i32_0 = arith.constant 0 : i32
    return %arg0, %c0_i32, %arg2 : i32, i32, i32
  }
  func.func @transform_3(%arg0: i32, %arg1: i32, %arg2: i32) -> (i32, i32, i32) {
    %c0_i32 = arith.constant 0 : i32
    %c0_i32_0 = arith.constant 0 : i32
    return %arg0, %arg2, %c0_i32 : i32, i32, i32
  }
  func.func @transform_4(%arg0: i32, %arg1: i32, %arg2: i32) -> (i32, i32) {
    %c0_i32 = arith.constant 0 : i32
    %c0_i32_0 = arith.constant 0 : i32
    %c0_i32_1 = arith.constant 0 : i32
    return %c0_i32, %c0_i32_0 : i32, i32
  }
  func.func @transform_5(%arg0: i32, %arg1: i32, %arg2: i32) -> (i32, i32) {
    %c0_i32 = arith.constant 0 : i32
    %c0_i32_0 = arith.constant 0 : i32
    %c0_i32_1 = arith.constant 0 : i32
    return %c0_i32, %c0_i32_0 : i32, i32
  }
  func.func @transform_6(%arg0: i32, %arg1: i32, %arg2: i32) -> (i32, i32, i32) {
    %c0_i32 = arith.constant 0 : i32
    %c0_i32_0 = arith.constant 0 : i32
    return %arg0, %c0_i32, %arg1 : i32, i32, i32
  }
}

</mosaic_0001>

<llo_original>
// kernel: attn_block_forward.3
$region0: #{attn_block_forward.3}
  #allocation0 [shape = 'u32[]', space=smem, size = 0x4, offset = 0x4, fixed_abs, tag = 'smem constant byte address 0x4 - core index']
  #allocation1 [shape = 'u32[144,128]{1,0:T(1,128)}', space=vmem, size = 0x12000, scoped, tag = 'internal scratch']
  %s0 = inlined_call_operand.vmem [shape: f32[2,128,1024], index: 0, kind: input, shape index: {}]
  %s1 = inlined_call_operand.vmem [shape: f32[2,128,1], index: 1, kind: output, shape index: {0}]
  %s2 = inlined_call_operand.vmem [shape: f32[2,128,1], index: 2, kind: output, shape index: {1}]
  %3 = xla_tuple %s1, %s2
  %s4 = sld [smem:[#allocation0]]
  $region72: #{attn_block_forward.3} parent=0
    _
  %s6 = ssub.s32 1, %s4
  %s7 = scalar_select 0, %s6, %s4
  $region1: #{attn_block_forward.3} parent=0
    #allocation2 [shape = 'u8[524288]{0}', space=vmem, size = 0x80000, scoped, tag = 'input window, operand 0']
    loop: start=0, step=1, limit=6
    $region2: #{attn_block_forward.3} parent=1 // loop_pre_header
      _
    $region3: #{attn_block_forward.3} parent=1 // loop_header
      %s9 = sphi 0, %s13
      %p10 = scmp.ge.s32.totalorder %s9, 6
      %s16 = sphi 0, %s28
      %s17 = sphi 0, %s24
      %s18 = sphi 0, %s16
      %s19 = sphi 0, %s17
      %s20 = sphi 0, %s18
      %s21 = sphi 0, %s19
      %s33 = sphi 0, %s35
      %s36 = sphi 0, %s33
      %s37 = sphi 0, %s36
      %s53 = sphi 0, %s37
      %s59 = sphi 0, %s61
      %s62 = sphi 0, %s59
      %s63 = sphi 0, %s62
      %s79 = sphi 0, %s63
      %s85 = sphi 0, %s87
      %s88 = sphi 0, %s85
      %s89 = sphi 0, %s88
      %s105 = sphi 0, %s89
    $region4: #{attn_block_forward.3} parent=1 // loop_header_branch
      %12 = sbr.rel (%p10) target = $region8
    $region5: #{attn_block_forward.3} parent=1 // loop_body
      %s14 = ssub.s32 %s9, 1
      %s15 = ssub.s32 %s9, 2
      %s22 = sadd.s32 1, %s17
      %p23 = scmp.ge.s32.totalorder %s22, 2
      %s24 = scalar_select %p23, 0, %s22
      %s25 = sadd.s32 1, %s16
      %s26 = scalar_select %p23, %s25, %s16
      %p27 = scmp.ge.s32.totalorder %s26, 2
      %s28 = scalar_select %p27, 0, %s26
      %s29 = ssub.s32 %s16, %s28
      %s30 = ssub.s32 %s17, %s24
      %s31 = sor.u32 %s29, %s30
      %p32 = scmp.eq.s32.totalorder %s31, 0
      %s34 = sadd.s32 %s33, 1
      %s35 = scalar_select %p32, %s33, %s34
      %p38 = pneg %p32
      %p39 = scmp.eq.s32.totalorder %s9, 3
      %p40 = por %p38, %p39
      %p41 = scmp.ne.s32.totalorder %s33, %s36
      %p42 = scmp.eq.s32.totalorder %s9, 0
      %p43 = por %p41, %p42
      %p44 = scmp.ne.s32.totalorder %s33, %s36
      %p45 = scmp.eq.s32.totalorder %s14, 3
      %p46 = por %p44, %p45
      %p47 = scmp.ne.s32.totalorder %s36, %s37
      %p48 = scmp.eq.s32.totalorder %s14, 0
      %p49 = por %p47, %p48
      %p50 = scmp.ne.s32.totalorder %s36, %s37
      %p51 = scmp.eq.s32.totalorder %s15, 3
      %p52 = por %p50, %p51
      %p54 = scmp.ne.s32.totalorder %s37, %s53
      %p55 = scmp.eq.s32.totalorder %s15, 0
      %p56 = por %p54, %p55
      %s57 = ssub.s32 %s16, %s28
      %p58 = scmp.eq.s32.totalorder %s57, 0
      %s60 = sadd.s32 %s59, 1
      %s61 = scalar_select %p58, %s59, %s60
      %p64 = pneg %p58
      %p65 = scmp.eq.s32.totalorder %s9, 3
      %p66 = por %p64, %p65
      %p67 = scmp.ne.s32.totalorder %s59, %s62
      %p68 = scmp.eq.s32.totalorder %s9, 0
      %p69 = por %p67, %p68
      %p70 = scmp.ne.s32.totalorder %s59, %s62
      %p71 = scmp.eq.s32.totalorder %s14, 3
      %p72 = por %p70, %p71
      %p73 = scmp.ne.s32.totalorder %s62, %s63
      %p74 = scmp.eq.s32.totalorder %s14, 0
      %p75 = por %p73, %p74
      %p76 = scmp.ne.s32.totalorder %s62, %s63
      %p77 = scmp.eq.s32.totalorder %s15, 3
      %p78 = por %p76, %p77
      %p80 = scmp.ne.s32.totalorder %s63, %s79
      %p81 = scmp.eq.s32.totalorder %s15, 0
      %p82 = por %p80, %p81
      %s83 = ssub.s32 %s16, %s28
      %p84 = scmp.eq.s32.totalorder %s83, 0
      %s86 = sadd.s32 %s85, 1
      %s87 = scalar_select %p84, %s85, %s86
      %p90 = pneg %p84
      %p91 = scmp.eq.s32.totalorder %s9, 3
      %p92 = por %p90, %p91
      %p93 = scmp.ne.s32.totalorder %s85, %s88
      %p94 = scmp.eq.s32.totalorder %s9, 0
      %p95 = por %p93, %p94
      %p96 = scmp.ne.s32.totalorder %s85, %s88
      %p97 = scmp.eq.s32.totalorder %s14, 3
      %p98 = por %p96, %p97
      %p99 = scmp.ne.s32.totalorder %s88, %s89
      %p100 = scmp.eq.s32.totalorder %s14, 0
      %p101 = por %p99, %p100
      %p102 = scmp.ne.s32.totalorder %s88, %s89
      %p103 = scmp.eq.s32.totalorder %s15, 3
      %p104 = por %p102, %p103
      %p106 = scmp.ne.s32.totalorder %s89, %s105
      %p107 = scmp.eq.s32.totalorder %s15, 0
      %p108 = por %p106, %p107
      %p109 = scmp.le.s32.totalorder 1, %s9
      %p110 = scmp.lt.s32.totalorder %s9, 5
      %p111 = pnand %p109, %p110
      %p112 = pneg %p111
      // Predicated region
      $region9: #{attn_block_forward.3} parent=5 // pred_check
        _
      $region10: #{attn_block_forward.3} parent=5 // pred_check_branch
        %114 = sbr.rel (%p111) target = $region12
      $region11: #{attn_block_forward.3} parent=5 // pred_region
        %s115 = ssub.s32 %s9, 1
      $region12: #{attn_block_forward.3} parent=5 // pred_fallthru
        _
      %p116 = scmp.lt.s32.totalorder %s9, 4
      // Predicated region
      $region13: #{attn_block_forward.3} parent=5 // pred_check
        %p117 = pneg %p116
      $region14: #{attn_block_forward.3} parent=5 // pred_check_branch
        %119 = sbr.rel (%p117) target = $region16
      $region15: #{attn_block_forward.3} parent=5 // pred_region
        // Predicated region
        $region17: #{attn_block_forward.3} parent=15 // pred_check
          %p120 = pneg %p43
        $region18: #{attn_block_forward.3} parent=15 // pred_check_branch
          %122 = sbr.rel (%p120) target = $region20
        $region19: #{attn_block_forward.3} parent=15 // pred_region
          %s123 = sand.u32 %s33, 1
          %s124 = sand.u32 %s33, 1
          %s125 = smul.addr %s124, 512
          %s126 = scalar_lea.vmem [#allocation2], %s125
          %s127 = smul.u32 4, %s17
          %s128 = smul.addr %s16, 128
          %s129 = sadd.s32 %s127, %s128
          %s130 = smul.addr %s129, 8
          %s131 = scalar_lea.vmem %s0, %s130
          // Predicated region
          $region21: #{attn_block_forward.3} parent=19 // pred_check
            _
          $region22: #{attn_block_forward.3} parent=19 // pred_check_branch
            %133 = sbr.rel (0) target = $region24
          $region23: #{attn_block_forward.3} parent=19 // pred_region
            // Predicated region
            $region25: #{attn_block_forward.3} parent=23 // pred_check
              _
            $region26: #{attn_block_forward.3} parent=23 // pred_check_branch
              %135 = sbr.rel (0) target = $region28
            $region27: #{attn_block_forward.3} parent=23 // pred_region
              loop: start=0, step=1, limit=1
              $region29: #{attn_block_forward.3} parent=27 // loop_pre_header
                _
              $region30: #{attn_block_forward.3} parent=27 // loop_header
                %s137 = sphi 0, %s141
                %p138 = scmp.ge.s32.totalorder %s137, 1
                %s142 = sphi %s131, %s131
                %s143 = sphi %s126, %s126
              $region31: #{attn_block_forward.3} parent=27 // loop_header_branch
                %140 = sbr.rel (%p138) target = $region35
              $region32: #{attn_block_forward.3} parent=27 // loop_body
                %v144 = vld [vmem:[%s142] sm:$0xff]
                %145 = vst [vmem:[%s143] sm:$0xff] %v144
                %v146 = vld [vmem:[%s142 + $0x8] sm:$0xff]
                %147 = vst [vmem:[%s143 + $0x8] sm:$0xff] %v146
                %v148 = vld [vmem:[%s142 + $0x10] sm:$0xff]
                %149 = vst [vmem:[%s143 + $0x10] sm:$0xff] %v148
                %v150 = vld [vmem:[%s142 + $0x18] sm:$0xff]
                %151 = vst [vmem:[%s143 + $0x18] sm:$0xff] %v150
                %v152 = vld [vmem:[%s142 + $0x40] sm:$0xff]
                %153 = vst [vmem:[%s143 + $0x20] sm:$0xff] %v152
                %v154 = vld [vmem:[%s142 + $0x48] sm:$0xff]
                %155 = vst [vmem:[%s143 + $0x28] sm:$0xff] %v154
                %v156 = vld [vmem:[%s142 + $0x50] sm:$0xff]
                %157 = vst [vmem:[%s143 + $0x30] sm:$0xff] %v156
                %v158 = vld [vmem:[%s142 + $0x58] sm:$0xff]
                %159 = vst [vmem:[%s143 + $0x38] sm:$0xff] %v158
                %v160 = vld [vmem:[%s142 + $0x80] sm:$0xff]
                %161 = vst [vmem:[%s143 + $0x40] sm:$0xff] %v160
                %v162 = vld [vmem:[%s142 + $0x88] sm:$0xff]
                %163 = vst [vmem:[%s143 + $0x48] sm:$0xff] %v162
                %v164 = vld [vmem:[%s142 + $0x90] sm:$0xff]
                %165 = vst [vmem:[%s143 + $0x50] sm:$0xff] %v164
                %v166 = vld [vmem:[%s142 + $0x98] sm:$0xff]
                %167 = vst [vmem:[%s143 + $0x58] sm:$0xff] %v166
                %v168 = vld [vmem:[%s142 + $0xc0] sm:$0xff]
                %169 = vst [vmem:[%s143 + $0x60] sm:$0xff] %v168
                %v170 = vld [vmem:[%s142 + $0xc8] sm:$0xff]
                %171 = vst [vmem:[%s143 + $0x68] sm:$0xff] %v170
                %v172 = vld [vmem:[%s142 + $0xd0] sm:$0xff]
                %173 = vst [vmem:[%s143 + $0x70] sm:$0xff] %v172
                %v174 = vld [vmem:[%s142 + $0xd8] sm:$0xff]
                %175 = vst [vmem:[%s143 + $0x78] sm:$0xff] %v174
                %v176 = vld [vmem:[%s142 + $0x100] sm:$0xff]
                %177 = vst [vmem:[%s143 + $0x80] sm:$0xff] %v176
                %v178 = vld [vmem:[%s142 + $0x108] sm:$0xff]
                %179 = vst [vmem:[%s143 + $0x88] sm:$0xff] %v178
                %v180 = vld [vmem:[%s142 + $0x110] sm:$0xff]
                %181 = vst [vmem:[%s143 + $0x90] sm:$0xff] %v180
                %v182 = vld [vmem:[%s142 + $0x118] sm:$0xff]
                %183 = vst [vmem:[%s143 + $0x98] sm:$0xff] %v182
                %v184 = vld [vmem:[%s142 + $0x140] sm:$0xff]
                %185 = vst [vmem:[%s143 + $0xa0] sm:$0xff] %v184
                %v186 = vld [vmem:[%s142 + $0x148] sm:$0xff]
                %187 = vst [vmem:[%s143 + $0xa8] sm:$0xff] %v186
                %v188 = vld [vmem:[%s142 + $0x150] sm:$0xff]
                %189 = vst [vmem:[%s143 + $0xb0] sm:$0xff] %v188
                %v190 = vld [vmem:[%s142 + $0x158] sm:$0xff]
                %191 = vst [vmem:[%s143 + $0xb8] sm:$0xff] %v190
                %v192 = vld [vmem:[%s142 + $0x180] sm:$0xff]
                %193 = vst [vmem:[%s143 + $0xc0] sm:$0xff] %v192
                %v194 = vld [vmem:[%s142 + $0x188] sm:$0xff]
                %195 = vst [vmem:[%s143 + $0xc8] sm:$0xff] %v194
                %v196 = vld [vmem:[%s142 + $0x190] sm:$0xff]
                %197 = vst [vmem:[%s143 + $0xd0] sm:$0xff] %v196
                %v198 = vld [vmem:[%s142 + $0x198] sm:$0xff]
                %199 = vst [vmem:[%s143 + $0xd8] sm:$0xff] %v198
                %v200 = vld [vmem:[%s142 + $0x1c0] sm:$0xff]
                %201 = vst [vmem:[%s143 + $0xe0] sm:$0xff] %v200
                %v202 = vld [vmem:[%s142 + $0x1c8] sm:$0xff]
                %203 = vst [vmem:[%s143 + $0xe8] sm:$0xff] %v202
                %v204 = vld [vmem:[%s142 + $0x1d0] sm:$0xff]
                %205 = vst [vmem:[%s143 + $0xf0] sm:$0xff] %v204
                %v206 = vld [vmem:[%s142 + $0x1d8] sm:$0xff]
                %207 = vst [vmem:[%s143 + $0xf8] sm:$0xff] %v206
                %v208 = vld [vmem:[%s142 + $0x200] sm:$0xff]
                %209 = vst [vmem:[%s143 + $0x100] sm:$0xff] %v208
                %v210 = vld [vmem:[%s142 + $0x208] sm:$0xff]
                %211 = vst [vmem:[%s143 + $0x108] sm:$0xff] %v210
                %v212 = vld [vmem:[%s142 + $0x210] sm:$0xff]
                %213 = vst [vmem:[%s143 + $0x110] sm:$0xff] %v212
                %v214 = vld [vmem:[%s142 + $0x218] sm:$0xff]
                %215 = vst [vmem:[%s143 + $0x118] sm:$0xff] %v214
                %v216 = vld [vmem:[%s142 + $0x240] sm:$0xff]
                %217 = vst [vmem:[%s143 + $0x120] sm:$0xff] %v216
                %v218 = vld [vmem:[%s142 + $0x248] sm:$0xff]
                %219 = vst [vmem:[%s143 + $0x128] sm:$0xff] %v218
                %v220 = vld [vmem:[%s142 + $0x250] sm:$0xff]
                %221 = vst [vmem:[%s143 + $0x130] sm:$0xff] %v220
                %v222 = vld [vmem:[%s142 + $0x258] sm:$0xff]
                %223 = vst [vmem:[%s143 + $0x138] sm:$0xff] %v222
                %v224 = vld [vmem:[%s142 + $0x280] sm:$0xff]
                %225 = vst [vmem:[%s143 + $0x140] sm:$0xff] %v224
                %v226 = vld [vmem:[%s142 + $0x288] sm:$0xff]
                %227 = vst [vmem:[%s143 + $0x148] sm:$0xff] %v226
                %v228 = vld [vmem:[%s142 + $0x290] sm:$0xff]
                %229 = vst [vmem:[%s143 + $0x150] sm:$0xff] %v228
                %v230 = vld [vmem:[%s142 + $0x298] sm:$0xff]
                %231 = vst [vmem:[%s143 + $0x158] sm:$0xff] %v230
                %v232 = vld [vmem:[%s142 + $0x2c0] sm:$0xff]
                %233 = vst [vmem:[%s143 + $0x160] sm:$0xff] %v232
                %v234 = vld [vmem:[%s142 + $0x2c8] sm:$0xff]
                %235 = vst [vmem:[%s143 + $0x168] sm:$0xff] %v234
                %v236 = vld [vmem:[%s142 + $0x2d0] sm:$0xff]
                %237 = vst [vmem:[%s143 + $0x170] sm:$0xff] %v236
                %v238 = vld [vmem:[%s142 + $0x2d8] sm:$0xff]
                %239 = vst [vmem:[%s143 + $0x178] sm:$0xff] %v238
                %v240 = vld [vmem:[%s142 + $0x300] sm:$0xff]
                %241 = vst [vmem:[%s143 + $0x180] sm:$0xff] %v240
                %v242 = vld [vmem:[%s142 + $0x308] sm:$0xff]
                %243 = vst [vmem:[%s143 + $0x188] sm:$0xff] %v242
                %v244 = vld [vmem:[%s142 + $0x310] sm:$0xff]
                %245 = vst [vmem:[%s143 + $0x190] sm:$0xff] %v244
                %v246 = vld [vmem:[%s142 + $0x318] sm:$0xff]
                %247 = vst [vmem:[%s143 + $0x198] sm:$0xff] %v246
                %v248 = vld [vmem:[%s142 + $0x340] sm:$0xff]
                %249 = vst [vmem:[%s143 + $0x1a0] sm:$0xff] %v248
                %v250 = vld [vmem:[%s142 + $0x348] sm:$0xff]
                %251 = vst [vmem:[%s143 + $0x1a8] sm:$0xff] %v250
                %v252 = vld [vmem:[%s142 + $0x350] sm:$0xff]
                %253 = vst [vmem:[%s143 + $0x1b0] sm:$0xff] %v252
                %v254 = vld [vmem:[%s142 + $0x358] sm:$0xff]
                %255 = vst [vmem:[%s143 + $0x1b8] sm:$0xff] %v254
                %v256 = vld [vmem:[%s142 + $0x380] sm:$0xff]
                %257 = vst [vmem:[%s143 + $0x1c0] sm:$0xff] %v256
                %v258 = vld [vmem:[%s142 + $0x388] sm:$0xff]
                %259 = vst [vmem:[%s143 + $0x1c8] sm:$0xff] %v258
                %v260 = vld [vmem:[%s142 + $0x390] sm:$0xff]
                %261 = vst [vmem:[%s143 + $0x1d0] sm:$0xff] %v260
                %v262 = vld [vmem:[%s142 + $0x398] sm:$0xff]
                %263 = vst [vmem:[%s143 + $0x1d8] sm:$0xff] %v262
                %v264 = vld [vmem:[%s142 + $0x3c0] sm:$0xff]
                %265 = vst [vmem:[%s143 + $0x1e0] sm:$0xff] %v264
                %v266 = vld [vmem:[%s142 + $0x3c8] sm:$0xff]
                %267 = vst [vmem:[%s143 + $0x1e8] sm:$0xff] %v266
                %v268 = vld [vmem:[%s142 + $0x3d0] sm:$0xff]
                %269 = vst [vmem:[%s143 + $0x1f0] sm:$0xff] %v268
                %v270 = vld [vmem:[%s142 + $0x3d8] sm:$0xff]
                %271 = vst [vmem:[%s143 + $0x1f8] sm:$0xff] %v270
              $region33: #{attn_block_forward.3} parent=27 // loop_footer
                %s141 = sadd.s32 1, %s137
              $region34: #{attn_block_forward.3} parent=27 // loop_footer_branch
                %136 = sbr.rel target = $region30
              $region35: #{attn_block_forward.3} parent=27 // loop_exit
                _
            $region28: #{attn_block_forward.3} parent=23 // pred_fallthru
              _
            // Predicated region
            $region36: #{attn_block_forward.3} parent=23 // pred_check
              _
            $region37: #{attn_block_forward.3} parent=23 // pred_check_branch
              %273 = sbr.rel target = $region39
            $region38: #{attn_block_forward.3} parent=23 // pred_region
              _
            $region39: #{attn_block_forward.3} parent=23 // pred_fallthru
              _
          $region24: #{attn_block_forward.3} parent=19 // pred_fallthru
            _
          %274 = vnop
        $region20: #{attn_block_forward.3} parent=15 // pred_fallthru
          _
      $region16: #{attn_block_forward.3} parent=5 // pred_fallthru
        _
      %p275 = scmp.le.s32.totalorder 1, %s9
      %p276 = scmp.lt.s32.totalorder %s9, 5
      %p277 = pnand %p275, %p276
      %p278 = pneg %p277
      // Predicated region
      $region40: #{attn_block_forward.3} parent=5 // pred_check
        _
      $region41: #{attn_block_forward.3} parent=5 // pred_check_branch
        %280 = sbr.rel (%p277) target = $region43
      $region42: #{attn_block_forward.3} parent=5 // pred_region
        %s281 = ssub.s32 %s9, 1
        %s282 = sand.u32 %s36, 1
        %s283 = sand.u32 %s36, 1
        %s284 = smul.addr %s283, 512
        %s285 = scalar_lea.vmem [#allocation2], %s284
        // Predicated region
        $region44: #{attn_block_forward.3} parent=42 // pred_check
          %p286 = pneg %p49
        $region45: #{attn_block_forward.3} parent=42 // pred_check_branch
          %288 = sbr.rel (%p286) target = $region47
        $region46: #{attn_block_forward.3} parent=42 // pred_region
          _
        $region47: #{attn_block_forward.3} parent=42 // pred_fallthru
          _
        %s289 = sand.u32 %s36, 1
        %s290 = sand.u32 %s36, 1
        %s291 = smul.addr %s290, 512
        %s292 = scalar_lea.vmem [#allocation2], %s291
        %p293 = pneg %p49
        %p294 = pneg %p46
        %p295 = pneg %p75
        %p296 = pneg %p72
        %p297 = scmp.lt.s32.totalorder %s18, 1
        %s298 = scalar_select %p297, %s18, 1
        %s299 = smul.addr %s298, 16
        %s300 = smul.addr %s299, 8
        %s301 = scalar_lea.vmem %s1, %s300
        %p302 = pneg %p101
        %p303 = pneg %p98
        %p304 = scmp.lt.s32.totalorder %s18, 1
        %s305 = scalar_select %p304, %s18, 1
        %s306 = smul.addr %s305, 16
        %s307 = smul.addr %s306, 8
        %s308 = scalar_lea.vmem %s2, %s307
        %s309 = smul.u32 4, %s19
        %p310 = scmp.lt.s32.totalorder %s18, 1
        %s311 = scalar_select %p310, %s18, 1
        %s312 = smul.addr %s311, 16
        %s313 = smul.addr %s312, 8
        %s314 = scalar_lea.vmem %s1, %s313
        %p315 = scmp.lt.s32.totalorder %s18, 1
        %s316 = scalar_select %p315, %s18, 1
        %s317 = smul.addr %s316, 16
        %s318 = smul.addr %s317, 8
        %s319 = scalar_lea.vmem %s2, %s318
        %p320 = scmp.eq.s32.totalorder %s19, 0
        // Predicated region
        $region48: #{attn_block_forward.3} parent=42 // pred_check
          %p321 = pneg %p320
        $region49: #{attn_block_forward.3} parent=42 // pred_check_branch
          %323 = sbr.rel (%p321) target = $region51
        $region50: #{attn_block_forward.3} parent=42 // pred_region
          %vm324 = vcmask 7168
          %325 = vst.msk [vmem:[%s314] sm:$0xff] %vm324, 0.0
          %326 = vst.msk [vmem:[%s314 + $0x8] sm:$0xff] %vm324, 0.0
          %327 = vst.msk [vmem:[%s314 + $0x10] sm:$0xff] %vm324, 0.0
          %328 = vst.msk [vmem:[%s314 + $0x18] sm:$0xff] %vm324, 0.0
          %329 = vst.msk [vmem:[%s314 + $0x20] sm:$0xff] %vm324, 0.0
          %330 = vst.msk [vmem:[%s314 + $0x28] sm:$0xff] %vm324, 0.0
          %331 = vst.msk [vmem:[%s314 + $0x30] sm:$0xff] %vm324, 0.0
          %332 = vst.msk [vmem:[%s314 + $0x38] sm:$0xff] %vm324, 0.0
          %333 = vst.msk [vmem:[%s314 + $0x40] sm:$0xff] %vm324, 0.0
          %334 = vst.msk [vmem:[%s314 + $0x48] sm:$0xff] %vm324, 0.0
          %335 = vst.msk [vmem:[%s314 + $0x50] sm:$0xff] %vm324, 0.0
          %336 = vst.msk [vmem:[%s314 + $0x58] sm:$0xff] %vm324, 0.0
          %337 = vst.msk [vmem:[%s314 + $0x60] sm:$0xff] %vm324, 0.0
          %338 = vst.msk [vmem:[%s314 + $0x68] sm:$0xff] %vm324, 0.0
          %339 = vst.msk [vmem:[%s314 + $0x70] sm:$0xff] %vm324, 0.0
          %340 = vst.msk [vmem:[%s314 + $0x78] sm:$0xff] %vm324, 0.0
          %341 = vst.msk [vmem:[%s319] sm:$0xff] %vm324, 0.0
          %342 = vst.msk [vmem:[%s319 + $0x8] sm:$0xff] %vm324, 0.0
          %343 = vst.msk [vmem:[%s319 + $0x10] sm:$0xff] %vm324, 0.0
          %344 = vst.msk [vmem:[%s319 + $0x18] sm:$0xff] %vm324, 0.0
          %345 = vst.msk [vmem:[%s319 + $0x20] sm:$0xff] %vm324, 0.0
          %346 = vst.msk [vmem:[%s319 + $0x28] sm:$0xff] %vm324, 0.0
          %347 = vst.msk [vmem:[%s319 + $0x30] sm:$0xff] %vm324, 0.0
          %348 = vst.msk [vmem:[%s319 + $0x38] sm:$0xff] %vm324, 0.0
          %349 = vst.msk [vmem:[%s319 + $0x40] sm:$0xff] %vm324, 0.0
          %350 = vst.msk [vmem:[%s319 + $0x48] sm:$0xff] %vm324, 0.0
          %351 = vst.msk [vmem:[%s319 + $0x50] sm:$0xff] %vm324, 0.0
          %352 = vst.msk [vmem:[%s319 + $0x58] sm:$0xff] %vm324, 0.0
          %353 = vst.msk [vmem:[%s319 + $0x60] sm:$0xff] %vm324, 0.0
          %354 = vst.msk [vmem:[%s319 + $0x68] sm:$0xff] %vm324, 0.0
          %355 = vst.msk [vmem:[%s319 + $0x70] sm:$0xff] %vm324, 0.0
          %356 = vst.msk [vmem:[%s319 + $0x78] sm:$0xff] %vm324, 0.0
        $region51: #{attn_block_forward.3} parent=42 // pred_fallthru
          _
        %v357 = vld [vmem:[%s285] sm:$0xff]
        %v358 = vld [vmem:[%s285 + $0x8] sm:$0xff]
        %v359 = vld [vmem:[%s285 + $0x10] sm:$0xff]
        %v360 = vld [vmem:[%s285 + $0x18] sm:$0xff]
        %v361 = vld [vmem:[%s285 + $0x20] sm:$0xff]
        %v362 = vld [vmem:[%s285 + $0x28] sm:$0xff]
        %v363 = vld [vmem:[%s285 + $0x30] sm:$0xff]
        %v364 = vld [vmem:[%s285 + $0x38] sm:$0xff]
        %v365 = vld [vmem:[%s285 + $0x40] sm:$0xff]
        %v366 = vld [vmem:[%s285 + $0x48] sm:$0xff]
        %v367 = vld [vmem:[%s285 + $0x50] sm:$0xff]
        %v368 = vld [vmem:[%s285 + $0x58] sm:$0xff]
        %v369 = vld [vmem:[%s285 + $0x60] sm:$0xff]
        %v370 = vld [vmem:[%s285 + $0x68] sm:$0xff]
        %v371 = vld [vmem:[%s285 + $0x70] sm:$0xff]
        %v372 = vld [vmem:[%s285 + $0x78] sm:$0xff]
        %v373 = vld [vmem:[%s285 + $0x80] sm:$0xff]
        %v374 = vld [vmem:[%s285 + $0x88] sm:$0xff]
        %v375 = vld [vmem:[%s285 + $0x90] sm:$0xff]
        %v376 = vld [vmem:[%s285 + $0x98] sm:$0xff]
        %v377 = vld [vmem:[%s285 + $0xa0] sm:$0xff]
        %v378 = vld [vmem:[%s285 + $0xa8] sm:$0xff]
        %v379 = vld [vmem:[%s285 + $0xb0] sm:$0xff]
        %v380 = vld [vmem:[%s285 + $0xb8] sm:$0xff]
        %v381 = vld [vmem:[%s285 + $0xc0] sm:$0xff]
        %v382 = vld [vmem:[%s285 + $0xc8] sm:$0xff]
        %v383 = vld [vmem:[%s285 + $0xd0] sm:$0xff]
        %v384 = vld [vmem:[%s285 + $0xd8] sm:$0xff]
        %v385 = vld [vmem:[%s285 + $0xe0] sm:$0xff]
        %v386 = vld [vmem:[%s285 + $0xe8] sm:$0xff]
        %v387 = vld [vmem:[%s285 + $0xf0] sm:$0xff]
        %v388 = vld [vmem:[%s285 + $0xf8] sm:$0xff]
        %v389 = vld [vmem:[%s285 + $0x100] sm:$0xff]
        %v390 = vld [vmem:[%s285 + $0x108] sm:$0xff]
        %v391 = vld [vmem:[%s285 + $0x110] sm:$0xff]
        %v392 = vld [vmem:[%s285 + $0x118] sm:$0xff]
        %v393 = vld [vmem:[%s285 + $0x120] sm:$0xff]
        %v394 = vld [vmem:[%s285 + $0x128] sm:$0xff]
        %v395 = vld [vmem:[%s285 + $0x130] sm:$0xff]
        %v396 = vld [vmem:[%s285 + $0x138] sm:$0xff]
        %v397 = vld [vmem:[%s285 + $0x140] sm:$0xff]
        %v398 = vld [vmem:[%s285 + $0x148] sm:$0xff]
        %v399 = vld [vmem:[%s285 + $0x150] sm:$0xff]
        %v400 = vld [vmem:[%s285 + $0x158] sm:$0xff]
        %v401 = vld [vmem:[%s285 + $0x160] sm:$0xff]
        %v402 = vld [vmem:[%s285 + $0x168] sm:$0xff]
        %v403 = vld [vmem:[%s285 + $0x170] sm:$0xff]
        %v404 = vld [vmem:[%s285 + $0x178] sm:$0xff]
        %v405 = vld [vmem:[%s285 + $0x180] sm:$0xff]
        %v406 = vld [vmem:[%s285 + $0x188] sm:$0xff]
        %v407 = vld [vmem:[%s285 + $0x190] sm:$0xff]
        %v408 = vld [vmem:[%s285 + $0x198] sm:$0xff]
        %v409 = vld [vmem:[%s285 + $0x1a0] sm:$0xff]
        %v410 = vld [vmem:[%s285 + $0x1a8] sm:$0xff]
        %v411 = vld [vmem:[%s285 + $0x1b0] sm:$0xff]
        %v412 = vld [vmem:[%s285 + $0x1b8] sm:$0xff]
        %v413 = vld [vmem:[%s285 + $0x1c0] sm:$0xff]
        %v414 = vld [vmem:[%s285 + $0x1c8] sm:$0xff]
        %v415 = vld [vmem:[%s285 + $0x1d0] sm:$0xff]
        %v416 = vld [vmem:[%s285 + $0x1d8] sm:$0xff]
        %v417 = vld [vmem:[%s285 + $0x1e0] sm:$0xff]
        %v418 = vld [vmem:[%s285 + $0x1e8] sm:$0xff]
        %v419 = vld [vmem:[%s285 + $0x1f0] sm:$0xff]
        %v420 = vld [vmem:[%s285 + $0x1f8] sm:$0xff]
        %v421 = vld [vmem:[%s314] sm:$0xff]
        %v422 = vld [vmem:[%s314 + $0x8] sm:$0xff]
        %v423 = vld [vmem:[%s314 + $0x10] sm:$0xff]
        %v424 = vld [vmem:[%s314 + $0x18] sm:$0xff]
        %v425 = vld [vmem:[%s314 + $0x20] sm:$0xff]
        %v426 = vld [vmem:[%s314 + $0x28] sm:$0xff]
        %v427 = vld [vmem:[%s314 + $0x30] sm:$0xff]
        %v428 = vld [vmem:[%s314 + $0x38] sm:$0xff]
        %v429 = vld [vmem:[%s314 + $0x40] sm:$0xff]
        %v430 = vld [vmem:[%s314 + $0x48] sm:$0xff]
        %v431 = vld [vmem:[%s314 + $0x50] sm:$0xff]
        %v432 = vld [vmem:[%s314 + $0x58] sm:$0xff]
        %v433 = vld [vmem:[%s314 + $0x60] sm:$0xff]
        %v434 = vld [vmem:[%s314 + $0x68] sm:$0xff]
        %v435 = vld [vmem:[%s314 + $0x70] sm:$0xff]
        %v436 = vld [vmem:[%s314 + $0x78] sm:$0xff]
        %v437 = vadd.f32 %v357, %v358
        %v438 = vadd.f32 %v437, %v359
        %v439 = vadd.f32 %v438, %v360
        %440 = vadd.xlane.f32.xlu0 %v439
        %v441 = vpop.xlane.xlu0 %440
        %v442 = vadd.f32 %v361, %v362
        %v443 = vadd.f32 %v442, %v363
        %v444 = vadd.f32 %v443, %v364
        %445 = vadd.xlane.f32.xlu0 %v444
        %v446 = vpop.xlane.xlu0 %445
        %v447 = vadd.f32 %v365, %v366
        %v448 = vadd.f32 %v447, %v367
        %v449 = vadd.f32 %v448, %v368
        %450 = vadd.xlane.f32.xlu0 %v449
        %v451 = vpop.xlane.xlu0 %450
        %v452 = vadd.f32 %v369, %v370
        %v453 = vadd.f32 %v452, %v371
        %v454 = vadd.f32 %v453, %v372
        %455 = vadd.xlane.f32.xlu0 %v454
        %v456 = vpop.xlane.xlu0 %455
        %v457 = vadd.f32 %v373, %v374
        %v458 = vadd.f32 %v457, %v375
        %v459 = vadd.f32 %v458, %v376
        %460 = vadd.xlane.f32.xlu0 %v459
        %v461 = vpop.xlane.xlu0 %460
        %v462 = vadd.f32 %v377, %v378
        %v463 = vadd.f32 %v462, %v379
        %v464 = vadd.f32 %v463, %v380
        %465 = vadd.xlane.f32.xlu0 %v464
        %v466 = vpop.xlane.xlu0 %465
        %v467 = vadd.f32 %v381, %v382
        %v468 = vadd.f32 %v467, %v383
        %v469 = vadd.f32 %v468, %v384
        %470 = vadd.xlane.f32.xlu0 %v469
        %v471 = vpop.xlane.xlu0 %470
        %v472 = vadd.f32 %v385, %v386
        %v473 = vadd.f32 %v472, %v387
        %v474 = vadd.f32 %v473, %v388
        %475 = vadd.xlane.f32.xlu0 %v474
        %v476 = vpop.xlane.xlu0 %475
        %v477 = vadd.f32 %v389, %v390
        %v478 = vadd.f32 %v477, %v391
        %v479 = vadd.f32 %v478, %v392
        %480 = vadd.xlane.f32.xlu0 %v479
        %v481 = vpop.xlane.xlu0 %480
        %v482 = vadd.f32 %v393, %v394
        %v483 = vadd.f32 %v482, %v395
        %v484 = vadd.f32 %v483, %v396
        %485 = vadd.xlane.f32.xlu0 %v484
        %v486 = vpop.xlane.xlu0 %485
        %v487 = vadd.f32 %v397, %v398
        %v488 = vadd.f32 %v487, %v399
        %v489 = vadd.f32 %v488, %v400
        %490 = vadd.xlane.f32.xlu0 %v489
        %v491 = vpop.xlane.xlu0 %490
        %v492 = vadd.f32 %v401, %v402
        %v493 = vadd.f32 %v492, %v403
        %v494 = vadd.f32 %v493, %v404
        %495 = vadd.xlane.f32.xlu0 %v494
        %v496 = vpop.xlane.xlu0 %495
        %v497 = vadd.f32 %v405, %v406
        %v498 = vadd.f32 %v497, %v407
        %v499 = vadd.f32 %v498, %v408
        %500 = vadd.xlane.f32.xlu0 %v499
        %v501 = vpop.xlane.xlu0 %500
        %v502 = vadd.f32 %v409, %v410
        %v503 = vadd.f32 %v502, %v411
        %v504 = vadd.f32 %v503, %v412
        %505 = vadd.xlane.f32.xlu0 %v504
        %v506 = vpop.xlane.xlu0 %505
        %v507 = vadd.f32 %v413, %v414
        %v508 = vadd.f32 %v507, %v415
        %v509 = vadd.f32 %v508, %v416
        %510 = vadd.xlane.f32.xlu0 %v509
        %v511 = vpop.xlane.xlu0 %510
        %v512 = vadd.f32 %v417, %v418
        %v513 = vadd.f32 %v512, %v419
        %v514 = vadd.f32 %v513, %v420
        %515 = vadd.xlane.f32.xlu0 %v514
        %v516 = vpop.xlane.xlu0 %515
        %v517 = vadd.f32 %v421, %v441
        %v518 = vadd.f32 %v422, %v446
        %v519 = vadd.f32 %v423, %v451
        %v520 = vadd.f32 %v424, %v456
        %v521 = vadd.f32 %v425, %v461
        %v522 = vadd.f32 %v426, %v466
        %v523 = vadd.f32 %v427, %v471
        %v524 = vadd.f32 %v428, %v476
        %v525 = vadd.f32 %v429, %v481
        %v526 = vadd.f32 %v430, %v486
        %v527 = vadd.f32 %v431, %v491
        %v528 = vadd.f32 %v432, %v496
        %v529 = vadd.f32 %v433, %v501
        %v530 = vadd.f32 %v434, %v506
        %v531 = vadd.f32 %v435, %v511
        %v532 = vadd.f32 %v436, %v516
        %vm533 = vcmask 7168
        %534 = vst.msk [vmem:[%s314] sm:$0xff] %vm533, %v517
        %535 = vst.msk [vmem:[%s314 + $0x8] sm:$0xff] %vm533, %v518
        %536 = vst.msk [vmem:[%s314 + $0x10] sm:$0xff] %vm533, %v519
        %537 = vst.msk [vmem:[%s314 + $0x18] sm:$0xff] %vm533, %v520
        %538 = vst.msk [vmem:[%s314 + $0x20] sm:$0xff] %vm533, %v521
        %539 = vst.msk [vmem:[%s314 + $0x28] sm:$0xff] %vm533, %v522
        %540 = vst.msk [vmem:[%s314 + $0x30] sm:$0xff] %vm533, %v523
        %541 = vst.msk [vmem:[%s314 + $0x38] sm:$0xff] %vm533, %v524
        %542 = vst.msk [vmem:[%s314 + $0x40] sm:$0xff] %vm533, %v525
        %543 = vst.msk [vmem:[%s314 + $0x48] sm:$0xff] %vm533, %v526
        %544 = vst.msk [vmem:[%s314 + $0x50] sm:$0xff] %vm533, %v527
        %545 = vst.msk [vmem:[%s314 + $0x58] sm:$0xff] %vm533, %v528
        %546 = vst.msk [vmem:[%s314 + $0x60] sm:$0xff] %vm533, %v529
        %547 = vst.msk [vmem:[%s314 + $0x68] sm:$0xff] %vm533, %v530
        %548 = vst.msk [vmem:[%s314 + $0x70] sm:$0xff] %vm533, %v531
        %549 = vst.msk [vmem:[%s314 + $0x78] sm:$0xff] %vm533, %v532
        %v550 = vld [vmem:[%s319] sm:$0xff]
        %v551 = vld [vmem:[%s319 + $0x8] sm:$0xff]
        %v552 = vld [vmem:[%s319 + $0x10] sm:$0xff]
        %v553 = vld [vmem:[%s319 + $0x18] sm:$0xff]
        %v554 = vld [vmem:[%s319 + $0x20] sm:$0xff]
        %v555 = vld [vmem:[%s319 + $0x28] sm:$0xff]
        %v556 = vld [vmem:[%s319 + $0x30] sm:$0xff]
        %v557 = vld [vmem:[%s319 + $0x38] sm:$0xff]
        %v558 = vld [vmem:[%s319 + $0x40] sm:$0xff]
        %v559 = vld [vmem:[%s319 + $0x48] sm:$0xff]
        %v560 = vld [vmem:[%s319 + $0x50] sm:$0xff]
        %v561 = vld [vmem:[%s319 + $0x58] sm:$0xff]
        %v562 = vld [vmem:[%s319 + $0x60] sm:$0xff]
        %v563 = vld [vmem:[%s319 + $0x68] sm:$0xff]
        %v564 = vld [vmem:[%s319 + $0x70] sm:$0xff]
        %v565 = vld [vmem:[%s319 + $0x78] sm:$0xff]
        %v566 = vmul.f32 %v357, %v357
        %v567 = vmul.f32 %v358, %v358
        %v568 = vmul.f32 %v359, %v359
        %v569 = vmul.f32 %v360, %v360
        %v570 = vmul.f32 %v361, %v361
        %v571 = vmul.f32 %v362, %v362
        %v572 = vmul.f32 %v363, %v363
        %v573 = vmul.f32 %v364, %v364
        %v574 = vmul.f32 %v365, %v365
        %v575 = vmul.f32 %v366, %v366
        %v576 = vmul.f32 %v367, %v367
        %v577 = vmul.f32 %v368, %v368
        %v578 = vmul.f32 %v369, %v369
        %v579 = vmul.f32 %v370, %v370
        %v580 = vmul.f32 %v371, %v371
        %v581 = vmul.f32 %v372, %v372
        %v582 = vmul.f32 %v373, %v373
        %v583 = vmul.f32 %v374, %v374
        %v584 = vmul.f32 %v375, %v375
        %v585 = vmul.f32 %v376, %v376
        %v586 = vmul.f32 %v377, %v377
        %v587 = vmul.f32 %v378, %v378
        %v588 = vmul.f32 %v379, %v379
        %v589 = vmul.f32 %v380, %v380
        %v590 = vmul.f32 %v381, %v381
        %v591 = vmul.f32 %v382, %v382
        %v592 = vmul.f32 %v383, %v383
        %v593 = vmul.f32 %v384, %v384
        %v594 = vmul.f32 %v385, %v385
        %v595 = vmul.f32 %v386, %v386
        %v596 = vmul.f32 %v387, %v387
        %v597 = vmul.f32 %v388, %v388
        %v598 = vmul.f32 %v389, %v389
        %v599 = vmul.f32 %v390, %v390
        %v600 = vmul.f32 %v391, %v391
        %v601 = vmul.f32 %v392, %v392
        %v602 = vmul.f32 %v393, %v393
        %v603 = vmul.f32 %v394, %v394
        %v604 = vmul.f32 %v395, %v395
        %v605 = vmul.f32 %v396, %v396
        %v606 = vmul.f32 %v397, %v397
        %v607 = vmul.f32 %v398, %v398
        %v608 = vmul.f32 %v399, %v399
        %v609 = vmul.f32 %v400, %v400
        %v610 = vmul.f32 %v401, %v401
        %v611 = vmul.f32 %v402, %v402
        %v612 = vmul.f32 %v403, %v403
        %v613 = vmul.f32 %v404, %v404
        %v614 = vmul.f32 %v405, %v405
        %v615 = vmul.f32 %v406, %v406
        %v616 = vmul.f32 %v407, %v407
        %v617 = vmul.f32 %v408, %v408
        %v618 = vmul.f32 %v409, %v409
        %v619 = vmul.f32 %v410, %v410
        %v620 = vmul.f32 %v411, %v411
        %v621 = vmul.f32 %v412, %v412
        %v622 = vmul.f32 %v413, %v413
        %v623 = vmul.f32 %v414, %v414
        %v624 = vmul.f32 %v415, %v415
        %v625 = vmul.f32 %v416, %v416
        %v626 = vmul.f32 %v417, %v417
        %v627 = vmul.f32 %v418, %v418
        %v628 = vmul.f32 %v419, %v419
        %v629 = vmul.f32 %v420, %v420
        %v630 = vadd.f32 %v566, %v567
        %v631 = vadd.f32 %v630, %v568
        %v632 = vadd.f32 %v631, %v569
        %633 = vadd.xlane.f32.xlu0 %v632
        %v634 = vpop.xlane.xlu0 %633
        %v635 = vadd.f32 %v570, %v571
        %v636 = vadd.f32 %v635, %v572
        %v637 = vadd.f32 %v636, %v573
        %638 = vadd.xlane.f32.xlu0 %v637
        %v639 = vpop.xlane.xlu0 %638
        %v640 = vadd.f32 %v574, %v575
        %v641 = vadd.f32 %v640, %v576
        %v642 = vadd.f32 %v641, %v577
        %643 = vadd.xlane.f32.xlu0 %v642
        %v644 = vpop.xlane.xlu0 %643
        %v645 = vadd.f32 %v578, %v579
        %v646 = vadd.f32 %v645, %v580
        %v647 = vadd.f32 %v646, %v581
        %648 = vadd.xlane.f32.xlu0 %v647
        %v649 = vpop.xlane.xlu0 %648
        %v650 = vadd.f32 %v582, %v583
        %v651 = vadd.f32 %v650, %v584
        %v652 = vadd.f32 %v651, %v585
        %653 = vadd.xlane.f32.xlu0 %v652
        %v654 = vpop.xlane.xlu0 %653
        %v655 = vadd.f32 %v586, %v587
        %v656 = vadd.f32 %v655, %v588
        %v657 = vadd.f32 %v656, %v589
        %658 = vadd.xlane.f32.xlu0 %v657
        %v659 = vpop.xlane.xlu0 %658
        %v660 = vadd.f32 %v590, %v591
        %v661 = vadd.f32 %v660, %v592
        %v662 = vadd.f32 %v661, %v593
        %663 = vadd.xlane.f32.xlu0 %v662
        %v664 = vpop.xlane.xlu0 %663
        %v665 = vadd.f32 %v594, %v595
        %v666 = vadd.f32 %v665, %v596
        %v667 = vadd.f32 %v666, %v597
        %668 = vadd.xlane.f32.xlu0 %v667
        %v669 = vpop.xlane.xlu0 %668
        %v670 = vadd.f32 %v598, %v599
        %v671 = vadd.f32 %v670, %v600
        %v672 = vadd.f32 %v671, %v601
        %673 = vadd.xlane.f32.xlu0 %v672
        %v674 = vpop.xlane.xlu0 %673
        %v675 = vadd.f32 %v602, %v603
        %v676 = vadd.f32 %v675, %v604
        %v677 = vadd.f32 %v676, %v605
        %678 = vadd.xlane.f32.xlu0 %v677
        %v679 = vpop.xlane.xlu0 %678
        %v680 = vadd.f32 %v606, %v607
        %v681 = vadd.f32 %v680, %v608
        %v682 = vadd.f32 %v681, %v609
        %683 = vadd.xlane.f32.xlu0 %v682
        %v684 = vpop.xlane.xlu0 %683
        %v685 = vadd.f32 %v610, %v611
        %v686 = vadd.f32 %v685, %v612
        %v687 = vadd.f32 %v686, %v613
        %688 = vadd.xlane.f32.xlu0 %v687
        %v689 = vpop.xlane.xlu0 %688
        %v690 = vadd.f32 %v614, %v615
        %v691 = vadd.f32 %v690, %v616
        %v692 = vadd.f32 %v691, %v617
        %693 = vadd.xlane.f32.xlu0 %v692
        %v694 = vpop.xlane.xlu0 %693
        %v695 = vadd.f32 %v618, %v619
        %v696 = vadd.f32 %v695, %v620
        %v697 = vadd.f32 %v696, %v621
        %698 = vadd.xlane.f32.xlu0 %v697
        %v699 = vpop.xlane.xlu0 %698
        %v700 = vadd.f32 %v622, %v623
        %v701 = vadd.f32 %v700, %v624
        %v702 = vadd.f32 %v701, %v625
        %703 = vadd.xlane.f32.xlu0 %v702
        %v704 = vpop.xlane.xlu0 %703
        %v705 = vadd.f32 %v626, %v627
        %v706 = vadd.f32 %v705, %v628
        %v707 = vadd.f32 %v706, %v629
        %708 = vadd.xlane.f32.xlu0 %v707
        %v709 = vpop.xlane.xlu0 %708
        %v710 = vadd.f32 %v550, %v634
        %v711 = vadd.f32 %v551, %v639
        %v712 = vadd.f32 %v552, %v644
        %v713 = vadd.f32 %v553, %v649
        %v714 = vadd.f32 %v554, %v654
        %v715 = vadd.f32 %v555, %v659
        %v716 = vadd.f32 %v556, %v664
        %v717 = vadd.f32 %v557, %v669
        %v718 = vadd.f32 %v558, %v674
        %v719 = vadd.f32 %v559, %v679
        %v720 = vadd.f32 %v560, %v684
        %v721 = vadd.f32 %v561, %v689
        %v722 = vadd.f32 %v562, %v694
        %v723 = vadd.f32 %v563, %v699
        %v724 = vadd.f32 %v564, %v704
        %v725 = vadd.f32 %v565, %v709
        %726 = vst.msk [vmem:[%s319] sm:$0xff] %vm533, %v710
        %727 = vst.msk [vmem:[%s319 + $0x8] sm:$0xff] %vm533, %v711
        %728 = vst.msk [vmem:[%s319 + $0x10] sm:$0xff] %vm533, %v712
        %729 = vst.msk [vmem:[%s319 + $0x18] sm:$0xff] %vm533, %v713
        %730 = vst.msk [vmem:[%s319 + $0x20] sm:$0xff] %vm533, %v714
        %731 = vst.msk [vmem:[%s319 + $0x28] sm:$0xff] %vm533, %v715
        %732 = vst.msk [vmem:[%s319 + $0x30] sm:$0xff] %vm533, %v716
        %733 = vst.msk [vmem:[%s319 + $0x38] sm:$0xff] %vm533, %v717
        %734 = vst.msk [vmem:[%s319 + $0x40] sm:$0xff] %vm533, %v718
        %735 = vst.msk [vmem:[%s319 + $0x48] sm:$0xff] %vm533, %v719
        %736 = vst.msk [vmem:[%s319 + $0x50] sm:$0xff] %vm533, %v720
        %737 = vst.msk [vmem:[%s319 + $0x58] sm:$0xff] %vm533, %v721
        %738 = vst.msk [vmem:[%s319 + $0x60] sm:$0xff] %vm533, %v722
        %739 = vst.msk [vmem:[%s319 + $0x68] sm:$0xff] %vm533, %v723
        %740 = vst.msk [vmem:[%s319 + $0x70] sm:$0xff] %vm533, %v724
        %741 = vst.msk [vmem:[%s319 + $0x78] sm:$0xff] %vm533, %v725
        %p742 = scmp.lt.s32.totalorder %s18, 1
        %s743 = scalar_select %p742, %s18, 1
        %s744 = smul.addr %s743, 16
        %s745 = smul.addr %s744, 8
        %s746 = scalar_lea.vmem %s1, %s745
        %p747 = scmp.lt.s32.totalorder %s18, 1
        %s748 = scalar_select %p747, %s18, 1
        %s749 = smul.addr %s748, 16
        %s750 = smul.addr %s749, 8
        %s751 = scalar_lea.vmem %s2, %s750
        // Predicated region
        $region52: #{attn_block_forward.3} parent=42 // pred_check
          %p752 = pneg %p72
        $region53: #{attn_block_forward.3} parent=42 // pred_check_branch
          %754 = sbr.rel (%p752) target = $region55
        $region54: #{attn_block_forward.3} parent=42 // pred_region
          _
        $region55: #{attn_block_forward.3} parent=42 // pred_fallthru
          _
        // Predicated region
        $region56: #{attn_block_forward.3} parent=42 // pred_check
          %p755 = pneg %p98
        $region57: #{attn_block_forward.3} parent=42 // pred_check_branch
          %757 = sbr.rel (%p755) target = $region59
        $region58: #{attn_block_forward.3} parent=42 // pred_region
          _
        $region59: #{attn_block_forward.3} parent=42 // pred_fallthru
          _
      $region43: #{attn_block_forward.3} parent=5 // pred_fallthru
        _
      %p758 = scmp.le.s32.totalorder 2, %s9
      // Predicated region
      $region60: #{attn_block_forward.3} parent=5 // pred_check
        %p759 = pneg %p758
      $region61: #{attn_block_forward.3} parent=5 // pred_check_branch
        %761 = sbr.rel (%p759) target = $region63
      $region62: #{attn_block_forward.3} parent=5 // pred_region
        %s762 = ssub.s32 %s9, 2
        // Predicated region
        $region64: #{attn_block_forward.3} parent=62 // pred_check
          %p763 = pneg %p78
        $region65: #{attn_block_forward.3} parent=62 // pred_check_branch
          %765 = sbr.rel (%p763) target = $region67
        $region66: #{attn_block_forward.3} parent=62 // pred_region
          %p766 = scmp.lt.s32.totalorder %s20, 1
          %s767 = scalar_select %p766, %s20, 1
          %s768 = smul.addr %s767, 16
          %s769 = smul.addr %s768, 8
          %s770 = scalar_lea.vmem %s1, %s769
        $region67: #{attn_block_forward.3} parent=62 // pred_fallthru
          _
        // Predicated region
        $region68: #{attn_block_forward.3} parent=62 // pred_check
          %p771 = pneg %p104
        $region69: #{attn_block_forward.3} parent=62 // pred_check_branch
          %773 = sbr.rel (%p771) target = $region71
        $region70: #{attn_block_forward.3} parent=62 // pred_region
          %p774 = scmp.lt.s32.totalorder %s20, 1
          %s775 = scalar_select %p774, %s20, 1
          %s776 = smul.addr %s775, 16
          %s777 = smul.addr %s776, 8
          %s778 = scalar_lea.vmem %s2, %s777
        $region71: #{attn_block_forward.3} parent=62 // pred_fallthru
          _
      $region63: #{attn_block_forward.3} parent=5 // pred_fallthru
        _
    $region6: #{attn_block_forward.3} parent=1 // loop_footer
      %s13 = sadd.s32 1, %s9
    $region7: #{attn_block_forward.3} parent=1 // loop_footer_branch
      %8 = sbr.rel target = $region3
    $region8: #{attn_block_forward.3} parent=1 // loop_exit
      _

// kernel: attn_block_forward.4
$region0: #{attn_block_forward.4}
  #allocation0 [shape = 'u32[]', space=smem, size = 0x4, offset = 0x4, fixed_abs, tag = 'smem constant byte address 0x4 - core index']
  #allocation1 [shape = 'u32[144,128]{1,0:T(1,128)}', space=vmem, size = 0x12000, scoped, tag = 'internal scratch']
  %s0 = inlined_call_operand.vmem [shape: f32[2,128,1024], index: 0, kind: input, shape index: {}]
  %s1 = inlined_call_operand.vmem [shape: f32[2,128,1], index: 1, kind: input, shape index: {}]
  %s2 = inlined_call_operand.vmem [shape: f32[2,128,1], index: 2, kind: input, shape index: {}]
  %s3 = inlined_call_operand.vmem [shape: bf16[128,256], index: 3, kind: input, shape index: {}]
  %s4 = inlined_call_operand.vmem [shape: f32[1,256], index: 4, kind: input, shape index: {}]
  %s5 = inlined_call_operand.vmem [shape: bf16[128,128], index: 5, kind: input, shape index: {}]
  %s6 = inlined_call_operand.vmem [shape: f32[128,1], index: 6, kind: input, shape index: {}]
  %s7 = inlined_call_operand.vmem [shape: bf16[2,1024,128], index: 7, kind: output, shape index: {0}]
  %s8 = inlined_call_operand.vmem [shape: bf16[2,128,1024], index: 8, kind: output, shape index: {1}]
  %s9 = inlined_call_operand.vmem [shape: bf16[2,1024,128], index: 9, kind: output, shape index: {2}]
  %10 = xla_tuple %s7, %s8, %s9
  %s11 = sld [smem:[#allocation0]]
  $region119: #{attn_block_forward.4} parent=0
    _
  %s13 = ssub.s32 1, %s11
  %s14 = scalar_select 0, %s13, %s11
  $region1: #{attn_block_forward.4} parent=0
    #allocation2 [shape = 'u8[524288]{0}', space=vmem, size = 0x80000, scoped, tag = 'input window, operand 0']
    #allocation3 [shape = 'u8[262144]{0}', space=vmem, size = 0x40000, scoped, tag = 'output window, operand 1']
    loop: start=0, step=1, limit=6
    $region2: #{attn_block_forward.4} parent=1 // loop_pre_header
      _
    $region3: #{attn_block_forward.4} parent=1 // loop_header
      %s16 = sphi 0, %s20
      %p17 = scmp.ge.s32.totalorder %s16, 6
      %s23 = sphi 0, %s35
      %s24 = sphi 0, %s31
      %s25 = sphi 0, %s23
      %s26 = sphi 0, %s24
      %s27 = sphi 0, %s25
      %s28 = sphi 0, %s26
      %s40 = sphi 0, %s42
      %s43 = sphi 0, %s40
      %s44 = sphi 0, %s43
      %s60 = sphi 0, %s44
      %s66 = sphi 0, %s68
      %s69 = sphi 0, %s66
      %s70 = sphi 0, %s69
      %s86 = sphi 0, %s70
      %s92 = sphi 0, %s94
      %s95 = sphi 0, %s92
      %s96 = sphi 0, %s95
      %s112 = sphi 0, %s96
      %s116 = sphi 0, %s116
      %s118 = sphi 0, %s116
      %s119 = sphi 0, %s118
      %s133 = sphi 0, %s119
      %s137 = sphi 0, %s137
      %s139 = sphi 0, %s137
      %s140 = sphi 0, %s139
      %s154 = sphi 0, %s140
      %s158 = sphi 0, %s158
      %s160 = sphi 0, %s158
      %s161 = sphi 0, %s160
      %s175 = sphi 0, %s161
      %s179 = sphi 0, %s179
      %s181 = sphi 0, %s179
      %s182 = sphi 0, %s181
      %s196 = sphi 0, %s182
      %s204 = sphi 0, %s206
      %s207 = sphi 0, %s204
      %s208 = sphi 0, %s207
      %s224 = sphi 0, %s208
      %s232 = sphi 0, %s234
      %s235 = sphi 0, %s232
      %s236 = sphi 0, %s235
      %s252 = sphi 0, %s236
      %s260 = sphi 0, %s262
      %s263 = sphi 0, %s260
      %s264 = sphi 0, %s263
      %s280 = sphi 0, %s264
    $region4: #{attn_block_forward.4} parent=1 // loop_header_branch
      %19 = sbr.rel (%p17) target = $region8
    $region5: #{attn_block_forward.4} parent=1 // loop_body
      %s21 = ssub.s32 %s16, 1
      %s22 = ssub.s32 %s16, 2
      %s29 = sadd.s32 1, %s24
      %p30 = scmp.ge.s32.totalorder %s29, 2
      %s31 = scalar_select %p30, 0, %s29
      %s32 = sadd.s32 1, %s23
      %s33 = scalar_select %p30, %s32, %s23
      %p34 = scmp.ge.s32.totalorder %s33, 2
      %s35 = scalar_select %p34, 0, %s33
      %s36 = ssub.s32 %s23, %s35
      %s37 = ssub.s32 %s24, %s31
      %s38 = sor.u32 %s36, %s37
      %p39 = scmp.eq.s32.totalorder %s38, 0
      %s41 = sadd.s32 %s40, 1
      %s42 = scalar_select %p39, %s40, %s41
      %p45 = pneg %p39
      %p46 = scmp.eq.s32.totalorder %s16, 3
      %p47 = por %p45, %p46
      %p48 = scmp.ne.s32.totalorder %s40, %s43
      %p49 = scmp.eq.s32.totalorder %s16, 0
      %p50 = por %p48, %p49
      %p51 = scmp.ne.s32.totalorder %s40, %s43
      %p52 = scmp.eq.s32.totalorder %s21, 3
      %p53 = por %p51, %p52
      %p54 = scmp.ne.s32.totalorder %s43, %s44
      %p55 = scmp.eq.s32.totalorder %s21, 0
      %p56 = por %p54, %p55
      %p57 = scmp.ne.s32.totalorder %s43, %s44
      %p58 = scmp.eq.s32.totalorder %s22, 3
      %p59 = por %p57, %p58
      %p61 = scmp.ne.s32.totalorder %s44, %s60
      %p62 = scmp.eq.s32.totalorder %s22, 0
      %p63 = por %p61, %p62
      %s64 = ssub.s32 %s23, %s35
      %p65 = scmp.eq.s32.totalorder %s64, 0
      %s67 = sadd.s32 %s66, 1
      %s68 = scalar_select %p65, %s66, %s67
      %p71 = pneg %p65
      %p72 = scmp.eq.s32.totalorder %s16, 3
      %p73 = por %p71, %p72
      %p74 = scmp.ne.s32.totalorder %s66, %s69
      %p75 = scmp.eq.s32.totalorder %s16, 0
      %p76 = por %p74, %p75
      %p77 = scmp.ne.s32.totalorder %s66, %s69
      %p78 = scmp.eq.s32.totalorder %s21, 3
      %p79 = por %p77, %p78
      %p80 = scmp.ne.s32.totalorder %s69, %s70
      %p81 = scmp.eq.s32.totalorder %s21, 0
      %p82 = por %p80, %p81
      %p83 = scmp.ne.s32.totalorder %s69, %s70
      %p84 = scmp.eq.s32.totalorder %s22, 3
      %p85 = por %p83, %p84
      %p87 = scmp.ne.s32.totalorder %s70, %s86
      %p88 = scmp.eq.s32.totalorder %s22, 0
      %p89 = por %p87, %p88
      %s90 = ssub.s32 %s23, %s35
      %p91 = scmp.eq.s32.totalorder %s90, 0
      %s93 = sadd.s32 %s92, 1
      %s94 = scalar_select %p91, %s92, %s93
      %p97 = pneg %p91
      %p98 = scmp.eq.s32.totalorder %s16, 3
      %p99 = por %p97, %p98
      %p100 = scmp.ne.s32.totalorder %s92, %s95
      %p101 = scmp.eq.s32.totalorder %s16, 0
      %p102 = por %p100, %p101
      %p103 = scmp.ne.s32.totalorder %s92, %s95
      %p104 = scmp.eq.s32.totalorder %s21, 3
      %p105 = por %p103, %p104
      %p106 = scmp.ne.s32.totalorder %s95, %s96
      %p107 = scmp.eq.s32.totalorder %s21, 0
      %p108 = por %p106, %p107
      %p109 = scmp.ne.s32.totalorder %s95, %s96
      %p110 = scmp.eq.s32.totalorder %s22, 3
      %p111 = por %p109, %p110
      %p113 = scmp.ne.s32.totalorder %s96, %s112
      %p114 = scmp.eq.s32.totalorder %s22, 0
      %p115 = por %p113, %p114
      %s117 = sadd.s32 %s116, 1
      %p120 = scmp.eq.s32.totalorder %s16, 3
      %p121 = scmp.ne.s32.totalorder %s116, %s118
      %p122 = scmp.eq.s32.totalorder %s16, 0
      %p123 = por %p121, %p122
      %p124 = scmp.ne.s32.totalorder %s116, %s118
      %p125 = scmp.eq.s32.totalorder %s21, 3
      %p126 = por %p124, %p125
      %p127 = scmp.ne.s32.totalorder %s118, %s119
      %p128 = scmp.eq.s32.totalorder %s21, 0
      %p129 = por %p127, %p128
      %p130 = scmp.ne.s32.totalorder %s118, %s119
      %p131 = scmp.eq.s32.totalorder %s22, 3
      %p132 = por %p130, %p131
      %p134 = scmp.ne.s32.totalorder %s119, %s133
      %p135 = scmp.eq.s32.totalorder %s22, 0
      %p136 = por %p134, %p135
      %s138 = sadd.s32 %s137, 1
      %p141 = scmp.eq.s32.totalorder %s16, 3
      %p142 = scmp.ne.s32.totalorder %s137, %s139
      %p143 = scmp.eq.s32.totalorder %s16, 0
      %p144 = por %p142, %p143
      %p145 = scmp.ne.s32.totalorder %s137, %s139
      %p146 = scmp.eq.s32.totalorder %s21, 3
      %p147 = por %p145, %p146
      %p148 = scmp.ne.s32.totalorder %s139, %s140
      %p149 = scmp.eq.s32.totalorder %s21, 0
      %p150 = por %p148, %p149
      %p151 = scmp.ne.s32.totalorder %s139, %s140
      %p152 = scmp.eq.s32.totalorder %s22, 3
      %p153 = por %p151, %p152
      %p155 = scmp.ne.s32.totalorder %s140, %s154
      %p156 = scmp.eq.s32.totalorder %s22, 0
      %p157 = por %p155, %p156
      %s159 = sadd.s32 %s158, 1
      %p162 = scmp.eq.s32.totalorder %s16, 3
      %p163 = scmp.ne.s32.totalorder %s158, %s160
      %p164 = scmp.eq.s32.totalorder %s16, 0
      %p165 = por %p163, %p164
      %p166 = scmp.ne.s32.totalorder %s158, %s160
      %p167 = scmp.eq.s32.totalorder %s21, 3
      %p168 = por %p166, %p167
      %p169 = scmp.ne.s32.totalorder %s160, %s161
      %p170 = scmp.eq.s32.totalorder %s21, 0
      %p171 = por %p169, %p170
      %p172 = scmp.ne.s32.totalorder %s160, %s161
      %p173 = scmp.eq.s32.totalorder %s22, 3
      %p174 = por %p172, %p173
      %p176 = scmp.ne.s32.totalorder %s161, %s175
      %p177 = scmp.eq.s32.totalorder %s22, 0
      %p178 = por %p176, %p177
      %s180 = sadd.s32 %s179, 1
      %p183 = scmp.eq.s32.totalorder %s16, 3
      %p184 = scmp.ne.s32.totalorder %s179, %s181
      %p185 = scmp.eq.s32.totalorder %s16, 0
      %p186 = por %p184, %p185
      %p187 = scmp.ne.s32.totalorder %s179, %s181
      %p188 = scmp.eq.s32.totalorder %s21, 3
      %p189 = por %p187, %p188
      %p190 = scmp.ne.s32.totalorder %s181, %s182
      %p191 = scmp.eq.s32.totalorder %s21, 0
      %p192 = por %p190, %p191
      %p193 = scmp.ne.s32.totalorder %s181, %s182
      %p194 = scmp.eq.s32.totalorder %s22, 3
      %p195 = por %p193, %p194
      %p197 = scmp.ne.s32.totalorder %s182, %s196
      %p198 = scmp.eq.s32.totalorder %s22, 0
      %p199 = por %p197, %p198
      %s200 = ssub.s32 %s23, %s35
      %s201 = ssub.s32 %s24, %s31
      %s202 = sor.u32 %s200, %s201
      %p203 = scmp.eq.s32.totalorder %s202, 0
      %s205 = sadd.s32 %s204, 1
      %s206 = scalar_select %p203, %s204, %s205
      %p209 = pneg %p203
      %p210 = scmp.eq.s32.totalorder %s16, 3
      %p211 = por %p209, %p210
      %p212 = scmp.ne.s32.totalorder %s204, %s207
      %p213 = scmp.eq.s32.totalorder %s16, 0
      %p214 = por %p212, %p213
      %p215 = scmp.ne.s32.totalorder %s204, %s207
      %p216 = scmp.eq.s32.totalorder %s21, 3
      %p217 = por %p215, %p216
      %p218 = scmp.ne.s32.totalorder %s207, %s208
      %p219 = scmp.eq.s32.totalorder %s21, 0
      %p220 = por %p218, %p219
      %p221 = scmp.ne.s32.totalorder %s207, %s208
      %p222 = scmp.eq.s32.totalorder %s22, 3
      %p223 = por %p221, %p222
      %p225 = scmp.ne.s32.totalorder %s208, %s224
      %p226 = scmp.eq.s32.totalorder %s22, 0
      %p227 = por %p225, %p226
      %s228 = ssub.s32 %s23, %s35
      %s229 = ssub.s32 %s24, %s31
      %s230 = sor.u32 %s228, %s229
      %p231 = scmp.eq.s32.totalorder %s230, 0
      %s233 = sadd.s32 %s232, 1
      %s234 = scalar_select %p231, %s232, %s233
      %p237 = pneg %p231
      %p238 = scmp.eq.s32.totalorder %s16, 3
      %p239 = por %p237, %p238
      %p240 = scmp.ne.s32.totalorder %s232, %s235
      %p241 = scmp.eq.s32.totalorder %s16, 0
      %p242 = por %p240, %p241
      %p243 = scmp.ne.s32.totalorder %s232, %s235
      %p244 = scmp.eq.s32.totalorder %s21, 3
      %p245 = por %p243, %p244
      %p246 = scmp.ne.s32.totalorder %s235, %s236
      %p247 = scmp.eq.s32.totalorder %s21, 0
      %p248 = por %p246, %p247
      %p249 = scmp.ne.s32.totalorder %s235, %s236
      %p250 = scmp.eq.s32.totalorder %s22, 3
      %p251 = por %p249, %p250
      %p253 = scmp.ne.s32.totalorder %s236, %s252
      %p254 = scmp.eq.s32.totalorder %s22, 0
      %p255 = por %p253, %p254
      %s256 = ssub.s32 %s23, %s35
      %s257 = ssub.s32 %s24, %s31
      %s258 = sor.u32 %s256, %s257
      %p259 = scmp.eq.s32.totalorder %s258, 0
      %s261 = sadd.s32 %s260, 1
      %s262 = scalar_select %p259, %s260, %s261
      %p265 = pneg %p259
      %p266 = scmp.eq.s32.totalorder %s16, 3
      %p267 = por %p265, %p266
      %p268 = scmp.ne.s32.totalorder %s260, %s263
      %p269 = scmp.eq.s32.totalorder %s16, 0
      %p270 = por %p268, %p269
      %p271 = scmp.ne.s32.totalorder %s260, %s263
      %p272 = scmp.eq.s32.totalorder %s21, 3
      %p273 = por %p271, %p272
      %p274 = scmp.ne.s32.totalorder %s263, %s264
      %p275 = scmp.eq.s32.totalorder %s21, 0
      %p276 = por %p274, %p275
      %p277 = scmp.ne.s32.totalorder %s263, %s264
      %p278 = scmp.eq.s32.totalorder %s22, 3
      %p279 = por %p277, %p278
      %p281 = scmp.ne.s32.totalorder %s264, %s280
      %p282 = scmp.eq.s32.totalorder %s22, 0
      %p283 = por %p281, %p282
      %p284 = scmp.le.s32.totalorder 1, %s16
      %p285 = scmp.lt.s32.totalorder %s16, 5
      %p286 = pnand %p284, %p285
      %p287 = pneg %p286
      // Predicated region
      $region9: #{attn_block_forward.4} parent=5 // pred_check
        _
      $region10: #{attn_block_forward.4} parent=5 // pred_check_branch
        %289 = sbr.rel (%p286) target = $region12
      $region11: #{attn_block_forward.4} parent=5 // pred_region
        %s290 = ssub.s32 %s16, 1
        // Predicated region
        $region13: #{attn_block_forward.4} parent=11 // pred_check
          %p291 = pneg %p129
        $region14: #{attn_block_forward.4} parent=11 // pred_check_branch
          %293 = sbr.rel (%p291) target = $region16
        $region15: #{attn_block_forward.4} parent=11 // pred_region
          _
        $region16: #{attn_block_forward.4} parent=11 // pred_fallthru
          _
        // Predicated region
        $region17: #{attn_block_forward.4} parent=11 // pred_check
          %p294 = pneg %p150
        $region18: #{attn_block_forward.4} parent=11 // pred_check_branch
          %296 = sbr.rel (%p294) target = $region20
        $region19: #{attn_block_forward.4} parent=11 // pred_region
          _
        $region20: #{attn_block_forward.4} parent=11 // pred_fallthru
          _
        // Predicated region
        $region21: #{attn_block_forward.4} parent=11 // pred_check
          %p297 = pneg %p171
        $region22: #{attn_block_forward.4} parent=11 // pred_check_branch
          %299 = sbr.rel (%p297) target = $region24
        $region23: #{attn_block_forward.4} parent=11 // pred_region
          _
        $region24: #{attn_block_forward.4} parent=11 // pred_fallthru
          _
        // Predicated region
        $region25: #{attn_block_forward.4} parent=11 // pred_check
          %p300 = pneg %p192
        $region26: #{attn_block_forward.4} parent=11 // pred_check_branch
          %302 = sbr.rel (%p300) target = $region28
        $region27: #{attn_block_forward.4} parent=11 // pred_region
          _
        $region28: #{attn_block_forward.4} parent=11 // pred_fallthru
          _
      $region12: #{attn_block_forward.4} parent=5 // pred_fallthru
        _
      %p303 = scmp.lt.s32.totalorder %s16, 4
      // Predicated region
      $region29: #{attn_block_forward.4} parent=5 // pred_check
        %p304 = pneg %p303
      $region30: #{attn_block_forward.4} parent=5 // pred_check_branch
        %306 = sbr.rel (%p304) target = $region32
      $region31: #{attn_block_forward.4} parent=5 // pred_region
        // Predicated region
        $region33: #{attn_block_forward.4} parent=31 // pred_check
          %p307 = pneg %p50
        $region34: #{attn_block_forward.4} parent=31 // pred_check_branch
          %309 = sbr.rel (%p307) target = $region36
        $region35: #{attn_block_forward.4} parent=31 // pred_region
          %s310 = sand.u32 %s40, 1
          %s311 = sand.u32 %s40, 1
          %s312 = smul.addr %s311, 512
          %s313 = scalar_lea.vmem [#allocation2], %s312
          %s314 = smul.u32 4, %s24
          %s315 = smul.addr %s23, 128
          %s316 = sadd.s32 %s314, %s315
          %s317 = smul.addr %s316, 8
          %s318 = scalar_lea.vmem %s0, %s317
          // Predicated region
          $region37: #{attn_block_forward.4} parent=35 // pred_check
            _
          $region38: #{attn_block_forward.4} parent=35 // pred_check_branch
            %320 = sbr.rel (0) target = $region40
          $region39: #{attn_block_forward.4} parent=35 // pred_region
            // Predicated region
            $region41: #{attn_block_forward.4} parent=39 // pred_check
              _
            $region42: #{attn_block_forward.4} parent=39 // pred_check_branch
              %322 = sbr.rel (0) target = $region44
            $region43: #{attn_block_forward.4} parent=39 // pred_region
              loop: start=0, step=1, limit=1
              $region45: #{attn_block_forward.4} parent=43 // loop_pre_header
                _
              $region46: #{attn_block_forward.4} parent=43 // loop_header
                %s324 = sphi 0, %s328
                %p325 = scmp.ge.s32.totalorder %s324, 1
                %s329 = sphi %s318, %s318
                %s330 = sphi %s313, %s313
              $region47: #{attn_block_forward.4} parent=43 // loop_header_branch
                %327 = sbr.rel (%p325) target = $region51
              $region48: #{attn_block_forward.4} parent=43 // loop_body
                %v331 = vld [vmem:[%s329] sm:$0xff]
                %332 = vst [vmem:[%s330] sm:$0xff] %v331
                %v333 = vld [vmem:[%s329 + $0x8] sm:$0xff]
                %334 = vst [vmem:[%s330 + $0x8] sm:$0xff] %v333
                %v335 = vld [vmem:[%s329 + $0x10] sm:$0xff]
                %336 = vst [vmem:[%s330 + $0x10] sm:$0xff] %v335
                %v337 = vld [vmem:[%s329 + $0x18] sm:$0xff]
                %338 = vst [vmem:[%s330 + $0x18] sm:$0xff] %v337
                %v339 = vld [vmem:[%s329 + $0x40] sm:$0xff]
                %340 = vst [vmem:[%s330 + $0x20] sm:$0xff] %v339
                %v341 = vld [vmem:[%s329 + $0x48] sm:$0xff]
                %342 = vst [vmem:[%s330 + $0x28] sm:$0xff] %v341
                %v343 = vld [vmem:[%s329 + $0x50] sm:$0xff]
                %344 = vst [vmem:[%s330 + $0x30] sm:$0xff] %v343
                %v345 = vld [vmem:[%s329 + $0x58] sm:$0xff]
                %346 = vst [vmem:[%s330 + $0x38] sm:$0xff] %v345
                %v347 = vld [vmem:[%s329 + $0x80] sm:$0xff]
                %348 = vst [vmem:[%s330 + $0x40] sm:$0xff] %v347
                %v349 = vld [vmem:[%s329 + $0x88] sm:$0xff]
                %350 = vst [vmem:[%s330 + $0x48] sm:$0xff] %v349
                %v351 = vld [vmem:[%s329 + $0x90] sm:$0xff]
                %352 = vst [vmem:[%s330 + $0x50] sm:$0xff] %v351
                %v353 = vld [vmem:[%s329 + $0x98] sm:$0xff]
                %354 = vst [vmem:[%s330 + $0x58] sm:$0xff] %v353
                %v355 = vld [vmem:[%s329 + $0xc0] sm:$0xff]
                %356 = vst [vmem:[%s330 + $0x60] sm:$0xff] %v355
                %v357 = vld [vmem:[%s329 + $0xc8] sm:$0xff]
                %358 = vst [vmem:[%s330 + $0x68] sm:$0xff] %v357
                %v359 = vld [vmem:[%s329 + $0xd0] sm:$0xff]
                %360 = vst [vmem:[%s330 + $0x70] sm:$0xff] %v359
                %v361 = vld [vmem:[%s329 + $0xd8] sm:$0xff]
                %362 = vst [vmem:[%s330 + $0x78] sm:$0xff] %v361
                %v363 = vld [vmem:[%s329 + $0x100] sm:$0xff]
                %364 = vst [vmem:[%s330 + $0x80] sm:$0xff] %v363
                %v365 = vld [vmem:[%s329 + $0x108] sm:$0xff]
                %366 = vst [vmem:[%s330 + $0x88] sm:$0xff] %v365
                %v367 = vld [vmem:[%s329 + $0x110] sm:$0xff]
                %368 = vst [vmem:[%s330 + $0x90] sm:$0xff] %v367
                %v369 = vld [vmem:[%s329 + $0x118] sm:$0xff]
                %370 = vst [vmem:[%s330 + $0x98] sm:$0xff] %v369
                %v371 = vld [vmem:[%s329 + $0x140] sm:$0xff]
                %372 = vst [vmem:[%s330 + $0xa0] sm:$0xff] %v371
                %v373 = vld [vmem:[%s329 + $0x148] sm:$0xff]
                %374 = vst [vmem:[%s330 + $0xa8] sm:$0xff] %v373
                %v375 = vld [vmem:[%s329 + $0x150] sm:$0xff]
                %376 = vst [vmem:[%s330 + $0xb0] sm:$0xff] %v375
                %v377 = vld [vmem:[%s329 + $0x158] sm:$0xff]
                %378 = vst [vmem:[%s330 + $0xb8] sm:$0xff] %v377
                %v379 = vld [vmem:[%s329 + $0x180] sm:$0xff]
                %380 = vst [vmem:[%s330 + $0xc0] sm:$0xff] %v379
                %v381 = vld [vmem:[%s329 + $0x188] sm:$0xff]
                %382 = vst [vmem:[%s330 + $0xc8] sm:$0xff] %v381
                %v383 = vld [vmem:[%s329 + $0x190] sm:$0xff]
                %384 = vst [vmem:[%s330 + $0xd0] sm:$0xff] %v383
                %v385 = vld [vmem:[%s329 + $0x198] sm:$0xff]
                %386 = vst [vmem:[%s330 + $0xd8] sm:$0xff] %v385
                %v387 = vld [vmem:[%s329 + $0x1c0] sm:$0xff]
                %388 = vst [vmem:[%s330 + $0xe0] sm:$0xff] %v387
                %v389 = vld [vmem:[%s329 + $0x1c8] sm:$0xff]
                %390 = vst [vmem:[%s330 + $0xe8] sm:$0xff] %v389
                %v391 = vld [vmem:[%s329 + $0x1d0] sm:$0xff]
                %392 = vst [vmem:[%s330 + $0xf0] sm:$0xff] %v391
                %v393 = vld [vmem:[%s329 + $0x1d8] sm:$0xff]
                %394 = vst [vmem:[%s330 + $0xf8] sm:$0xff] %v393
                %v395 = vld [vmem:[%s329 + $0x200] sm:$0xff]
                %396 = vst [vmem:[%s330 + $0x100] sm:$0xff] %v395
                %v397 = vld [vmem:[%s329 + $0x208] sm:$0xff]
                %398 = vst [vmem:[%s330 + $0x108] sm:$0xff] %v397
                %v399 = vld [vmem:[%s329 + $0x210] sm:$0xff]
                %400 = vst [vmem:[%s330 + $0x110] sm:$0xff] %v399
                %v401 = vld [vmem:[%s329 + $0x218] sm:$0xff]
                %402 = vst [vmem:[%s330 + $0x118] sm:$0xff] %v401
                %v403 = vld [vmem:[%s329 + $0x240] sm:$0xff]
                %404 = vst [vmem:[%s330 + $0x120] sm:$0xff] %v403
                %v405 = vld [vmem:[%s329 + $0x248] sm:$0xff]
                %406 = vst [vmem:[%s330 + $0x128] sm:$0xff] %v405
                %v407 = vld [vmem:[%s329 + $0x250] sm:$0xff]
                %408 = vst [vmem:[%s330 + $0x130] sm:$0xff] %v407
                %v409 = vld [vmem:[%s329 + $0x258] sm:$0xff]
                %410 = vst [vmem:[%s330 + $0x138] sm:$0xff] %v409
                %v411 = vld [vmem:[%s329 + $0x280] sm:$0xff]
                %412 = vst [vmem:[%s330 + $0x140] sm:$0xff] %v411
                %v413 = vld [vmem:[%s329 + $0x288] sm:$0xff]
                %414 = vst [vmem:[%s330 + $0x148] sm:$0xff] %v413
                %v415 = vld [vmem:[%s329 + $0x290] sm:$0xff]
                %416 = vst [vmem:[%s330 + $0x150] sm:$0xff] %v415
                %v417 = vld [vmem:[%s329 + $0x298] sm:$0xff]
                %418 = vst [vmem:[%s330 + $0x158] sm:$0xff] %v417
                %v419 = vld [vmem:[%s329 + $0x2c0] sm:$0xff]
                %420 = vst [vmem:[%s330 + $0x160] sm:$0xff] %v419
                %v421 = vld [vmem:[%s329 + $0x2c8] sm:$0xff]
                %422 = vst [vmem:[%s330 + $0x168] sm:$0xff] %v421
                %v423 = vld [vmem:[%s329 + $0x2d0] sm:$0xff]
                %424 = vst [vmem:[%s330 + $0x170] sm:$0xff] %v423
                %v425 = vld [vmem:[%s329 + $0x2d8] sm:$0xff]
                %426 = vst [vmem:[%s330 + $0x178] sm:$0xff] %v425
                %v427 = vld [vmem:[%s329 + $0x300] sm:$0xff]
                %428 = vst [vmem:[%s330 + $0x180] sm:$0xff] %v427
                %v429 = vld [vmem:[%s329 + $0x308] sm:$0xff]
                %430 = vst [vmem:[%s330 + $0x188] sm:$0xff] %v429
                %v431 = vld [vmem:[%s329 + $0x310] sm:$0xff]
                %432 = vst [vmem:[%s330 + $0x190] sm:$0xff] %v431
                %v433 = vld [vmem:[%s329 + $0x318] sm:$0xff]
                %434 = vst [vmem:[%s330 + $0x198] sm:$0xff] %v433
                %v435 = vld [vmem:[%s329 + $0x340] sm:$0xff]
                %436 = vst [vmem:[%s330 + $0x1a0] sm:$0xff] %v435
                %v437 = vld [vmem:[%s329 + $0x348] sm:$0xff]
                %438 = vst [vmem:[%s330 + $0x1a8] sm:$0xff] %v437
                %v439 = vld [vmem:[%s329 + $0x350] sm:$0xff]
                %440 = vst [vmem:[%s330 + $0x1b0] sm:$0xff] %v439
                %v441 = vld [vmem:[%s329 + $0x358] sm:$0xff]
                %442 = vst [vmem:[%s330 + $0x1b8] sm:$0xff] %v441
                %v443 = vld [vmem:[%s329 + $0x380] sm:$0xff]
                %444 = vst [vmem:[%s330 + $0x1c0] sm:$0xff] %v443
                %v445 = vld [vmem:[%s329 + $0x388] sm:$0xff]
                %446 = vst [vmem:[%s330 + $0x1c8] sm:$0xff] %v445
                %v447 = vld [vmem:[%s329 + $0x390] sm:$0xff]
                %448 = vst [vmem:[%s330 + $0x1d0] sm:$0xff] %v447
                %v449 = vld [vmem:[%s329 + $0x398] sm:$0xff]
                %450 = vst [vmem:[%s330 + $0x1d8] sm:$0xff] %v449
                %v451 = vld [vmem:[%s329 + $0x3c0] sm:$0xff]
                %452 = vst [vmem:[%s330 + $0x1e0] sm:$0xff] %v451
                %v453 = vld [vmem:[%s329 + $0x3c8] sm:$0xff]
                %454 = vst [vmem:[%s330 + $0x1e8] sm:$0xff] %v453
                %v455 = vld [vmem:[%s329 + $0x3d0] sm:$0xff]
                %456 = vst [vmem:[%s330 + $0x1f0] sm:$0xff] %v455
                %v457 = vld [vmem:[%s329 + $0x3d8] sm:$0xff]
                %458 = vst [vmem:[%s330 + $0x1f8] sm:$0xff] %v457
              $region49: #{attn_block_forward.4} parent=43 // loop_footer
                %s328 = sadd.s32 1, %s324
              $region50: #{attn_block_forward.4} parent=43 // loop_footer_branch
                %323 = sbr.rel target = $region46
              $region51: #{attn_block_forward.4} parent=43 // loop_exit
                _
            $region44: #{attn_block_forward.4} parent=39 // pred_fallthru
              _
            // Predicated region
            $region52: #{attn_block_forward.4} parent=39 // pred_check
              _
            $region53: #{attn_block_forward.4} parent=39 // pred_check_branch
              %460 = sbr.rel target = $region55
            $region54: #{attn_block_forward.4} parent=39 // pred_region
              _
            $region55: #{attn_block_forward.4} parent=39 // pred_fallthru
              _
          $region40: #{attn_block_forward.4} parent=35 // pred_fallthru
            _
          %461 = vnop
        $region36: #{attn_block_forward.4} parent=31 // pred_fallthru
          _
        // Predicated region
        $region56: #{attn_block_forward.4} parent=31 // pred_check
          %p462 = pneg %p76
        $region57: #{attn_block_forward.4} parent=31 // pred_check_branch
          %464 = sbr.rel (%p462) target = $region59
        $region58: #{attn_block_forward.4} parent=31 // pred_region
          %p465 = scmp.lt.s32.totalorder %s23, 1
          %s466 = scalar_select %p465, %s23, 1
          %s467 = smul.addr %s466, 16
          %s468 = smul.addr %s467, 8
          %s469 = scalar_lea.vmem %s1, %s468
        $region59: #{attn_block_forward.4} parent=31 // pred_fallthru
          _
        // Predicated region
        $region60: #{attn_block_forward.4} parent=31 // pred_check
          %p470 = pneg %p102
        $region61: #{attn_block_forward.4} parent=31 // pred_check_branch
          %472 = sbr.rel (%p470) target = $region63
        $region62: #{attn_block_forward.4} parent=31 // pred_region
          %p473 = scmp.lt.s32.totalorder %s23, 1
          %s474 = scalar_select %p473, %s23, 1
          %s475 = smul.addr %s474, 16
          %s476 = smul.addr %s475, 8
          %s477 = scalar_lea.vmem %s2, %s476
        $region63: #{attn_block_forward.4} parent=31 // pred_fallthru
          _
      $region32: #{attn_block_forward.4} parent=5 // pred_fallthru
        _
      %p478 = scmp.le.s32.totalorder 1, %s16
      %p479 = scmp.lt.s32.totalorder %s16, 5
      %p480 = pnand %p478, %p479
      %p481 = pneg %p480
      // Predicated region
      $region64: #{attn_block_forward.4} parent=5 // pred_check
        _
      $region65: #{attn_block_forward.4} parent=5 // pred_check_branch
        %483 = sbr.rel (%p480) target = $region67
      $region66: #{attn_block_forward.4} parent=5 // pred_region
        %s484 = ssub.s32 %s16, 1
        %s485 = sand.u32 %s43, 1
        %s486 = sand.u32 %s43, 1
        %s487 = smul.addr %s486, 512
        %s488 = scalar_lea.vmem [#allocation2], %s487
        // Predicated region
        $region68: #{attn_block_forward.4} parent=66 // pred_check
          %p489 = pneg %p56
        $region69: #{attn_block_forward.4} parent=66 // pred_check_branch
          %491 = sbr.rel (%p489) target = $region71
        $region70: #{attn_block_forward.4} parent=66 // pred_region
          _
        $region71: #{attn_block_forward.4} parent=66 // pred_fallthru
          _
        %s492 = sand.u32 %s43, 1
        %s493 = sand.u32 %s43, 1
        %s494 = smul.addr %s493, 512
        %s495 = scalar_lea.vmem [#allocation2], %s494
        %p496 = pneg %p56
        %p497 = pneg %p53
        %p498 = scmp.lt.s32.totalorder %s25, 1
        %s499 = scalar_select %p498, %s25, 1
        %s500 = smul.addr %s499, 16
        %s501 = smul.addr %s500, 8
        %s502 = scalar_lea.vmem %s1, %s501
        %p503 = pneg %p82
        %p504 = pneg %p79
        %p505 = scmp.lt.s32.totalorder %s25, 1
        %s506 = scalar_select %p505, %s25, 1
        %s507 = smul.addr %s506, 16
        %s508 = smul.addr %s507, 8
        %s509 = scalar_lea.vmem %s2, %s508
        %p510 = pneg %p108
        %p511 = pneg %p105
        %p512 = pneg %p129
        %p513 = pneg %p126
        %p514 = pneg %p150
        %p515 = pneg %p147
        %p516 = pneg %p171
        %p517 = pneg %p168
        %p518 = pneg %p192
        %p519 = pneg %p189
        %p520 = pneg %p220
        %p521 = pneg %p217
        %s522 = smul.u32 64, %s26
        %p523 = scmp.lt.s32.totalorder %s25, 1
        %s524 = scalar_select %p523, %s25, 1
        %p525 = scmp.lt.s32.totalorder %s522, 127
        %s526 = scalar_select %p525, %s522, 127
        %s527 = smul.addr %s524, 128
        %s528 = sadd.s32 %s526, %s527
        %s529 = smul.addr %s528, 4
        %s530 = scalar_lea.vmem %s7, %s529
        %p531 = pneg %p248
        %p532 = pneg %p245
        %s533 = sand.u32 %s235, 1
        %s534 = sand.u32 %s235, 1
        %s535 = smul.addr %s534, 256
        %s536 = scalar_lea.vmem [#allocation3], %s535
        %p537 = pneg %p276
        %p538 = pneg %p273
        %s539 = smul.u32 64, %s26
        %p540 = scmp.lt.s32.totalorder %s25, 1
        %s541 = scalar_select %p540, %s25, 1
        %p542 = scmp.lt.s32.totalorder %s539, 127
        %s543 = scalar_select %p542, %s539, 127
        %s544 = smul.addr %s541, 128
        %s545 = sadd.s32 %s543, %s544
        %s546 = smul.addr %s545, 4
        %s547 = scalar_lea.vmem %s9, %s546
        %s548 = smul.u32 4, %s26
        %p549 = scmp.lt.s32.totalorder %s25, 1
        %s550 = scalar_select %p549, %s25, 1
        %s551 = smul.addr %s550, 16
        %s552 = smul.addr %s551, 8
        %s553 = scalar_lea.vmem %s1, %s552
        %p554 = scmp.lt.s32.totalorder %s25, 1
        %s555 = scalar_select %p554, %s25, 1
        %s556 = smul.addr %s555, 16
        %s557 = smul.addr %s556, 8
        %s558 = scalar_lea.vmem %s2, %s557
        %s559 = smul.u32 64, %s26
        %p560 = scmp.lt.s32.totalorder %s25, 1
        %s561 = scalar_select %p560, %s25, 1
        %p562 = scmp.lt.s32.totalorder %s559, 127
        %s563 = scalar_select %p562, %s559, 127
        %s564 = smul.addr %s561, 128
        %s565 = sadd.s32 %s563, %s564
        %s566 = smul.addr %s565, 4
        %s567 = scalar_lea.vmem %s7, %s566
        %s568 = smul.u32 64, %s26
        %s569 = smul.u32 4, %s26
        %s570 = smul.u32 64, %s26
        %p571 = scmp.lt.s32.totalorder %s25, 1
        %s572 = scalar_select %p571, %s25, 1
        %p573 = scmp.lt.s32.totalorder %s570, 127
        %s574 = scalar_select %p573, %s570, 127
        %s575 = smul.addr %s572, 128
        %s576 = sadd.s32 %s574, %s575
        %s577 = smul.addr %s576, 4
        %s578 = scalar_lea.vmem %s9, %s577
        %s579 = smul.u32 64, %s26
        %v581 = vld [vmem:[%s488] sm:$0xff]
        %v582 = vld [vmem:[%s488 + $0x8] sm:$0xff]
        %v583 = vld [vmem:[%s488 + $0x10] sm:$0xff]
        %v584 = vld [vmem:[%s488 + $0x18] sm:$0xff]
        %v585 = vld [vmem:[%s488 + $0x20] sm:$0xff]
        %v586 = vld [vmem:[%s488 + $0x28] sm:$0xff]
        %v587 = vld [vmem:[%s488 + $0x30] sm:$0xff]
        %v588 = vld [vmem:[%s488 + $0x38] sm:$0xff]
        %v589 = vld [vmem:[%s488 + $0x40] sm:$0xff]
        %v590 = vld [vmem:[%s488 + $0x48] sm:$0xff]
        %v591 = vld [vmem:[%s488 + $0x50] sm:$0xff]
        %v592 = vld [vmem:[%s488 + $0x58] sm:$0xff]
        %v593 = vld [vmem:[%s488 + $0x60] sm:$0xff]
        %v594 = vld [vmem:[%s488 + $0x68] sm:$0xff]
        %v595 = vld [vmem:[%s488 + $0x70] sm:$0xff]
        %v596 = vld [vmem:[%s488 + $0x78] sm:$0xff]
        %v597 = vld [vmem:[%s488 + $0x80] sm:$0xff]
        %v598 = vld [vmem:[%s488 + $0x88] sm:$0xff]
        %v599 = vld [vmem:[%s488 + $0x90] sm:$0xff]
        %v600 = vld [vmem:[%s488 + $0x98] sm:$0xff]
        %v601 = vld [vmem:[%s488 + $0xa0] sm:$0xff]
        %v602 = vld [vmem:[%s488 + $0xa8] sm:$0xff]
        %v603 = vld [vmem:[%s488 + $0xb0] sm:$0xff]
        %v604 = vld [vmem:[%s488 + $0xb8] sm:$0xff]
        %v605 = vld [vmem:[%s488 + $0xc0] sm:$0xff]
        %v606 = vld [vmem:[%s488 + $0xc8] sm:$0xff]
        %v607 = vld [vmem:[%s488 + $0xd0] sm:$0xff]
        %v608 = vld [vmem:[%s488 + $0xd8] sm:$0xff]
        %v609 = vld [vmem:[%s488 + $0xe0] sm:$0xff]
        %v610 = vld [vmem:[%s488 + $0xe8] sm:$0xff]
        %v611 = vld [vmem:[%s488 + $0xf0] sm:$0xff]
        %v612 = vld [vmem:[%s488 + $0xf8] sm:$0xff]
        %v613 = vld [vmem:[%s488 + $0x100] sm:$0xff]
        %v614 = vld [vmem:[%s488 + $0x108] sm:$0xff]
        %v615 = vld [vmem:[%s488 + $0x110] sm:$0xff]
        %v616 = vld [vmem:[%s488 + $0x118] sm:$0xff]
        %v617 = vld [vmem:[%s488 + $0x120] sm:$0xff]
        %v618 = vld [vmem:[%s488 + $0x128] sm:$0xff]
        %v619 = vld [vmem:[%s488 + $0x130] sm:$0xff]
        %v620 = vld [vmem:[%s488 + $0x138] sm:$0xff]
        %v621 = vld [vmem:[%s488 + $0x140] sm:$0xff]
        %v622 = vld [vmem:[%s488 + $0x148] sm:$0xff]
        %v623 = vld [vmem:[%s488 + $0x150] sm:$0xff]
        %v624 = vld [vmem:[%s488 + $0x158] sm:$0xff]
        %v625 = vld [vmem:[%s488 + $0x160] sm:$0xff]
        %v626 = vld [vmem:[%s488 + $0x168] sm:$0xff]
        %v627 = vld [vmem:[%s488 + $0x170] sm:$0xff]
        %v628 = vld [vmem:[%s488 + $0x178] sm:$0xff]
        %v629 = vld [vmem:[%s488 + $0x180] sm:$0xff]
        %v630 = vld [vmem:[%s488 + $0x188] sm:$0xff]
        %v631 = vld [vmem:[%s488 + $0x190] sm:$0xff]
        %v632 = vld [vmem:[%s488 + $0x198] sm:$0xff]
        %v633 = vld [vmem:[%s488 + $0x1a0] sm:$0xff]
        %v634 = vld [vmem:[%s488 + $0x1a8] sm:$0xff]
        %v635 = vld [vmem:[%s488 + $0x1b0] sm:$0xff]
        %v636 = vld [vmem:[%s488 + $0x1b8] sm:$0xff]
        %v637 = vld [vmem:[%s488 + $0x1c0] sm:$0xff]
        %v638 = vld [vmem:[%s488 + $0x1c8] sm:$0xff]
        %v639 = vld [vmem:[%s488 + $0x1d0] sm:$0xff]
        %v640 = vld [vmem:[%s488 + $0x1d8] sm:$0xff]
        %v641 = vld [vmem:[%s488 + $0x1e0] sm:$0xff]
        %v642 = vld [vmem:[%s488 + $0x1e8] sm:$0xff]
        %v643 = vld [vmem:[%s488 + $0x1f0] sm:$0xff]
        %v644 = vld [vmem:[%s488 + $0x1f8] sm:$0xff]
        %v645 = vld [vmem:[%s553] sm:$0xff]
        %v646 = vld [vmem:[%s553 + $0x8] sm:$0xff]
        %v647 = vld [vmem:[%s553 + $0x10] sm:$0xff]
        %v648 = vld [vmem:[%s553 + $0x18] sm:$0xff]
        %v649 = vld [vmem:[%s553 + $0x20] sm:$0xff]
        %v650 = vld [vmem:[%s553 + $0x28] sm:$0xff]
        %v651 = vld [vmem:[%s553 + $0x30] sm:$0xff]
        %v652 = vld [vmem:[%s553 + $0x38] sm:$0xff]
        %v653 = vld [vmem:[%s553 + $0x40] sm:$0xff]
        %v654 = vld [vmem:[%s553 + $0x48] sm:$0xff]
        %v655 = vld [vmem:[%s553 + $0x50] sm:$0xff]
        %v656 = vld [vmem:[%s553 + $0x58] sm:$0xff]
        %v657 = vld [vmem:[%s553 + $0x60] sm:$0xff]
        %v658 = vld [vmem:[%s553 + $0x68] sm:$0xff]
        %v659 = vld [vmem:[%s553 + $0x70] sm:$0xff]
        %v660 = vld [vmem:[%s553 + $0x78] sm:$0xff]
        %662 = vset.pattern.permute.xlu0 0
        %663 = vperm.xlu0 %662, %v645
        %v664 = vpop.permute.xlu0 %663
        %667 = vset.pattern.permute.xlu0 0
        %668 = vperm.xlu0 %667, %v646
        %v669 = vpop.permute.xlu0 %668
        %672 = vset.pattern.permute.xlu0 0
        %673 = vperm.xlu0 %672, %v647
        %v674 = vpop.permute.xlu0 %673
        %677 = vset.pattern.permute.xlu0 0
        %678 = vperm.xlu0 %677, %v648
        %v679 = vpop.permute.xlu0 %678
        %682 = vset.pattern.permute.xlu0 0
        %683 = vperm.xlu0 %682, %v649
        %v684 = vpop.permute.xlu0 %683
        %687 = vset.pattern.permute.xlu0 0
        %688 = vperm.xlu0 %687, %v650
        %v689 = vpop.permute.xlu0 %688
        %692 = vset.pattern.permute.xlu0 0
        %693 = vperm.xlu0 %692, %v651
        %v694 = vpop.permute.xlu0 %693
        %697 = vset.pattern.permute.xlu0 0
        %698 = vperm.xlu0 %697, %v652
        %v699 = vpop.permute.xlu0 %698
        %702 = vset.pattern.permute.xlu0 0
        %703 = vperm.xlu0 %702, %v653
        %v704 = vpop.permute.xlu0 %703
        %707 = vset.pattern.permute.xlu0 0
        %708 = vperm.xlu0 %707, %v654
        %v709 = vpop.permute.xlu0 %708
        %712 = vset.pattern.permute.xlu0 0
        %713 = vperm.xlu0 %712, %v655
        %v714 = vpop.permute.xlu0 %713
        %717 = vset.pattern.permute.xlu0 0
        %718 = vperm.xlu0 %717, %v656
        %v719 = vpop.permute.xlu0 %718
        %722 = vset.pattern.permute.xlu0 0
        %723 = vperm.xlu0 %722, %v657
        %v724 = vpop.permute.xlu0 %723
        %727 = vset.pattern.permute.xlu0 0
        %728 = vperm.xlu0 %727, %v658
        %v729 = vpop.permute.xlu0 %728
        %732 = vset.pattern.permute.xlu0 0
        %733 = vperm.xlu0 %732, %v659
        %v734 = vpop.permute.xlu0 %733
        %737 = vset.pattern.permute.xlu0 0
        %738 = vperm.xlu0 %737, %v660
        %v739 = vpop.permute.xlu0 %738
        %v741 = vmul.f32 %v581, %v664
        %v742 = vmul.f32 %v582, %v664
        %v743 = vmul.f32 %v583, %v664
        %v744 = vmul.f32 %v584, %v664
        %v745 = vmul.f32 %v585, %v669
        %v746 = vmul.f32 %v586, %v669
        %v747 = vmul.f32 %v587, %v669
        %v748 = vmul.f32 %v588, %v669
        %v749 = vmul.f32 %v589, %v674
        %v750 = vmul.f32 %v590, %v674
        %v751 = vmul.f32 %v591, %v674
        %v752 = vmul.f32 %v592, %v674
        %v753 = vmul.f32 %v593, %v679
        %v754 = vmul.f32 %v594, %v679
        %v755 = vmul.f32 %v595, %v679
        %v756 = vmul.f32 %v596, %v679
        %v757 = vmul.f32 %v597, %v684
        %v758 = vmul.f32 %v598, %v684
        %v759 = vmul.f32 %v599, %v684
        %v760 = vmul.f32 %v600, %v684
        %v761 = vmul.f32 %v601, %v689
        %v762 = vmul.f32 %v602, %v689
        %v763 = vmul.f32 %v603, %v689
        %v764 = vmul.f32 %v604, %v689
        %v765 = vmul.f32 %v605, %v694
        %v766 = vmul.f32 %v606, %v694
        %v767 = vmul.f32 %v607, %v694
        %v768 = vmul.f32 %v608, %v694
        %v769 = vmul.f32 %v609, %v699
        %v770 = vmul.f32 %v610, %v699
        %v771 = vmul.f32 %v611, %v699
        %v772 = vmul.f32 %v612, %v699
        %v773 = vmul.f32 %v613, %v704
        %v774 = vmul.f32 %v614, %v704
        %v775 = vmul.f32 %v615, %v704
        %v776 = vmul.f32 %v616, %v704
        %v777 = vmul.f32 %v617, %v709
        %v778 = vmul.f32 %v618, %v709
        %v779 = vmul.f32 %v619, %v709
        %v780 = vmul.f32 %v620, %v709
        %v781 = vmul.f32 %v621, %v714
        %v782 = vmul.f32 %v622, %v714
        %v783 = vmul.f32 %v623, %v714
        %v784 = vmul.f32 %v624, %v714
        %v785 = vmul.f32 %v625, %v719
        %v786 = vmul.f32 %v626, %v719
        %v787 = vmul.f32 %v627, %v719
        %v788 = vmul.f32 %v628, %v719
        %v789 = vmul.f32 %v629, %v724
        %v790 = vmul.f32 %v630, %v724
        %v791 = vmul.f32 %v631, %v724
        %v792 = vmul.f32 %v632, %v724
        %v793 = vmul.f32 %v633, %v729
        %v794 = vmul.f32 %v634, %v729
        %v795 = vmul.f32 %v635, %v729
        %v796 = vmul.f32 %v636, %v729
        %v797 = vmul.f32 %v637, %v734
        %v798 = vmul.f32 %v638, %v734
        %v799 = vmul.f32 %v639, %v734
        %v800 = vmul.f32 %v640, %v734
        %v801 = vmul.f32 %v641, %v739
        %v802 = vmul.f32 %v642, %v739
        %v803 = vmul.f32 %v643, %v739
        %v804 = vmul.f32 %v644, %v739
        %v805 = vld [vmem:[%s558] sm:$0xff]
        %v806 = vld [vmem:[%s558 + $0x8] sm:$0xff]
        %v807 = vld [vmem:[%s558 + $0x10] sm:$0xff]
        %v808 = vld [vmem:[%s558 + $0x18] sm:$0xff]
        %v809 = vld [vmem:[%s558 + $0x20] sm:$0xff]
        %v810 = vld [vmem:[%s558 + $0x28] sm:$0xff]
        %v811 = vld [vmem:[%s558 + $0x30] sm:$0xff]
        %v812 = vld [vmem:[%s558 + $0x38] sm:$0xff]
        %v813 = vld [vmem:[%s558 + $0x40] sm:$0xff]
        %v814 = vld [vmem:[%s558 + $0x48] sm:$0xff]
        %v815 = vld [vmem:[%s558 + $0x50] sm:$0xff]
        %v816 = vld [vmem:[%s558 + $0x58] sm:$0xff]
        %v817 = vld [vmem:[%s558 + $0x60] sm:$0xff]
        %v818 = vld [vmem:[%s558 + $0x68] sm:$0xff]
        %v819 = vld [vmem:[%s558 + $0x70] sm:$0xff]
        %v820 = vld [vmem:[%s558 + $0x78] sm:$0xff]
        %822 = vset.pattern.permute.xlu0 0
        %823 = vperm.xlu0 %822, %v805
        %v824 = vpop.permute.xlu0 %823
        %827 = vset.pattern.permute.xlu0 0
        %828 = vperm.xlu0 %827, %v806
        %v829 = vpop.permute.xlu0 %828
        %832 = vset.pattern.permute.xlu0 0
        %833 = vperm.xlu0 %832, %v807
        %v834 = vpop.permute.xlu0 %833
        %837 = vset.pattern.permute.xlu0 0
        %838 = vperm.xlu0 %837, %v808
        %v839 = vpop.permute.xlu0 %838
        %842 = vset.pattern.permute.xlu0 0
        %843 = vperm.xlu0 %842, %v809
        %v844 = vpop.permute.xlu0 %843
        %847 = vset.pattern.permute.xlu0 0
        %848 = vperm.xlu0 %847, %v810
        %v849 = vpop.permute.xlu0 %848
        %852 = vset.pattern.permute.xlu0 0
        %853 = vperm.xlu0 %852, %v811
        %v854 = vpop.permute.xlu0 %853
        %857 = vset.pattern.permute.xlu0 0
        %858 = vperm.xlu0 %857, %v812
        %v859 = vpop.permute.xlu0 %858
        %862 = vset.pattern.permute.xlu0 0
        %863 = vperm.xlu0 %862, %v813
        %v864 = vpop.permute.xlu0 %863
        %867 = vset.pattern.permute.xlu0 0
        %868 = vperm.xlu0 %867, %v814
        %v869 = vpop.permute.xlu0 %868
        %872 = vset.pattern.permute.xlu0 0
        %873 = vperm.xlu0 %872, %v815
        %v874 = vpop.permute.xlu0 %873
        %877 = vset.pattern.permute.xlu0 0
        %878 = vperm.xlu0 %877, %v816
        %v879 = vpop.permute.xlu0 %878
        %882 = vset.pattern.permute.xlu0 0
        %883 = vperm.xlu0 %882, %v817
        %v884 = vpop.permute.xlu0 %883
        %887 = vset.pattern.permute.xlu0 0
        %888 = vperm.xlu0 %887, %v818
        %v889 = vpop.permute.xlu0 %888
        %892 = vset.pattern.permute.xlu0 0
        %893 = vperm.xlu0 %892, %v819
        %v894 = vpop.permute.xlu0 %893
        %897 = vset.pattern.permute.xlu0 0
        %898 = vperm.xlu0 %897, %v820
        %v899 = vpop.permute.xlu0 %898
        %v901 = vadd.f32 %v741, %v824
        %v902 = vadd.f32 %v742, %v824
        %v903 = vadd.f32 %v743, %v824
        %v904 = vadd.f32 %v744, %v824
        %v905 = vadd.f32 %v745, %v829
        %v906 = vadd.f32 %v746, %v829
        %v907 = vadd.f32 %v747, %v829
        %v908 = vadd.f32 %v748, %v829
        %v909 = vadd.f32 %v749, %v834
        %v910 = vadd.f32 %v750, %v834
        %v911 = vadd.f32 %v751, %v834
        %v912 = vadd.f32 %v752, %v834
        %v913 = vadd.f32 %v753, %v839
        %v914 = vadd.f32 %v754, %v839
        %v915 = vadd.f32 %v755, %v839
        %v916 = vadd.f32 %v756, %v839
        %v917 = vadd.f32 %v757, %v844
        %v918 = vadd.f32 %v758, %v844
        %v919 = vadd.f32 %v759, %v844
        %v920 = vadd.f32 %v760, %v844
        %v921 = vadd.f32 %v761, %v849
        %v922 = vadd.f32 %v762, %v849
        %v923 = vadd.f32 %v763, %v849
        %v924 = vadd.f32 %v764, %v849
        %v925 = vadd.f32 %v765, %v854
        %v926 = vadd.f32 %v766, %v854
        %v927 = vadd.f32 %v767, %v854
        %v928 = vadd.f32 %v768, %v854
        %v929 = vadd.f32 %v769, %v859
        %v930 = vadd.f32 %v770, %v859
        %v931 = vadd.f32 %v771, %v859
        %v932 = vadd.f32 %v772, %v859
        %v933 = vadd.f32 %v773, %v864
        %v934 = vadd.f32 %v774, %v864
        %v935 = vadd.f32 %v775, %v864
        %v936 = vadd.f32 %v776, %v864
        %v937 = vadd.f32 %v777, %v869
        %v938 = vadd.f32 %v778, %v869
        %v939 = vadd.f32 %v779, %v869
        %v940 = vadd.f32 %v780, %v869
        %v941 = vadd.f32 %v781, %v874
        %v942 = vadd.f32 %v782, %v874
        %v943 = vadd.f32 %v783, %v874
        %v944 = vadd.f32 %v784, %v874
        %v945 = vadd.f32 %v785, %v879
        %v946 = vadd.f32 %v786, %v879
        %v947 = vadd.f32 %v787, %v879
        %v948 = vadd.f32 %v788, %v879
        %v949 = vadd.f32 %v789, %v884
        %v950 = vadd.f32 %v790, %v884
        %v951 = vadd.f32 %v791, %v884
        %v952 = vadd.f32 %v792, %v884
        %v953 = vadd.f32 %v793, %v889
        %v954 = vadd.f32 %v794, %v889
        %v955 = vadd.f32 %v795, %v889
        %v956 = vadd.f32 %v796, %v889
        %v957 = vadd.f32 %v797, %v894
        %v958 = vadd.f32 %v798, %v894
        %v959 = vadd.f32 %v799, %v894
        %v960 = vadd.f32 %v800, %v894
        %v961 = vadd.f32 %v801, %v899
        %v962 = vadd.f32 %v802, %v899
        %v963 = vadd.f32 %v803, %v899
        %v964 = vadd.f32 %v804, %v899
        %v965 = vpack.c.bf16 %v905, %v901
        %v966 = vpack.c.bf16 %v906, %v902
        %v967 = vpack.c.bf16 %v907, %v903
        %v968 = vpack.c.bf16 %v908, %v904
        %v969 = vpack.c.bf16 %v913, %v909
        %v970 = vpack.c.bf16 %v914, %v910
        %v971 = vpack.c.bf16 %v915, %v911
        %v972 = vpack.c.bf16 %v916, %v912
        %v973 = vpack.c.bf16 %v921, %v917
        %v974 = vpack.c.bf16 %v922, %v918
        %v975 = vpack.c.bf16 %v923, %v919
        %v976 = vpack.c.bf16 %v924, %v920
        %v977 = vpack.c.bf16 %v929, %v925
        %v978 = vpack.c.bf16 %v930, %v926
        %v979 = vpack.c.bf16 %v931, %v927
        %v980 = vpack.c.bf16 %v932, %v928
        %v981 = vpack.c.bf16 %v937, %v933
        %v982 = vpack.c.bf16 %v938, %v934
        %v983 = vpack.c.bf16 %v939, %v935
        %v984 = vpack.c.bf16 %v940, %v936
        %v985 = vpack.c.bf16 %v945, %v941
        %v986 = vpack.c.bf16 %v946, %v942
        %v987 = vpack.c.bf16 %v947, %v943
        %v988 = vpack.c.bf16 %v948, %v944
        %v989 = vpack.c.bf16 %v953, %v949
        %v990 = vpack.c.bf16 %v954, %v950
        %v991 = vpack.c.bf16 %v955, %v951
        %v992 = vpack.c.bf16 %v956, %v952
        %v993 = vpack.c.bf16 %v961, %v957
        %v994 = vpack.c.bf16 %v962, %v958
        %v995 = vpack.c.bf16 %v963, %v959
        %v996 = vpack.c.bf16 %v964, %v960
        %v997 = vld [vmem:[%s5] sm:$0xf]
        %v998 = vld [vmem:[%s5 + $0x4] sm:$0xf]
        %v999 = vld [vmem:[%s5 + $0x8] sm:$0xf]
        %v1000 = vld [vmem:[%s5 + $0xc] sm:$0xf]
        %v1001 = vld [vmem:[%s5 + $0x10] sm:$0xf]
        %v1002 = vld [vmem:[%s5 + $0x14] sm:$0xf]
        %v1003 = vld [vmem:[%s5 + $0x18] sm:$0xf]
        %v1004 = vld [vmem:[%s5 + $0x1c] sm:$0xf]
        %v1005 = vld [vmem:[%s5 + $0x20] sm:$0xf]
        %v1006 = vld [vmem:[%s5 + $0x24] sm:$0xf]
        %v1007 = vld [vmem:[%s5 + $0x28] sm:$0xf]
        %v1008 = vld [vmem:[%s5 + $0x2c] sm:$0xf]
        %v1009 = vld [vmem:[%s5 + $0x30] sm:$0xf]
        %v1010 = vld [vmem:[%s5 + $0x34] sm:$0xf]
        %v1011 = vld [vmem:[%s5 + $0x38] sm:$0xf]
        %v1012 = vld [vmem:[%s5 + $0x3c] sm:$0xf]
        %v1013 = vld [vmem:[%s6] sm:$0xff]
        %v1014 = vld [vmem:[%s6 + $0x8] sm:$0xff]
        %v1015 = vld [vmem:[%s6 + $0x10] sm:$0xff]
        %v1016 = vld [vmem:[%s6 + $0x18] sm:$0xff]
        %v1017 = vld [vmem:[%s6 + $0x20] sm:$0xff]
        %v1018 = vld [vmem:[%s6 + $0x28] sm:$0xff]
        %v1019 = vld [vmem:[%s6 + $0x30] sm:$0xff]
        %v1020 = vld [vmem:[%s6 + $0x38] sm:$0xff]
        %v1021 = vld [vmem:[%s6 + $0x40] sm:$0xff]
        %v1022 = vld [vmem:[%s6 + $0x48] sm:$0xff]
        %v1023 = vld [vmem:[%s6 + $0x50] sm:$0xff]
        %v1024 = vld [vmem:[%s6 + $0x58] sm:$0xff]
        %v1025 = vld [vmem:[%s6 + $0x60] sm:$0xff]
        %v1026 = vld [vmem:[%s6 + $0x68] sm:$0xff]
        %v1027 = vld [vmem:[%s6 + $0x70] sm:$0xff]
        %v1028 = vld [vmem:[%s6 + $0x78] sm:$0xff]
        %1030 = vset.pattern.permute.xlu0 0
        %1031 = vperm.xlu0 %1030, %v1013
        %v1032 = vpop.permute.xlu0 %1031
        %1035 = vset.pattern.permute.xlu0 0
        %1036 = vperm.xlu0 %1035, %v1014
        %v1037 = vpop.permute.xlu0 %1036
        %1040 = vset.pattern.permute.xlu0 0
        %1041 = vperm.xlu0 %1040, %v1015
        %v1042 = vpop.permute.xlu0 %1041
        %1045 = vset.pattern.permute.xlu0 0
        %1046 = vperm.xlu0 %1045, %v1016
        %v1047 = vpop.permute.xlu0 %1046
        %1050 = vset.pattern.permute.xlu0 0
        %1051 = vperm.xlu0 %1050, %v1017
        %v1052 = vpop.permute.xlu0 %1051
        %1055 = vset.pattern.permute.xlu0 0
        %1056 = vperm.xlu0 %1055, %v1018
        %v1057 = vpop.permute.xlu0 %1056
        %1060 = vset.pattern.permute.xlu0 0
        %1061 = vperm.xlu0 %1060, %v1019
        %v1062 = vpop.permute.xlu0 %1061
        %1065 = vset.pattern.permute.xlu0 0
        %1066 = vperm.xlu0 %1065, %v1020
        %v1067 = vpop.permute.xlu0 %1066
        %1070 = vset.pattern.permute.xlu0 0
        %1071 = vperm.xlu0 %1070, %v1021
        %v1072 = vpop.permute.xlu0 %1071
        %1075 = vset.pattern.permute.xlu0 0
        %1076 = vperm.xlu0 %1075, %v1022
        %v1077 = vpop.permute.xlu0 %1076
        %1080 = vset.pattern.permute.xlu0 0
        %1081 = vperm.xlu0 %1080, %v1023
        %v1082 = vpop.permute.xlu0 %1081
        %1085 = vset.pattern.permute.xlu0 0
        %1086 = vperm.xlu0 %1085, %v1024
        %v1087 = vpop.permute.xlu0 %1086
        %1090 = vset.pattern.permute.xlu0 0
        %1091 = vperm.xlu0 %1090, %v1025
        %v1092 = vpop.permute.xlu0 %1091
        %1095 = vset.pattern.permute.xlu0 0
        %1096 = vperm.xlu0 %1095, %v1026
        %v1097 = vpop.permute.xlu0 %1096
        %1100 = vset.pattern.permute.xlu0 0
        %1101 = vperm.xlu0 %1100, %v1027
        %v1102 = vpop.permute.xlu0 %1101
        %1105 = vset.pattern.permute.xlu0 0
        %1106 = vperm.xlu0 %1105, %v1028
        %v1107 = vpop.permute.xlu0 %1106
        %v1125 = vunpack.c.l.b16 %v997
        %v1126 = vunpack.c.l.b16 %v998
        %v1127 = vunpack.c.l.b16 %v999
        %v1128 = vunpack.c.l.b16 %v1000
        %v1129 = vunpack.c.l.b16 %v1001
        %v1130 = vunpack.c.l.b16 %v1002
        %v1131 = vunpack.c.l.b16 %v1003
        %v1132 = vunpack.c.l.b16 %v1004
        %v1133 = vunpack.c.l.b16 %v1005
        %v1134 = vunpack.c.l.b16 %v1006
        %v1135 = vunpack.c.l.b16 %v1007
        %v1136 = vunpack.c.l.b16 %v1008
        %v1137 = vunpack.c.l.b16 %v1009
        %v1138 = vunpack.c.l.b16 %v1010
        %v1139 = vunpack.c.l.b16 %v1011
        %v1140 = vunpack.c.l.b16 %v1012
        %v1141 = vpack.c.b16 %v1126, %v1125
        %v1142 = vpack.c.b16 %v1128, %v1127
        %v1143 = vpack.c.b16 %v1130, %v1129
        %v1144 = vpack.c.b16 %v1132, %v1131
        %v1145 = vpack.c.b16 %v1134, %v1133
        %v1146 = vpack.c.b16 %v1136, %v1135
        %v1147 = vpack.c.b16 %v1138, %v1137
        %v1148 = vpack.c.b16 %v1140, %v1139
        %1157 = vmatprep.subr.bf16.mxu0 %v994
        %1158 = vmatpush1.bf16.msra.mxu0 %v993
        %1159 = vmatprep.subr.bf16.mxu0 %v990
        %1160 = vmatpush1.bf16.msra.mxu0 %v989
        %1161 = vmatprep.subr.bf16.mxu0 %v986
        %1162 = vmatpush1.bf16.msra.mxu0 %v985
        %1163 = vmatprep.subr.bf16.mxu0 %v982
        %1164 = vmatpush1.bf16.msra.mxu0 %v981
        %1165 = vmatprep.subr.bf16.mxu0 %v978
        %1166 = vmatpush1.bf16.msra.mxu0 %v977
        %1167 = vmatprep.subr.bf16.mxu0 %v974
        %1168 = vmatpush1.bf16.msra.mxu0 %v973
        %1169 = vmatprep.subr.bf16.mxu0 %v970
        %1170 = vmatpush1.bf16.msra.mxu0 %v969
        %1171 = vmatprep.subr.bf16.mxu0 %v966
        %1172 = vmatpush1.bf16.msra.mxu0 %v965
        %1173 = vmatprep.subr.bf16.mxu0 0
        %1174 = vmatpush2.bf16.msra.mxu0 0
        %1175 = vmatprep.subr.bf16.mxu0 0
        %1176 = vmatpush2.bf16.msra.mxu0 0
        %1177 = vmatprep.subr.bf16.mxu0 0
        %1178 = vmatpush2.bf16.msra.mxu0 0
        %1179 = vmatprep.subr.bf16.mxu0 0
        %1180 = vmatpush2.bf16.msra.mxu0 0
        %1181 = vmatprep.subr.bf16.mxu0 0
        %1182 = vmatpush2.bf16.msra.mxu0 0
        %1183 = vmatprep.subr.bf16.mxu0 0
        %1184 = vmatpush2.bf16.msra.mxu0 0
        %1185 = vmatprep.subr.bf16.mxu0 0
        %1186 = vmatpush2.bf16.msra.mxu0 0
        %1187 = vmatprep.subr.bf16.mxu0 0
        %1188 = vmatpush2.bf16.msra.mxu0 0
        %1189 = vmatprep.mubr.bf16.mxu0 0
        %1190 = vmatmul.mubr.bf16.gmra.mxu0 %v1141
        %v1191 = vpop.f32.mrf.mxu0
        %v1192 = vadd.f32 %v1032, %v1191
        %v1193 = vpop.f32.mrf.mxu0
        %v1194 = vadd.f32 %v1032, %v1193
        %v1195 = vpop.f32.mrf.mxu0
        %v1196 = vadd.f32 %v1037, %v1195
        %v1197 = vpop.f32.mrf.mxu0
        %v1198 = vadd.f32 %v1037, %v1197
        %1199 = vmatprep.mubr.bf16.mxu0 0
        %1200 = vmatmul.mubr.bf16.gmra.mxu0 %v1142
        %v1201 = vpop.f32.mrf.mxu0
        %v1202 = vadd.f32 %v1042, %v1201
        %v1203 = vpop.f32.mrf.mxu0
        %v1204 = vadd.f32 %v1042, %v1203
        %v1205 = vpop.f32.mrf.mxu0
        %v1206 = vadd.f32 %v1047, %v1205
        %v1207 = vpop.f32.mrf.mxu0
        %v1208 = vadd.f32 %v1047, %v1207
        %1209 = vmatprep.mubr.bf16.mxu0 0
        %1210 = vmatmul.mubr.bf16.gmra.mxu0 %v1143
        %v1211 = vpop.f32.mrf.mxu0
        %v1212 = vadd.f32 %v1052, %v1211
        %v1213 = vpop.f32.mrf.mxu0
        %v1214 = vadd.f32 %v1052, %v1213
        %v1215 = vpop.f32.mrf.mxu0
        %v1216 = vadd.f32 %v1057, %v1215
        %v1217 = vpop.f32.mrf.mxu0
        %v1218 = vadd.f32 %v1057, %v1217
        %1219 = vmatprep.mubr.bf16.mxu0 0
        %1220 = vmatmul.mubr.bf16.gmra.mxu0 %v1144
        %v1221 = vpop.f32.mrf.mxu0
        %v1222 = vadd.f32 %v1062, %v1221
        %v1223 = vpop.f32.mrf.mxu0
        %v1224 = vadd.f32 %v1062, %v1223
        %v1225 = vpop.f32.mrf.mxu0
        %v1226 = vadd.f32 %v1067, %v1225
        %v1227 = vpop.f32.mrf.mxu0
        %v1228 = vadd.f32 %v1067, %v1227
        %1229 = vmatprep.mubr.bf16.mxu0 0
        %1230 = vmatmul.mubr.bf16.gmra.mxu0 %v1145
        %v1231 = vpop.f32.mrf.mxu0
        %v1232 = vadd.f32 %v1072, %v1231
        %v1233 = vpop.f32.mrf.mxu0
        %v1234 = vadd.f32 %v1072, %v1233
        %v1235 = vpop.f32.mrf.mxu0
        %v1236 = vadd.f32 %v1077, %v1235
        %v1237 = vpop.f32.mrf.mxu0
        %v1238 = vadd.f32 %v1077, %v1237
        %1239 = vmatprep.mubr.bf16.mxu0 0
        %1240 = vmatmul.mubr.bf16.gmra.mxu0 %v1146
        %v1241 = vpop.f32.mrf.mxu0
        %v1242 = vadd.f32 %v1082, %v1241
        %v1243 = vpop.f32.mrf.mxu0
        %v1244 = vadd.f32 %v1082, %v1243
        %v1245 = vpop.f32.mrf.mxu0
        %v1246 = vadd.f32 %v1087, %v1245
        %v1247 = vpop.f32.mrf.mxu0
        %v1248 = vadd.f32 %v1087, %v1247
        %1249 = vmatprep.mubr.bf16.mxu0 0
        %1250 = vmatmul.mubr.bf16.gmra.mxu0 %v1147
        %v1251 = vpop.f32.mrf.mxu0
        %v1252 = vadd.f32 %v1092, %v1251
        %v1253 = vpop.f32.mrf.mxu0
        %v1254 = vadd.f32 %v1092, %v1253
        %v1255 = vpop.f32.mrf.mxu0
        %v1256 = vadd.f32 %v1097, %v1255
        %v1257 = vpop.f32.mrf.mxu0
        %v1258 = vadd.f32 %v1097, %v1257
        %1259 = vmatprep.mubr.bf16.mxu0 0
        %1260 = vmatmul.mubr.bf16.gmra.mxu0 %v1148
        %v1261 = vpop.f32.mrf.mxu0
        %v1262 = vadd.f32 %v1102, %v1261
        %v1263 = vpop.f32.mrf.mxu0
        %v1264 = vadd.f32 %v1102, %v1263
        %v1265 = vpop.f32.mrf.mxu0
        %v1266 = vadd.f32 %v1107, %v1265
        %v1267 = vpop.f32.mrf.mxu0
        %v1268 = vadd.f32 %v1107, %v1267
        %1269 = vdwg.mxu0
        %1270 = vmatprep.subr.bf16.mxu0 %v996
        %1271 = vmatpush1.bf16.msra.mxu0 %v995
        %1272 = vmatprep.subr.bf16.mxu0 %v992
        %1273 = vmatpush1.bf16.msra.mxu0 %v991
        %1274 = vmatprep.subr.bf16.mxu0 %v988
        %1275 = vmatpush1.bf16.msra.mxu0 %v987
        %1276 = vmatprep.subr.bf16.mxu0 %v984
        %1277 = vmatpush1.bf16.msra.mxu0 %v983
        %1278 = vmatprep.subr.bf16.mxu0 %v980
        %1279 = vmatpush1.bf16.msra.mxu0 %v979
        %1280 = vmatprep.subr.bf16.mxu0 %v976
        %1281 = vmatpush1.bf16.msra.mxu0 %v975
        %1282 = vmatprep.subr.bf16.mxu0 %v972
        %1283 = vmatpush1.bf16.msra.mxu0 %v971
        %1284 = vmatprep.subr.bf16.mxu0 %v968
        %1285 = vmatpush1.bf16.msra.mxu0 %v967
        %1286 = vmatprep.subr.bf16.mxu0 0
        %1287 = vmatpush2.bf16.msra.mxu0 0
        %1288 = vmatprep.subr.bf16.mxu0 0
        %1289 = vmatpush2.bf16.msra.mxu0 0
        %1290 = vmatprep.subr.bf16.mxu0 0
        %1291 = vmatpush2.bf16.msra.mxu0 0
        %1292 = vmatprep.subr.bf16.mxu0 0
        %1293 = vmatpush2.bf16.msra.mxu0 0
        %1294 = vmatprep.subr.bf16.mxu0 0
        %1295 = vmatpush2.bf16.msra.mxu0 0
        %1296 = vmatprep.subr.bf16.mxu0 0
        %1297 = vmatpush2.bf16.msra.mxu0 0
        %1298 = vmatprep.subr.bf16.mxu0 0
        %1299 = vmatpush2.bf16.msra.mxu0 0
        %1300 = vmatprep.subr.bf16.mxu0 0
        %1301 = vmatpush2.bf16.msra.mxu0 0
        %1302 = vmatprep.mubr.bf16.mxu0 0
        %1303 = vmatmul.mubr.bf16.gmra.mxu0 %v1141
        %v1304 = vpop.f32.mrf.mxu0
        %v1305 = vadd.f32 %v1032, %v1304
        %v1306 = vpop.f32.mrf.mxu0
        %v1307 = vadd.f32 %v1032, %v1306
        %v1308 = vpop.f32.mrf.mxu0
        %v1309 = vadd.f32 %v1037, %v1308
        %v1310 = vpop.f32.mrf.mxu0
        %v1311 = vadd.f32 %v1037, %v1310
        %1312 = vmatprep.mubr.bf16.mxu0 0
        %1313 = vmatmul.mubr.bf16.gmra.mxu0 %v1142
        %v1314 = vpop.f32.mrf.mxu0
        %v1315 = vadd.f32 %v1042, %v1314
        %v1316 = vpop.f32.mrf.mxu0
        %v1317 = vadd.f32 %v1042, %v1316
        %v1318 = vpop.f32.mrf.mxu0
        %v1319 = vadd.f32 %v1047, %v1318
        %v1320 = vpop.f32.mrf.mxu0
        %v1321 = vadd.f32 %v1047, %v1320
        %1322 = vmatprep.mubr.bf16.mxu0 0
        %1323 = vmatmul.mubr.bf16.gmra.mxu0 %v1143
        %v1324 = vpop.f32.mrf.mxu0
        %v1325 = vadd.f32 %v1052, %v1324
        %v1326 = vpop.f32.mrf.mxu0
        %v1327 = vadd.f32 %v1052, %v1326
        %v1328 = vpop.f32.mrf.mxu0
        %v1329 = vadd.f32 %v1057, %v1328
        %v1330 = vpop.f32.mrf.mxu0
        %v1331 = vadd.f32 %v1057, %v1330
        %1332 = vmatprep.mubr.bf16.mxu0 0
        %1333 = vmatmul.mubr.bf16.gmra.mxu0 %v1144
        %v1334 = vpop.f32.mrf.mxu0
        %v1335 = vadd.f32 %v1062, %v1334
        %v1336 = vpop.f32.mrf.mxu0
        %v1337 = vadd.f32 %v1062, %v1336
        %v1338 = vpop.f32.mrf.mxu0
        %v1339 = vadd.f32 %v1067, %v1338
        %v1340 = vpop.f32.mrf.mxu0
        %v1341 = vadd.f32 %v1067, %v1340
        %1342 = vmatprep.mubr.bf16.mxu0 0
        %1343 = vmatmul.mubr.bf16.gmra.mxu0 %v1145
        %v1344 = vpop.f32.mrf.mxu0
        %v1345 = vadd.f32 %v1072, %v1344
        %v1346 = vpop.f32.mrf.mxu0
        %v1347 = vadd.f32 %v1072, %v1346
        %v1348 = vpop.f32.mrf.mxu0
        %v1349 = vadd.f32 %v1077, %v1348
        %v1350 = vpop.f32.mrf.mxu0
        %v1351 = vadd.f32 %v1077, %v1350
        %1352 = vmatprep.mubr.bf16.mxu0 0
        %1353 = vmatmul.mubr.bf16.gmra.mxu0 %v1146
        %v1354 = vpop.f32.mrf.mxu0
        %v1355 = vadd.f32 %v1082, %v1354
        %v1356 = vpop.f32.mrf.mxu0
        %v1357 = vadd.f32 %v1082, %v1356
        %v1358 = vpop.f32.mrf.mxu0
        %v1359 = vadd.f32 %v1087, %v1358
        %v1360 = vpop.f32.mrf.mxu0
        %v1361 = vadd.f32 %v1087, %v1360
        %1362 = vmatprep.mubr.bf16.mxu0 0
        %1363 = vmatmul.mubr.bf16.gmra.mxu0 %v1147
        %v1364 = vpop.f32.mrf.mxu0
        %v1365 = vadd.f32 %v1092, %v1364
        %v1366 = vpop.f32.mrf.mxu0
        %v1367 = vadd.f32 %v1092, %v1366
        %v1368 = vpop.f32.mrf.mxu0
        %v1369 = vadd.f32 %v1097, %v1368
        %v1370 = vpop.f32.mrf.mxu0
        %v1371 = vadd.f32 %v1097, %v1370
        %1372 = vmatprep.mubr.bf16.mxu0 0
        %1373 = vmatmul.mubr.bf16.gmra.mxu0 %v1148
        %v1374 = vpop.f32.mrf.mxu0
        %v1375 = vadd.f32 %v1102, %v1374
        %v1376 = vpop.f32.mrf.mxu0
        %v1377 = vadd.f32 %v1102, %v1376
        %v1378 = vpop.f32.mrf.mxu0
        %v1379 = vadd.f32 %v1107, %v1378
        %v1380 = vpop.f32.mrf.mxu0
        %v1381 = vadd.f32 %v1107, %v1380
        %1382 = vdwg.mxu0
        %v1383 = vpack.c.bf16 %v1196, %v1192
        %v1384 = vpack.c.bf16 %v1198, %v1194
        %v1385 = vpack.c.bf16 %v1309, %v1305
        %v1386 = vpack.c.bf16 %v1311, %v1307
        %v1387 = vpack.c.bf16 %v1206, %v1202
        %v1388 = vpack.c.bf16 %v1208, %v1204
        %v1389 = vpack.c.bf16 %v1319, %v1315
        %v1390 = vpack.c.bf16 %v1321, %v1317
        %v1391 = vpack.c.bf16 %v1216, %v1212
        %v1392 = vpack.c.bf16 %v1218, %v1214
        %v1393 = vpack.c.bf16 %v1329, %v1325
        %v1394 = vpack.c.bf16 %v1331, %v1327
        %v1395 = vpack.c.bf16 %v1226, %v1222
        %v1396 = vpack.c.bf16 %v1228, %v1224
        %v1397 = vpack.c.bf16 %v1339, %v1335
        %v1398 = vpack.c.bf16 %v1341, %v1337
        %v1399 = vpack.c.bf16 %v1236, %v1232
        %v1400 = vpack.c.bf16 %v1238, %v1234
        %v1401 = vpack.c.bf16 %v1349, %v1345
        %v1402 = vpack.c.bf16 %v1351, %v1347
        %v1403 = vpack.c.bf16 %v1246, %v1242
        %v1404 = vpack.c.bf16 %v1248, %v1244
        %v1405 = vpack.c.bf16 %v1359, %v1355
        %v1406 = vpack.c.bf16 %v1361, %v1357
        %v1407 = vpack.c.bf16 %v1256, %v1252
        %v1408 = vpack.c.bf16 %v1258, %v1254
        %v1409 = vpack.c.bf16 %v1369, %v1365
        %v1410 = vpack.c.bf16 %v1371, %v1367
        %v1411 = vpack.c.bf16 %v1266, %v1262
        %v1412 = vpack.c.bf16 %v1268, %v1264
        %v1413 = vpack.c.bf16 %v1379, %v1375
        %v1414 = vpack.c.bf16 %v1381, %v1377
        %v1447 = vunpack.c.l.b16 %v1383
        %v1448 = vunpack.c.l.b16 %v1384
        %v1449 = vunpack.c.l.b16 %v1385
        %v1450 = vunpack.c.l.b16 %v1386
        %v1451 = vunpack.c.h.b16 %v1383
        %v1452 = vunpack.c.h.b16 %v1384
        %v1453 = vunpack.c.h.b16 %v1385
        %v1454 = vunpack.c.h.b16 %v1386
        %v1455 = vunpack.c.l.b16 %v1387
        %v1456 = vunpack.c.l.b16 %v1388
        %v1457 = vunpack.c.l.b16 %v1389
        %v1458 = vunpack.c.l.b16 %v1390
        %v1459 = vunpack.c.h.b16 %v1387
        %v1460 = vunpack.c.h.b16 %v1388
        %v1461 = vunpack.c.h.b16 %v1389
        %v1462 = vunpack.c.h.b16 %v1390
        %v1463 = vunpack.c.l.b16 %v1391
        %v1464 = vunpack.c.l.b16 %v1392
        %v1465 = vunpack.c.l.b16 %v1393
        %v1466 = vunpack.c.l.b16 %v1394
        %v1467 = vunpack.c.h.b16 %v1391
        %v1468 = vunpack.c.h.b16 %v1392
        %v1469 = vunpack.c.h.b16 %v1393
        %v1470 = vunpack.c.h.b16 %v1394
        %v1471 = vunpack.c.l.b16 %v1395
        %v1472 = vunpack.c.l.b16 %v1396
        %v1473 = vunpack.c.l.b16 %v1397
        %v1474 = vunpack.c.l.b16 %v1398
        %v1475 = vunpack.c.h.b16 %v1395
        %v1476 = vunpack.c.h.b16 %v1396
        %v1477 = vunpack.c.h.b16 %v1397
        %v1478 = vunpack.c.h.b16 %v1398
        %v1479 = vunpack.c.l.b16 %v1399
        %v1480 = vunpack.c.l.b16 %v1400
        %v1481 = vunpack.c.l.b16 %v1401
        %v1482 = vunpack.c.l.b16 %v1402
        %v1483 = vunpack.c.h.b16 %v1399
        %v1484 = vunpack.c.h.b16 %v1400
        %v1485 = vunpack.c.h.b16 %v1401
        %v1486 = vunpack.c.h.b16 %v1402
        %v1487 = vunpack.c.l.b16 %v1403
        %v1488 = vunpack.c.l.b16 %v1404
        %v1489 = vunpack.c.l.b16 %v1405
        %v1490 = vunpack.c.l.b16 %v1406
        %v1491 = vunpack.c.h.b16 %v1403
        %v1492 = vunpack.c.h.b16 %v1404
        %v1493 = vunpack.c.h.b16 %v1405
        %v1494 = vunpack.c.h.b16 %v1406
        %v1495 = vunpack.c.l.b16 %v1407
        %v1496 = vunpack.c.l.b16 %v1408
        %v1497 = vunpack.c.l.b16 %v1409
        %v1498 = vunpack.c.l.b16 %v1410
        %v1499 = vunpack.c.h.b16 %v1407
        %v1500 = vunpack.c.h.b16 %v1408
        %v1501 = vunpack.c.h.b16 %v1409
        %v1502 = vunpack.c.h.b16 %v1410
        %v1503 = vunpack.c.l.b16 %v1411
        %v1504 = vunpack.c.l.b16 %v1412
        %v1505 = vunpack.c.l.b16 %v1413
        %v1506 = vunpack.c.l.b16 %v1414
        %v1507 = vunpack.c.h.b16 %v1411
        %v1508 = vunpack.c.h.b16 %v1412
        %v1509 = vunpack.c.h.b16 %v1413
        %v1510 = vunpack.c.h.b16 %v1414
        %v1511 = vpack.c.b16 %v1448, %v1447
        %v1512 = vpack.c.b16 %v1450, %v1449
        %v1513 = vpack.c.b16 %v1452, %v1451
        %v1514 = vpack.c.b16 %v1454, %v1453
        %v1515 = vpack.c.b16 %v1456, %v1455
        %v1516 = vpack.c.b16 %v1458, %v1457
        %v1517 = vpack.c.b16 %v1460, %v1459
        %v1518 = vpack.c.b16 %v1462, %v1461
        %v1519 = vpack.c.b16 %v1464, %v1463
        %v1520 = vpack.c.b16 %v1466, %v1465
        %v1521 = vpack.c.b16 %v1468, %v1467
        %v1522 = vpack.c.b16 %v1470, %v1469
        %v1523 = vpack.c.b16 %v1472, %v1471
        %v1524 = vpack.c.b16 %v1474, %v1473
        %v1525 = vpack.c.b16 %v1476, %v1475
        %v1526 = vpack.c.b16 %v1478, %v1477
        %v1527 = vpack.c.b16 %v1480, %v1479
        %v1528 = vpack.c.b16 %v1482, %v1481
        %v1529 = vpack.c.b16 %v1484, %v1483
        %v1530 = vpack.c.b16 %v1486, %v1485
        %v1531 = vpack.c.b16 %v1488, %v1487
        %v1532 = vpack.c.b16 %v1490, %v1489
        %v1533 = vpack.c.b16 %v1492, %v1491
        %v1534 = vpack.c.b16 %v1494, %v1493
        %v1535 = vpack.c.b16 %v1496, %v1495
        %v1536 = vpack.c.b16 %v1498, %v1497
        %v1537 = vpack.c.b16 %v1500, %v1499
        %v1538 = vpack.c.b16 %v1502, %v1501
        %v1539 = vpack.c.b16 %v1504, %v1503
        %v1540 = vpack.c.b16 %v1506, %v1505
        %v1541 = vpack.c.b16 %v1508, %v1507
        %v1542 = vpack.c.b16 %v1510, %v1509
        %1575 = vst [vmem:[%s536] sm:$0xff] %v1511
        %1576 = vst [vmem:[%s536 + $0x8] sm:$0xff] %v1512
        %1577 = vst [vmem:[%s536 + $0x10] sm:$0xff] %v1513
        %1578 = vst [vmem:[%s536 + $0x18] sm:$0xff] %v1514
        %1579 = vst [vmem:[%s536 + $0x20] sm:$0xff] %v1515
        %1580 = vst [vmem:[%s536 + $0x28] sm:$0xff] %v1516
        %1581 = vst [vmem:[%s536 + $0x30] sm:$0xff] %v1517
        %1582 = vst [vmem:[%s536 + $0x38] sm:$0xff] %v1518
        %1583 = vst [vmem:[%s536 + $0x40] sm:$0xff] %v1519
        %1584 = vst [vmem:[%s536 + $0x48] sm:$0xff] %v1520
        %1585 = vst [vmem:[%s536 + $0x50] sm:$0xff] %v1521
        %1586 = vst [vmem:[%s536 + $0x58] sm:$0xff] %v1522
        %1587 = vst [vmem:[%s536 + $0x60] sm:$0xff] %v1523
        %1588 = vst [vmem:[%s536 + $0x68] sm:$0xff] %v1524
        %1589 = vst [vmem:[%s536 + $0x70] sm:$0xff] %v1525
        %1590 = vst [vmem:[%s536 + $0x78] sm:$0xff] %v1526
        %1591 = vst [vmem:[%s536 + $0x80] sm:$0xff] %v1527
        %1592 = vst [vmem:[%s536 + $0x88] sm:$0xff] %v1528
        %1593 = vst [vmem:[%s536 + $0x90] sm:$0xff] %v1529
        %1594 = vst [vmem:[%s536 + $0x98] sm:$0xff] %v1530
        %1595 = vst [vmem:[%s536 + $0xa0] sm:$0xff] %v1531
        %1596 = vst [vmem:[%s536 + $0xa8] sm:$0xff] %v1532
        %1597 = vst [vmem:[%s536 + $0xb0] sm:$0xff] %v1533
        %1598 = vst [vmem:[%s536 + $0xb8] sm:$0xff] %v1534
        %1599 = vst [vmem:[%s536 + $0xc0] sm:$0xff] %v1535
        %1600 = vst [vmem:[%s536 + $0xc8] sm:$0xff] %v1536
        %1601 = vst [vmem:[%s536 + $0xd0] sm:$0xff] %v1537
        %1602 = vst [vmem:[%s536 + $0xd8] sm:$0xff] %v1538
        %1603 = vst [vmem:[%s536 + $0xe0] sm:$0xff] %v1539
        %1604 = vst [vmem:[%s536 + $0xe8] sm:$0xff] %v1540
        %1605 = vst [vmem:[%s536 + $0xf0] sm:$0xff] %v1541
        %1606 = vst [vmem:[%s536 + $0xf8] sm:$0xff] %v1542
        %1607 = vxpose.xlu0.b32.start [1/16] %v901, 128
        %1608 = vxpose.xlu0.b32.cont [2/16] %v905, 128
        %1609 = vxpose.xlu0.b32.cont [3/16] %v909, 128
        %1610 = vxpose.xlu0.b32.cont [4/16] %v913, 128
        %1611 = vxpose.xlu0.b32.cont [5/16] %v917, 128
        %1612 = vxpose.xlu0.b32.cont [6/16] %v921, 128
        %1613 = vxpose.xlu0.b32.cont [7/16] %v925, 128
        %1614 = vxpose.xlu0.b32.cont [8/16] %v929, 128
        %1615 = vxpose.xlu0.b32.cont [9/16] %v933, 128
        %1616 = vxpose.xlu0.b32.cont [10/16] %v937, 128
        %1617 = vxpose.xlu0.b32.cont [11/16] %v941, 128
        %1618 = vxpose.xlu0.b32.cont [12/16] %v945, 128
        %1619 = vxpose.xlu0.b32.cont [13/16] %v949, 128
        %1620 = vxpose.xlu0.b32.cont [14/16] %v953, 128
        %1621 = vxpose.xlu0.b32.cont [15/16] %v957, 128
        %1622 = vxpose.xlu0.b32.end [16/16] %v961, 128
        %v1623 = vpop.trf.xlu0
        %v1624 = vpop.trf.xlu0
        %v1625 = vpop.trf.xlu0
        %v1626 = vpop.trf.xlu0
        %v1627 = vpop.trf.xlu0
        %v1628 = vpop.trf.xlu0
        %v1629 = vpop.trf.xlu0
        %v1630 = vpop.trf.xlu0
        %v1631 = vpop.trf.xlu0
        %v1632 = vpop.trf.xlu0
        %v1633 = vpop.trf.xlu0
        %v1634 = vpop.trf.xlu0
        %v1635 = vpop.trf.xlu0
        %v1636 = vpop.trf.xlu0
        %v1637 = vpop.trf.xlu0
        %v1638 = vpop.trf.xlu0
        %1639 = vxpose.xlu0.b32.start [1/16] %v902, 128
        %1640 = vxpose.xlu0.b32.cont [2/16] %v906, 128
        %1641 = vxpose.xlu0.b32.cont [3/16] %v910, 128
        %1642 = vxpose.xlu0.b32.cont [4/16] %v914, 128
        %1643 = vxpose.xlu0.b32.cont [5/16] %v918, 128
        %1644 = vxpose.xlu0.b32.cont [6/16] %v922, 128
        %1645 = vxpose.xlu0.b32.cont [7/16] %v926, 128
        %1646 = vxpose.xlu0.b32.cont [8/16] %v930, 128
        %1647 = vxpose.xlu0.b32.cont [9/16] %v934, 128
        %1648 = vxpose.xlu0.b32.cont [10/16] %v938, 128
        %1649 = vxpose.xlu0.b32.cont [11/16] %v942, 128
        %1650 = vxpose.xlu0.b32.cont [12/16] %v946, 128
        %1651 = vxpose.xlu0.b32.cont [13/16] %v950, 128
        %1652 = vxpose.xlu0.b32.cont [14/16] %v954, 128
        %1653 = vxpose.xlu0.b32.cont [15/16] %v958, 128
        %1654 = vxpose.xlu0.b32.end [16/16] %v962, 128
        %v1655 = vpop.trf.xlu0
        %v1656 = vpop.trf.xlu0
        %v1657 = vpop.trf.xlu0
        %v1658 = vpop.trf.xlu0
        %v1659 = vpop.trf.xlu0
        %v1660 = vpop.trf.xlu0
        %v1661 = vpop.trf.xlu0
        %v1662 = vpop.trf.xlu0
        %v1663 = vpop.trf.xlu0
        %v1664 = vpop.trf.xlu0
        %v1665 = vpop.trf.xlu0
        %v1666 = vpop.trf.xlu0
        %v1667 = vpop.trf.xlu0
        %v1668 = vpop.trf.xlu0
        %v1669 = vpop.trf.xlu0
        %v1670 = vpop.trf.xlu0
        %1671 = vxpose.xlu0.b32.start [1/16] %v903, 128
        %1672 = vxpose.xlu0.b32.cont [2/16] %v907, 128
        %1673 = vxpose.xlu0.b32.cont [3/16] %v911, 128
        %1674 = vxpose.xlu0.b32.cont [4/16] %v915, 128
        %1675 = vxpose.xlu0.b32.cont [5/16] %v919, 128
        %1676 = vxpose.xlu0.b32.cont [6/16] %v923, 128
        %1677 = vxpose.xlu0.b32.cont [7/16] %v927, 128
        %1678 = vxpose.xlu0.b32.cont [8/16] %v931, 128
        %1679 = vxpose.xlu0.b32.cont [9/16] %v935, 128
        %1680 = vxpose.xlu0.b32.cont [10/16] %v939, 128
        %1681 = vxpose.xlu0.b32.cont [11/16] %v943, 128
        %1682 = vxpose.xlu0.b32.cont [12/16] %v947, 128
        %1683 = vxpose.xlu0.b32.cont [13/16] %v951, 128
        %1684 = vxpose.xlu0.b32.cont [14/16] %v955, 128
        %1685 = vxpose.xlu0.b32.cont [15/16] %v959, 128
        %1686 = vxpose.xlu0.b32.end [16/16] %v963, 128
        %v1687 = vpop.trf.xlu0
        %v1688 = vpop.trf.xlu0
        %v1689 = vpop.trf.xlu0
        %v1690 = vpop.trf.xlu0
        %v1691 = vpop.trf.xlu0
        %v1692 = vpop.trf.xlu0
        %v1693 = vpop.trf.xlu0
        %v1694 = vpop.trf.xlu0
        %v1695 = vpop.trf.xlu0
        %v1696 = vpop.trf.xlu0
        %v1697 = vpop.trf.xlu0
        %v1698 = vpop.trf.xlu0
        %v1699 = vpop.trf.xlu0
        %v1700 = vpop.trf.xlu0
        %v1701 = vpop.trf.xlu0
        %v1702 = vpop.trf.xlu0
        %1703 = vxpose.xlu0.b32.start [1/16] %v904, 128
        %1704 = vxpose.xlu0.b32.cont [2/16] %v908, 128
        %1705 = vxpose.xlu0.b32.cont [3/16] %v912, 128
        %1706 = vxpose.xlu0.b32.cont [4/16] %v916, 128
        %1707 = vxpose.xlu0.b32.cont [5/16] %v920, 128
        %1708 = vxpose.xlu0.b32.cont [6/16] %v924, 128
        %1709 = vxpose.xlu0.b32.cont [7/16] %v928, 128
        %1710 = vxpose.xlu0.b32.cont [8/16] %v932, 128
        %1711 = vxpose.xlu0.b32.cont [9/16] %v936, 128
        %1712 = vxpose.xlu0.b32.cont [10/16] %v940, 128
        %1713 = vxpose.xlu0.b32.cont [11/16] %v944, 128
        %1714 = vxpose.xlu0.b32.cont [12/16] %v948, 128
        %1715 = vxpose.xlu0.b32.cont [13/16] %v952, 128
        %1716 = vxpose.xlu0.b32.cont [14/16] %v956, 128
        %1717 = vxpose.xlu0.b32.cont [15/16] %v960, 128
        %1718 = vxpose.xlu0.b32.end [16/16] %v964, 128
        %v1719 = vpop.trf.xlu0
        %v1720 = vpop.trf.xlu0
        %v1721 = vpop.trf.xlu0
        %v1722 = vpop.trf.xlu0
        %v1723 = vpop.trf.xlu0
        %v1724 = vpop.trf.xlu0
        %v1725 = vpop.trf.xlu0
        %v1726 = vpop.trf.xlu0
        %v1727 = vpop.trf.xlu0
        %v1728 = vpop.trf.xlu0
        %v1729 = vpop.trf.xlu0
        %v1730 = vpop.trf.xlu0
        %v1731 = vpop.trf.xlu0
        %v1732 = vpop.trf.xlu0
        %v1733 = vpop.trf.xlu0
        %v1734 = vpop.trf.xlu0
        %v1735 = vpack.c.bf16 %v1624, %v1623
        %v1736 = vpack.c.bf16 %v1626, %v1625
        %v1737 = vpack.c.bf16 %v1628, %v1627
        %v1738 = vpack.c.bf16 %v1630, %v1629
        %v1739 = vpack.c.bf16 %v1632, %v1631
        %v1740 = vpack.c.bf16 %v1634, %v1633
        %v1741 = vpack.c.bf16 %v1636, %v1635
        %v1742 = vpack.c.bf16 %v1638, %v1637
        %v1743 = vpack.c.bf16 %v1656, %v1655
        %v1744 = vpack.c.bf16 %v1658, %v1657
        %v1745 = vpack.c.bf16 %v1660, %v1659
        %v1746 = vpack.c.bf16 %v1662, %v1661
        %v1747 = vpack.c.bf16 %v1664, %v1663
        %v1748 = vpack.c.bf16 %v1666, %v1665
        %v1749 = vpack.c.bf16 %v1668, %v1667
        %v1750 = vpack.c.bf16 %v1670, %v1669
        %v1751 = vpack.c.bf16 %v1688, %v1687
        %v1752 = vpack.c.bf16 %v1690, %v1689
        %v1753 = vpack.c.bf16 %v1692, %v1691
        %v1754 = vpack.c.bf16 %v1694, %v1693
        %v1755 = vpack.c.bf16 %v1696, %v1695
        %v1756 = vpack.c.bf16 %v1698, %v1697
        %v1757 = vpack.c.bf16 %v1700, %v1699
        %v1758 = vpack.c.bf16 %v1702, %v1701
        %v1759 = vpack.c.bf16 %v1720, %v1719
        %v1760 = vpack.c.bf16 %v1722, %v1721
        %v1761 = vpack.c.bf16 %v1724, %v1723
        %v1762 = vpack.c.bf16 %v1726, %v1725
        %v1763 = vpack.c.bf16 %v1728, %v1727
        %v1764 = vpack.c.bf16 %v1730, %v1729
        %v1765 = vpack.c.bf16 %v1732, %v1731
        %v1766 = vpack.c.bf16 %v1734, %v1733
        %v1767 = vld [vmem:[%s3] sm:$0xff]
        %v1768 = vld [vmem:[%s3 + $0x8] sm:$0xff]
        %v1769 = vld [vmem:[%s3 + $0x10] sm:$0xff]
        %v1770 = vld [vmem:[%s3 + $0x18] sm:$0xff]
        %v1771 = vld [vmem:[%s3 + $0x20] sm:$0xff]
        %v1772 = vld [vmem:[%s3 + $0x28] sm:$0xff]
        %v1773 = vld [vmem:[%s3 + $0x30] sm:$0xff]
        %v1774 = vld [vmem:[%s3 + $0x38] sm:$0xff]
        %v1775 = vld [vmem:[%s3 + $0x40] sm:$0xff]
        %v1776 = vld [vmem:[%s3 + $0x48] sm:$0xff]
        %v1777 = vld [vmem:[%s3 + $0x50] sm:$0xff]
        %v1778 = vld [vmem:[%s3 + $0x58] sm:$0xff]
        %v1779 = vld [vmem:[%s3 + $0x60] sm:$0xff]
        %v1780 = vld [vmem:[%s3 + $0x68] sm:$0xff]
        %v1781 = vld [vmem:[%s3 + $0x70] sm:$0xff]
        %v1782 = vld [vmem:[%s3 + $0x78] sm:$0xff]
        %v1783 = vld [vmem:[%s4] sm:$0x3]
        %v1785 = vlaneseq
        %v1786 = vshrl.u32 %v1785, 7
        %v1787 = vsub.s32 0, %v1786
        %v1788 = vrot.slane %v1783, %v1787
        %v1789 = vlaneseq
        %v1790 = vshrl.u32 %v1789, 7
        %v1791 = vsub.s32 1, %v1790
        %v1792 = vrot.slane %v1783, %v1791
        %v1811 = vunpack.c.l.b16 %v1767
        %v1812 = vunpack.c.h.b16 %v1767
        %v1813 = vunpack.c.l.b16 %v1768
        %v1814 = vunpack.c.h.b16 %v1768
        %v1815 = vunpack.c.l.b16 %v1769
        %v1816 = vunpack.c.h.b16 %v1769
        %v1817 = vunpack.c.l.b16 %v1770
        %v1818 = vunpack.c.h.b16 %v1770
        %v1819 = vunpack.c.l.b16 %v1771
        %v1820 = vunpack.c.h.b16 %v1771
        %v1821 = vunpack.c.l.b16 %v1772
        %v1822 = vunpack.c.h.b16 %v1772
        %v1823 = vunpack.c.l.b16 %v1773
        %v1824 = vunpack.c.h.b16 %v1773
        %v1825 = vunpack.c.l.b16 %v1774
        %v1826 = vunpack.c.h.b16 %v1774
        %v1827 = vunpack.c.l.b16 %v1775
        %v1828 = vunpack.c.h.b16 %v1775
        %v1829 = vunpack.c.l.b16 %v1776
        %v1830 = vunpack.c.h.b16 %v1776
        %v1831 = vunpack.c.l.b16 %v1777
        %v1832 = vunpack.c.h.b16 %v1777
        %v1833 = vunpack.c.l.b16 %v1778
        %v1834 = vunpack.c.h.b16 %v1778
        %v1835 = vunpack.c.l.b16 %v1779
        %v1836 = vunpack.c.h.b16 %v1779
        %v1837 = vunpack.c.l.b16 %v1780
        %v1838 = vunpack.c.h.b16 %v1780
        %v1839 = vunpack.c.l.b16 %v1781
        %v1840 = vunpack.c.h.b16 %v1781
        %v1841 = vunpack.c.l.b16 %v1782
        %v1842 = vunpack.c.h.b16 %v1782
        %v1843 = vpack.c.b16 %v1813, %v1811
        %v1844 = vpack.c.b16 %v1814, %v1812
        %v1845 = vpack.c.b16 %v1817, %v1815
        %v1846 = vpack.c.b16 %v1818, %v1816
        %v1847 = vpack.c.b16 %v1821, %v1819
        %v1848 = vpack.c.b16 %v1822, %v1820
        %v1849 = vpack.c.b16 %v1825, %v1823
        %v1850 = vpack.c.b16 %v1826, %v1824
        %v1851 = vpack.c.b16 %v1829, %v1827
        %v1852 = vpack.c.b16 %v1830, %v1828
        %v1853 = vpack.c.b16 %v1833, %v1831
        %v1854 = vpack.c.b16 %v1834, %v1832
        %v1855 = vpack.c.b16 %v1837, %v1835
        %v1856 = vpack.c.b16 %v1838, %v1836
        %v1857 = vpack.c.b16 %v1841, %v1839
        %v1858 = vpack.c.b16 %v1842, %v1840
        %1875 = vmatprep.subr.bf16.mxu0 %v1858
        %1876 = vmatpush1.bf16.msra.mxu0 %v1857
        %1877 = vmatprep.subr.bf16.mxu0 %v1856
        %1878 = vmatpush1.bf16.msra.mxu0 %v1855
        %1879 = vmatprep.subr.bf16.mxu0 %v1854
        %1880 = vmatpush1.bf16.msra.mxu0 %v1853
        %1881 = vmatprep.subr.bf16.mxu0 %v1852
        %1882 = vmatpush1.bf16.msra.mxu0 %v1851
        %1883 = vmatprep.subr.bf16.mxu0 %v1850
        %1884 = vmatpush1.bf16.msra.mxu0 %v1849
        %1885 = vmatprep.subr.bf16.mxu0 %v1848
        %1886 = vmatpush1.bf16.msra.mxu0 %v1847
        %1887 = vmatprep.subr.bf16.mxu0 %v1846
        %1888 = vmatpush1.bf16.msra.mxu0 %v1845
        %1889 = vmatprep.subr.bf16.mxu0 %v1844
        %1890 = vmatpush1.bf16.msra.mxu0 %v1843
        %1891 = vmatprep.subr.bf16.mxu0 0
        %1892 = vmatpush2.bf16.msra.mxu0 0
        %1893 = vmatprep.subr.bf16.mxu0 0
        %1894 = vmatpush2.bf16.msra.mxu0 0
        %1895 = vmatprep.subr.bf16.mxu0 0
        %1896 = vmatpush2.bf16.msra.mxu0 0
        %1897 = vmatprep.subr.bf16.mxu0 0
        %1898 = vmatpush2.bf16.msra.mxu0 0
        %1899 = vmatprep.subr.bf16.mxu0 0
        %1900 = vmatpush2.bf16.msra.mxu0 0
        %1901 = vmatprep.subr.bf16.mxu0 0
        %1902 = vmatpush2.bf16.msra.mxu0 0
        %1903 = vmatprep.subr.bf16.mxu0 0
        %1904 = vmatpush2.bf16.msra.mxu0 0
        %1905 = vmatprep.subr.bf16.mxu0 0
        %1906 = vmatpush2.bf16.msra.mxu0 0
        %1907 = vmatprep.mubr.bf16.mxu0 0
        %1908 = vmatmul.mubr.bf16.gmra.mxu0 %v1735
        %v1909 = vpop.f32.mrf.mxu0
        %v1910 = vadd.f32 %v1788, %v1909
        %v1911 = vpop.f32.mrf.mxu0
        %v1912 = vadd.f32 %v1792, %v1911
        %v1913 = vpop.f32.mrf.mxu0
        %v1914 = vadd.f32 %v1788, %v1913
        %v1915 = vpop.f32.mrf.mxu0
        %v1916 = vadd.f32 %v1792, %v1915
        %1917 = vmatprep.mubr.bf16.mxu0 0
        %1918 = vmatmul.mubr.bf16.gmra.mxu0 %v1736
        %v1919 = vpop.f32.mrf.mxu0
        %v1920 = vadd.f32 %v1788, %v1919
        %v1921 = vpop.f32.mrf.mxu0
        %v1922 = vadd.f32 %v1792, %v1921
        %v1923 = vpop.f32.mrf.mxu0
        %v1924 = vadd.f32 %v1788, %v1923
        %v1925 = vpop.f32.mrf.mxu0
        %v1926 = vadd.f32 %v1792, %v1925
        %1927 = vmatprep.mubr.bf16.mxu0 0
        %1928 = vmatmul.mubr.bf16.gmra.mxu0 %v1737
        %v1929 = vpop.f32.mrf.mxu0
        %v1930 = vadd.f32 %v1788, %v1929
        %v1931 = vpop.f32.mrf.mxu0
        %v1932 = vadd.f32 %v1792, %v1931
        %v1933 = vpop.f32.mrf.mxu0
        %v1934 = vadd.f32 %v1788, %v1933
        %v1935 = vpop.f32.mrf.mxu0
        %v1936 = vadd.f32 %v1792, %v1935
        %1937 = vmatprep.mubr.bf16.mxu0 0
        %1938 = vmatmul.mubr.bf16.gmra.mxu0 %v1738
        %v1939 = vpop.f32.mrf.mxu0
        %v1940 = vadd.f32 %v1788, %v1939
        %v1941 = vpop.f32.mrf.mxu0
        %v1942 = vadd.f32 %v1792, %v1941
        %v1943 = vpop.f32.mrf.mxu0
        %v1944 = vadd.f32 %v1788, %v1943
        %v1945 = vpop.f32.mrf.mxu0
        %v1946 = vadd.f32 %v1792, %v1945
        %1947 = vmatprep.mubr.bf16.mxu0 0
        %1948 = vmatmul.mubr.bf16.gmra.mxu0 %v1739
        %v1949 = vpop.f32.mrf.mxu0
        %v1950 = vadd.f32 %v1788, %v1949
        %v1951 = vpop.f32.mrf.mxu0
        %v1952 = vadd.f32 %v1792, %v1951
        %v1953 = vpop.f32.mrf.mxu0
        %v1954 = vadd.f32 %v1788, %v1953
        %v1955 = vpop.f32.mrf.mxu0
        %v1956 = vadd.f32 %v1792, %v1955
        %1957 = vmatprep.mubr.bf16.mxu0 0
        %1958 = vmatmul.mubr.bf16.gmra.mxu0 %v1740
        %v1959 = vpop.f32.mrf.mxu0
        %v1960 = vadd.f32 %v1788, %v1959
        %v1961 = vpop.f32.mrf.mxu0
        %v1962 = vadd.f32 %v1792, %v1961
        %v1963 = vpop.f32.mrf.mxu0
        %v1964 = vadd.f32 %v1788, %v1963
        %v1965 = vpop.f32.mrf.mxu0
        %v1966 = vadd.f32 %v1792, %v1965
        %1967 = vmatprep.mubr.bf16.mxu0 0
        %1968 = vmatmul.mubr.bf16.gmra.mxu0 %v1741
        %v1969 = vpop.f32.mrf.mxu0
        %v1970 = vadd.f32 %v1788, %v1969
        %v1971 = vpop.f32.mrf.mxu0
        %v1972 = vadd.f32 %v1792, %v1971
        %v1973 = vpop.f32.mrf.mxu0
        %v1974 = vadd.f32 %v1788, %v1973
        %v1975 = vpop.f32.mrf.mxu0
        %v1976 = vadd.f32 %v1792, %v1975
        %1977 = vmatprep.mubr.bf16.mxu0 0
        %1978 = vmatmul.mubr.bf16.gmra.mxu0 %v1742
        %v1979 = vpop.f32.mrf.mxu0
        %v1980 = vadd.f32 %v1788, %v1979
        %v1981 = vpop.f32.mrf.mxu0
        %v1982 = vadd.f32 %v1792, %v1981
        %v1983 = vpop.f32.mrf.mxu0
        %v1984 = vadd.f32 %v1788, %v1983
        %v1985 = vpop.f32.mrf.mxu0
        %v1986 = vadd.f32 %v1792, %v1985
        %1987 = vmatprep.mubr.bf16.mxu0 0
        %1988 = vmatmul.mubr.bf16.gmra.mxu0 %v1743
        %v1989 = vpop.f32.mrf.mxu0
        %v1990 = vadd.f32 %v1788, %v1989
        %v1991 = vpop.f32.mrf.mxu0
        %v1992 = vadd.f32 %v1792, %v1991
        %v1993 = vpop.f32.mrf.mxu0
        %v1994 = vadd.f32 %v1788, %v1993
        %v1995 = vpop.f32.mrf.mxu0
        %v1996 = vadd.f32 %v1792, %v1995
        %1997 = vmatprep.mubr.bf16.mxu0 0
        %1998 = vmatmul.mubr.bf16.gmra.mxu0 %v1744
        %v1999 = vpop.f32.mrf.mxu0
        %v2000 = vadd.f32 %v1788, %v1999
        %v2001 = vpop.f32.mrf.mxu0
        %v2002 = vadd.f32 %v1792, %v2001
        %v2003 = vpop.f32.mrf.mxu0
        %v2004 = vadd.f32 %v1788, %v2003
        %v2005 = vpop.f32.mrf.mxu0
        %v2006 = vadd.f32 %v1792, %v2005
        %2007 = vmatprep.mubr.bf16.mxu0 0
        %2008 = vmatmul.mubr.bf16.gmra.mxu0 %v1745
        %v2009 = vpop.f32.mrf.mxu0
        %v2010 = vadd.f32 %v1788, %v2009
        %v2011 = vpop.f32.mrf.mxu0
        %v2012 = vadd.f32 %v1792, %v2011
        %v2013 = vpop.f32.mrf.mxu0
        %v2014 = vadd.f32 %v1788, %v2013
        %v2015 = vpop.f32.mrf.mxu0
        %v2016 = vadd.f32 %v1792, %v2015
        %2017 = vmatprep.mubr.bf16.mxu0 0
        %2018 = vmatmul.mubr.bf16.gmra.mxu0 %v1746
        %v2019 = vpop.f32.mrf.mxu0
        %v2020 = vadd.f32 %v1788, %v2019
        %v2021 = vpop.f32.mrf.mxu0
        %v2022 = vadd.f32 %v1792, %v2021
        %v2023 = vpop.f32.mrf.mxu0
        %v2024 = vadd.f32 %v1788, %v2023
        %v2025 = vpop.f32.mrf.mxu0
        %v2026 = vadd.f32 %v1792, %v2025
        %2027 = vmatprep.mubr.bf16.mxu0 0
        %2028 = vmatmul.mubr.bf16.gmra.mxu0 %v1747
        %v2029 = vpop.f32.mrf.mxu0
        %v2030 = vadd.f32 %v1788, %v2029
        %v2031 = vpop.f32.mrf.mxu0
        %v2032 = vadd.f32 %v1792, %v2031
        %v2033 = vpop.f32.mrf.mxu0
        %v2034 = vadd.f32 %v1788, %v2033
        %v2035 = vpop.f32.mrf.mxu0
        %v2036 = vadd.f32 %v1792, %v2035
        %2037 = vmatprep.mubr.bf16.mxu0 0
        %2038 = vmatmul.mubr.bf16.gmra.mxu0 %v1748
        %v2039 = vpop.f32.mrf.mxu0
        %v2040 = vadd.f32 %v1788, %v2039
        %v2041 = vpop.f32.mrf.mxu0
        %v2042 = vadd.f32 %v1792, %v2041
        %v2043 = vpop.f32.mrf.mxu0
        %v2044 = vadd.f32 %v1788, %v2043
        %v2045 = vpop.f32.mrf.mxu0
        %v2046 = vadd.f32 %v1792, %v2045
        %2047 = vmatprep.mubr.bf16.mxu0 0
        %2048 = vmatmul.mubr.bf16.gmra.mxu0 %v1749
        %v2049 = vpop.f32.mrf.mxu0
        %v2050 = vadd.f32 %v1788, %v2049
        %v2051 = vpop.f32.mrf.mxu0
        %v2052 = vadd.f32 %v1792, %v2051
        %v2053 = vpop.f32.mrf.mxu0
        %v2054 = vadd.f32 %v1788, %v2053
        %v2055 = vpop.f32.mrf.mxu0
        %v2056 = vadd.f32 %v1792, %v2055
        %2057 = vmatprep.mubr.bf16.mxu0 0
        %2058 = vmatmul.mubr.bf16.gmra.mxu0 %v1750
        %v2059 = vpop.f32.mrf.mxu0
        %v2060 = vadd.f32 %v1788, %v2059
        %v2061 = vpop.f32.mrf.mxu0
        %v2062 = vadd.f32 %v1792, %v2061
        %v2063 = vpop.f32.mrf.mxu0
        %v2064 = vadd.f32 %v1788, %v2063
        %v2065 = vpop.f32.mrf.mxu0
        %v2066 = vadd.f32 %v1792, %v2065
        %2067 = vmatprep.mubr.bf16.mxu0 0
        %2068 = vmatmul.mubr.bf16.gmra.mxu0 %v1751
        %v2069 = vpop.f32.mrf.mxu0
        %v2070 = vadd.f32 %v1788, %v2069
        %v2071 = vpop.f32.mrf.mxu0
        %v2072 = vadd.f32 %v1792, %v2071
        %v2073 = vpop.f32.mrf.mxu0
        %v2074 = vadd.f32 %v1788, %v2073
        %v2075 = vpop.f32.mrf.mxu0
        %v2076 = vadd.f32 %v1792, %v2075
        %2077 = vmatprep.mubr.bf16.mxu0 0
        %2078 = vmatmul.mubr.bf16.gmra.mxu0 %v1752
        %v2079 = vpop.f32.mrf.mxu0
        %v2080 = vadd.f32 %v1788, %v2079
        %v2081 = vpop.f32.mrf.mxu0
        %v2082 = vadd.f32 %v1792, %v2081
        %v2083 = vpop.f32.mrf.mxu0
        %v2084 = vadd.f32 %v1788, %v2083
        %v2085 = vpop.f32.mrf.mxu0
        %v2086 = vadd.f32 %v1792, %v2085
        %2087 = vmatprep.mubr.bf16.mxu0 0
        %2088 = vmatmul.mubr.bf16.gmra.mxu0 %v1753
        %v2089 = vpop.f32.mrf.mxu0
        %v2090 = vadd.f32 %v1788, %v2089
        %v2091 = vpop.f32.mrf.mxu0
        %v2092 = vadd.f32 %v1792, %v2091
        %v2093 = vpop.f32.mrf.mxu0
        %v2094 = vadd.f32 %v1788, %v2093
        %v2095 = vpop.f32.mrf.mxu0
        %v2096 = vadd.f32 %v1792, %v2095
        %2097 = vmatprep.mubr.bf16.mxu0 0
        %2098 = vmatmul.mubr.bf16.gmra.mxu0 %v1754
        %v2099 = vpop.f32.mrf.mxu0
        %v2100 = vadd.f32 %v1788, %v2099
        %v2101 = vpop.f32.mrf.mxu0
        %v2102 = vadd.f32 %v1792, %v2101
        %v2103 = vpop.f32.mrf.mxu0
        %v2104 = vadd.f32 %v1788, %v2103
        %v2105 = vpop.f32.mrf.mxu0
        %v2106 = vadd.f32 %v1792, %v2105
        %2107 = vmatprep.mubr.bf16.mxu0 0
        %2108 = vmatmul.mubr.bf16.gmra.mxu0 %v1755
        %v2109 = vpop.f32.mrf.mxu0
        %v2110 = vadd.f32 %v1788, %v2109
        %v2111 = vpop.f32.mrf.mxu0
        %v2112 = vadd.f32 %v1792, %v2111
        %v2113 = vpop.f32.mrf.mxu0
        %v2114 = vadd.f32 %v1788, %v2113
        %v2115 = vpop.f32.mrf.mxu0
        %v2116 = vadd.f32 %v1792, %v2115
        %2117 = vmatprep.mubr.bf16.mxu0 0
        %2118 = vmatmul.mubr.bf16.gmra.mxu0 %v1756
        %v2119 = vpop.f32.mrf.mxu0
        %v2120 = vadd.f32 %v1788, %v2119
        %v2121 = vpop.f32.mrf.mxu0
        %v2122 = vadd.f32 %v1792, %v2121
        %v2123 = vpop.f32.mrf.mxu0
        %v2124 = vadd.f32 %v1788, %v2123
        %v2125 = vpop.f32.mrf.mxu0
        %v2126 = vadd.f32 %v1792, %v2125
        %2127 = vmatprep.mubr.bf16.mxu0 0
        %2128 = vmatmul.mubr.bf16.gmra.mxu0 %v1757
        %v2129 = vpop.f32.mrf.mxu0
        %v2130 = vadd.f32 %v1788, %v2129
        %v2131 = vpop.f32.mrf.mxu0
        %v2132 = vadd.f32 %v1792, %v2131
        %v2133 = vpop.f32.mrf.mxu0
        %v2134 = vadd.f32 %v1788, %v2133
        %v2135 = vpop.f32.mrf.mxu0
        %v2136 = vadd.f32 %v1792, %v2135
        %2137 = vmatprep.mubr.bf16.mxu0 0
        %2138 = vmatmul.mubr.bf16.gmra.mxu0 %v1758
        %v2139 = vpop.f32.mrf.mxu0
        %v2140 = vadd.f32 %v1788, %v2139
        %v2141 = vpop.f32.mrf.mxu0
        %v2142 = vadd.f32 %v1792, %v2141
        %v2143 = vpop.f32.mrf.mxu0
        %v2144 = vadd.f32 %v1788, %v2143
        %v2145 = vpop.f32.mrf.mxu0
        %v2146 = vadd.f32 %v1792, %v2145
        %2147 = vmatprep.mubr.bf16.mxu0 0
        %2148 = vmatmul.mubr.bf16.gmra.mxu0 %v1759
        %v2149 = vpop.f32.mrf.mxu0
        %v2150 = vadd.f32 %v1788, %v2149
        %v2151 = vpop.f32.mrf.mxu0
        %v2152 = vadd.f32 %v1792, %v2151
        %v2153 = vpop.f32.mrf.mxu0
        %v2154 = vadd.f32 %v1788, %v2153
        %v2155 = vpop.f32.mrf.mxu0
        %v2156 = vadd.f32 %v1792, %v2155
        %2157 = vmatprep.mubr.bf16.mxu0 0
        %2158 = vmatmul.mubr.bf16.gmra.mxu0 %v1760
        %v2159 = vpop.f32.mrf.mxu0
        %v2160 = vadd.f32 %v1788, %v2159
        %v2161 = vpop.f32.mrf.mxu0
        %v2162 = vadd.f32 %v1792, %v2161
        %v2163 = vpop.f32.mrf.mxu0
        %v2164 = vadd.f32 %v1788, %v2163
        %v2165 = vpop.f32.mrf.mxu0
        %v2166 = vadd.f32 %v1792, %v2165
        %2167 = vmatprep.mubr.bf16.mxu0 0
        %2168 = vmatmul.mubr.bf16.gmra.mxu0 %v1761
        %v2169 = vpop.f32.mrf.mxu0
        %v2170 = vadd.f32 %v1788, %v2169
        %v2171 = vpop.f32.mrf.mxu0
        %v2172 = vadd.f32 %v1792, %v2171
        %v2173 = vpop.f32.mrf.mxu0
        %v2174 = vadd.f32 %v1788, %v2173
        %v2175 = vpop.f32.mrf.mxu0
        %v2176 = vadd.f32 %v1792, %v2175
        %2177 = vmatprep.mubr.bf16.mxu0 0
        %2178 = vmatmul.mubr.bf16.gmra.mxu0 %v1762
        %v2179 = vpop.f32.mrf.mxu0
        %v2180 = vadd.f32 %v1788, %v2179
        %v2181 = vpop.f32.mrf.mxu0
        %v2182 = vadd.f32 %v1792, %v2181
        %v2183 = vpop.f32.mrf.mxu0
        %v2184 = vadd.f32 %v1788, %v2183
        %v2185 = vpop.f32.mrf.mxu0
        %v2186 = vadd.f32 %v1792, %v2185
        %2187 = vmatprep.mubr.bf16.mxu0 0
        %2188 = vmatmul.mubr.bf16.gmra.mxu0 %v1763
        %v2189 = vpop.f32.mrf.mxu0
        %v2190 = vadd.f32 %v1788, %v2189
        %v2191 = vpop.f32.mrf.mxu0
        %v2192 = vadd.f32 %v1792, %v2191
        %v2193 = vpop.f32.mrf.mxu0
        %v2194 = vadd.f32 %v1788, %v2193
        %v2195 = vpop.f32.mrf.mxu0
        %v2196 = vadd.f32 %v1792, %v2195
        %2197 = vmatprep.mubr.bf16.mxu0 0
        %2198 = vmatmul.mubr.bf16.gmra.mxu0 %v1764
        %v2199 = vpop.f32.mrf.mxu0
        %v2200 = vadd.f32 %v1788, %v2199
        %v2201 = vpop.f32.mrf.mxu0
        %v2202 = vadd.f32 %v1792, %v2201
        %v2203 = vpop.f32.mrf.mxu0
        %v2204 = vadd.f32 %v1788, %v2203
        %v2205 = vpop.f32.mrf.mxu0
        %v2206 = vadd.f32 %v1792, %v2205
        %2207 = vmatprep.mubr.bf16.mxu0 0
        %2208 = vmatmul.mubr.bf16.gmra.mxu0 %v1765
        %v2209 = vpop.f32.mrf.mxu0
        %v2210 = vadd.f32 %v1788, %v2209
        %v2211 = vpop.f32.mrf.mxu0
        %v2212 = vadd.f32 %v1792, %v2211
        %v2213 = vpop.f32.mrf.mxu0
        %v2214 = vadd.f32 %v1788, %v2213
        %v2215 = vpop.f32.mrf.mxu0
        %v2216 = vadd.f32 %v1792, %v2215
        %2217 = vmatprep.mubr.bf16.mxu0 0
        %2218 = vmatmul.mubr.bf16.gmra.mxu0 %v1766
        %v2219 = vpop.f32.mrf.mxu0
        %v2220 = vadd.f32 %v1788, %v2219
        %v2221 = vpop.f32.mrf.mxu0
        %v2222 = vadd.f32 %v1792, %v2221
        %v2223 = vpop.f32.mrf.mxu0
        %v2224 = vadd.f32 %v1788, %v2223
        %v2225 = vpop.f32.mrf.mxu0
        %v2226 = vadd.f32 %v1792, %v2225
        %2227 = vdwg.mxu0
        %v2228 = vpack.c.bf16 %v1914, %v1910
        %v2229 = vpack.c.bf16 %v1916, %v1912
        %v2230 = vpack.c.bf16 %v1924, %v1920
        %v2231 = vpack.c.bf16 %v1926, %v1922
        %v2232 = vpack.c.bf16 %v1934, %v1930
        %v2233 = vpack.c.bf16 %v1936, %v1932
        %v2234 = vpack.c.bf16 %v1944, %v1940
        %v2235 = vpack.c.bf16 %v1946, %v1942
        %v2236 = vpack.c.bf16 %v1954, %v1950
        %v2237 = vpack.c.bf16 %v1956, %v1952
        %v2238 = vpack.c.bf16 %v1964, %v1960
        %v2239 = vpack.c.bf16 %v1966, %v1962
        %v2240 = vpack.c.bf16 %v1974, %v1970
        %v2241 = vpack.c.bf16 %v1976, %v1972
        %v2242 = vpack.c.bf16 %v1984, %v1980
        %v2243 = vpack.c.bf16 %v1986, %v1982
        %v2244 = vpack.c.bf16 %v1994, %v1990
        %v2245 = vpack.c.bf16 %v1996, %v1992
        %v2246 = vpack.c.bf16 %v2004, %v2000
        %v2247 = vpack.c.bf16 %v2006, %v2002
        %v2248 = vpack.c.bf16 %v2014, %v2010
        %v2249 = vpack.c.bf16 %v2016, %v2012
        %v2250 = vpack.c.bf16 %v2024, %v2020
        %v2251 = vpack.c.bf16 %v2026, %v2022
        %v2252 = vpack.c.bf16 %v2034, %v2030
        %v2253 = vpack.c.bf16 %v2036, %v2032
        %v2254 = vpack.c.bf16 %v2044, %v2040
        %v2255 = vpack.c.bf16 %v2046, %v2042
        %v2256 = vpack.c.bf16 %v2054, %v2050
        %v2257 = vpack.c.bf16 %v2056, %v2052
        %v2258 = vpack.c.bf16 %v2064, %v2060
        %v2259 = vpack.c.bf16 %v2066, %v2062
        %v2260 = vpack.c.bf16 %v2074, %v2070
        %v2261 = vpack.c.bf16 %v2076, %v2072
        %v2262 = vpack.c.bf16 %v2084, %v2080
        %v2263 = vpack.c.bf16 %v2086, %v2082
        %v2264 = vpack.c.bf16 %v2094, %v2090
        %v2265 = vpack.c.bf16 %v2096, %v2092
        %v2266 = vpack.c.bf16 %v2104, %v2100
        %v2267 = vpack.c.bf16 %v2106, %v2102
        %v2268 = vpack.c.bf16 %v2114, %v2110
        %v2269 = vpack.c.bf16 %v2116, %v2112
        %v2270 = vpack.c.bf16 %v2124, %v2120
        %v2271 = vpack.c.bf16 %v2126, %v2122
        %v2272 = vpack.c.bf16 %v2134, %v2130
        %v2273 = vpack.c.bf16 %v2136, %v2132
        %v2274 = vpack.c.bf16 %v2144, %v2140
        %v2275 = vpack.c.bf16 %v2146, %v2142
        %v2276 = vpack.c.bf16 %v2154, %v2150
        %v2277 = vpack.c.bf16 %v2156, %v2152
        %v2278 = vpack.c.bf16 %v2164, %v2160
        %v2279 = vpack.c.bf16 %v2166, %v2162
        %v2280 = vpack.c.bf16 %v2174, %v2170
        %v2281 = vpack.c.bf16 %v2176, %v2172
        %v2282 = vpack.c.bf16 %v2184, %v2180
        %v2283 = vpack.c.bf16 %v2186, %v2182
        %v2284 = vpack.c.bf16 %v2194, %v2190
        %v2285 = vpack.c.bf16 %v2196, %v2192
        %v2286 = vpack.c.bf16 %v2204, %v2200
        %v2287 = vpack.c.bf16 %v2206, %v2202
        %v2288 = vpack.c.bf16 %v2214, %v2210
        %v2289 = vpack.c.bf16 %v2216, %v2212
        %v2290 = vpack.c.bf16 %v2224, %v2220
        %v2291 = vpack.c.bf16 %v2226, %v2222
        %v2324 = vunpack.c.l.b16 %v2228
        %v2325 = vunpack.c.h.b16 %v2228
        %v2326 = vunpack.c.l.b16 %v2230
        %v2327 = vunpack.c.h.b16 %v2230
        %v2328 = vunpack.c.l.b16 %v2232
        %v2329 = vunpack.c.h.b16 %v2232
        %v2330 = vunpack.c.l.b16 %v2234
        %v2331 = vunpack.c.h.b16 %v2234
        %v2332 = vunpack.c.l.b16 %v2236
        %v2333 = vunpack.c.h.b16 %v2236
        %v2334 = vunpack.c.l.b16 %v2238
        %v2335 = vunpack.c.h.b16 %v2238
        %v2336 = vunpack.c.l.b16 %v2240
        %v2337 = vunpack.c.h.b16 %v2240
        %v2338 = vunpack.c.l.b16 %v2242
        %v2339 = vunpack.c.h.b16 %v2242
        %v2340 = vunpack.c.l.b16 %v2244
        %v2341 = vunpack.c.h.b16 %v2244
        %v2342 = vunpack.c.l.b16 %v2246
        %v2343 = vunpack.c.h.b16 %v2246
        %v2344 = vunpack.c.l.b16 %v2248
        %v2345 = vunpack.c.h.b16 %v2248
        %v2346 = vunpack.c.l.b16 %v2250
        %v2347 = vunpack.c.h.b16 %v2250
        %v2348 = vunpack.c.l.b16 %v2252
        %v2349 = vunpack.c.h.b16 %v2252
        %v2350 = vunpack.c.l.b16 %v2254
        %v2351 = vunpack.c.h.b16 %v2254
        %v2352 = vunpack.c.l.b16 %v2256
        %v2353 = vunpack.c.h.b16 %v2256
        %v2354 = vunpack.c.l.b16 %v2258
        %v2355 = vunpack.c.h.b16 %v2258
        %v2356 = vunpack.c.l.b16 %v2260
        %v2357 = vunpack.c.h.b16 %v2260
        %v2358 = vunpack.c.l.b16 %v2262
        %v2359 = vunpack.c.h.b16 %v2262
        %v2360 = vunpack.c.l.b16 %v2264
        %v2361 = vunpack.c.h.b16 %v2264
        %v2362 = vunpack.c.l.b16 %v2266
        %v2363 = vunpack.c.h.b16 %v2266
        %v2364 = vunpack.c.l.b16 %v2268
        %v2365 = vunpack.c.h.b16 %v2268
        %v2366 = vunpack.c.l.b16 %v2270
        %v2367 = vunpack.c.h.b16 %v2270
        %v2368 = vunpack.c.l.b16 %v2272
        %v2369 = vunpack.c.h.b16 %v2272
        %v2370 = vunpack.c.l.b16 %v2274
        %v2371 = vunpack.c.h.b16 %v2274
        %v2372 = vunpack.c.l.b16 %v2276
        %v2373 = vunpack.c.h.b16 %v2276
        %v2374 = vunpack.c.l.b16 %v2278
        %v2375 = vunpack.c.h.b16 %v2278
        %v2376 = vunpack.c.l.b16 %v2280
        %v2377 = vunpack.c.h.b16 %v2280
        %v2378 = vunpack.c.l.b16 %v2282
        %v2379 = vunpack.c.h.b16 %v2282
        %v2380 = vunpack.c.l.b16 %v2284
        %v2381 = vunpack.c.h.b16 %v2284
        %v2382 = vunpack.c.l.b16 %v2286
        %v2383 = vunpack.c.h.b16 %v2286
        %v2384 = vunpack.c.l.b16 %v2288
        %v2385 = vunpack.c.h.b16 %v2288
        %v2386 = vunpack.c.l.b16 %v2290
        %v2387 = vunpack.c.h.b16 %v2290
        %v2388 = vpack.c.b16 %v2324, %v2324
        %v2389 = vpack.c.b16 %v2325, %v2325
        %v2390 = vpack.c.b16 %v2326, %v2326
        %v2391 = vpack.c.b16 %v2327, %v2327
        %v2392 = vpack.c.b16 %v2328, %v2328
        %v2393 = vpack.c.b16 %v2329, %v2329
        %v2394 = vpack.c.b16 %v2330, %v2330
        %v2395 = vpack.c.b16 %v2331, %v2331
        %v2396 = vpack.c.b16 %v2332, %v2332
        %v2397 = vpack.c.b16 %v2333, %v2333
        %v2398 = vpack.c.b16 %v2334, %v2334
        %v2399 = vpack.c.b16 %v2335, %v2335
        %v2400 = vpack.c.b16 %v2336, %v2336
        %v2401 = vpack.c.b16 %v2337, %v2337
        %v2402 = vpack.c.b16 %v2338, %v2338
        %v2403 = vpack.c.b16 %v2339, %v2339
        %v2404 = vpack.c.b16 %v2340, %v2340
        %v2405 = vpack.c.b16 %v2341, %v2341
        %v2406 = vpack.c.b16 %v2342, %v2342
        %v2407 = vpack.c.b16 %v2343, %v2343
        %v2408 = vpack.c.b16 %v2344, %v2344
        %v2409 = vpack.c.b16 %v2345, %v2345
        %v2410 = vpack.c.b16 %v2346, %v2346
        %v2411 = vpack.c.b16 %v2347, %v2347
        %v2412 = vpack.c.b16 %v2348, %v2348
        %v2413 = vpack.c.b16 %v2349, %v2349
        %v2414 = vpack.c.b16 %v2350, %v2350
        %v2415 = vpack.c.b16 %v2351, %v2351
        %v2416 = vpack.c.b16 %v2352, %v2352
        %v2417 = vpack.c.b16 %v2353, %v2353
        %v2418 = vpack.c.b16 %v2354, %v2354
        %v2419 = vpack.c.b16 %v2355, %v2355
        %v2420 = vpack.c.b16 %v2356, %v2356
        %v2421 = vpack.c.b16 %v2357, %v2357
        %v2422 = vpack.c.b16 %v2358, %v2358
        %v2423 = vpack.c.b16 %v2359, %v2359
        %v2424 = vpack.c.b16 %v2360, %v2360
        %v2425 = vpack.c.b16 %v2361, %v2361
        %v2426 = vpack.c.b16 %v2362, %v2362
        %v2427 = vpack.c.b16 %v2363, %v2363
        %v2428 = vpack.c.b16 %v2364, %v2364
        %v2429 = vpack.c.b16 %v2365, %v2365
        %v2430 = vpack.c.b16 %v2366, %v2366
        %v2431 = vpack.c.b16 %v2367, %v2367
        %v2432 = vpack.c.b16 %v2368, %v2368
        %v2433 = vpack.c.b16 %v2369, %v2369
        %v2434 = vpack.c.b16 %v2370, %v2370
        %v2435 = vpack.c.b16 %v2371, %v2371
        %v2436 = vpack.c.b16 %v2372, %v2372
        %v2437 = vpack.c.b16 %v2373, %v2373
        %v2438 = vpack.c.b16 %v2374, %v2374
        %v2439 = vpack.c.b16 %v2375, %v2375
        %v2440 = vpack.c.b16 %v2376, %v2376
        %v2441 = vpack.c.b16 %v2377, %v2377
        %v2442 = vpack.c.b16 %v2378, %v2378
        %v2443 = vpack.c.b16 %v2379, %v2379
        %v2444 = vpack.c.b16 %v2380, %v2380
        %v2445 = vpack.c.b16 %v2381, %v2381
        %v2446 = vpack.c.b16 %v2382, %v2382
        %v2447 = vpack.c.b16 %v2383, %v2383
        %v2448 = vpack.c.b16 %v2384, %v2384
        %v2449 = vpack.c.b16 %v2385, %v2385
        %v2450 = vpack.c.b16 %v2386, %v2386
        %v2451 = vpack.c.b16 %v2387, %v2387
        %2516 = vst [vmem:[%s567] sm:$0xf] %v2388
        %2517 = vst [vmem:[%s567 + $0x4] sm:$0xf] %v2389
        %2518 = vst [vmem:[%s567 + $0x8] sm:$0xf] %v2390
        %2519 = vst [vmem:[%s567 + $0xc] sm:$0xf] %v2391
        %2520 = vst [vmem:[%s567 + $0x10] sm:$0xf] %v2392
        %2521 = vst [vmem:[%s567 + $0x14] sm:$0xf] %v2393
        %2522 = vst [vmem:[%s567 + $0x18] sm:$0xf] %v2394
        %2523 = vst [vmem:[%s567 + $0x1c] sm:$0xf] %v2395
        %2524 = vst [vmem:[%s567 + $0x20] sm:$0xf] %v2396
        %2525 = vst [vmem:[%s567 + $0x24] sm:$0xf] %v2397
        %2526 = vst [vmem:[%s567 + $0x28] sm:$0xf] %v2398
        %2527 = vst [vmem:[%s567 + $0x2c] sm:$0xf] %v2399
        %2528 = vst [vmem:[%s567 + $0x30] sm:$0xf] %v2400
        %2529 = vst [vmem:[%s567 + $0x34] sm:$0xf] %v2401
        %2530 = vst [vmem:[%s567 + $0x38] sm:$0xf] %v2402
        %2531 = vst [vmem:[%s567 + $0x3c] sm:$0xf] %v2403
        %2532 = vst [vmem:[%s567 + $0x40] sm:$0xf] %v2404
        %2533 = vst [vmem:[%s567 + $0x44] sm:$0xf] %v2405
        %2534 = vst [vmem:[%s567 + $0x48] sm:$0xf] %v2406
        %2535 = vst [vmem:[%s567 + $0x4c] sm:$0xf] %v2407
        %2536 = vst [vmem:[%s567 + $0x50] sm:$0xf] %v2408
        %2537 = vst [vmem:[%s567 + $0x54] sm:$0xf] %v2409
        %2538 = vst [vmem:[%s567 + $0x58] sm:$0xf] %v2410
        %2539 = vst [vmem:[%s567 + $0x5c] sm:$0xf] %v2411
        %2540 = vst [vmem:[%s567 + $0x60] sm:$0xf] %v2412
        %2541 = vst [vmem:[%s567 + $0x64] sm:$0xf] %v2413
        %2542 = vst [vmem:[%s567 + $0x68] sm:$0xf] %v2414
        %2543 = vst [vmem:[%s567 + $0x6c] sm:$0xf] %v2415
        %2544 = vst [vmem:[%s567 + $0x70] sm:$0xf] %v2416
        %2545 = vst [vmem:[%s567 + $0x74] sm:$0xf] %v2417
        %2546 = vst [vmem:[%s567 + $0x78] sm:$0xf] %v2418
        %2547 = vst [vmem:[%s567 + $0x7c] sm:$0xf] %v2419
        %2548 = vst [vmem:[%s567 + $0x80] sm:$0xf] %v2420
        %2549 = vst [vmem:[%s567 + $0x84] sm:$0xf] %v2421
        %2550 = vst [vmem:[%s567 + $0x88] sm:$0xf] %v2422
        %2551 = vst [vmem:[%s567 + $0x8c] sm:$0xf] %v2423
        %2552 = vst [vmem:[%s567 + $0x90] sm:$0xf] %v2424
        %2553 = vst [vmem:[%s567 + $0x94] sm:$0xf] %v2425
        %2554 = vst [vmem:[%s567 + $0x98] sm:$0xf] %v2426
        %2555 = vst [vmem:[%s567 + $0x9c] sm:$0xf] %v2427
        %2556 = vst [vmem:[%s567 + $0xa0] sm:$0xf] %v2428
        %2557 = vst [vmem:[%s567 + $0xa4] sm:$0xf] %v2429
        %2558 = vst [vmem:[%s567 + $0xa8] sm:$0xf] %v2430
        %2559 = vst [vmem:[%s567 + $0xac] sm:$0xf] %v2431
        %2560 = vst [vmem:[%s567 + $0xb0] sm:$0xf] %v2432
        %2561 = vst [vmem:[%s567 + $0xb4] sm:$0xf] %v2433
        %2562 = vst [vmem:[%s567 + $0xb8] sm:$0xf] %v2434
        %2563 = vst [vmem:[%s567 + $0xbc] sm:$0xf] %v2435
        %2564 = vst [vmem:[%s567 + $0xc0] sm:$0xf] %v2436
        %2565 = vst [vmem:[%s567 + $0xc4] sm:$0xf] %v2437
        %2566 = vst [vmem:[%s567 + $0xc8] sm:$0xf] %v2438
        %2567 = vst [vmem:[%s567 + $0xcc] sm:$0xf] %v2439
        %2568 = vst [vmem:[%s567 + $0xd0] sm:$0xf] %v2440
        %2569 = vst [vmem:[%s567 + $0xd4] sm:$0xf] %v2441
        %2570 = vst [vmem:[%s567 + $0xd8] sm:$0xf] %v2442
        %2571 = vst [vmem:[%s567 + $0xdc] sm:$0xf] %v2443
        %2572 = vst [vmem:[%s567 + $0xe0] sm:$0xf] %v2444
        %2573 = vst [vmem:[%s567 + $0xe4] sm:$0xf] %v2445
        %2574 = vst [vmem:[%s567 + $0xe8] sm:$0xf] %v2446
        %2575 = vst [vmem:[%s567 + $0xec] sm:$0xf] %v2447
        %2576 = vst [vmem:[%s567 + $0xf0] sm:$0xf] %v2448
        %2577 = vst [vmem:[%s567 + $0xf4] sm:$0xf] %v2449
        %2578 = vst [vmem:[%s567 + $0xf8] sm:$0xf] %v2450
        %2579 = vst [vmem:[%s567 + $0xfc] sm:$0xf] %v2451
        %v2612 = vunpack.c.l.b16 %v2229
        %v2613 = vunpack.c.h.b16 %v2229
        %v2614 = vunpack.c.l.b16 %v2231
        %v2615 = vunpack.c.h.b16 %v2231
        %v2616 = vunpack.c.l.b16 %v2233
        %v2617 = vunpack.c.h.b16 %v2233
        %v2618 = vunpack.c.l.b16 %v2235
        %v2619 = vunpack.c.h.b16 %v2235
        %v2620 = vunpack.c.l.b16 %v2237
        %v2621 = vunpack.c.h.b16 %v2237
        %v2622 = vunpack.c.l.b16 %v2239
        %v2623 = vunpack.c.h.b16 %v2239
        %v2624 = vunpack.c.l.b16 %v2241
        %v2625 = vunpack.c.h.b16 %v2241
        %v2626 = vunpack.c.l.b16 %v2243
        %v2627 = vunpack.c.h.b16 %v2243
        %v2628 = vunpack.c.l.b16 %v2245
        %v2629 = vunpack.c.h.b16 %v2245
        %v2630 = vunpack.c.l.b16 %v2247
        %v2631 = vunpack.c.h.b16 %v2247
        %v2632 = vunpack.c.l.b16 %v2249
        %v2633 = vunpack.c.h.b16 %v2249
        %v2634 = vunpack.c.l.b16 %v2251
        %v2635 = vunpack.c.h.b16 %v2251
        %v2636 = vunpack.c.l.b16 %v2253
        %v2637 = vunpack.c.h.b16 %v2253
        %v2638 = vunpack.c.l.b16 %v2255
        %v2639 = vunpack.c.h.b16 %v2255
        %v2640 = vunpack.c.l.b16 %v2257
        %v2641 = vunpack.c.h.b16 %v2257
        %v2642 = vunpack.c.l.b16 %v2259
        %v2643 = vunpack.c.h.b16 %v2259
        %v2644 = vunpack.c.l.b16 %v2261
        %v2645 = vunpack.c.h.b16 %v2261
        %v2646 = vunpack.c.l.b16 %v2263
        %v2647 = vunpack.c.h.b16 %v2263
        %v2648 = vunpack.c.l.b16 %v2265
        %v2649 = vunpack.c.h.b16 %v2265
        %v2650 = vunpack.c.l.b16 %v2267
        %v2651 = vunpack.c.h.b16 %v2267
        %v2652 = vunpack.c.l.b16 %v2269
        %v2653 = vunpack.c.h.b16 %v2269
        %v2654 = vunpack.c.l.b16 %v2271
        %v2655 = vunpack.c.h.b16 %v2271
        %v2656 = vunpack.c.l.b16 %v2273
        %v2657 = vunpack.c.h.b16 %v2273
        %v2658 = vunpack.c.l.b16 %v2275
        %v2659 = vunpack.c.h.b16 %v2275
        %v2660 = vunpack.c.l.b16 %v2277
        %v2661 = vunpack.c.h.b16 %v2277
        %v2662 = vunpack.c.l.b16 %v2279
        %v2663 = vunpack.c.h.b16 %v2279
        %v2664 = vunpack.c.l.b16 %v2281
        %v2665 = vunpack.c.h.b16 %v2281
        %v2666 = vunpack.c.l.b16 %v2283
        %v2667 = vunpack.c.h.b16 %v2283
        %v2668 = vunpack.c.l.b16 %v2285
        %v2669 = vunpack.c.h.b16 %v2285
        %v2670 = vunpack.c.l.b16 %v2287
        %v2671 = vunpack.c.h.b16 %v2287
        %v2672 = vunpack.c.l.b16 %v2289
        %v2673 = vunpack.c.h.b16 %v2289
        %v2674 = vunpack.c.l.b16 %v2291
        %v2675 = vunpack.c.h.b16 %v2291
        %v2676 = vpack.c.b16 %v2612, %v2612
        %v2677 = vpack.c.b16 %v2613, %v2613
        %v2678 = vpack.c.b16 %v2614, %v2614
        %v2679 = vpack.c.b16 %v2615, %v2615
        %v2680 = vpack.c.b16 %v2616, %v2616
        %v2681 = vpack.c.b16 %v2617, %v2617
        %v2682 = vpack.c.b16 %v2618, %v2618
        %v2683 = vpack.c.b16 %v2619, %v2619
        %v2684 = vpack.c.b16 %v2620, %v2620
        %v2685 = vpack.c.b16 %v2621, %v2621
        %v2686 = vpack.c.b16 %v2622, %v2622
        %v2687 = vpack.c.b16 %v2623, %v2623
        %v2688 = vpack.c.b16 %v2624, %v2624
        %v2689 = vpack.c.b16 %v2625, %v2625
        %v2690 = vpack.c.b16 %v2626, %v2626
        %v2691 = vpack.c.b16 %v2627, %v2627
        %v2692 = vpack.c.b16 %v2628, %v2628
        %v2693 = vpack.c.b16 %v2629, %v2629
        %v2694 = vpack.c.b16 %v2630, %v2630
        %v2695 = vpack.c.b16 %v2631, %v2631
        %v2696 = vpack.c.b16 %v2632, %v2632
        %v2697 = vpack.c.b16 %v2633, %v2633
        %v2698 = vpack.c.b16 %v2634, %v2634
        %v2699 = vpack.c.b16 %v2635, %v2635
        %v2700 = vpack.c.b16 %v2636, %v2636
        %v2701 = vpack.c.b16 %v2637, %v2637
        %v2702 = vpack.c.b16 %v2638, %v2638
        %v2703 = vpack.c.b16 %v2639, %v2639
        %v2704 = vpack.c.b16 %v2640, %v2640
        %v2705 = vpack.c.b16 %v2641, %v2641
        %v2706 = vpack.c.b16 %v2642, %v2642
        %v2707 = vpack.c.b16 %v2643, %v2643
        %v2708 = vpack.c.b16 %v2644, %v2644
        %v2709 = vpack.c.b16 %v2645, %v2645
        %v2710 = vpack.c.b16 %v2646, %v2646
        %v2711 = vpack.c.b16 %v2647, %v2647
        %v2712 = vpack.c.b16 %v2648, %v2648
        %v2713 = vpack.c.b16 %v2649, %v2649
        %v2714 = vpack.c.b16 %v2650, %v2650
        %v2715 = vpack.c.b16 %v2651, %v2651
        %v2716 = vpack.c.b16 %v2652, %v2652
        %v2717 = vpack.c.b16 %v2653, %v2653
        %v2718 = vpack.c.b16 %v2654, %v2654
        %v2719 = vpack.c.b16 %v2655, %v2655
        %v2720 = vpack.c.b16 %v2656, %v2656
        %v2721 = vpack.c.b16 %v2657, %v2657
        %v2722 = vpack.c.b16 %v2658, %v2658
        %v2723 = vpack.c.b16 %v2659, %v2659
        %v2724 = vpack.c.b16 %v2660, %v2660
        %v2725 = vpack.c.b16 %v2661, %v2661
        %v2726 = vpack.c.b16 %v2662, %v2662
        %v2727 = vpack.c.b16 %v2663, %v2663
        %v2728 = vpack.c.b16 %v2664, %v2664
        %v2729 = vpack.c.b16 %v2665, %v2665
        %v2730 = vpack.c.b16 %v2666, %v2666
        %v2731 = vpack.c.b16 %v2667, %v2667
        %v2732 = vpack.c.b16 %v2668, %v2668
        %v2733 = vpack.c.b16 %v2669, %v2669
        %v2734 = vpack.c.b16 %v2670, %v2670
        %v2735 = vpack.c.b16 %v2671, %v2671
        %v2736 = vpack.c.b16 %v2672, %v2672
        %v2737 = vpack.c.b16 %v2673, %v2673
        %v2738 = vpack.c.b16 %v2674, %v2674
        %v2739 = vpack.c.b16 %v2675, %v2675
        %2804 = vst [vmem:[%s578] sm:$0xf] %v2676
        %2805 = vst [vmem:[%s578 + $0x4] sm:$0xf] %v2677
        %2806 = vst [vmem:[%s578 + $0x8] sm:$0xf] %v2678
        %2807 = vst [vmem:[%s578 + $0xc] sm:$0xf] %v2679
        %2808 = vst [vmem:[%s578 + $0x10] sm:$0xf] %v2680
        %2809 = vst [vmem:[%s578 + $0x14] sm:$0xf] %v2681
        %2810 = vst [vmem:[%s578 + $0x18] sm:$0xf] %v2682
        %2811 = vst [vmem:[%s578 + $0x1c] sm:$0xf] %v2683
        %2812 = vst [vmem:[%s578 + $0x20] sm:$0xf] %v2684
        %2813 = vst [vmem:[%s578 + $0x24] sm:$0xf] %v2685
        %2814 = vst [vmem:[%s578 + $0x28] sm:$0xf] %v2686
        %2815 = vst [vmem:[%s578 + $0x2c] sm:$0xf] %v2687
        %2816 = vst [vmem:[%s578 + $0x30] sm:$0xf] %v2688
        %2817 = vst [vmem:[%s578 + $0x34] sm:$0xf] %v2689
        %2818 = vst [vmem:[%s578 + $0x38] sm:$0xf] %v2690
        %2819 = vst [vmem:[%s578 + $0x3c] sm:$0xf] %v2691
        %2820 = vst [vmem:[%s578 + $0x40] sm:$0xf] %v2692
        %2821 = vst [vmem:[%s578 + $0x44] sm:$0xf] %v2693
        %2822 = vst [vmem:[%s578 + $0x48] sm:$0xf] %v2694
        %2823 = vst [vmem:[%s578 + $0x4c] sm:$0xf] %v2695
        %2824 = vst [vmem:[%s578 + $0x50] sm:$0xf] %v2696
        %2825 = vst [vmem:[%s578 + $0x54] sm:$0xf] %v2697
        %2826 = vst [vmem:[%s578 + $0x58] sm:$0xf] %v2698
        %2827 = vst [vmem:[%s578 + $0x5c] sm:$0xf] %v2699
        %2828 = vst [vmem:[%s578 + $0x60] sm:$0xf] %v2700
        %2829 = vst [vmem:[%s578 + $0x64] sm:$0xf] %v2701
        %2830 = vst [vmem:[%s578 + $0x68] sm:$0xf] %v2702
        %2831 = vst [vmem:[%s578 + $0x6c] sm:$0xf] %v2703
        %2832 = vst [vmem:[%s578 + $0x70] sm:$0xf] %v2704
        %2833 = vst [vmem:[%s578 + $0x74] sm:$0xf] %v2705
        %2834 = vst [vmem:[%s578 + $0x78] sm:$0xf] %v2706
        %2835 = vst [vmem:[%s578 + $0x7c] sm:$0xf] %v2707
        %2836 = vst [vmem:[%s578 + $0x80] sm:$0xf] %v2708
        %2837 = vst [vmem:[%s578 + $0x84] sm:$0xf] %v2709
        %2838 = vst [vmem:[%s578 + $0x88] sm:$0xf] %v2710
        %2839 = vst [vmem:[%s578 + $0x8c] sm:$0xf] %v2711
        %2840 = vst [vmem:[%s578 + $0x90] sm:$0xf] %v2712
        %2841 = vst [vmem:[%s578 + $0x94] sm:$0xf] %v2713
        %2842 = vst [vmem:[%s578 + $0x98] sm:$0xf] %v2714
        %2843 = vst [vmem:[%s578 + $0x9c] sm:$0xf] %v2715
        %2844 = vst [vmem:[%s578 + $0xa0] sm:$0xf] %v2716
        %2845 = vst [vmem:[%s578 + $0xa4] sm:$0xf] %v2717
        %2846 = vst [vmem:[%s578 + $0xa8] sm:$0xf] %v2718
        %2847 = vst [vmem:[%s578 + $0xac] sm:$0xf] %v2719
        %2848 = vst [vmem:[%s578 + $0xb0] sm:$0xf] %v2720
        %2849 = vst [vmem:[%s578 + $0xb4] sm:$0xf] %v2721
        %2850 = vst [vmem:[%s578 + $0xb8] sm:$0xf] %v2722
        %2851 = vst [vmem:[%s578 + $0xbc] sm:$0xf] %v2723
        %2852 = vst [vmem:[%s578 + $0xc0] sm:$0xf] %v2724
        %2853 = vst [vmem:[%s578 + $0xc4] sm:$0xf] %v2725
        %2854 = vst [vmem:[%s578 + $0xc8] sm:$0xf] %v2726
        %2855 = vst [vmem:[%s578 + $0xcc] sm:$0xf] %v2727
        %2856 = vst [vmem:[%s578 + $0xd0] sm:$0xf] %v2728
        %2857 = vst [vmem:[%s578 + $0xd4] sm:$0xf] %v2729
        %2858 = vst [vmem:[%s578 + $0xd8] sm:$0xf] %v2730
        %2859 = vst [vmem:[%s578 + $0xdc] sm:$0xf] %v2731
        %2860 = vst [vmem:[%s578 + $0xe0] sm:$0xf] %v2732
        %2861 = vst [vmem:[%s578 + $0xe4] sm:$0xf] %v2733
        %2862 = vst [vmem:[%s578 + $0xe8] sm:$0xf] %v2734
        %2863 = vst [vmem:[%s578 + $0xec] sm:$0xf] %v2735
        %2864 = vst [vmem:[%s578 + $0xf0] sm:$0xf] %v2736
        %2865 = vst [vmem:[%s578 + $0xf4] sm:$0xf] %v2737
        %2866 = vst [vmem:[%s578 + $0xf8] sm:$0xf] %v2738
        %2867 = vst [vmem:[%s578 + $0xfc] sm:$0xf] %v2739
        %s2868 = smul.u32 64, %s26
        %p2869 = scmp.lt.s32.totalorder %s25, 1
        %s2870 = scalar_select %p2869, %s25, 1
        %p2871 = scmp.lt.s32.totalorder %s2868, 127
        %s2872 = scalar_select %p2871, %s2868, 127
        %s2873 = smul.addr %s2870, 128
        %s2874 = sadd.s32 %s2872, %s2873
        %s2875 = smul.addr %s2874, 4
        %s2876 = scalar_lea.vmem %s7, %s2875
        %s2877 = sand.u32 %s235, 1
        %s2878 = sand.u32 %s235, 1
        %s2879 = smul.addr %s2878, 256
        %s2880 = scalar_lea.vmem [#allocation3], %s2879
        %s2881 = smul.u32 64, %s26
        %p2882 = scmp.lt.s32.totalorder %s25, 1
        %s2883 = scalar_select %p2882, %s25, 1
        %p2884 = scmp.lt.s32.totalorder %s2881, 127
        %s2885 = scalar_select %p2884, %s2881, 127
        %s2886 = smul.addr %s2883, 128
        %s2887 = sadd.s32 %s2885, %s2886
        %s2888 = smul.addr %s2887, 4
        %s2889 = scalar_lea.vmem %s9, %s2888
        // Predicated region
        $region72: #{attn_block_forward.4} parent=66 // pred_check
          %p2890 = pneg %p217
        $region73: #{attn_block_forward.4} parent=66 // pred_check_branch
          %2892 = sbr.rel (%p2890) target = $region75
        $region74: #{attn_block_forward.4} parent=66 // pred_region
          %s2893 = smul.u32 64, %s26
        $region75: #{attn_block_forward.4} parent=66 // pred_fallthru
          _
        // Predicated region
        $region76: #{attn_block_forward.4} parent=66 // pred_check
          %p2894 = pneg %p245
        $region77: #{attn_block_forward.4} parent=66 // pred_check_branch
          %2896 = sbr.rel (%p2894) target = $region79
        $region78: #{attn_block_forward.4} parent=66 // pred_region
          %s2897 = smul.u32 4, %s26
          %s2898 = smul.addr %s25, 128
          %s2899 = sadd.s32 %s2897, %s2898
          %s2900 = smul.addr %s2899, 4
          %s2901 = scalar_lea.vmem %s8, %s2900
          // Predicated region
          $region80: #{attn_block_forward.4} parent=78 // pred_check
            _
          $region81: #{attn_block_forward.4} parent=78 // pred_check_branch
            %2903 = sbr.rel (0) target = $region83
          $region82: #{attn_block_forward.4} parent=78 // pred_region
            // Predicated region
            $region84: #{attn_block_forward.4} parent=82 // pred_check
              _
            $region85: #{attn_block_forward.4} parent=82 // pred_check_branch
              %2905 = sbr.rel (0) target = $region87
            $region86: #{attn_block_forward.4} parent=82 // pred_region
              loop: start=0, step=1, limit=1
              $region88: #{attn_block_forward.4} parent=86 // loop_pre_header
                _
              $region89: #{attn_block_forward.4} parent=86 // loop_header
                %s2907 = sphi 0, %s2911
                %p2908 = scmp.ge.s32.totalorder %s2907, 1
                %s2912 = sphi %s2880, %s2880
                %s2913 = sphi %s2901, %s2901
              $region90: #{attn_block_forward.4} parent=86 // loop_header_branch
                %2910 = sbr.rel (%p2908) target = $region94
              $region91: #{attn_block_forward.4} parent=86 // loop_body
                %v2914 = vld [vmem:[%s2912] sm:$0xff]
                %2915 = vst [vmem:[%s2913] sm:$0xff] %v2914
                %v2916 = vld [vmem:[%s2912 + $0x8] sm:$0xff]
                %2917 = vst [vmem:[%s2913 + $0x8] sm:$0xff] %v2916
                %v2918 = vld [vmem:[%s2912 + $0x10] sm:$0xff]
                %2919 = vst [vmem:[%s2913 + $0x20] sm:$0xff] %v2918
                %v2920 = vld [vmem:[%s2912 + $0x18] sm:$0xff]
                %2921 = vst [vmem:[%s2913 + $0x28] sm:$0xff] %v2920
                %v2922 = vld [vmem:[%s2912 + $0x20] sm:$0xff]
                %2923 = vst [vmem:[%s2913 + $0x40] sm:$0xff] %v2922
                %v2924 = vld [vmem:[%s2912 + $0x28] sm:$0xff]
                %2925 = vst [vmem:[%s2913 + $0x48] sm:$0xff] %v2924
                %v2926 = vld [vmem:[%s2912 + $0x30] sm:$0xff]
                %2927 = vst [vmem:[%s2913 + $0x60] sm:$0xff] %v2926
                %v2928 = vld [vmem:[%s2912 + $0x38] sm:$0xff]
                %2929 = vst [vmem:[%s2913 + $0x68] sm:$0xff] %v2928
                %v2930 = vld [vmem:[%s2912 + $0x40] sm:$0xff]
                %2931 = vst [vmem:[%s2913 + $0x80] sm:$0xff] %v2930
                %v2932 = vld [vmem:[%s2912 + $0x48] sm:$0xff]
                %2933 = vst [vmem:[%s2913 + $0x88] sm:$0xff] %v2932
                %v2934 = vld [vmem:[%s2912 + $0x50] sm:$0xff]
                %2935 = vst [vmem:[%s2913 + $0xa0] sm:$0xff] %v2934
                %v2936 = vld [vmem:[%s2912 + $0x58] sm:$0xff]
                %2937 = vst [vmem:[%s2913 + $0xa8] sm:$0xff] %v2936
                %v2938 = vld [vmem:[%s2912 + $0x60] sm:$0xff]
                %2939 = vst [vmem:[%s2913 + $0xc0] sm:$0xff] %v2938
                %v2940 = vld [vmem:[%s2912 + $0x68] sm:$0xff]
                %2941 = vst [vmem:[%s2913 + $0xc8] sm:$0xff] %v2940
                %v2942 = vld [vmem:[%s2912 + $0x70] sm:$0xff]
                %2943 = vst [vmem:[%s2913 + $0xe0] sm:$0xff] %v2942
                %v2944 = vld [vmem:[%s2912 + $0x78] sm:$0xff]
                %2945 = vst [vmem:[%s2913 + $0xe8] sm:$0xff] %v2944
                %v2946 = vld [vmem:[%s2912 + $0x80] sm:$0xff]
                %2947 = vst [vmem:[%s2913 + $0x100] sm:$0xff] %v2946
                %v2948 = vld [vmem:[%s2912 + $0x88] sm:$0xff]
                %2949 = vst [vmem:[%s2913 + $0x108] sm:$0xff] %v2948
                %v2950 = vld [vmem:[%s2912 + $0x90] sm:$0xff]
                %2951 = vst [vmem:[%s2913 + $0x120] sm:$0xff] %v2950
                %v2952 = vld [vmem:[%s2912 + $0x98] sm:$0xff]
                %2953 = vst [vmem:[%s2913 + $0x128] sm:$0xff] %v2952
                %v2954 = vld [vmem:[%s2912 + $0xa0] sm:$0xff]
                %2955 = vst [vmem:[%s2913 + $0x140] sm:$0xff] %v2954
                %v2956 = vld [vmem:[%s2912 + $0xa8] sm:$0xff]
                %2957 = vst [vmem:[%s2913 + $0x148] sm:$0xff] %v2956
                %v2958 = vld [vmem:[%s2912 + $0xb0] sm:$0xff]
                %2959 = vst [vmem:[%s2913 + $0x160] sm:$0xff] %v2958
                %v2960 = vld [vmem:[%s2912 + $0xb8] sm:$0xff]
                %2961 = vst [vmem:[%s2913 + $0x168] sm:$0xff] %v2960
                %v2962 = vld [vmem:[%s2912 + $0xc0] sm:$0xff]
                %2963 = vst [vmem:[%s2913 + $0x180] sm:$0xff] %v2962
                %v2964 = vld [vmem:[%s2912 + $0xc8] sm:$0xff]
                %2965 = vst [vmem:[%s2913 + $0x188] sm:$0xff] %v2964
                %v2966 = vld [vmem:[%s2912 + $0xd0] sm:$0xff]
                %2967 = vst [vmem:[%s2913 + $0x1a0] sm:$0xff] %v2966
                %v2968 = vld [vmem:[%s2912 + $0xd8] sm:$0xff]
                %2969 = vst [vmem:[%s2913 + $0x1a8] sm:$0xff] %v2968
                %v2970 = vld [vmem:[%s2912 + $0xe0] sm:$0xff]
                %2971 = vst [vmem:[%s2913 + $0x1c0] sm:$0xff] %v2970
                %v2972 = vld [vmem:[%s2912 + $0xe8] sm:$0xff]
                %2973 = vst [vmem:[%s2913 + $0x1c8] sm:$0xff] %v2972
                %v2974 = vld [vmem:[%s2912 + $0xf0] sm:$0xff]
                %2975 = vst [vmem:[%s2913 + $0x1e0] sm:$0xff] %v2974
                %v2976 = vld [vmem:[%s2912 + $0xf8] sm:$0xff]
                %2977 = vst [vmem:[%s2913 + $0x1e8] sm:$0xff] %v2976
              $region92: #{attn_block_forward.4} parent=86 // loop_footer
                %s2911 = sadd.s32 1, %s2907
              $region93: #{attn_block_forward.4} parent=86 // loop_footer_branch
                %2906 = sbr.rel target = $region89
              $region94: #{attn_block_forward.4} parent=86 // loop_exit
                _
            $region87: #{attn_block_forward.4} parent=82 // pred_fallthru
              _
            // Predicated region
            $region95: #{attn_block_forward.4} parent=82 // pred_check
              _
            $region96: #{attn_block_forward.4} parent=82 // pred_check_branch
              %2979 = sbr.rel target = $region98
            $region97: #{attn_block_forward.4} parent=82 // pred_region
              _
            $region98: #{attn_block_forward.4} parent=82 // pred_fallthru
              _
          $region83: #{attn_block_forward.4} parent=78 // pred_fallthru
            _
          %2980 = vnop
        $region79: #{attn_block_forward.4} parent=66 // pred_fallthru
          _
        // Predicated region
        $region99: #{attn_block_forward.4} parent=66 // pred_check
          %p2981 = pneg %p273
        $region100: #{attn_block_forward.4} parent=66 // pred_check_branch
          %2983 = sbr.rel (%p2981) target = $region102
        $region101: #{attn_block_forward.4} parent=66 // pred_region
          %s2984 = smul.u32 64, %s26
        $region102: #{attn_block_forward.4} parent=66 // pred_fallthru
          _
      $region67: #{attn_block_forward.4} parent=5 // pred_fallthru
        _
      %p2985 = scmp.le.s32.totalorder 2, %s16
      // Predicated region
      $region103: #{attn_block_forward.4} parent=5 // pred_check
        %p2986 = pneg %p2985
      $region104: #{attn_block_forward.4} parent=5 // pred_check_branch
        %2988 = sbr.rel (%p2986) target = $region106
      $region105: #{attn_block_forward.4} parent=5 // pred_region
        %s2989 = ssub.s32 %s16, 2
        // Predicated region
        $region107: #{attn_block_forward.4} parent=105 // pred_check
          %p2990 = pneg %p223
        $region108: #{attn_block_forward.4} parent=105 // pred_check_branch
          %2992 = sbr.rel (%p2990) target = $region110
        $region109: #{attn_block_forward.4} parent=105 // pred_region
          %s2993 = smul.u32 64, %s28
          %p2994 = scmp.lt.s32.totalorder %s27, 1
          %s2995 = scalar_select %p2994, %s27, 1
          %p2996 = scmp.lt.s32.totalorder %s2993, 127
          %s2997 = scalar_select %p2996, %s2993, 127
          %s2998 = smul.addr %s2995, 128
          %s2999 = sadd.s32 %s2997, %s2998
          %s3000 = smul.addr %s2999, 4
          %s3001 = scalar_lea.vmem %s7, %s3000
        $region110: #{attn_block_forward.4} parent=105 // pred_fallthru
          _
        // Predicated region
        $region111: #{attn_block_forward.4} parent=105 // pred_check
          %p3002 = pneg %p251
        $region112: #{attn_block_forward.4} parent=105 // pred_check_branch
          %3004 = sbr.rel (%p3002) target = $region114
        $region113: #{attn_block_forward.4} parent=105 // pred_region
          %s3005 = sand.u32 %s236, 1
          %s3006 = sand.u32 %s236, 1
          %s3007 = smul.addr %s3006, 256
          %s3008 = scalar_lea.vmem [#allocation3], %s3007
        $region114: #{attn_block_forward.4} parent=105 // pred_fallthru
          _
        // Predicated region
        $region115: #{attn_block_forward.4} parent=105 // pred_check
          %p3009 = pneg %p279
        $region116: #{attn_block_forward.4} parent=105 // pred_check_branch
          %3011 = sbr.rel (%p3009) target = $region118
        $region117: #{attn_block_forward.4} parent=105 // pred_region
          %s3012 = smul.u32 64, %s28
          %p3013 = scmp.lt.s32.totalorder %s27, 1
          %s3014 = scalar_select %p3013, %s27, 1
          %p3015 = scmp.lt.s32.totalorder %s3012, 127
          %s3016 = scalar_select %p3015, %s3012, 127
          %s3017 = smul.addr %s3014, 128
          %s3018 = sadd.s32 %s3016, %s3017
          %s3019 = smul.addr %s3018, 4
          %s3020 = scalar_lea.vmem %s9, %s3019
        $region118: #{attn_block_forward.4} parent=105 // pred_fallthru
          _
      $region106: #{attn_block_forward.4} parent=5 // pred_fallthru
        _
    $region6: #{attn_block_forward.4} parent=1 // loop_footer
      %s20 = sadd.s32 1, %s16
    $region7: #{attn_block_forward.4} parent=1 // loop_footer_branch
      %15 = sbr.rel target = $region3
    $region8: #{attn_block_forward.4} parent=1 // loop_exit
      _

// kernel: attn_block_forward.5
$region0: #{attn_block_forward.5}
  #allocation0 [shape = 'u32[]', space=smem, size = 0x4, offset = 0x4, fixed_abs, tag = 'smem constant byte address 0x4 - core index']
  #allocation1 [shape = 'u32[144,128]{1,0:T(1,128)}', space=vmem, size = 0x12000, scoped, tag = 'internal scratch']
  #allocation2 [shape = 'f32[512,128]{1,0:T(8,128)}', space=vmem, size = 0x40000, scoped, tag = 'scratch operand']
  #allocation3 [shape = 'f32[512,128]{1,0:T(8,128)}', space=vmem, size = 0x40000, scoped, tag = 'scratch operand']
  #allocation4 [shape = 'f32[512,128]{1,0:T(8,128)}', space=vmem, size = 0x40000, scoped, tag = 'scratch operand']
  %s0 = inlined_call_operand.vmem [shape: f32[2,128,1024], index: 0, kind: input, shape index: {}]
  %s1 = inlined_call_operand.vmem [shape: bf16[2,1024,128], index: 1, kind: input, shape index: {}]
  %s2 = inlined_call_operand.vmem [shape: bf16[2,128,1024], index: 2, kind: input, shape index: {}]
  %s3 = inlined_call_operand.vmem [shape: bf16[2,1024,128], index: 3, kind: input, shape index: {}]
  %s4 = inlined_call_operand.vmem [shape: bf16[128,128], index: 4, kind: input, shape index: {}]
  %s5 = inlined_call_operand.vmem [shape: f32[128,1], index: 5, kind: input, shape index: {}]
  %s6 = inlined_call_operand.vmem [shape: f32[2,128,1024], index: 6, kind: output, shape index: {}]
  %s7 = sld [smem:[#allocation0]]
  $region130: #{attn_block_forward.5} parent=0
    _
  %s9 = ssub.s32 1, %s7
  %s10 = scalar_select 0, %s9, %s7
  $region1: #{attn_block_forward.5} parent=0
    #allocation5 [shape = 'u8[524288]{0}', space=vmem, size = 0x80000, scoped, tag = 'input window, operand 0']
    #allocation6 [shape = 'u8[262144]{0}', space=vmem, size = 0x40000, scoped, tag = 'input window, operand 2']
    #allocation7 [shape = 'u8[524288]{0}', space=vmem, size = 0x80000, scoped, tag = 'output window, operand 0']
    loop: start=0, step=1, limit=10
    $region2: #{attn_block_forward.5} parent=1 // loop_pre_header
      _
    $region3: #{attn_block_forward.5} parent=1 // loop_header
      %s12 = sphi 0, %s16
      %p13 = scmp.ge.s32.totalorder %s12, 10
      %s19 = sphi 0, %s38
      %s20 = sphi 0, %s34
      %s21 = sphi 0, %s30
      %s22 = sphi 0, %s19
      %s23 = sphi 0, %s20
      %s24 = sphi 0, %s21
      %s25 = sphi 0, %s22
      %s26 = sphi 0, %s23
      %s27 = sphi 0, %s24
      %s43 = sphi 0, %s45
      %s46 = sphi 0, %s43
      %s47 = sphi 0, %s46
      %s63 = sphi 0, %s47
      %s71 = sphi 0, %s73
      %s74 = sphi 0, %s71
      %s75 = sphi 0, %s74
      %s91 = sphi 0, %s75
      %s99 = sphi 0, %s101
      %s102 = sphi 0, %s99
      %s103 = sphi 0, %s102
      %s119 = sphi 0, %s103
      %s127 = sphi 0, %s129
      %s130 = sphi 0, %s127
      %s131 = sphi 0, %s130
      %s147 = sphi 0, %s131
      %s151 = sphi 0, %s151
      %s153 = sphi 0, %s151
      %s154 = sphi 0, %s153
      %s168 = sphi 0, %s154
      %s172 = sphi 0, %s172
      %s174 = sphi 0, %s172
      %s175 = sphi 0, %s174
      %s189 = sphi 0, %s175
      %s197 = sphi 0, %s199
      %s200 = sphi 0, %s197
      %s201 = sphi 0, %s200
      %s217 = sphi 0, %s201
    $region4: #{attn_block_forward.5} parent=1 // loop_header_branch
      %15 = sbr.rel (%p13) target = $region8
    $region5: #{attn_block_forward.5} parent=1 // loop_body
      %s17 = ssub.s32 %s12, 1
      %s18 = ssub.s32 %s12, 2
      %s28 = sadd.s32 1, %s21
      %p29 = scmp.ge.s32.totalorder %s28, 2
      %s30 = scalar_select %p29, 0, %s28
      %s31 = sadd.s32 1, %s20
      %s32 = scalar_select %p29, %s31, %s20
      %p33 = scmp.ge.s32.totalorder %s32, 2
      %s34 = scalar_select %p33, 0, %s32
      %s35 = sadd.s32 1, %s19
      %s36 = scalar_select %p33, %s35, %s19
      %p37 = scmp.ge.s32.totalorder %s36, 2
      %s38 = scalar_select %p37, 0, %s36
      %s39 = ssub.s32 %s19, %s38
      %s40 = ssub.s32 %s20, %s34
      %s41 = sor.u32 %s39, %s40
      %p42 = scmp.eq.s32.totalorder %s41, 0
      %s44 = sadd.s32 %s43, 1
      %s45 = scalar_select %p42, %s43, %s44
      %p48 = pneg %p42
      %p49 = scmp.eq.s32.totalorder %s12, 7
      %p50 = por %p48, %p49
      %p51 = scmp.ne.s32.totalorder %s43, %s46
      %p52 = scmp.eq.s32.totalorder %s12, 0
      %p53 = por %p51, %p52
      %p54 = scmp.ne.s32.totalorder %s43, %s46
      %p55 = scmp.eq.s32.totalorder %s17, 7
      %p56 = por %p54, %p55
      %p57 = scmp.ne.s32.totalorder %s46, %s47
      %p58 = scmp.eq.s32.totalorder %s17, 0
      %p59 = por %p57, %p58
      %p60 = scmp.ne.s32.totalorder %s46, %s47
      %p61 = scmp.eq.s32.totalorder %s18, 7
      %p62 = por %p60, %p61
      %p64 = scmp.ne.s32.totalorder %s47, %s63
      %p65 = scmp.eq.s32.totalorder %s18, 0
      %p66 = por %p64, %p65
      %s67 = ssub.s32 %s19, %s38
      %s68 = ssub.s32 %s20, %s34
      %s69 = sor.u32 %s67, %s68
      %p70 = scmp.eq.s32.totalorder %s69, 0
      %s72 = sadd.s32 %s71, 1
      %s73 = scalar_select %p70, %s71, %s72
      %p76 = pneg %p70
      %p77 = scmp.eq.s32.totalorder %s12, 7
      %p78 = por %p76, %p77
      %p79 = scmp.ne.s32.totalorder %s71, %s74
      %p80 = scmp.eq.s32.totalorder %s12, 0
      %p81 = por %p79, %p80
      %p82 = scmp.ne.s32.totalorder %s71, %s74
      %p83 = scmp.eq.s32.totalorder %s17, 7
      %p84 = por %p82, %p83
      %p85 = scmp.ne.s32.totalorder %s74, %s75
      %p86 = scmp.eq.s32.totalorder %s17, 0
      %p87 = por %p85, %p86
      %p88 = scmp.ne.s32.totalorder %s74, %s75
      %p89 = scmp.eq.s32.totalorder %s18, 7
      %p90 = por %p88, %p89
      %p92 = scmp.ne.s32.totalorder %s75, %s91
      %p93 = scmp.eq.s32.totalorder %s18, 0
      %p94 = por %p92, %p93
      %s95 = ssub.s32 %s19, %s38
      %s96 = ssub.s32 %s21, %s30
      %s97 = sor.u32 %s95, %s96
      %p98 = scmp.eq.s32.totalorder %s97, 0
      %s100 = sadd.s32 %s99, 1
      %s101 = scalar_select %p98, %s99, %s100
      %p104 = pneg %p98
      %p105 = scmp.eq.s32.totalorder %s12, 7
      %p106 = por %p104, %p105
      %p107 = scmp.ne.s32.totalorder %s99, %s102
      %p108 = scmp.eq.s32.totalorder %s12, 0
      %p109 = por %p107, %p108
      %p110 = scmp.ne.s32.totalorder %s99, %s102
      %p111 = scmp.eq.s32.totalorder %s17, 7
      %p112 = por %p110, %p111
      %p113 = scmp.ne.s32.totalorder %s102, %s103
      %p114 = scmp.eq.s32.totalorder %s17, 0
      %p115 = por %p113, %p114
      %p116 = scmp.ne.s32.totalorder %s102, %s103
      %p117 = scmp.eq.s32.totalorder %s18, 7
      %p118 = por %p116, %p117
      %p120 = scmp.ne.s32.totalorder %s103, %s119
      %p121 = scmp.eq.s32.totalorder %s18, 0
      %p122 = por %p120, %p121
      %s123 = ssub.s32 %s19, %s38
      %s124 = ssub.s32 %s21, %s30
      %s125 = sor.u32 %s123, %s124
      %p126 = scmp.eq.s32.totalorder %s125, 0
      %s128 = sadd.s32 %s127, 1
      %s129 = scalar_select %p126, %s127, %s128
      %p132 = pneg %p126
      %p133 = scmp.eq.s32.totalorder %s12, 7
      %p134 = por %p132, %p133
      %p135 = scmp.ne.s32.totalorder %s127, %s130
      %p136 = scmp.eq.s32.totalorder %s12, 0
      %p137 = por %p135, %p136
      %p138 = scmp.ne.s32.totalorder %s127, %s130
      %p139 = scmp.eq.s32.totalorder %s17, 7
      %p140 = por %p138, %p139
      %p141 = scmp.ne.s32.totalorder %s130, %s131
      %p142 = scmp.eq.s32.totalorder %s17, 0
      %p143 = por %p141, %p142
      %p144 = scmp.ne.s32.totalorder %s130, %s131
      %p145 = scmp.eq.s32.totalorder %s18, 7
      %p146 = por %p144, %p145
      %p148 = scmp.ne.s32.totalorder %s131, %s147
      %p149 = scmp.eq.s32.totalorder %s18, 0
      %p150 = por %p148, %p149
      %s152 = sadd.s32 %s151, 1
      %p155 = scmp.eq.s32.totalorder %s12, 7
      %p156 = scmp.ne.s32.totalorder %s151, %s153
      %p157 = scmp.eq.s32.totalorder %s12, 0
      %p158 = por %p156, %p157
      %p159 = scmp.ne.s32.totalorder %s151, %s153
      %p160 = scmp.eq.s32.totalorder %s17, 7
      %p161 = por %p159, %p160
      %p162 = scmp.ne.s32.totalorder %s153, %s154
      %p163 = scmp.eq.s32.totalorder %s17, 0
      %p164 = por %p162, %p163
      %p165 = scmp.ne.s32.totalorder %s153, %s154
      %p166 = scmp.eq.s32.totalorder %s18, 7
      %p167 = por %p165, %p166
      %p169 = scmp.ne.s32.totalorder %s154, %s168
      %p170 = scmp.eq.s32.totalorder %s18, 0
      %p171 = por %p169, %p170
      %s173 = sadd.s32 %s172, 1
      %p176 = scmp.eq.s32.totalorder %s12, 7
      %p177 = scmp.ne.s32.totalorder %s172, %s174
      %p178 = scmp.eq.s32.totalorder %s12, 0
      %p179 = por %p177, %p178
      %p180 = scmp.ne.s32.totalorder %s172, %s174
      %p181 = scmp.eq.s32.totalorder %s17, 7
      %p182 = por %p180, %p181
      %p183 = scmp.ne.s32.totalorder %s174, %s175
      %p184 = scmp.eq.s32.totalorder %s17, 0
      %p185 = por %p183, %p184
      %p186 = scmp.ne.s32.totalorder %s174, %s175
      %p187 = scmp.eq.s32.totalorder %s18, 7
      %p188 = por %p186, %p187
      %p190 = scmp.ne.s32.totalorder %s175, %s189
      %p191 = scmp.eq.s32.totalorder %s18, 0
      %p192 = por %p190, %p191
      %s193 = ssub.s32 %s19, %s38
      %s194 = ssub.s32 %s20, %s34
      %s195 = sor.u32 %s193, %s194
      %p196 = scmp.eq.s32.totalorder %s195, 0
      %s198 = sadd.s32 %s197, 1
      %s199 = scalar_select %p196, %s197, %s198
      %p202 = pneg %p196
      %p203 = scmp.eq.s32.totalorder %s12, 7
      %p204 = por %p202, %p203
      %p205 = scmp.ne.s32.totalorder %s197, %s200
      %p206 = scmp.eq.s32.totalorder %s12, 0
      %p207 = por %p205, %p206
      %p208 = scmp.ne.s32.totalorder %s197, %s200
      %p209 = scmp.eq.s32.totalorder %s17, 7
      %p210 = por %p208, %p209
      %p211 = scmp.ne.s32.totalorder %s200, %s201
      %p212 = scmp.eq.s32.totalorder %s17, 0
      %p213 = por %p211, %p212
      %p214 = scmp.ne.s32.totalorder %s200, %s201
      %p215 = scmp.eq.s32.totalorder %s18, 7
      %p216 = por %p214, %p215
      %p218 = scmp.ne.s32.totalorder %s201, %s217
      %p219 = scmp.eq.s32.totalorder %s18, 0
      %p220 = por %p218, %p219
      %p221 = scmp.le.s32.totalorder 1, %s12
      %p222 = scmp.lt.s32.totalorder %s12, 9
      %p223 = pnand %p221, %p222
      %p224 = pneg %p223
      // Predicated region
      $region9: #{attn_block_forward.5} parent=5 // pred_check
        _
      $region10: #{attn_block_forward.5} parent=5 // pred_check_branch
        %226 = sbr.rel (%p223) target = $region12
      $region11: #{attn_block_forward.5} parent=5 // pred_region
        %s227 = ssub.s32 %s12, 1
        // Predicated region
        $region13: #{attn_block_forward.5} parent=11 // pred_check
          %p228 = pneg %p164
        $region14: #{attn_block_forward.5} parent=11 // pred_check_branch
          %230 = sbr.rel (%p228) target = $region16
        $region15: #{attn_block_forward.5} parent=11 // pred_region
          _
        $region16: #{attn_block_forward.5} parent=11 // pred_fallthru
          _
        // Predicated region
        $region17: #{attn_block_forward.5} parent=11 // pred_check
          %p231 = pneg %p185
        $region18: #{attn_block_forward.5} parent=11 // pred_check_branch
          %233 = sbr.rel (%p231) target = $region20
        $region19: #{attn_block_forward.5} parent=11 // pred_region
          _
        $region20: #{attn_block_forward.5} parent=11 // pred_fallthru
          _
      $region12: #{attn_block_forward.5} parent=5 // pred_fallthru
        _
      %p234 = scmp.lt.s32.totalorder %s12, 8
      // Predicated region
      $region21: #{attn_block_forward.5} parent=5 // pred_check
        %p235 = pneg %p234
      $region22: #{attn_block_forward.5} parent=5 // pred_check_branch
        %237 = sbr.rel (%p235) target = $region24
      $region23: #{attn_block_forward.5} parent=5 // pred_region
        // Predicated region
        $region25: #{attn_block_forward.5} parent=23 // pred_check
          %p238 = pneg %p53
        $region26: #{attn_block_forward.5} parent=23 // pred_check_branch
          %240 = sbr.rel (%p238) target = $region28
        $region27: #{attn_block_forward.5} parent=23 // pred_region
          %s241 = sand.u32 %s43, 1
          %s242 = sand.u32 %s43, 1
          %s243 = smul.addr %s242, 512
          %s244 = scalar_lea.vmem [#allocation5], %s243
          %s245 = smul.u32 4, %s20
          %s246 = smul.addr %s19, 128
          %s247 = sadd.s32 %s245, %s246
          %s248 = smul.addr %s247, 8
          %s249 = scalar_lea.vmem %s0, %s248
          // Predicated region
          $region29: #{attn_block_forward.5} parent=27 // pred_check
            _
          $region30: #{attn_block_forward.5} parent=27 // pred_check_branch
            %251 = sbr.rel (0) target = $region32
          $region31: #{attn_block_forward.5} parent=27 // pred_region
            // Predicated region
            $region33: #{attn_block_forward.5} parent=31 // pred_check
              _
            $region34: #{attn_block_forward.5} parent=31 // pred_check_branch
              %253 = sbr.rel (0) target = $region36
            $region35: #{attn_block_forward.5} parent=31 // pred_region
              loop: start=0, step=1, limit=1
              $region37: #{attn_block_forward.5} parent=35 // loop_pre_header
                _
              $region38: #{attn_block_forward.5} parent=35 // loop_header
                %s255 = sphi 0, %s259
                %p256 = scmp.ge.s32.totalorder %s255, 1
                %s260 = sphi %s249, %s249
                %s261 = sphi %s244, %s244
              $region39: #{attn_block_forward.5} parent=35 // loop_header_branch
                %258 = sbr.rel (%p256) target = $region43
              $region40: #{attn_block_forward.5} parent=35 // loop_body
                %v262 = vld [vmem:[%s260] sm:$0xff]
                %263 = vst [vmem:[%s261] sm:$0xff] %v262
                %v264 = vld [vmem:[%s260 + $0x8] sm:$0xff]
                %265 = vst [vmem:[%s261 + $0x8] sm:$0xff] %v264
                %v266 = vld [vmem:[%s260 + $0x10] sm:$0xff]
                %267 = vst [vmem:[%s261 + $0x10] sm:$0xff] %v266
                %v268 = vld [vmem:[%s260 + $0x18] sm:$0xff]
                %269 = vst [vmem:[%s261 + $0x18] sm:$0xff] %v268
                %v270 = vld [vmem:[%s260 + $0x40] sm:$0xff]
                %271 = vst [vmem:[%s261 + $0x20] sm:$0xff] %v270
                %v272 = vld [vmem:[%s260 + $0x48] sm:$0xff]
                %273 = vst [vmem:[%s261 + $0x28] sm:$0xff] %v272
                %v274 = vld [vmem:[%s260 + $0x50] sm:$0xff]
                %275 = vst [vmem:[%s261 + $0x30] sm:$0xff] %v274
                %v276 = vld [vmem:[%s260 + $0x58] sm:$0xff]
                %277 = vst [vmem:[%s261 + $0x38] sm:$0xff] %v276
                %v278 = vld [vmem:[%s260 + $0x80] sm:$0xff]
                %279 = vst [vmem:[%s261 + $0x40] sm:$0xff] %v278
                %v280 = vld [vmem:[%s260 + $0x88] sm:$0xff]
                %281 = vst [vmem:[%s261 + $0x48] sm:$0xff] %v280
                %v282 = vld [vmem:[%s260 + $0x90] sm:$0xff]
                %283 = vst [vmem:[%s261 + $0x50] sm:$0xff] %v282
                %v284 = vld [vmem:[%s260 + $0x98] sm:$0xff]
                %285 = vst [vmem:[%s261 + $0x58] sm:$0xff] %v284
                %v286 = vld [vmem:[%s260 + $0xc0] sm:$0xff]
                %287 = vst [vmem:[%s261 + $0x60] sm:$0xff] %v286
                %v288 = vld [vmem:[%s260 + $0xc8] sm:$0xff]
                %289 = vst [vmem:[%s261 + $0x68] sm:$0xff] %v288
                %v290 = vld [vmem:[%s260 + $0xd0] sm:$0xff]
                %291 = vst [vmem:[%s261 + $0x70] sm:$0xff] %v290
                %v292 = vld [vmem:[%s260 + $0xd8] sm:$0xff]
                %293 = vst [vmem:[%s261 + $0x78] sm:$0xff] %v292
                %v294 = vld [vmem:[%s260 + $0x100] sm:$0xff]
                %295 = vst [vmem:[%s261 + $0x80] sm:$0xff] %v294
                %v296 = vld [vmem:[%s260 + $0x108] sm:$0xff]
                %297 = vst [vmem:[%s261 + $0x88] sm:$0xff] %v296
                %v298 = vld [vmem:[%s260 + $0x110] sm:$0xff]
                %299 = vst [vmem:[%s261 + $0x90] sm:$0xff] %v298
                %v300 = vld [vmem:[%s260 + $0x118] sm:$0xff]
                %301 = vst [vmem:[%s261 + $0x98] sm:$0xff] %v300
                %v302 = vld [vmem:[%s260 + $0x140] sm:$0xff]
                %303 = vst [vmem:[%s261 + $0xa0] sm:$0xff] %v302
                %v304 = vld [vmem:[%s260 + $0x148] sm:$0xff]
                %305 = vst [vmem:[%s261 + $0xa8] sm:$0xff] %v304
                %v306 = vld [vmem:[%s260 + $0x150] sm:$0xff]
                %307 = vst [vmem:[%s261 + $0xb0] sm:$0xff] %v306
                %v308 = vld [vmem:[%s260 + $0x158] sm:$0xff]
                %309 = vst [vmem:[%s261 + $0xb8] sm:$0xff] %v308
                %v310 = vld [vmem:[%s260 + $0x180] sm:$0xff]
                %311 = vst [vmem:[%s261 + $0xc0] sm:$0xff] %v310
                %v312 = vld [vmem:[%s260 + $0x188] sm:$0xff]
                %313 = vst [vmem:[%s261 + $0xc8] sm:$0xff] %v312
                %v314 = vld [vmem:[%s260 + $0x190] sm:$0xff]
                %315 = vst [vmem:[%s261 + $0xd0] sm:$0xff] %v314
                %v316 = vld [vmem:[%s260 + $0x198] sm:$0xff]
                %317 = vst [vmem:[%s261 + $0xd8] sm:$0xff] %v316
                %v318 = vld [vmem:[%s260 + $0x1c0] sm:$0xff]
                %319 = vst [vmem:[%s261 + $0xe0] sm:$0xff] %v318
                %v320 = vld [vmem:[%s260 + $0x1c8] sm:$0xff]
                %321 = vst [vmem:[%s261 + $0xe8] sm:$0xff] %v320
                %v322 = vld [vmem:[%s260 + $0x1d0] sm:$0xff]
                %323 = vst [vmem:[%s261 + $0xf0] sm:$0xff] %v322
                %v324 = vld [vmem:[%s260 + $0x1d8] sm:$0xff]
                %325 = vst [vmem:[%s261 + $0xf8] sm:$0xff] %v324
                %v326 = vld [vmem:[%s260 + $0x200] sm:$0xff]
                %327 = vst [vmem:[%s261 + $0x100] sm:$0xff] %v326
                %v328 = vld [vmem:[%s260 + $0x208] sm:$0xff]
                %329 = vst [vmem:[%s261 + $0x108] sm:$0xff] %v328
                %v330 = vld [vmem:[%s260 + $0x210] sm:$0xff]
                %331 = vst [vmem:[%s261 + $0x110] sm:$0xff] %v330
                %v332 = vld [vmem:[%s260 + $0x218] sm:$0xff]
                %333 = vst [vmem:[%s261 + $0x118] sm:$0xff] %v332
                %v334 = vld [vmem:[%s260 + $0x240] sm:$0xff]
                %335 = vst [vmem:[%s261 + $0x120] sm:$0xff] %v334
                %v336 = vld [vmem:[%s260 + $0x248] sm:$0xff]
                %337 = vst [vmem:[%s261 + $0x128] sm:$0xff] %v336
                %v338 = vld [vmem:[%s260 + $0x250] sm:$0xff]
                %339 = vst [vmem:[%s261 + $0x130] sm:$0xff] %v338
                %v340 = vld [vmem:[%s260 + $0x258] sm:$0xff]
                %341 = vst [vmem:[%s261 + $0x138] sm:$0xff] %v340
                %v342 = vld [vmem:[%s260 + $0x280] sm:$0xff]
                %343 = vst [vmem:[%s261 + $0x140] sm:$0xff] %v342
                %v344 = vld [vmem:[%s260 + $0x288] sm:$0xff]
                %345 = vst [vmem:[%s261 + $0x148] sm:$0xff] %v344
                %v346 = vld [vmem:[%s260 + $0x290] sm:$0xff]
                %347 = vst [vmem:[%s261 + $0x150] sm:$0xff] %v346
                %v348 = vld [vmem:[%s260 + $0x298] sm:$0xff]
                %349 = vst [vmem:[%s261 + $0x158] sm:$0xff] %v348
                %v350 = vld [vmem:[%s260 + $0x2c0] sm:$0xff]
                %351 = vst [vmem:[%s261 + $0x160] sm:$0xff] %v350
                %v352 = vld [vmem:[%s260 + $0x2c8] sm:$0xff]
                %353 = vst [vmem:[%s261 + $0x168] sm:$0xff] %v352
                %v354 = vld [vmem:[%s260 + $0x2d0] sm:$0xff]
                %355 = vst [vmem:[%s261 + $0x170] sm:$0xff] %v354
                %v356 = vld [vmem:[%s260 + $0x2d8] sm:$0xff]
                %357 = vst [vmem:[%s261 + $0x178] sm:$0xff] %v356
                %v358 = vld [vmem:[%s260 + $0x300] sm:$0xff]
                %359 = vst [vmem:[%s261 + $0x180] sm:$0xff] %v358
                %v360 = vld [vmem:[%s260 + $0x308] sm:$0xff]
                %361 = vst [vmem:[%s261 + $0x188] sm:$0xff] %v360
                %v362 = vld [vmem:[%s260 + $0x310] sm:$0xff]
                %363 = vst [vmem:[%s261 + $0x190] sm:$0xff] %v362
                %v364 = vld [vmem:[%s260 + $0x318] sm:$0xff]
                %365 = vst [vmem:[%s261 + $0x198] sm:$0xff] %v364
                %v366 = vld [vmem:[%s260 + $0x340] sm:$0xff]
                %367 = vst [vmem:[%s261 + $0x1a0] sm:$0xff] %v366
                %v368 = vld [vmem:[%s260 + $0x348] sm:$0xff]
                %369 = vst [vmem:[%s261 + $0x1a8] sm:$0xff] %v368
                %v370 = vld [vmem:[%s260 + $0x350] sm:$0xff]
                %371 = vst [vmem:[%s261 + $0x1b0] sm:$0xff] %v370
                %v372 = vld [vmem:[%s260 + $0x358] sm:$0xff]
                %373 = vst [vmem:[%s261 + $0x1b8] sm:$0xff] %v372
                %v374 = vld [vmem:[%s260 + $0x380] sm:$0xff]
                %375 = vst [vmem:[%s261 + $0x1c0] sm:$0xff] %v374
                %v376 = vld [vmem:[%s260 + $0x388] sm:$0xff]
                %377 = vst [vmem:[%s261 + $0x1c8] sm:$0xff] %v376
                %v378 = vld [vmem:[%s260 + $0x390] sm:$0xff]
                %379 = vst [vmem:[%s261 + $0x1d0] sm:$0xff] %v378
                %v380 = vld [vmem:[%s260 + $0x398] sm:$0xff]
                %381 = vst [vmem:[%s261 + $0x1d8] sm:$0xff] %v380
                %v382 = vld [vmem:[%s260 + $0x3c0] sm:$0xff]
                %383 = vst [vmem:[%s261 + $0x1e0] sm:$0xff] %v382
                %v384 = vld [vmem:[%s260 + $0x3c8] sm:$0xff]
                %385 = vst [vmem:[%s261 + $0x1e8] sm:$0xff] %v384
                %v386 = vld [vmem:[%s260 + $0x3d0] sm:$0xff]
                %387 = vst [vmem:[%s261 + $0x1f0] sm:$0xff] %v386
                %v388 = vld [vmem:[%s260 + $0x3d8] sm:$0xff]
                %389 = vst [vmem:[%s261 + $0x1f8] sm:$0xff] %v388
              $region41: #{attn_block_forward.5} parent=35 // loop_footer
                %s259 = sadd.s32 1, %s255
              $region42: #{attn_block_forward.5} parent=35 // loop_footer_branch
                %254 = sbr.rel target = $region38
              $region43: #{attn_block_forward.5} parent=35 // loop_exit
                _
            $region36: #{attn_block_forward.5} parent=31 // pred_fallthru
              _
            // Predicated region
            $region44: #{attn_block_forward.5} parent=31 // pred_check
              _
            $region45: #{attn_block_forward.5} parent=31 // pred_check_branch
              %391 = sbr.rel target = $region47
            $region46: #{attn_block_forward.5} parent=31 // pred_region
              _
            $region47: #{attn_block_forward.5} parent=31 // pred_fallthru
              _
          $region32: #{attn_block_forward.5} parent=27 // pred_fallthru
            _
          %392 = vnop
        $region28: #{attn_block_forward.5} parent=23 // pred_fallthru
          _
        // Predicated region
        $region48: #{attn_block_forward.5} parent=23 // pred_check
          %p393 = pneg %p81
        $region49: #{attn_block_forward.5} parent=23 // pred_check_branch
          %395 = sbr.rel (%p393) target = $region51
        $region50: #{attn_block_forward.5} parent=23 // pred_region
          %s396 = smul.u32 64, %s20
          %p397 = scmp.lt.s32.totalorder %s19, 1
          %s398 = scalar_select %p397, %s19, 1
          %p399 = scmp.lt.s32.totalorder %s396, 127
          %s400 = scalar_select %p399, %s396, 127
          %s401 = smul.addr %s398, 128
          %s402 = sadd.s32 %s400, %s401
          %s403 = smul.addr %s402, 4
          %s404 = scalar_lea.vmem %s1, %s403
          %s405 = smul.u32 64, %s20
        $region51: #{attn_block_forward.5} parent=23 // pred_fallthru
          _
        // Predicated region
        $region52: #{attn_block_forward.5} parent=23 // pred_check
          %p406 = pneg %p109
        $region53: #{attn_block_forward.5} parent=23 // pred_check_branch
          %408 = sbr.rel (%p406) target = $region55
        $region54: #{attn_block_forward.5} parent=23 // pred_region
          %s409 = sand.u32 %s99, 1
          %s410 = sand.u32 %s99, 1
          %s411 = smul.addr %s410, 256
          %s412 = scalar_lea.vmem [#allocation6], %s411
          %s413 = smul.u32 4, %s21
          %s414 = smul.addr %s19, 128
          %s415 = sadd.s32 %s413, %s414
          %s416 = smul.addr %s415, 4
          %s417 = scalar_lea.vmem %s2, %s416
          // Predicated region
          $region56: #{attn_block_forward.5} parent=54 // pred_check
            _
          $region57: #{attn_block_forward.5} parent=54 // pred_check_branch
            %419 = sbr.rel (0) target = $region59
          $region58: #{attn_block_forward.5} parent=54 // pred_region
            // Predicated region
            $region60: #{attn_block_forward.5} parent=58 // pred_check
              _
            $region61: #{attn_block_forward.5} parent=58 // pred_check_branch
              %421 = sbr.rel (0) target = $region63
            $region62: #{attn_block_forward.5} parent=58 // pred_region
              loop: start=0, step=1, limit=1
              $region64: #{attn_block_forward.5} parent=62 // loop_pre_header
                _
              $region65: #{attn_block_forward.5} parent=62 // loop_header
                %s423 = sphi 0, %s427
                %p424 = scmp.ge.s32.totalorder %s423, 1
                %s428 = sphi %s417, %s417
                %s429 = sphi %s412, %s412
              $region66: #{attn_block_forward.5} parent=62 // loop_header_branch
                %426 = sbr.rel (%p424) target = $region70
              $region67: #{attn_block_forward.5} parent=62 // loop_body
                %v430 = vld [vmem:[%s428] sm:$0xff]
                %431 = vst [vmem:[%s429] sm:$0xff] %v430
                %v432 = vld [vmem:[%s428 + $0x8] sm:$0xff]
                %433 = vst [vmem:[%s429 + $0x8] sm:$0xff] %v432
                %v434 = vld [vmem:[%s428 + $0x20] sm:$0xff]
                %435 = vst [vmem:[%s429 + $0x10] sm:$0xff] %v434
                %v436 = vld [vmem:[%s428 + $0x28] sm:$0xff]
                %437 = vst [vmem:[%s429 + $0x18] sm:$0xff] %v436
                %v438 = vld [vmem:[%s428 + $0x40] sm:$0xff]
                %439 = vst [vmem:[%s429 + $0x20] sm:$0xff] %v438
                %v440 = vld [vmem:[%s428 + $0x48] sm:$0xff]
                %441 = vst [vmem:[%s429 + $0x28] sm:$0xff] %v440
                %v442 = vld [vmem:[%s428 + $0x60] sm:$0xff]
                %443 = vst [vmem:[%s429 + $0x30] sm:$0xff] %v442
                %v444 = vld [vmem:[%s428 + $0x68] sm:$0xff]
                %445 = vst [vmem:[%s429 + $0x38] sm:$0xff] %v444
                %v446 = vld [vmem:[%s428 + $0x80] sm:$0xff]
                %447 = vst [vmem:[%s429 + $0x40] sm:$0xff] %v446
                %v448 = vld [vmem:[%s428 + $0x88] sm:$0xff]
                %449 = vst [vmem:[%s429 + $0x48] sm:$0xff] %v448
                %v450 = vld [vmem:[%s428 + $0xa0] sm:$0xff]
                %451 = vst [vmem:[%s429 + $0x50] sm:$0xff] %v450
                %v452 = vld [vmem:[%s428 + $0xa8] sm:$0xff]
                %453 = vst [vmem:[%s429 + $0x58] sm:$0xff] %v452
                %v454 = vld [vmem:[%s428 + $0xc0] sm:$0xff]
                %455 = vst [vmem:[%s429 + $0x60] sm:$0xff] %v454
                %v456 = vld [vmem:[%s428 + $0xc8] sm:$0xff]
                %457 = vst [vmem:[%s429 + $0x68] sm:$0xff] %v456
                %v458 = vld [vmem:[%s428 + $0xe0] sm:$0xff]
                %459 = vst [vmem:[%s429 + $0x70] sm:$0xff] %v458
                %v460 = vld [vmem:[%s428 + $0xe8] sm:$0xff]
                %461 = vst [vmem:[%s429 + $0x78] sm:$0xff] %v460
                %v462 = vld [vmem:[%s428 + $0x100] sm:$0xff]
                %463 = vst [vmem:[%s429 + $0x80] sm:$0xff] %v462
                %v464 = vld [vmem:[%s428 + $0x108] sm:$0xff]
                %465 = vst [vmem:[%s429 + $0x88] sm:$0xff] %v464
                %v466 = vld [vmem:[%s428 + $0x120] sm:$0xff]
                %467 = vst [vmem:[%s429 + $0x90] sm:$0xff] %v466
                %v468 = vld [vmem:[%s428 + $0x128] sm:$0xff]
                %469 = vst [vmem:[%s429 + $0x98] sm:$0xff] %v468
                %v470 = vld [vmem:[%s428 + $0x140] sm:$0xff]
                %471 = vst [vmem:[%s429 + $0xa0] sm:$0xff] %v470
                %v472 = vld [vmem:[%s428 + $0x148] sm:$0xff]
                %473 = vst [vmem:[%s429 + $0xa8] sm:$0xff] %v472
                %v474 = vld [vmem:[%s428 + $0x160] sm:$0xff]
                %475 = vst [vmem:[%s429 + $0xb0] sm:$0xff] %v474
                %v476 = vld [vmem:[%s428 + $0x168] sm:$0xff]
                %477 = vst [vmem:[%s429 + $0xb8] sm:$0xff] %v476
                %v478 = vld [vmem:[%s428 + $0x180] sm:$0xff]
                %479 = vst [vmem:[%s429 + $0xc0] sm:$0xff] %v478
                %v480 = vld [vmem:[%s428 + $0x188] sm:$0xff]
                %481 = vst [vmem:[%s429 + $0xc8] sm:$0xff] %v480
                %v482 = vld [vmem:[%s428 + $0x1a0] sm:$0xff]
                %483 = vst [vmem:[%s429 + $0xd0] sm:$0xff] %v482
                %v484 = vld [vmem:[%s428 + $0x1a8] sm:$0xff]
                %485 = vst [vmem:[%s429 + $0xd8] sm:$0xff] %v484
                %v486 = vld [vmem:[%s428 + $0x1c0] sm:$0xff]
                %487 = vst [vmem:[%s429 + $0xe0] sm:$0xff] %v486
                %v488 = vld [vmem:[%s428 + $0x1c8] sm:$0xff]
                %489 = vst [vmem:[%s429 + $0xe8] sm:$0xff] %v488
                %v490 = vld [vmem:[%s428 + $0x1e0] sm:$0xff]
                %491 = vst [vmem:[%s429 + $0xf0] sm:$0xff] %v490
                %v492 = vld [vmem:[%s428 + $0x1e8] sm:$0xff]
                %493 = vst [vmem:[%s429 + $0xf8] sm:$0xff] %v492
              $region68: #{attn_block_forward.5} parent=62 // loop_footer
                %s427 = sadd.s32 1, %s423
              $region69: #{attn_block_forward.5} parent=62 // loop_footer_branch
                %422 = sbr.rel target = $region65
              $region70: #{attn_block_forward.5} parent=62 // loop_exit
                _
            $region63: #{attn_block_forward.5} parent=58 // pred_fallthru
              _
            // Predicated region
            $region71: #{attn_block_forward.5} parent=58 // pred_check
              _
            $region72: #{attn_block_forward.5} parent=58 // pred_check_branch
              %495 = sbr.rel target = $region74
            $region73: #{attn_block_forward.5} parent=58 // pred_region
              _
            $region74: #{attn_block_forward.5} parent=58 // pred_fallthru
              _
          $region59: #{attn_block_forward.5} parent=54 // pred_fallthru
            _
          %496 = vnop
        $region55: #{attn_block_forward.5} parent=23 // pred_fallthru
          _
        // Predicated region
        $region75: #{attn_block_forward.5} parent=23 // pred_check
          %p497 = pneg %p137
        $region76: #{attn_block_forward.5} parent=23 // pred_check_branch
          %499 = sbr.rel (%p497) target = $region78
        $region77: #{attn_block_forward.5} parent=23 // pred_region
          %s500 = smul.u32 64, %s21
          %p501 = scmp.lt.s32.totalorder %s19, 1
          %s502 = scalar_select %p501, %s19, 1
          %p503 = scmp.lt.s32.totalorder %s500, 127
          %s504 = scalar_select %p503, %s500, 127
          %s505 = smul.addr %s502, 128
          %s506 = sadd.s32 %s504, %s505
          %s507 = smul.addr %s506, 4
          %s508 = scalar_lea.vmem %s3, %s507
          %s509 = smul.u32 64, %s21
        $region78: #{attn_block_forward.5} parent=23 // pred_fallthru
          _
      $region24: #{attn_block_forward.5} parent=5 // pred_fallthru
        _
      %p510 = scmp.le.s32.totalorder 1, %s12
      %p511 = scmp.lt.s32.totalorder %s12, 9
      %p512 = pnand %p510, %p511
      %p513 = pneg %p512
      // Predicated region
      $region79: #{attn_block_forward.5} parent=5 // pred_check
        _
      $region80: #{attn_block_forward.5} parent=5 // pred_check_branch
        %515 = sbr.rel (%p512) target = $region82
      $region81: #{attn_block_forward.5} parent=5 // pred_region
        %s516 = ssub.s32 %s12, 1
        %s517 = sand.u32 %s46, 1
        %s518 = sand.u32 %s46, 1
        %s519 = smul.addr %s518, 512
        %s520 = scalar_lea.vmem [#allocation5], %s519
        // Predicated region
        $region83: #{attn_block_forward.5} parent=81 // pred_check
          %p521 = pneg %p59
        $region84: #{attn_block_forward.5} parent=81 // pred_check_branch
          %523 = sbr.rel (%p521) target = $region86
        $region85: #{attn_block_forward.5} parent=81 // pred_region
          _
        $region86: #{attn_block_forward.5} parent=81 // pred_fallthru
          _
        %s524 = sand.u32 %s102, 1
        %s525 = sand.u32 %s102, 1
        %s526 = smul.addr %s525, 256
        %s527 = scalar_lea.vmem [#allocation6], %s526
        // Predicated region
        $region87: #{attn_block_forward.5} parent=81 // pred_check
          %p528 = pneg %p115
        $region88: #{attn_block_forward.5} parent=81 // pred_check_branch
          %530 = sbr.rel (%p528) target = $region90
        $region89: #{attn_block_forward.5} parent=81 // pred_region
          _
        $region90: #{attn_block_forward.5} parent=81 // pred_fallthru
          _
        %s531 = sand.u32 %s46, 1
        %s532 = sand.u32 %s46, 1
        %s533 = smul.addr %s532, 512
        %s534 = scalar_lea.vmem [#allocation5], %s533
        %p535 = pneg %p59
        %p536 = pneg %p56
        %s537 = smul.u32 64, %s23
        %p538 = scmp.lt.s32.totalorder %s22, 1
        %s539 = scalar_select %p538, %s22, 1
        %p540 = scmp.lt.s32.totalorder %s537, 127
        %s541 = scalar_select %p540, %s537, 127
        %s542 = smul.addr %s539, 128
        %s543 = sadd.s32 %s541, %s542
        %s544 = smul.addr %s543, 4
        %s545 = scalar_lea.vmem %s1, %s544
        %p546 = pneg %p87
        %p547 = pneg %p84
        %s548 = sand.u32 %s102, 1
        %s549 = sand.u32 %s102, 1
        %s550 = smul.addr %s549, 256
        %s551 = scalar_lea.vmem [#allocation6], %s550
        %p552 = pneg %p115
        %p553 = pneg %p112
        %s554 = smul.u32 64, %s24
        %p555 = scmp.lt.s32.totalorder %s22, 1
        %s556 = scalar_select %p555, %s22, 1
        %p557 = scmp.lt.s32.totalorder %s554, 127
        %s558 = scalar_select %p557, %s554, 127
        %s559 = smul.addr %s556, 128
        %s560 = sadd.s32 %s558, %s559
        %s561 = smul.addr %s560, 4
        %s562 = scalar_lea.vmem %s3, %s561
        %p563 = pneg %p143
        %p564 = pneg %p140
        %p565 = pneg %p164
        %p566 = pneg %p161
        %p567 = pneg %p185
        %p568 = pneg %p182
        %p569 = pneg %p213
        %p570 = pneg %p210
        %s571 = sand.u32 %s200, 1
        %s572 = sand.u32 %s200, 1
        %s573 = smul.addr %s572, 512
        %s574 = scalar_lea.vmem [#allocation7], %s573
        %s575 = smul.u32 4, %s23
        %s576 = smul.u32 64, %s23
        %p577 = scmp.lt.s32.totalorder %s22, 1
        %s578 = scalar_select %p577, %s22, 1
        %p579 = scmp.lt.s32.totalorder %s576, 127
        %s580 = scalar_select %p579, %s576, 127
        %s581 = smul.addr %s578, 128
        %s582 = sadd.s32 %s580, %s581
        %s583 = smul.addr %s582, 4
        %s584 = scalar_lea.vmem %s1, %s583
        %s585 = smul.u32 64, %s23
        %s586 = smul.u32 4, %s24
        %s587 = smul.u32 64, %s24
        %p588 = scmp.lt.s32.totalorder %s22, 1
        %s589 = scalar_select %p588, %s22, 1
        %p590 = scmp.lt.s32.totalorder %s587, 127
        %s591 = scalar_select %p590, %s587, 127
        %s592 = smul.addr %s589, 128
        %s593 = sadd.s32 %s591, %s592
        %s594 = smul.addr %s593, 4
        %s595 = scalar_lea.vmem %s3, %s594
        %s596 = smul.u32 64, %s24
        %s597 = smul.u32 4, %s23
        %p599 = scmp.eq.s32.totalorder %s24, 0
        // Predicated region
        $region91: #{attn_block_forward.5} parent=81 // pred_check
          %p600 = pneg %p599
        $region92: #{attn_block_forward.5} parent=81 // pred_check_branch
          %602 = sbr.rel (%p600) target = $region94
        $region93: #{attn_block_forward.5} parent=81 // pred_region
          %603 = vst [vmem:[#allocation2] sm:$0xff] -inf
          %604 = vst [vmem:[#allocation2 + $0x8] sm:$0xff] -inf
          %605 = vst [vmem:[#allocation2 + $0x10] sm:$0xff] -inf
          %606 = vst [vmem:[#allocation2 + $0x18] sm:$0xff] -inf
          %607 = vst [vmem:[#allocation2 + $0x20] sm:$0xff] -inf
          %608 = vst [vmem:[#allocation2 + $0x28] sm:$0xff] -inf
          %609 = vst [vmem:[#allocation2 + $0x30] sm:$0xff] -inf
          %610 = vst [vmem:[#allocation2 + $0x38] sm:$0xff] -inf
          %611 = vst [vmem:[#allocation2 + $0x40] sm:$0xff] -inf
          %612 = vst [vmem:[#allocation2 + $0x48] sm:$0xff] -inf
          %613 = vst [vmem:[#allocation2 + $0x50] sm:$0xff] -inf
          %614 = vst [vmem:[#allocation2 + $0x58] sm:$0xff] -inf
          %615 = vst [vmem:[#allocation2 + $0x60] sm:$0xff] -inf
          %616 = vst [vmem:[#allocation2 + $0x68] sm:$0xff] -inf
          %617 = vst [vmem:[#allocation2 + $0x70] sm:$0xff] -inf
          %618 = vst [vmem:[#allocation2 + $0x78] sm:$0xff] -inf
          %619 = vst [vmem:[#allocation2 + $0x80] sm:$0xff] -inf
          %620 = vst [vmem:[#allocation2 + $0x88] sm:$0xff] -inf
          %621 = vst [vmem:[#allocation2 + $0x90] sm:$0xff] -inf
          %622 = vst [vmem:[#allocation2 + $0x98] sm:$0xff] -inf
          %623 = vst [vmem:[#allocation2 + $0xa0] sm:$0xff] -inf
          %624 = vst [vmem:[#allocation2 + $0xa8] sm:$0xff] -inf
          %625 = vst [vmem:[#allocation2 + $0xb0] sm:$0xff] -inf
          %626 = vst [vmem:[#allocation2 + $0xb8] sm:$0xff] -inf
          %627 = vst [vmem:[#allocation2 + $0xc0] sm:$0xff] -inf
          %628 = vst [vmem:[#allocation2 + $0xc8] sm:$0xff] -inf
          %629 = vst [vmem:[#allocation2 + $0xd0] sm:$0xff] -inf
          %630 = vst [vmem:[#allocation2 + $0xd8] sm:$0xff] -inf
          %631 = vst [vmem:[#allocation2 + $0xe0] sm:$0xff] -inf
          %632 = vst [vmem:[#allocation2 + $0xe8] sm:$0xff] -inf
          %633 = vst [vmem:[#allocation2 + $0xf0] sm:$0xff] -inf
          %634 = vst [vmem:[#allocation2 + $0xf8] sm:$0xff] -inf
          %635 = vst [vmem:[#allocation2 + $0x100] sm:$0xff] -inf
          %636 = vst [vmem:[#allocation2 + $0x108] sm:$0xff] -inf
          %637 = vst [vmem:[#allocation2 + $0x110] sm:$0xff] -inf
          %638 = vst [vmem:[#allocation2 + $0x118] sm:$0xff] -inf
          %639 = vst [vmem:[#allocation2 + $0x120] sm:$0xff] -inf
          %640 = vst [vmem:[#allocation2 + $0x128] sm:$0xff] -inf
          %641 = vst [vmem:[#allocation2 + $0x130] sm:$0xff] -inf
          %642 = vst [vmem:[#allocation2 + $0x138] sm:$0xff] -inf
          %643 = vst [vmem:[#allocation2 + $0x140] sm:$0xff] -inf
          %644 = vst [vmem:[#allocation2 + $0x148] sm:$0xff] -inf
          %645 = vst [vmem:[#allocation2 + $0x150] sm:$0xff] -inf
          %646 = vst [vmem:[#allocation2 + $0x158] sm:$0xff] -inf
          %647 = vst [vmem:[#allocation2 + $0x160] sm:$0xff] -inf
          %648 = vst [vmem:[#allocation2 + $0x168] sm:$0xff] -inf
          %649 = vst [vmem:[#allocation2 + $0x170] sm:$0xff] -inf
          %650 = vst [vmem:[#allocation2 + $0x178] sm:$0xff] -inf
          %651 = vst [vmem:[#allocation2 + $0x180] sm:$0xff] -inf
          %652 = vst [vmem:[#allocation2 + $0x188] sm:$0xff] -inf
          %653 = vst [vmem:[#allocation2 + $0x190] sm:$0xff] -inf
          %654 = vst [vmem:[#allocation2 + $0x198] sm:$0xff] -inf
          %655 = vst [vmem:[#allocation2 + $0x1a0] sm:$0xff] -inf
          %656 = vst [vmem:[#allocation2 + $0x1a8] sm:$0xff] -inf
          %657 = vst [vmem:[#allocation2 + $0x1b0] sm:$0xff] -inf
          %658 = vst [vmem:[#allocation2 + $0x1b8] sm:$0xff] -inf
          %659 = vst [vmem:[#allocation2 + $0x1c0] sm:$0xff] -inf
          %660 = vst [vmem:[#allocation2 + $0x1c8] sm:$0xff] -inf
          %661 = vst [vmem:[#allocation2 + $0x1d0] sm:$0xff] -inf
          %662 = vst [vmem:[#allocation2 + $0x1d8] sm:$0xff] -inf
          %663 = vst [vmem:[#allocation2 + $0x1e0] sm:$0xff] -inf
          %664 = vst [vmem:[#allocation2 + $0x1e8] sm:$0xff] -inf
          %665 = vst [vmem:[#allocation2 + $0x1f0] sm:$0xff] -inf
          %666 = vst [vmem:[#allocation2 + $0x1f8] sm:$0xff] -inf
          %667 = vst [vmem:[#allocation3] sm:$0xff] 0.0
          %668 = vst [vmem:[#allocation3 + $0x8] sm:$0xff] 0.0
          %669 = vst [vmem:[#allocation3 + $0x10] sm:$0xff] 0.0
          %670 = vst [vmem:[#allocation3 + $0x18] sm:$0xff] 0.0
          %671 = vst [vmem:[#allocation3 + $0x20] sm:$0xff] 0.0
          %672 = vst [vmem:[#allocation3 + $0x28] sm:$0xff] 0.0
          %673 = vst [vmem:[#allocation3 + $0x30] sm:$0xff] 0.0
          %674 = vst [vmem:[#allocation3 + $0x38] sm:$0xff] 0.0
          %675 = vst [vmem:[#allocation3 + $0x40] sm:$0xff] 0.0
          %676 = vst [vmem:[#allocation3 + $0x48] sm:$0xff] 0.0
          %677 = vst [vmem:[#allocation3 + $0x50] sm:$0xff] 0.0
          %678 = vst [vmem:[#allocation3 + $0x58] sm:$0xff] 0.0
          %679 = vst [vmem:[#allocation3 + $0x60] sm:$0xff] 0.0
          %680 = vst [vmem:[#allocation3 + $0x68] sm:$0xff] 0.0
          %681 = vst [vmem:[#allocation3 + $0x70] sm:$0xff] 0.0
          %682 = vst [vmem:[#allocation3 + $0x78] sm:$0xff] 0.0
          %683 = vst [vmem:[#allocation3 + $0x80] sm:$0xff] 0.0
          %684 = vst [vmem:[#allocation3 + $0x88] sm:$0xff] 0.0
          %685 = vst [vmem:[#allocation3 + $0x90] sm:$0xff] 0.0
          %686 = vst [vmem:[#allocation3 + $0x98] sm:$0xff] 0.0
          %687 = vst [vmem:[#allocation3 + $0xa0] sm:$0xff] 0.0
          %688 = vst [vmem:[#allocation3 + $0xa8] sm:$0xff] 0.0
          %689 = vst [vmem:[#allocation3 + $0xb0] sm:$0xff] 0.0
          %690 = vst [vmem:[#allocation3 + $0xb8] sm:$0xff] 0.0
          %691 = vst [vmem:[#allocation3 + $0xc0] sm:$0xff] 0.0
          %692 = vst [vmem:[#allocation3 + $0xc8] sm:$0xff] 0.0
          %693 = vst [vmem:[#allocation3 + $0xd0] sm:$0xff] 0.0
          %694 = vst [vmem:[#allocation3 + $0xd8] sm:$0xff] 0.0
          %695 = vst [vmem:[#allocation3 + $0xe0] sm:$0xff] 0.0
          %696 = vst [vmem:[#allocation3 + $0xe8] sm:$0xff] 0.0
          %697 = vst [vmem:[#allocation3 + $0xf0] sm:$0xff] 0.0
          %698 = vst [vmem:[#allocation3 + $0xf8] sm:$0xff] 0.0
          %699 = vst [vmem:[#allocation3 + $0x100] sm:$0xff] 0.0
          %700 = vst [vmem:[#allocation3 + $0x108] sm:$0xff] 0.0
          %701 = vst [vmem:[#allocation3 + $0x110] sm:$0xff] 0.0
          %702 = vst [vmem:[#allocation3 + $0x118] sm:$0xff] 0.0
          %703 = vst [vmem:[#allocation3 + $0x120] sm:$0xff] 0.0
          %704 = vst [vmem:[#allocation3 + $0x128] sm:$0xff] 0.0
          %705 = vst [vmem:[#allocation3 + $0x130] sm:$0xff] 0.0
          %706 = vst [vmem:[#allocation3 + $0x138] sm:$0xff] 0.0
          %707 = vst [vmem:[#allocation3 + $0x140] sm:$0xff] 0.0
          %708 = vst [vmem:[#allocation3 + $0x148] sm:$0xff] 0.0
          %709 = vst [vmem:[#allocation3 + $0x150] sm:$0xff] 0.0
          %710 = vst [vmem:[#allocation3 + $0x158] sm:$0xff] 0.0
          %711 = vst [vmem:[#allocation3 + $0x160] sm:$0xff] 0.0
          %712 = vst [vmem:[#allocation3 + $0x168] sm:$0xff] 0.0
          %713 = vst [vmem:[#allocation3 + $0x170] sm:$0xff] 0.0
          %714 = vst [vmem:[#allocation3 + $0x178] sm:$0xff] 0.0
          %715 = vst [vmem:[#allocation3 + $0x180] sm:$0xff] 0.0
          %716 = vst [vmem:[#allocation3 + $0x188] sm:$0xff] 0.0
          %717 = vst [vmem:[#allocation3 + $0x190] sm:$0xff] 0.0
          %718 = vst [vmem:[#allocation3 + $0x198] sm:$0xff] 0.0
          %719 = vst [vmem:[#allocation3 + $0x1a0] sm:$0xff] 0.0
          %720 = vst [vmem:[#allocation3 + $0x1a8] sm:$0xff] 0.0
          %721 = vst [vmem:[#allocation3 + $0x1b0] sm:$0xff] 0.0
          %722 = vst [vmem:[#allocation3 + $0x1b8] sm:$0xff] 0.0
          %723 = vst [vmem:[#allocation3 + $0x1c0] sm:$0xff] 0.0
          %724 = vst [vmem:[#allocation3 + $0x1c8] sm:$0xff] 0.0
          %725 = vst [vmem:[#allocation3 + $0x1d0] sm:$0xff] 0.0
          %726 = vst [vmem:[#allocation3 + $0x1d8] sm:$0xff] 0.0
          %727 = vst [vmem:[#allocation3 + $0x1e0] sm:$0xff] 0.0
          %728 = vst [vmem:[#allocation3 + $0x1e8] sm:$0xff] 0.0
          %729 = vst [vmem:[#allocation3 + $0x1f0] sm:$0xff] 0.0
          %730 = vst [vmem:[#allocation3 + $0x1f8] sm:$0xff] 0.0
          %731 = vst [vmem:[#allocation4] sm:$0xff] 0.0
          %732 = vst [vmem:[#allocation4 + $0x8] sm:$0xff] 0.0
          %733 = vst [vmem:[#allocation4 + $0x10] sm:$0xff] 0.0
          %734 = vst [vmem:[#allocation4 + $0x18] sm:$0xff] 0.0
          %735 = vst [vmem:[#allocation4 + $0x20] sm:$0xff] 0.0
          %736 = vst [vmem:[#allocation4 + $0x28] sm:$0xff] 0.0
          %737 = vst [vmem:[#allocation4 + $0x30] sm:$0xff] 0.0
          %738 = vst [vmem:[#allocation4 + $0x38] sm:$0xff] 0.0
          %739 = vst [vmem:[#allocation4 + $0x40] sm:$0xff] 0.0
          %740 = vst [vmem:[#allocation4 + $0x48] sm:$0xff] 0.0
          %741 = vst [vmem:[#allocation4 + $0x50] sm:$0xff] 0.0
          %742 = vst [vmem:[#allocation4 + $0x58] sm:$0xff] 0.0
          %743 = vst [vmem:[#allocation4 + $0x60] sm:$0xff] 0.0
          %744 = vst [vmem:[#allocation4 + $0x68] sm:$0xff] 0.0
          %745 = vst [vmem:[#allocation4 + $0x70] sm:$0xff] 0.0
          %746 = vst [vmem:[#allocation4 + $0x78] sm:$0xff] 0.0
          %747 = vst [vmem:[#allocation4 + $0x80] sm:$0xff] 0.0
          %748 = vst [vmem:[#allocation4 + $0x88] sm:$0xff] 0.0
          %749 = vst [vmem:[#allocation4 + $0x90] sm:$0xff] 0.0
          %750 = vst [vmem:[#allocation4 + $0x98] sm:$0xff] 0.0
          %751 = vst [vmem:[#allocation4 + $0xa0] sm:$0xff] 0.0
          %752 = vst [vmem:[#allocation4 + $0xa8] sm:$0xff] 0.0
          %753 = vst [vmem:[#allocation4 + $0xb0] sm:$0xff] 0.0
          %754 = vst [vmem:[#allocation4 + $0xb8] sm:$0xff] 0.0
          %755 = vst [vmem:[#allocation4 + $0xc0] sm:$0xff] 0.0
          %756 = vst [vmem:[#allocation4 + $0xc8] sm:$0xff] 0.0
          %757 = vst [vmem:[#allocation4 + $0xd0] sm:$0xff] 0.0
          %758 = vst [vmem:[#allocation4 + $0xd8] sm:$0xff] 0.0
          %759 = vst [vmem:[#allocation4 + $0xe0] sm:$0xff] 0.0
          %760 = vst [vmem:[#allocation4 + $0xe8] sm:$0xff] 0.0
          %761 = vst [vmem:[#allocation4 + $0xf0] sm:$0xff] 0.0
          %762 = vst [vmem:[#allocation4 + $0xf8] sm:$0xff] 0.0
          %763 = vst [vmem:[#allocation4 + $0x100] sm:$0xff] 0.0
          %764 = vst [vmem:[#allocation4 + $0x108] sm:$0xff] 0.0
          %765 = vst [vmem:[#allocation4 + $0x110] sm:$0xff] 0.0
          %766 = vst [vmem:[#allocation4 + $0x118] sm:$0xff] 0.0
          %767 = vst [vmem:[#allocation4 + $0x120] sm:$0xff] 0.0
          %768 = vst [vmem:[#allocation4 + $0x128] sm:$0xff] 0.0
          %769 = vst [vmem:[#allocation4 + $0x130] sm:$0xff] 0.0
          %770 = vst [vmem:[#allocation4 + $0x138] sm:$0xff] 0.0
          %771 = vst [vmem:[#allocation4 + $0x140] sm:$0xff] 0.0
          %772 = vst [vmem:[#allocation4 + $0x148] sm:$0xff] 0.0
          %773 = vst [vmem:[#allocation4 + $0x150] sm:$0xff] 0.0
          %774 = vst [vmem:[#allocation4 + $0x158] sm:$0xff] 0.0
          %775 = vst [vmem:[#allocation4 + $0x160] sm:$0xff] 0.0
          %776 = vst [vmem:[#allocation4 + $0x168] sm:$0xff] 0.0
          %777 = vst [vmem:[#allocation4 + $0x170] sm:$0xff] 0.0
          %778 = vst [vmem:[#allocation4 + $0x178] sm:$0xff] 0.0
          %779 = vst [vmem:[#allocation4 + $0x180] sm:$0xff] 0.0
          %780 = vst [vmem:[#allocation4 + $0x188] sm:$0xff] 0.0
          %781 = vst [vmem:[#allocation4 + $0x190] sm:$0xff] 0.0
          %782 = vst [vmem:[#allocation4 + $0x198] sm:$0xff] 0.0
          %783 = vst [vmem:[#allocation4 + $0x1a0] sm:$0xff] 0.0
          %784 = vst [vmem:[#allocation4 + $0x1a8] sm:$0xff] 0.0
          %785 = vst [vmem:[#allocation4 + $0x1b0] sm:$0xff] 0.0
          %786 = vst [vmem:[#allocation4 + $0x1b8] sm:$0xff] 0.0
          %787 = vst [vmem:[#allocation4 + $0x1c0] sm:$0xff] 0.0
          %788 = vst [vmem:[#allocation4 + $0x1c8] sm:$0xff] 0.0
          %789 = vst [vmem:[#allocation4 + $0x1d0] sm:$0xff] 0.0
          %790 = vst [vmem:[#allocation4 + $0x1d8] sm:$0xff] 0.0
          %791 = vst [vmem:[#allocation4 + $0x1e0] sm:$0xff] 0.0
          %792 = vst [vmem:[#allocation4 + $0x1e8] sm:$0xff] 0.0
          %793 = vst [vmem:[#allocation4 + $0x1f0] sm:$0xff] 0.0
          %794 = vst [vmem:[#allocation4 + $0x1f8] sm:$0xff] 0.0
        $region94: #{attn_block_forward.5} parent=81 // pred_fallthru
          _
        %v795 = vld [vmem:[%s584] sm:$0xf]
        %v796 = vld [vmem:[%s584 + $0x4] sm:$0xf]
        %v797 = vld [vmem:[%s584 + $0x8] sm:$0xf]
        %v798 = vld [vmem:[%s584 + $0xc] sm:$0xf]
        %v799 = vld [vmem:[%s584 + $0x10] sm:$0xf]
        %v800 = vld [vmem:[%s584 + $0x14] sm:$0xf]
        %v801 = vld [vmem:[%s584 + $0x18] sm:$0xf]
        %v802 = vld [vmem:[%s584 + $0x1c] sm:$0xf]
        %v803 = vld [vmem:[%s584 + $0x20] sm:$0xf]
        %v804 = vld [vmem:[%s584 + $0x24] sm:$0xf]
        %v805 = vld [vmem:[%s584 + $0x28] sm:$0xf]
        %v806 = vld [vmem:[%s584 + $0x2c] sm:$0xf]
        %v807 = vld [vmem:[%s584 + $0x30] sm:$0xf]
        %v808 = vld [vmem:[%s584 + $0x34] sm:$0xf]
        %v809 = vld [vmem:[%s584 + $0x38] sm:$0xf]
        %v810 = vld [vmem:[%s584 + $0x3c] sm:$0xf]
        %v811 = vld [vmem:[%s584 + $0x40] sm:$0xf]
        %v812 = vld [vmem:[%s584 + $0x44] sm:$0xf]
        %v813 = vld [vmem:[%s584 + $0x48] sm:$0xf]
        %v814 = vld [vmem:[%s584 + $0x4c] sm:$0xf]
        %v815 = vld [vmem:[%s584 + $0x50] sm:$0xf]
        %v816 = vld [vmem:[%s584 + $0x54] sm:$0xf]
        %v817 = vld [vmem:[%s584 + $0x58] sm:$0xf]
        %v818 = vld [vmem:[%s584 + $0x5c] sm:$0xf]
        %v819 = vld [vmem:[%s584 + $0x60] sm:$0xf]
        %v820 = vld [vmem:[%s584 + $0x64] sm:$0xf]
        %v821 = vld [vmem:[%s584 + $0x68] sm:$0xf]
        %v822 = vld [vmem:[%s584 + $0x6c] sm:$0xf]
        %v823 = vld [vmem:[%s584 + $0x70] sm:$0xf]
        %v824 = vld [vmem:[%s584 + $0x74] sm:$0xf]
        %v825 = vld [vmem:[%s584 + $0x78] sm:$0xf]
        %v826 = vld [vmem:[%s584 + $0x7c] sm:$0xf]
        %v827 = vld [vmem:[%s584 + $0x80] sm:$0xf]
        %v828 = vld [vmem:[%s584 + $0x84] sm:$0xf]
        %v829 = vld [vmem:[%s584 + $0x88] sm:$0xf]
        %v830 = vld [vmem:[%s584 + $0x8c] sm:$0xf]
        %v831 = vld [vmem:[%s584 + $0x90] sm:$0xf]
        %v832 = vld [vmem:[%s584 + $0x94] sm:$0xf]
        %v833 = vld [vmem:[%s584 + $0x98] sm:$0xf]
        %v834 = vld [vmem:[%s584 + $0x9c] sm:$0xf]
        %v835 = vld [vmem:[%s584 + $0xa0] sm:$0xf]
        %v836 = vld [vmem:[%s584 + $0xa4] sm:$0xf]
        %v837 = vld [vmem:[%s584 + $0xa8] sm:$0xf]
        %v838 = vld [vmem:[%s584 + $0xac] sm:$0xf]
        %v839 = vld [vmem:[%s584 + $0xb0] sm:$0xf]
        %v840 = vld [vmem:[%s584 + $0xb4] sm:$0xf]
        %v841 = vld [vmem:[%s584 + $0xb8] sm:$0xf]
        %v842 = vld [vmem:[%s584 + $0xbc] sm:$0xf]
        %v843 = vld [vmem:[%s584 + $0xc0] sm:$0xf]
        %v844 = vld [vmem:[%s584 + $0xc4] sm:$0xf]
        %v845 = vld [vmem:[%s584 + $0xc8] sm:$0xf]
        %v846 = vld [vmem:[%s584 + $0xcc] sm:$0xf]
        %v847 = vld [vmem:[%s584 + $0xd0] sm:$0xf]
        %v848 = vld [vmem:[%s584 + $0xd4] sm:$0xf]
        %v849 = vld [vmem:[%s584 + $0xd8] sm:$0xf]
        %v850 = vld [vmem:[%s584 + $0xdc] sm:$0xf]
        %v851 = vld [vmem:[%s584 + $0xe0] sm:$0xf]
        %v852 = vld [vmem:[%s584 + $0xe4] sm:$0xf]
        %v853 = vld [vmem:[%s584 + $0xe8] sm:$0xf]
        %v854 = vld [vmem:[%s584 + $0xec] sm:$0xf]
        %v855 = vld [vmem:[%s584 + $0xf0] sm:$0xf]
        %v856 = vld [vmem:[%s584 + $0xf4] sm:$0xf]
        %v857 = vld [vmem:[%s584 + $0xf8] sm:$0xf]
        %v858 = vld [vmem:[%s584 + $0xfc] sm:$0xf]
        %v859 = vld [vmem:[%s527] sm:$0xff]
        %v860 = vld [vmem:[%s527 + $0x8] sm:$0xff]
        %v861 = vld [vmem:[%s527 + $0x10] sm:$0xff]
        %v862 = vld [vmem:[%s527 + $0x18] sm:$0xff]
        %v863 = vld [vmem:[%s527 + $0x20] sm:$0xff]
        %v864 = vld [vmem:[%s527 + $0x28] sm:$0xff]
        %v865 = vld [vmem:[%s527 + $0x30] sm:$0xff]
        %v866 = vld [vmem:[%s527 + $0x38] sm:$0xff]
        %v867 = vld [vmem:[%s527 + $0x40] sm:$0xff]
        %v868 = vld [vmem:[%s527 + $0x48] sm:$0xff]
        %v869 = vld [vmem:[%s527 + $0x50] sm:$0xff]
        %v870 = vld [vmem:[%s527 + $0x58] sm:$0xff]
        %v871 = vld [vmem:[%s527 + $0x60] sm:$0xff]
        %v872 = vld [vmem:[%s527 + $0x68] sm:$0xff]
        %v873 = vld [vmem:[%s527 + $0x70] sm:$0xff]
        %v874 = vld [vmem:[%s527 + $0x78] sm:$0xff]
        %v875 = vld [vmem:[%s527 + $0x80] sm:$0xff]
        %v876 = vld [vmem:[%s527 + $0x88] sm:$0xff]
        %v877 = vld [vmem:[%s527 + $0x90] sm:$0xff]
        %v878 = vld [vmem:[%s527 + $0x98] sm:$0xff]
        %v879 = vld [vmem:[%s527 + $0xa0] sm:$0xff]
        %v880 = vld [vmem:[%s527 + $0xa8] sm:$0xff]
        %v881 = vld [vmem:[%s527 + $0xb0] sm:$0xff]
        %v882 = vld [vmem:[%s527 + $0xb8] sm:$0xff]
        %v883 = vld [vmem:[%s527 + $0xc0] sm:$0xff]
        %v884 = vld [vmem:[%s527 + $0xc8] sm:$0xff]
        %v885 = vld [vmem:[%s527 + $0xd0] sm:$0xff]
        %v886 = vld [vmem:[%s527 + $0xd8] sm:$0xff]
        %v887 = vld [vmem:[%s527 + $0xe0] sm:$0xff]
        %v888 = vld [vmem:[%s527 + $0xe8] sm:$0xff]
        %v889 = vld [vmem:[%s527 + $0xf0] sm:$0xff]
        %v890 = vld [vmem:[%s527 + $0xf8] sm:$0xff]
        %v891 = vld [vmem:[%s595] sm:$0xf]
        %v892 = vld [vmem:[%s595 + $0x4] sm:$0xf]
        %v893 = vld [vmem:[%s595 + $0x8] sm:$0xf]
        %v894 = vld [vmem:[%s595 + $0xc] sm:$0xf]
        %v895 = vld [vmem:[%s595 + $0x10] sm:$0xf]
        %v896 = vld [vmem:[%s595 + $0x14] sm:$0xf]
        %v897 = vld [vmem:[%s595 + $0x18] sm:$0xf]
        %v898 = vld [vmem:[%s595 + $0x1c] sm:$0xf]
        %v899 = vld [vmem:[%s595 + $0x20] sm:$0xf]
        %v900 = vld [vmem:[%s595 + $0x24] sm:$0xf]
        %v901 = vld [vmem:[%s595 + $0x28] sm:$0xf]
        %v902 = vld [vmem:[%s595 + $0x2c] sm:$0xf]
        %v903 = vld [vmem:[%s595 + $0x30] sm:$0xf]
        %v904 = vld [vmem:[%s595 + $0x34] sm:$0xf]
        %v905 = vld [vmem:[%s595 + $0x38] sm:$0xf]
        %v906 = vld [vmem:[%s595 + $0x3c] sm:$0xf]
        %v907 = vld [vmem:[%s595 + $0x40] sm:$0xf]
        %v908 = vld [vmem:[%s595 + $0x44] sm:$0xf]
        %v909 = vld [vmem:[%s595 + $0x48] sm:$0xf]
        %v910 = vld [vmem:[%s595 + $0x4c] sm:$0xf]
        %v911 = vld [vmem:[%s595 + $0x50] sm:$0xf]
        %v912 = vld [vmem:[%s595 + $0x54] sm:$0xf]
        %v913 = vld [vmem:[%s595 + $0x58] sm:$0xf]
        %v914 = vld [vmem:[%s595 + $0x5c] sm:$0xf]
        %v915 = vld [vmem:[%s595 + $0x60] sm:$0xf]
        %v916 = vld [vmem:[%s595 + $0x64] sm:$0xf]
        %v917 = vld [vmem:[%s595 + $0x68] sm:$0xf]
        %v918 = vld [vmem:[%s595 + $0x6c] sm:$0xf]
        %v919 = vld [vmem:[%s595 + $0x70] sm:$0xf]
        %v920 = vld [vmem:[%s595 + $0x74] sm:$0xf]
        %v921 = vld [vmem:[%s595 + $0x78] sm:$0xf]
        %v922 = vld [vmem:[%s595 + $0x7c] sm:$0xf]
        %v923 = vld [vmem:[%s595 + $0x80] sm:$0xf]
        %v924 = vld [vmem:[%s595 + $0x84] sm:$0xf]
        %v925 = vld [vmem:[%s595 + $0x88] sm:$0xf]
        %v926 = vld [vmem:[%s595 + $0x8c] sm:$0xf]
        %v927 = vld [vmem:[%s595 + $0x90] sm:$0xf]
        %v928 = vld [vmem:[%s595 + $0x94] sm:$0xf]
        %v929 = vld [vmem:[%s595 + $0x98] sm:$0xf]
        %v930 = vld [vmem:[%s595 + $0x9c] sm:$0xf]
        %v931 = vld [vmem:[%s595 + $0xa0] sm:$0xf]
        %v932 = vld [vmem:[%s595 + $0xa4] sm:$0xf]
        %v933 = vld [vmem:[%s595 + $0xa8] sm:$0xf]
        %v934 = vld [vmem:[%s595 + $0xac] sm:$0xf]
        %v935 = vld [vmem:[%s595 + $0xb0] sm:$0xf]
        %v936 = vld [vmem:[%s595 + $0xb4] sm:$0xf]
        %v937 = vld [vmem:[%s595 + $0xb8] sm:$0xf]
        %v938 = vld [vmem:[%s595 + $0xbc] sm:$0xf]
        %v939 = vld [vmem:[%s595 + $0xc0] sm:$0xf]
        %v940 = vld [vmem:[%s595 + $0xc4] sm:$0xf]
        %v941 = vld [vmem:[%s595 + $0xc8] sm:$0xf]
        %v942 = vld [vmem:[%s595 + $0xcc] sm:$0xf]
        %v943 = vld [vmem:[%s595 + $0xd0] sm:$0xf]
        %v944 = vld [vmem:[%s595 + $0xd4] sm:$0xf]
        %v945 = vld [vmem:[%s595 + $0xd8] sm:$0xf]
        %v946 = vld [vmem:[%s595 + $0xdc] sm:$0xf]
        %v947 = vld [vmem:[%s595 + $0xe0] sm:$0xf]
        %v948 = vld [vmem:[%s595 + $0xe4] sm:$0xf]
        %v949 = vld [vmem:[%s595 + $0xe8] sm:$0xf]
        %v950 = vld [vmem:[%s595 + $0xec] sm:$0xf]
        %v951 = vld [vmem:[%s595 + $0xf0] sm:$0xf]
        %v952 = vld [vmem:[%s595 + $0xf4] sm:$0xf]
        %v953 = vld [vmem:[%s595 + $0xf8] sm:$0xf]
        %v954 = vld [vmem:[%s595 + $0xfc] sm:$0xf]
        %v1019 = vunpack.c.l.b16 %v795
        %v1020 = vunpack.c.l.b16 %v796
        %v1021 = vunpack.c.l.b16 %v797
        %v1022 = vunpack.c.l.b16 %v798
        %v1023 = vunpack.c.l.b16 %v799
        %v1024 = vunpack.c.l.b16 %v800
        %v1025 = vunpack.c.l.b16 %v801
        %v1026 = vunpack.c.l.b16 %v802
        %v1027 = vunpack.c.l.b16 %v803
        %v1028 = vunpack.c.l.b16 %v804
        %v1029 = vunpack.c.l.b16 %v805
        %v1030 = vunpack.c.l.b16 %v806
        %v1031 = vunpack.c.l.b16 %v807
        %v1032 = vunpack.c.l.b16 %v808
        %v1033 = vunpack.c.l.b16 %v809
        %v1034 = vunpack.c.l.b16 %v810
        %v1035 = vunpack.c.l.b16 %v811
        %v1036 = vunpack.c.l.b16 %v812
        %v1037 = vunpack.c.l.b16 %v813
        %v1038 = vunpack.c.l.b16 %v814
        %v1039 = vunpack.c.l.b16 %v815
        %v1040 = vunpack.c.l.b16 %v816
        %v1041 = vunpack.c.l.b16 %v817
        %v1042 = vunpack.c.l.b16 %v818
        %v1043 = vunpack.c.l.b16 %v819
        %v1044 = vunpack.c.l.b16 %v820
        %v1045 = vunpack.c.l.b16 %v821
        %v1046 = vunpack.c.l.b16 %v822
        %v1047 = vunpack.c.l.b16 %v823
        %v1048 = vunpack.c.l.b16 %v824
        %v1049 = vunpack.c.l.b16 %v825
        %v1050 = vunpack.c.l.b16 %v826
        %v1051 = vunpack.c.l.b16 %v827
        %v1052 = vunpack.c.l.b16 %v828
        %v1053 = vunpack.c.l.b16 %v829
        %v1054 = vunpack.c.l.b16 %v830
        %v1055 = vunpack.c.l.b16 %v831
        %v1056 = vunpack.c.l.b16 %v832
        %v1057 = vunpack.c.l.b16 %v833
        %v1058 = vunpack.c.l.b16 %v834
        %v1059 = vunpack.c.l.b16 %v835
        %v1060 = vunpack.c.l.b16 %v836
        %v1061 = vunpack.c.l.b16 %v837
        %v1062 = vunpack.c.l.b16 %v838
        %v1063 = vunpack.c.l.b16 %v839
        %v1064 = vunpack.c.l.b16 %v840
        %v1065 = vunpack.c.l.b16 %v841
        %v1066 = vunpack.c.l.b16 %v842
        %v1067 = vunpack.c.l.b16 %v843
        %v1068 = vunpack.c.l.b16 %v844
        %v1069 = vunpack.c.l.b16 %v845
        %v1070 = vunpack.c.l.b16 %v846
        %v1071 = vunpack.c.l.b16 %v847
        %v1072 = vunpack.c.l.b16 %v848
        %v1073 = vunpack.c.l.b16 %v849
        %v1074 = vunpack.c.l.b16 %v850
        %v1075 = vunpack.c.l.b16 %v851
        %v1076 = vunpack.c.l.b16 %v852
        %v1077 = vunpack.c.l.b16 %v853
        %v1078 = vunpack.c.l.b16 %v854
        %v1079 = vunpack.c.l.b16 %v855
        %v1080 = vunpack.c.l.b16 %v856
        %v1081 = vunpack.c.l.b16 %v857
        %v1082 = vunpack.c.l.b16 %v858
        %v1083 = vpack.c.b16 %v1020, %v1019
        %v1084 = vpack.c.b16 %v1022, %v1021
        %v1085 = vpack.c.b16 %v1024, %v1023
        %v1086 = vpack.c.b16 %v1026, %v1025
        %v1087 = vpack.c.b16 %v1028, %v1027
        %v1088 = vpack.c.b16 %v1030, %v1029
        %v1089 = vpack.c.b16 %v1032, %v1031
        %v1090 = vpack.c.b16 %v1034, %v1033
        %v1091 = vpack.c.b16 %v1036, %v1035
        %v1092 = vpack.c.b16 %v1038, %v1037
        %v1093 = vpack.c.b16 %v1040, %v1039
        %v1094 = vpack.c.b16 %v1042, %v1041
        %v1095 = vpack.c.b16 %v1044, %v1043
        %v1096 = vpack.c.b16 %v1046, %v1045
        %v1097 = vpack.c.b16 %v1048, %v1047
        %v1098 = vpack.c.b16 %v1050, %v1049
        %v1099 = vpack.c.b16 %v1052, %v1051
        %v1100 = vpack.c.b16 %v1054, %v1053
        %v1101 = vpack.c.b16 %v1056, %v1055
        %v1102 = vpack.c.b16 %v1058, %v1057
        %v1103 = vpack.c.b16 %v1060, %v1059
        %v1104 = vpack.c.b16 %v1062, %v1061
        %v1105 = vpack.c.b16 %v1064, %v1063
        %v1106 = vpack.c.b16 %v1066, %v1065
        %v1107 = vpack.c.b16 %v1068, %v1067
        %v1108 = vpack.c.b16 %v1070, %v1069
        %v1109 = vpack.c.b16 %v1072, %v1071
        %v1110 = vpack.c.b16 %v1074, %v1073
        %v1111 = vpack.c.b16 %v1076, %v1075
        %v1112 = vpack.c.b16 %v1078, %v1077
        %v1113 = vpack.c.b16 %v1080, %v1079
        %v1114 = vpack.c.b16 %v1082, %v1081
        %v1179 = vunpack.c.l.b16 %v859
        %v1180 = vunpack.c.h.b16 %v859
        %v1181 = vunpack.c.l.b16 %v860
        %v1182 = vunpack.c.h.b16 %v860
        %v1183 = vunpack.c.l.b16 %v861
        %v1184 = vunpack.c.h.b16 %v861
        %v1185 = vunpack.c.l.b16 %v862
        %v1186 = vunpack.c.h.b16 %v862
        %v1187 = vunpack.c.l.b16 %v863
        %v1188 = vunpack.c.h.b16 %v863
        %v1189 = vunpack.c.l.b16 %v864
        %v1190 = vunpack.c.h.b16 %v864
        %v1191 = vunpack.c.l.b16 %v865
        %v1192 = vunpack.c.h.b16 %v865
        %v1193 = vunpack.c.l.b16 %v866
        %v1194 = vunpack.c.h.b16 %v866
        %v1195 = vunpack.c.l.b16 %v867
        %v1196 = vunpack.c.h.b16 %v867
        %v1197 = vunpack.c.l.b16 %v868
        %v1198 = vunpack.c.h.b16 %v868
        %v1199 = vunpack.c.l.b16 %v869
        %v1200 = vunpack.c.h.b16 %v869
        %v1201 = vunpack.c.l.b16 %v870
        %v1202 = vunpack.c.h.b16 %v870
        %v1203 = vunpack.c.l.b16 %v871
        %v1204 = vunpack.c.h.b16 %v871
        %v1205 = vunpack.c.l.b16 %v872
        %v1206 = vunpack.c.h.b16 %v872
        %v1207 = vunpack.c.l.b16 %v873
        %v1208 = vunpack.c.h.b16 %v873
        %v1209 = vunpack.c.l.b16 %v874
        %v1210 = vunpack.c.h.b16 %v874
        %v1211 = vunpack.c.l.b16 %v875
        %v1212 = vunpack.c.h.b16 %v875
        %v1213 = vunpack.c.l.b16 %v876
        %v1214 = vunpack.c.h.b16 %v876
        %v1215 = vunpack.c.l.b16 %v877
        %v1216 = vunpack.c.h.b16 %v877
        %v1217 = vunpack.c.l.b16 %v878
        %v1218 = vunpack.c.h.b16 %v878
        %v1219 = vunpack.c.l.b16 %v879
        %v1220 = vunpack.c.h.b16 %v879
        %v1221 = vunpack.c.l.b16 %v880
        %v1222 = vunpack.c.h.b16 %v880
        %v1223 = vunpack.c.l.b16 %v881
        %v1224 = vunpack.c.h.b16 %v881
        %v1225 = vunpack.c.l.b16 %v882
        %v1226 = vunpack.c.h.b16 %v882
        %v1227 = vunpack.c.l.b16 %v883
        %v1228 = vunpack.c.h.b16 %v883
        %v1229 = vunpack.c.l.b16 %v884
        %v1230 = vunpack.c.h.b16 %v884
        %v1231 = vunpack.c.l.b16 %v885
        %v1232 = vunpack.c.h.b16 %v885
        %v1233 = vunpack.c.l.b16 %v886
        %v1234 = vunpack.c.h.b16 %v886
        %v1235 = vunpack.c.l.b16 %v887
        %v1236 = vunpack.c.h.b16 %v887
        %v1237 = vunpack.c.l.b16 %v888
        %v1238 = vunpack.c.h.b16 %v888
        %v1239 = vunpack.c.l.b16 %v889
        %v1240 = vunpack.c.h.b16 %v889
        %v1241 = vunpack.c.l.b16 %v890
        %v1242 = vunpack.c.h.b16 %v890
        %v1243 = vpack.c.b16 %v1183, %v1179
        %v1244 = vpack.c.b16 %v1184, %v1180
        %v1245 = vpack.c.b16 %v1185, %v1181
        %v1246 = vpack.c.b16 %v1186, %v1182
        %v1247 = vpack.c.b16 %v1191, %v1187
        %v1248 = vpack.c.b16 %v1192, %v1188
        %v1249 = vpack.c.b16 %v1193, %v1189
        %v1250 = vpack.c.b16 %v1194, %v1190
        %v1251 = vpack.c.b16 %v1199, %v1195
        %v1252 = vpack.c.b16 %v1200, %v1196
        %v1253 = vpack.c.b16 %v1201, %v1197
        %v1254 = vpack.c.b16 %v1202, %v1198
        %v1255 = vpack.c.b16 %v1207, %v1203
        %v1256 = vpack.c.b16 %v1208, %v1204
        %v1257 = vpack.c.b16 %v1209, %v1205
        %v1258 = vpack.c.b16 %v1210, %v1206
        %v1259 = vpack.c.b16 %v1215, %v1211
        %v1260 = vpack.c.b16 %v1216, %v1212
        %v1261 = vpack.c.b16 %v1217, %v1213
        %v1262 = vpack.c.b16 %v1218, %v1214
        %v1263 = vpack.c.b16 %v1223, %v1219
        %v1264 = vpack.c.b16 %v1224, %v1220
        %v1265 = vpack.c.b16 %v1225, %v1221
        %v1266 = vpack.c.b16 %v1226, %v1222
        %v1267 = vpack.c.b16 %v1231, %v1227
        %v1268 = vpack.c.b16 %v1232, %v1228
        %v1269 = vpack.c.b16 %v1233, %v1229
        %v1270 = vpack.c.b16 %v1234, %v1230
        %v1271 = vpack.c.b16 %v1239, %v1235
        %v1272 = vpack.c.b16 %v1240, %v1236
        %v1273 = vpack.c.b16 %v1241, %v1237
        %v1274 = vpack.c.b16 %v1242, %v1238
        %1307 = vmatprep.subr.bf16.mxu0 %v1272
        %1308 = vmatpush1.bf16.msra.mxu0 %v1271
        %1309 = vmatprep.subr.bf16.mxu0 %v1268
        %1310 = vmatpush1.bf16.msra.mxu0 %v1267
        %1311 = vmatprep.subr.bf16.mxu0 %v1264
        %1312 = vmatpush1.bf16.msra.mxu0 %v1263
        %1313 = vmatprep.subr.bf16.mxu0 %v1260
        %1314 = vmatpush1.bf16.msra.mxu0 %v1259
        %1315 = vmatprep.subr.bf16.mxu0 %v1256
        %1316 = vmatpush1.bf16.msra.mxu0 %v1255
        %1317 = vmatprep.subr.bf16.mxu0 %v1252
        %1318 = vmatpush1.bf16.msra.mxu0 %v1251
        %1319 = vmatprep.subr.bf16.mxu0 %v1248
        %1320 = vmatpush1.bf16.msra.mxu0 %v1247
        %1321 = vmatprep.subr.bf16.mxu0 %v1244
        %1322 = vmatpush1.bf16.msra.mxu0 %v1243
        %1323 = vmatprep.subr.bf16.mxu0 0
        %1324 = vmatpush2.bf16.msra.mxu0 0
        %1325 = vmatprep.subr.bf16.mxu0 0
        %1326 = vmatpush2.bf16.msra.mxu0 0
        %1327 = vmatprep.subr.bf16.mxu0 0
        %1328 = vmatpush2.bf16.msra.mxu0 0
        %1329 = vmatprep.subr.bf16.mxu0 0
        %1330 = vmatpush2.bf16.msra.mxu0 0
        %1331 = vmatprep.subr.bf16.mxu0 0
        %1332 = vmatpush2.bf16.msra.mxu0 0
        %1333 = vmatprep.subr.bf16.mxu0 0
        %1334 = vmatpush2.bf16.msra.mxu0 0
        %1335 = vmatprep.subr.bf16.mxu0 0
        %1336 = vmatpush2.bf16.msra.mxu0 0
        %1337 = vmatprep.subr.bf16.mxu0 0
        %1338 = vmatpush2.bf16.msra.mxu0 0
        %1339 = vmatprep.mubr.bf16.mxu0 0
        %1340 = vmatmul.mubr.bf16.gmra.mxu0 %v1083
        %v1341 = vpop.f32.mrf.mxu0
        %v1342 = vadd.f32 0.0, %v1341
        %v1343 = vpop.f32.mrf.mxu0
        %v1344 = vadd.f32 0.0, %v1343
        %v1345 = vpop.f32.mrf.mxu0
        %v1346 = vadd.f32 0.0, %v1345
        %v1347 = vpop.f32.mrf.mxu0
        %v1348 = vadd.f32 0.0, %v1347
        %1349 = vmatprep.mubr.bf16.mxu0 0
        %1350 = vmatmul.mubr.bf16.gmra.mxu0 %v1084
        %v1351 = vpop.f32.mrf.mxu0
        %v1352 = vadd.f32 0.0, %v1351
        %v1353 = vpop.f32.mrf.mxu0
        %v1354 = vadd.f32 0.0, %v1353
        %v1355 = vpop.f32.mrf.mxu0
        %v1356 = vadd.f32 0.0, %v1355
        %v1357 = vpop.f32.mrf.mxu0
        %v1358 = vadd.f32 0.0, %v1357
        %1359 = vmatprep.mubr.bf16.mxu0 0
        %1360 = vmatmul.mubr.bf16.gmra.mxu0 %v1085
        %v1361 = vpop.f32.mrf.mxu0
        %v1362 = vadd.f32 0.0, %v1361
        %v1363 = vpop.f32.mrf.mxu0
        %v1364 = vadd.f32 0.0, %v1363
        %v1365 = vpop.f32.mrf.mxu0
        %v1366 = vadd.f32 0.0, %v1365
        %v1367 = vpop.f32.mrf.mxu0
        %v1368 = vadd.f32 0.0, %v1367
        %1369 = vmatprep.mubr.bf16.mxu0 0
        %1370 = vmatmul.mubr.bf16.gmra.mxu0 %v1086
        %v1371 = vpop.f32.mrf.mxu0
        %v1372 = vadd.f32 0.0, %v1371
        %v1373 = vpop.f32.mrf.mxu0
        %v1374 = vadd.f32 0.0, %v1373
        %v1375 = vpop.f32.mrf.mxu0
        %v1376 = vadd.f32 0.0, %v1375
        %v1377 = vpop.f32.mrf.mxu0
        %v1378 = vadd.f32 0.0, %v1377
        %1379 = vmatprep.mubr.bf16.mxu0 0
        %1380 = vmatmul.mubr.bf16.gmra.mxu0 %v1087
        %v1381 = vpop.f32.mrf.mxu0
        %v1382 = vadd.f32 0.0, %v1381
        %v1383 = vpop.f32.mrf.mxu0
        %v1384 = vadd.f32 0.0, %v1383
        %v1385 = vpop.f32.mrf.mxu0
        %v1386 = vadd.f32 0.0, %v1385
        %v1387 = vpop.f32.mrf.mxu0
        %v1388 = vadd.f32 0.0, %v1387
        %1389 = vmatprep.mubr.bf16.mxu0 0
        %1390 = vmatmul.mubr.bf16.gmra.mxu0 %v1088
        %v1391 = vpop.f32.mrf.mxu0
        %v1392 = vadd.f32 0.0, %v1391
        %v1393 = vpop.f32.mrf.mxu0
        %v1394 = vadd.f32 0.0, %v1393
        %v1395 = vpop.f32.mrf.mxu0
        %v1396 = vadd.f32 0.0, %v1395
        %v1397 = vpop.f32.mrf.mxu0
        %v1398 = vadd.f32 0.0, %v1397
        %1399 = vmatprep.mubr.bf16.mxu0 0
        %1400 = vmatmul.mubr.bf16.gmra.mxu0 %v1089
        %v1401 = vpop.f32.mrf.mxu0
        %v1402 = vadd.f32 0.0, %v1401
        %v1403 = vpop.f32.mrf.mxu0
        %v1404 = vadd.f32 0.0, %v1403
        %v1405 = vpop.f32.mrf.mxu0
        %v1406 = vadd.f32 0.0, %v1405
        %v1407 = vpop.f32.mrf.mxu0
        %v1408 = vadd.f32 0.0, %v1407
        %1409 = vmatprep.mubr.bf16.mxu0 0
        %1410 = vmatmul.mubr.bf16.gmra.mxu0 %v1090
        %v1411 = vpop.f32.mrf.mxu0
        %v1412 = vadd.f32 0.0, %v1411
        %v1413 = vpop.f32.mrf.mxu0
        %v1414 = vadd.f32 0.0, %v1413
        %v1415 = vpop.f32.mrf.mxu0
        %v1416 = vadd.f32 0.0, %v1415
        %v1417 = vpop.f32.mrf.mxu0
        %v1418 = vadd.f32 0.0, %v1417
        %1419 = vmatprep.mubr.bf16.mxu0 0
        %1420 = vmatmul.mubr.bf16.gmra.mxu0 %v1091
        %v1421 = vpop.f32.mrf.mxu0
        %v1422 = vadd.f32 0.0, %v1421
        %v1423 = vpop.f32.mrf.mxu0
        %v1424 = vadd.f32 0.0, %v1423
        %v1425 = vpop.f32.mrf.mxu0
        %v1426 = vadd.f32 0.0, %v1425
        %v1427 = vpop.f32.mrf.mxu0
        %v1428 = vadd.f32 0.0, %v1427
        %1429 = vmatprep.mubr.bf16.mxu0 0
        %1430 = vmatmul.mubr.bf16.gmra.mxu0 %v1092
        %v1431 = vpop.f32.mrf.mxu0
        %v1432 = vadd.f32 0.0, %v1431
        %v1433 = vpop.f32.mrf.mxu0
        %v1434 = vadd.f32 0.0, %v1433
        %v1435 = vpop.f32.mrf.mxu0
        %v1436 = vadd.f32 0.0, %v1435
        %v1437 = vpop.f32.mrf.mxu0
        %v1438 = vadd.f32 0.0, %v1437
        %1439 = vmatprep.mubr.bf16.mxu0 0
        %1440 = vmatmul.mubr.bf16.gmra.mxu0 %v1093
        %v1441 = vpop.f32.mrf.mxu0
        %v1442 = vadd.f32 0.0, %v1441
        %v1443 = vpop.f32.mrf.mxu0
        %v1444 = vadd.f32 0.0, %v1443
        %v1445 = vpop.f32.mrf.mxu0
        %v1446 = vadd.f32 0.0, %v1445
        %v1447 = vpop.f32.mrf.mxu0
        %v1448 = vadd.f32 0.0, %v1447
        %1449 = vmatprep.mubr.bf16.mxu0 0
        %1450 = vmatmul.mubr.bf16.gmra.mxu0 %v1094
        %v1451 = vpop.f32.mrf.mxu0
        %v1452 = vadd.f32 0.0, %v1451
        %v1453 = vpop.f32.mrf.mxu0
        %v1454 = vadd.f32 0.0, %v1453
        %v1455 = vpop.f32.mrf.mxu0
        %v1456 = vadd.f32 0.0, %v1455
        %v1457 = vpop.f32.mrf.mxu0
        %v1458 = vadd.f32 0.0, %v1457
        %1459 = vmatprep.mubr.bf16.mxu0 0
        %1460 = vmatmul.mubr.bf16.gmra.mxu0 %v1095
        %v1461 = vpop.f32.mrf.mxu0
        %v1462 = vadd.f32 0.0, %v1461
        %v1463 = vpop.f32.mrf.mxu0
        %v1464 = vadd.f32 0.0, %v1463
        %v1465 = vpop.f32.mrf.mxu0
        %v1466 = vadd.f32 0.0, %v1465
        %v1467 = vpop.f32.mrf.mxu0
        %v1468 = vadd.f32 0.0, %v1467
        %1469 = vmatprep.mubr.bf16.mxu0 0
        %1470 = vmatmul.mubr.bf16.gmra.mxu0 %v1096
        %v1471 = vpop.f32.mrf.mxu0
        %v1472 = vadd.f32 0.0, %v1471
        %v1473 = vpop.f32.mrf.mxu0
        %v1474 = vadd.f32 0.0, %v1473
        %v1475 = vpop.f32.mrf.mxu0
        %v1476 = vadd.f32 0.0, %v1475
        %v1477 = vpop.f32.mrf.mxu0
        %v1478 = vadd.f32 0.0, %v1477
        %1479 = vmatprep.mubr.bf16.mxu0 0
        %1480 = vmatmul.mubr.bf16.gmra.mxu0 %v1097
        %v1481 = vpop.f32.mrf.mxu0
        %v1482 = vadd.f32 0.0, %v1481
        %v1483 = vpop.f32.mrf.mxu0
        %v1484 = vadd.f32 0.0, %v1483
        %v1485 = vpop.f32.mrf.mxu0
        %v1486 = vadd.f32 0.0, %v1485
        %v1487 = vpop.f32.mrf.mxu0
        %v1488 = vadd.f32 0.0, %v1487
        %1489 = vmatprep.mubr.bf16.mxu0 0
        %1490 = vmatmul.mubr.bf16.gmra.mxu0 %v1098
        %v1491 = vpop.f32.mrf.mxu0
        %v1492 = vadd.f32 0.0, %v1491
        %v1493 = vpop.f32.mrf.mxu0
        %v1494 = vadd.f32 0.0, %v1493
        %v1495 = vpop.f32.mrf.mxu0
        %v1496 = vadd.f32 0.0, %v1495
        %v1497 = vpop.f32.mrf.mxu0
        %v1498 = vadd.f32 0.0, %v1497
        %1499 = vmatprep.mubr.bf16.mxu0 0
        %1500 = vmatmul.mubr.bf16.gmra.mxu0 %v1099
        %v1501 = vpop.f32.mrf.mxu0
        %v1502 = vadd.f32 0.0, %v1501
        %v1503 = vpop.f32.mrf.mxu0
        %v1504 = vadd.f32 0.0, %v1503
        %v1505 = vpop.f32.mrf.mxu0
        %v1506 = vadd.f32 0.0, %v1505
        %v1507 = vpop.f32.mrf.mxu0
        %v1508 = vadd.f32 0.0, %v1507
        %1509 = vmatprep.mubr.bf16.mxu0 0
        %1510 = vmatmul.mubr.bf16.gmra.mxu0 %v1100
        %v1511 = vpop.f32.mrf.mxu0
        %v1512 = vadd.f32 0.0, %v1511
        %v1513 = vpop.f32.mrf.mxu0
        %v1514 = vadd.f32 0.0, %v1513
        %v1515 = vpop.f32.mrf.mxu0
        %v1516 = vadd.f32 0.0, %v1515
        %v1517 = vpop.f32.mrf.mxu0
        %v1518 = vadd.f32 0.0, %v1517
        %1519 = vmatprep.mubr.bf16.mxu0 0
        %1520 = vmatmul.mubr.bf16.gmra.mxu0 %v1101
        %v1521 = vpop.f32.mrf.mxu0
        %v1522 = vadd.f32 0.0, %v1521
        %v1523 = vpop.f32.mrf.mxu0
        %v1524 = vadd.f32 0.0, %v1523
        %v1525 = vpop.f32.mrf.mxu0
        %v1526 = vadd.f32 0.0, %v1525
        %v1527 = vpop.f32.mrf.mxu0
        %v1528 = vadd.f32 0.0, %v1527
        %1529 = vmatprep.mubr.bf16.mxu0 0
        %1530 = vmatmul.mubr.bf16.gmra.mxu0 %v1102
        %v1531 = vpop.f32.mrf.mxu0
        %v1532 = vadd.f32 0.0, %v1531
        %v1533 = vpop.f32.mrf.mxu0
        %v1534 = vadd.f32 0.0, %v1533
        %v1535 = vpop.f32.mrf.mxu0
        %v1536 = vadd.f32 0.0, %v1535
        %v1537 = vpop.f32.mrf.mxu0
        %v1538 = vadd.f32 0.0, %v1537
        %1539 = vmatprep.mubr.bf16.mxu0 0
        %1540 = vmatmul.mubr.bf16.gmra.mxu0 %v1103
        %v1541 = vpop.f32.mrf.mxu0
        %v1542 = vadd.f32 0.0, %v1541
        %v1543 = vpop.f32.mrf.mxu0
        %v1544 = vadd.f32 0.0, %v1543
        %v1545 = vpop.f32.mrf.mxu0
        %v1546 = vadd.f32 0.0, %v1545
        %v1547 = vpop.f32.mrf.mxu0
        %v1548 = vadd.f32 0.0, %v1547
        %1549 = vmatprep.mubr.bf16.mxu0 0
        %1550 = vmatmul.mubr.bf16.gmra.mxu0 %v1104
        %v1551 = vpop.f32.mrf.mxu0
        %v1552 = vadd.f32 0.0, %v1551
        %v1553 = vpop.f32.mrf.mxu0
        %v1554 = vadd.f32 0.0, %v1553
        %v1555 = vpop.f32.mrf.mxu0
        %v1556 = vadd.f32 0.0, %v1555
        %v1557 = vpop.f32.mrf.mxu0
        %v1558 = vadd.f32 0.0, %v1557
        %1559 = vmatprep.mubr.bf16.mxu0 0
        %1560 = vmatmul.mubr.bf16.gmra.mxu0 %v1105
        %v1561 = vpop.f32.mrf.mxu0
        %v1562 = vadd.f32 0.0, %v1561
        %v1563 = vpop.f32.mrf.mxu0
        %v1564 = vadd.f32 0.0, %v1563
        %v1565 = vpop.f32.mrf.mxu0
        %v1566 = vadd.f32 0.0, %v1565
        %v1567 = vpop.f32.mrf.mxu0
        %v1568 = vadd.f32 0.0, %v1567
        %1569 = vmatprep.mubr.bf16.mxu0 0
        %1570 = vmatmul.mubr.bf16.gmra.mxu0 %v1106
        %v1571 = vpop.f32.mrf.mxu0
        %v1572 = vadd.f32 0.0, %v1571
        %v1573 = vpop.f32.mrf.mxu0
        %v1574 = vadd.f32 0.0, %v1573
        %v1575 = vpop.f32.mrf.mxu0
        %v1576 = vadd.f32 0.0, %v1575
        %v1577 = vpop.f32.mrf.mxu0
        %v1578 = vadd.f32 0.0, %v1577
        %1579 = vmatprep.mubr.bf16.mxu0 0
        %1580 = vmatmul.mubr.bf16.gmra.mxu0 %v1107
        %v1581 = vpop.f32.mrf.mxu0
        %v1582 = vadd.f32 0.0, %v1581
        %v1583 = vpop.f32.mrf.mxu0
        %v1584 = vadd.f32 0.0, %v1583
        %v1585 = vpop.f32.mrf.mxu0
        %v1586 = vadd.f32 0.0, %v1585
        %v1587 = vpop.f32.mrf.mxu0
        %v1588 = vadd.f32 0.0, %v1587
        %1589 = vmatprep.mubr.bf16.mxu0 0
        %1590 = vmatmul.mubr.bf16.gmra.mxu0 %v1108
        %v1591 = vpop.f32.mrf.mxu0
        %v1592 = vadd.f32 0.0, %v1591
        %v1593 = vpop.f32.mrf.mxu0
        %v1594 = vadd.f32 0.0, %v1593
        %v1595 = vpop.f32.mrf.mxu0
        %v1596 = vadd.f32 0.0, %v1595
        %v1597 = vpop.f32.mrf.mxu0
        %v1598 = vadd.f32 0.0, %v1597
        %1599 = vmatprep.mubr.bf16.mxu0 0
        %1600 = vmatmul.mubr.bf16.gmra.mxu0 %v1109
        %v1601 = vpop.f32.mrf.mxu0
        %v1602 = vadd.f32 0.0, %v1601
        %v1603 = vpop.f32.mrf.mxu0
        %v1604 = vadd.f32 0.0, %v1603
        %v1605 = vpop.f32.mrf.mxu0
        %v1606 = vadd.f32 0.0, %v1605
        %v1607 = vpop.f32.mrf.mxu0
        %v1608 = vadd.f32 0.0, %v1607
        %1609 = vmatprep.mubr.bf16.mxu0 0
        %1610 = vmatmul.mubr.bf16.gmra.mxu0 %v1110
        %v1611 = vpop.f32.mrf.mxu0
        %v1612 = vadd.f32 0.0, %v1611
        %v1613 = vpop.f32.mrf.mxu0
        %v1614 = vadd.f32 0.0, %v1613
        %v1615 = vpop.f32.mrf.mxu0
        %v1616 = vadd.f32 0.0, %v1615
        %v1617 = vpop.f32.mrf.mxu0
        %v1618 = vadd.f32 0.0, %v1617
        %1619 = vmatprep.mubr.bf16.mxu0 0
        %1620 = vmatmul.mubr.bf16.gmra.mxu0 %v1111
        %v1621 = vpop.f32.mrf.mxu0
        %v1622 = vadd.f32 0.0, %v1621
        %v1623 = vpop.f32.mrf.mxu0
        %v1624 = vadd.f32 0.0, %v1623
        %v1625 = vpop.f32.mrf.mxu0
        %v1626 = vadd.f32 0.0, %v1625
        %v1627 = vpop.f32.mrf.mxu0
        %v1628 = vadd.f32 0.0, %v1627
        %1629 = vmatprep.mubr.bf16.mxu0 0
        %1630 = vmatmul.mubr.bf16.gmra.mxu0 %v1112
        %v1631 = vpop.f32.mrf.mxu0
        %v1632 = vadd.f32 0.0, %v1631
        %v1633 = vpop.f32.mrf.mxu0
        %v1634 = vadd.f32 0.0, %v1633
        %v1635 = vpop.f32.mrf.mxu0
        %v1636 = vadd.f32 0.0, %v1635
        %v1637 = vpop.f32.mrf.mxu0
        %v1638 = vadd.f32 0.0, %v1637
        %1639 = vmatprep.mubr.bf16.mxu0 0
        %1640 = vmatmul.mubr.bf16.gmra.mxu0 %v1113
        %v1641 = vpop.f32.mrf.mxu0
        %v1642 = vadd.f32 0.0, %v1641
        %v1643 = vpop.f32.mrf.mxu0
        %v1644 = vadd.f32 0.0, %v1643
        %v1645 = vpop.f32.mrf.mxu0
        %v1646 = vadd.f32 0.0, %v1645
        %v1647 = vpop.f32.mrf.mxu0
        %v1648 = vadd.f32 0.0, %v1647
        %1649 = vmatprep.mubr.bf16.mxu0 0
        %1650 = vmatmul.mubr.bf16.gmra.mxu0 %v1114
        %v1651 = vpop.f32.mrf.mxu0
        %v1652 = vadd.f32 0.0, %v1651
        %v1653 = vpop.f32.mrf.mxu0
        %v1654 = vadd.f32 0.0, %v1653
        %v1655 = vpop.f32.mrf.mxu0
        %v1656 = vadd.f32 0.0, %v1655
        %v1657 = vpop.f32.mrf.mxu0
        %v1658 = vadd.f32 0.0, %v1657
        %1659 = vdwg.mxu0
        %1660 = vmatprep.subr.bf16.mxu0 %v1274
        %1661 = vmatpush1.bf16.msra.mxu0 %v1273
        %1662 = vmatprep.subr.bf16.mxu0 %v1270
        %1663 = vmatpush1.bf16.msra.mxu0 %v1269
        %1664 = vmatprep.subr.bf16.mxu0 %v1266
        %1665 = vmatpush1.bf16.msra.mxu0 %v1265
        %1666 = vmatprep.subr.bf16.mxu0 %v1262
        %1667 = vmatpush1.bf16.msra.mxu0 %v1261
        %1668 = vmatprep.subr.bf16.mxu0 %v1258
        %1669 = vmatpush1.bf16.msra.mxu0 %v1257
        %1670 = vmatprep.subr.bf16.mxu0 %v1254
        %1671 = vmatpush1.bf16.msra.mxu0 %v1253
        %1672 = vmatprep.subr.bf16.mxu0 %v1250
        %1673 = vmatpush1.bf16.msra.mxu0 %v1249
        %1674 = vmatprep.subr.bf16.mxu0 %v1246
        %1675 = vmatpush1.bf16.msra.mxu0 %v1245
        %1676 = vmatprep.subr.bf16.mxu0 0
        %1677 = vmatpush2.bf16.msra.mxu0 0
        %1678 = vmatprep.subr.bf16.mxu0 0
        %1679 = vmatpush2.bf16.msra.mxu0 0
        %1680 = vmatprep.subr.bf16.mxu0 0
        %1681 = vmatpush2.bf16.msra.mxu0 0
        %1682 = vmatprep.subr.bf16.mxu0 0
        %1683 = vmatpush2.bf16.msra.mxu0 0
        %1684 = vmatprep.subr.bf16.mxu0 0
        %1685 = vmatpush2.bf16.msra.mxu0 0
        %1686 = vmatprep.subr.bf16.mxu0 0
        %1687 = vmatpush2.bf16.msra.mxu0 0
        %1688 = vmatprep.subr.bf16.mxu0 0
        %1689 = vmatpush2.bf16.msra.mxu0 0
        %1690 = vmatprep.subr.bf16.mxu0 0
        %1691 = vmatpush2.bf16.msra.mxu0 0
        %1692 = vmatprep.mubr.bf16.mxu0 0
        %1693 = vmatmul.mubr.bf16.gmra.mxu0 %v1083
        %v1694 = vpop.f32.mrf.mxu0
        %v1695 = vadd.f32 0.0, %v1694
        %v1696 = vpop.f32.mrf.mxu0
        %v1697 = vadd.f32 0.0, %v1696
        %v1698 = vpop.f32.mrf.mxu0
        %v1699 = vadd.f32 0.0, %v1698
        %v1700 = vpop.f32.mrf.mxu0
        %v1701 = vadd.f32 0.0, %v1700
        %1702 = vmatprep.mubr.bf16.mxu0 0
        %1703 = vmatmul.mubr.bf16.gmra.mxu0 %v1084
        %v1704 = vpop.f32.mrf.mxu0
        %v1705 = vadd.f32 0.0, %v1704
        %v1706 = vpop.f32.mrf.mxu0
        %v1707 = vadd.f32 0.0, %v1706
        %v1708 = vpop.f32.mrf.mxu0
        %v1709 = vadd.f32 0.0, %v1708
        %v1710 = vpop.f32.mrf.mxu0
        %v1711 = vadd.f32 0.0, %v1710
        %1712 = vmatprep.mubr.bf16.mxu0 0
        %1713 = vmatmul.mubr.bf16.gmra.mxu0 %v1085
        %v1714 = vpop.f32.mrf.mxu0
        %v1715 = vadd.f32 0.0, %v1714
        %v1716 = vpop.f32.mrf.mxu0
        %v1717 = vadd.f32 0.0, %v1716
        %v1718 = vpop.f32.mrf.mxu0
        %v1719 = vadd.f32 0.0, %v1718
        %v1720 = vpop.f32.mrf.mxu0
        %v1721 = vadd.f32 0.0, %v1720
        %1722 = vmatprep.mubr.bf16.mxu0 0
        %1723 = vmatmul.mubr.bf16.gmra.mxu0 %v1086
        %v1724 = vpop.f32.mrf.mxu0
        %v1725 = vadd.f32 0.0, %v1724
        %v1726 = vpop.f32.mrf.mxu0
        %v1727 = vadd.f32 0.0, %v1726
        %v1728 = vpop.f32.mrf.mxu0
        %v1729 = vadd.f32 0.0, %v1728
        %v1730 = vpop.f32.mrf.mxu0
        %v1731 = vadd.f32 0.0, %v1730
        %1732 = vmatprep.mubr.bf16.mxu0 0
        %1733 = vmatmul.mubr.bf16.gmra.mxu0 %v1087
        %v1734 = vpop.f32.mrf.mxu0
        %v1735 = vadd.f32 0.0, %v1734
        %v1736 = vpop.f32.mrf.mxu0
        %v1737 = vadd.f32 0.0, %v1736
        %v1738 = vpop.f32.mrf.mxu0
        %v1739 = vadd.f32 0.0, %v1738
        %v1740 = vpop.f32.mrf.mxu0
        %v1741 = vadd.f32 0.0, %v1740
        %1742 = vmatprep.mubr.bf16.mxu0 0
        %1743 = vmatmul.mubr.bf16.gmra.mxu0 %v1088
        %v1744 = vpop.f32.mrf.mxu0
        %v1745 = vadd.f32 0.0, %v1744
        %v1746 = vpop.f32.mrf.mxu0
        %v1747 = vadd.f32 0.0, %v1746
        %v1748 = vpop.f32.mrf.mxu0
        %v1749 = vadd.f32 0.0, %v1748
        %v1750 = vpop.f32.mrf.mxu0
        %v1751 = vadd.f32 0.0, %v1750
        %1752 = vmatprep.mubr.bf16.mxu0 0
        %1753 = vmatmul.mubr.bf16.gmra.mxu0 %v1089
        %v1754 = vpop.f32.mrf.mxu0
        %v1755 = vadd.f32 0.0, %v1754
        %v1756 = vpop.f32.mrf.mxu0
        %v1757 = vadd.f32 0.0, %v1756
        %v1758 = vpop.f32.mrf.mxu0
        %v1759 = vadd.f32 0.0, %v1758
        %v1760 = vpop.f32.mrf.mxu0
        %v1761 = vadd.f32 0.0, %v1760
        %1762 = vmatprep.mubr.bf16.mxu0 0
        %1763 = vmatmul.mubr.bf16.gmra.mxu0 %v1090
        %v1764 = vpop.f32.mrf.mxu0
        %v1765 = vadd.f32 0.0, %v1764
        %v1766 = vpop.f32.mrf.mxu0
        %v1767 = vadd.f32 0.0, %v1766
        %v1768 = vpop.f32.mrf.mxu0
        %v1769 = vadd.f32 0.0, %v1768
        %v1770 = vpop.f32.mrf.mxu0
        %v1771 = vadd.f32 0.0, %v1770
        %1772 = vmatprep.mubr.bf16.mxu0 0
        %1773 = vmatmul.mubr.bf16.gmra.mxu0 %v1091
        %v1774 = vpop.f32.mrf.mxu0
        %v1775 = vadd.f32 0.0, %v1774
        %v1776 = vpop.f32.mrf.mxu0
        %v1777 = vadd.f32 0.0, %v1776
        %v1778 = vpop.f32.mrf.mxu0
        %v1779 = vadd.f32 0.0, %v1778
        %v1780 = vpop.f32.mrf.mxu0
        %v1781 = vadd.f32 0.0, %v1780
        %1782 = vmatprep.mubr.bf16.mxu0 0
        %1783 = vmatmul.mubr.bf16.gmra.mxu0 %v1092
        %v1784 = vpop.f32.mrf.mxu0
        %v1785 = vadd.f32 0.0, %v1784
        %v1786 = vpop.f32.mrf.mxu0
        %v1787 = vadd.f32 0.0, %v1786
        %v1788 = vpop.f32.mrf.mxu0
        %v1789 = vadd.f32 0.0, %v1788
        %v1790 = vpop.f32.mrf.mxu0
        %v1791 = vadd.f32 0.0, %v1790
        %1792 = vmatprep.mubr.bf16.mxu0 0
        %1793 = vmatmul.mubr.bf16.gmra.mxu0 %v1093
        %v1794 = vpop.f32.mrf.mxu0
        %v1795 = vadd.f32 0.0, %v1794
        %v1796 = vpop.f32.mrf.mxu0
        %v1797 = vadd.f32 0.0, %v1796
        %v1798 = vpop.f32.mrf.mxu0
        %v1799 = vadd.f32 0.0, %v1798
        %v1800 = vpop.f32.mrf.mxu0
        %v1801 = vadd.f32 0.0, %v1800
        %1802 = vmatprep.mubr.bf16.mxu0 0
        %1803 = vmatmul.mubr.bf16.gmra.mxu0 %v1094
        %v1804 = vpop.f32.mrf.mxu0
        %v1805 = vadd.f32 0.0, %v1804
        %v1806 = vpop.f32.mrf.mxu0
        %v1807 = vadd.f32 0.0, %v1806
        %v1808 = vpop.f32.mrf.mxu0
        %v1809 = vadd.f32 0.0, %v1808
        %v1810 = vpop.f32.mrf.mxu0
        %v1811 = vadd.f32 0.0, %v1810
        %1812 = vmatprep.mubr.bf16.mxu0 0
        %1813 = vmatmul.mubr.bf16.gmra.mxu0 %v1095
        %v1814 = vpop.f32.mrf.mxu0
        %v1815 = vadd.f32 0.0, %v1814
        %v1816 = vpop.f32.mrf.mxu0
        %v1817 = vadd.f32 0.0, %v1816
        %v1818 = vpop.f32.mrf.mxu0
        %v1819 = vadd.f32 0.0, %v1818
        %v1820 = vpop.f32.mrf.mxu0
        %v1821 = vadd.f32 0.0, %v1820
        %1822 = vmatprep.mubr.bf16.mxu0 0
        %1823 = vmatmul.mubr.bf16.gmra.mxu0 %v1096
        %v1824 = vpop.f32.mrf.mxu0
        %v1825 = vadd.f32 0.0, %v1824
        %v1826 = vpop.f32.mrf.mxu0
        %v1827 = vadd.f32 0.0, %v1826
        %v1828 = vpop.f32.mrf.mxu0
        %v1829 = vadd.f32 0.0, %v1828
        %v1830 = vpop.f32.mrf.mxu0
        %v1831 = vadd.f32 0.0, %v1830
        %1832 = vmatprep.mubr.bf16.mxu0 0
        %1833 = vmatmul.mubr.bf16.gmra.mxu0 %v1097
        %v1834 = vpop.f32.mrf.mxu0
        %v1835 = vadd.f32 0.0, %v1834
        %v1836 = vpop.f32.mrf.mxu0
        %v1837 = vadd.f32 0.0, %v1836
        %v1838 = vpop.f32.mrf.mxu0
        %v1839 = vadd.f32 0.0, %v1838
        %v1840 = vpop.f32.mrf.mxu0
        %v1841 = vadd.f32 0.0, %v1840
        %1842 = vmatprep.mubr.bf16.mxu0 0
        %1843 = vmatmul.mubr.bf16.gmra.mxu0 %v1098
        %v1844 = vpop.f32.mrf.mxu0
        %v1845 = vadd.f32 0.0, %v1844
        %v1846 = vpop.f32.mrf.mxu0
        %v1847 = vadd.f32 0.0, %v1846
        %v1848 = vpop.f32.mrf.mxu0
        %v1849 = vadd.f32 0.0, %v1848
        %v1850 = vpop.f32.mrf.mxu0
        %v1851 = vadd.f32 0.0, %v1850
        %1852 = vmatprep.mubr.bf16.mxu0 0
        %1853 = vmatmul.mubr.bf16.gmra.mxu0 %v1099
        %v1854 = vpop.f32.mrf.mxu0
        %v1855 = vadd.f32 0.0, %v1854
        %v1856 = vpop.f32.mrf.mxu0
        %v1857 = vadd.f32 0.0, %v1856
        %v1858 = vpop.f32.mrf.mxu0
        %v1859 = vadd.f32 0.0, %v1858
        %v1860 = vpop.f32.mrf.mxu0
        %v1861 = vadd.f32 0.0, %v1860
        %1862 = vmatprep.mubr.bf16.mxu0 0
        %1863 = vmatmul.mubr.bf16.gmra.mxu0 %v1100
        %v1864 = vpop.f32.mrf.mxu0
        %v1865 = vadd.f32 0.0, %v1864
        %v1866 = vpop.f32.mrf.mxu0
        %v1867 = vadd.f32 0.0, %v1866
        %v1868 = vpop.f32.mrf.mxu0
        %v1869 = vadd.f32 0.0, %v1868
        %v1870 = vpop.f32.mrf.mxu0
        %v1871 = vadd.f32 0.0, %v1870
        %1872 = vmatprep.mubr.bf16.mxu0 0
        %1873 = vmatmul.mubr.bf16.gmra.mxu0 %v1101
        %v1874 = vpop.f32.mrf.mxu0
        %v1875 = vadd.f32 0.0, %v1874
        %v1876 = vpop.f32.mrf.mxu0
        %v1877 = vadd.f32 0.0, %v1876
        %v1878 = vpop.f32.mrf.mxu0
        %v1879 = vadd.f32 0.0, %v1878
        %v1880 = vpop.f32.mrf.mxu0
        %v1881 = vadd.f32 0.0, %v1880
        %1882 = vmatprep.mubr.bf16.mxu0 0
        %1883 = vmatmul.mubr.bf16.gmra.mxu0 %v1102
        %v1884 = vpop.f32.mrf.mxu0
        %v1885 = vadd.f32 0.0, %v1884
        %v1886 = vpop.f32.mrf.mxu0
        %v1887 = vadd.f32 0.0, %v1886
        %v1888 = vpop.f32.mrf.mxu0
        %v1889 = vadd.f32 0.0, %v1888
        %v1890 = vpop.f32.mrf.mxu0
        %v1891 = vadd.f32 0.0, %v1890
        %1892 = vmatprep.mubr.bf16.mxu0 0
        %1893 = vmatmul.mubr.bf16.gmra.mxu0 %v1103
        %v1894 = vpop.f32.mrf.mxu0
        %v1895 = vadd.f32 0.0, %v1894
        %v1896 = vpop.f32.mrf.mxu0
        %v1897 = vadd.f32 0.0, %v1896
        %v1898 = vpop.f32.mrf.mxu0
        %v1899 = vadd.f32 0.0, %v1898
        %v1900 = vpop.f32.mrf.mxu0
        %v1901 = vadd.f32 0.0, %v1900
        %1902 = vmatprep.mubr.bf16.mxu0 0
        %1903 = vmatmul.mubr.bf16.gmra.mxu0 %v1104
        %v1904 = vpop.f32.mrf.mxu0
        %v1905 = vadd.f32 0.0, %v1904
        %v1906 = vpop.f32.mrf.mxu0
        %v1907 = vadd.f32 0.0, %v1906
        %v1908 = vpop.f32.mrf.mxu0
        %v1909 = vadd.f32 0.0, %v1908
        %v1910 = vpop.f32.mrf.mxu0
        %v1911 = vadd.f32 0.0, %v1910
        %1912 = vmatprep.mubr.bf16.mxu0 0
        %1913 = vmatmul.mubr.bf16.gmra.mxu0 %v1105
        %v1914 = vpop.f32.mrf.mxu0
        %v1915 = vadd.f32 0.0, %v1914
        %v1916 = vpop.f32.mrf.mxu0
        %v1917 = vadd.f32 0.0, %v1916
        %v1918 = vpop.f32.mrf.mxu0
        %v1919 = vadd.f32 0.0, %v1918
        %v1920 = vpop.f32.mrf.mxu0
        %v1921 = vadd.f32 0.0, %v1920
        %1922 = vmatprep.mubr.bf16.mxu0 0
        %1923 = vmatmul.mubr.bf16.gmra.mxu0 %v1106
        %v1924 = vpop.f32.mrf.mxu0
        %v1925 = vadd.f32 0.0, %v1924
        %v1926 = vpop.f32.mrf.mxu0
        %v1927 = vadd.f32 0.0, %v1926
        %v1928 = vpop.f32.mrf.mxu0
        %v1929 = vadd.f32 0.0, %v1928
        %v1930 = vpop.f32.mrf.mxu0
        %v1931 = vadd.f32 0.0, %v1930
        %1932 = vmatprep.mubr.bf16.mxu0 0
        %1933 = vmatmul.mubr.bf16.gmra.mxu0 %v1107
        %v1934 = vpop.f32.mrf.mxu0
        %v1935 = vadd.f32 0.0, %v1934
        %v1936 = vpop.f32.mrf.mxu0
        %v1937 = vadd.f32 0.0, %v1936
        %v1938 = vpop.f32.mrf.mxu0
        %v1939 = vadd.f32 0.0, %v1938
        %v1940 = vpop.f32.mrf.mxu0
        %v1941 = vadd.f32 0.0, %v1940
        %1942 = vmatprep.mubr.bf16.mxu0 0
        %1943 = vmatmul.mubr.bf16.gmra.mxu0 %v1108
        %v1944 = vpop.f32.mrf.mxu0
        %v1945 = vadd.f32 0.0, %v1944
        %v1946 = vpop.f32.mrf.mxu0
        %v1947 = vadd.f32 0.0, %v1946
        %v1948 = vpop.f32.mrf.mxu0
        %v1949 = vadd.f32 0.0, %v1948
        %v1950 = vpop.f32.mrf.mxu0
        %v1951 = vadd.f32 0.0, %v1950
        %1952 = vmatprep.mubr.bf16.mxu0 0
        %1953 = vmatmul.mubr.bf16.gmra.mxu0 %v1109
        %v1954 = vpop.f32.mrf.mxu0
        %v1955 = vadd.f32 0.0, %v1954
        %v1956 = vpop.f32.mrf.mxu0
        %v1957 = vadd.f32 0.0, %v1956
        %v1958 = vpop.f32.mrf.mxu0
        %v1959 = vadd.f32 0.0, %v1958
        %v1960 = vpop.f32.mrf.mxu0
        %v1961 = vadd.f32 0.0, %v1960
        %1962 = vmatprep.mubr.bf16.mxu0 0
        %1963 = vmatmul.mubr.bf16.gmra.mxu0 %v1110
        %v1964 = vpop.f32.mrf.mxu0
        %v1965 = vadd.f32 0.0, %v1964
        %v1966 = vpop.f32.mrf.mxu0
        %v1967 = vadd.f32 0.0, %v1966
        %v1968 = vpop.f32.mrf.mxu0
        %v1969 = vadd.f32 0.0, %v1968
        %v1970 = vpop.f32.mrf.mxu0
        %v1971 = vadd.f32 0.0, %v1970
        %1972 = vmatprep.mubr.bf16.mxu0 0
        %1973 = vmatmul.mubr.bf16.gmra.mxu0 %v1111
        %v1974 = vpop.f32.mrf.mxu0
        %v1975 = vadd.f32 0.0, %v1974
        %v1976 = vpop.f32.mrf.mxu0
        %v1977 = vadd.f32 0.0, %v1976
        %v1978 = vpop.f32.mrf.mxu0
        %v1979 = vadd.f32 0.0, %v1978
        %v1980 = vpop.f32.mrf.mxu0
        %v1981 = vadd.f32 0.0, %v1980
        %1982 = vmatprep.mubr.bf16.mxu0 0
        %1983 = vmatmul.mubr.bf16.gmra.mxu0 %v1112
        %v1984 = vpop.f32.mrf.mxu0
        %v1985 = vadd.f32 0.0, %v1984
        %v1986 = vpop.f32.mrf.mxu0
        %v1987 = vadd.f32 0.0, %v1986
        %v1988 = vpop.f32.mrf.mxu0
        %v1989 = vadd.f32 0.0, %v1988
        %v1990 = vpop.f32.mrf.mxu0
        %v1991 = vadd.f32 0.0, %v1990
        %1992 = vmatprep.mubr.bf16.mxu0 0
        %1993 = vmatmul.mubr.bf16.gmra.mxu0 %v1113
        %v1994 = vpop.f32.mrf.mxu0
        %v1995 = vadd.f32 0.0, %v1994
        %v1996 = vpop.f32.mrf.mxu0
        %v1997 = vadd.f32 0.0, %v1996
        %v1998 = vpop.f32.mrf.mxu0
        %v1999 = vadd.f32 0.0, %v1998
        %v2000 = vpop.f32.mrf.mxu0
        %v2001 = vadd.f32 0.0, %v2000
        %2002 = vmatprep.mubr.bf16.mxu0 0
        %2003 = vmatmul.mubr.bf16.gmra.mxu0 %v1114
        %v2004 = vpop.f32.mrf.mxu0
        %v2005 = vadd.f32 0.0, %v2004
        %v2006 = vpop.f32.mrf.mxu0
        %v2007 = vadd.f32 0.0, %v2006
        %v2008 = vpop.f32.mrf.mxu0
        %v2009 = vadd.f32 0.0, %v2008
        %v2010 = vpop.f32.mrf.mxu0
        %v2011 = vadd.f32 0.0, %v2010
        %2012 = vdwg.mxu0
        %v2013 = vld [vmem:[#allocation2] sm:$0xff]
        %v2014 = vld [vmem:[#allocation2 + $0x8] sm:$0xff]
        %v2015 = vld [vmem:[#allocation2 + $0x10] sm:$0xff]
        %v2016 = vld [vmem:[#allocation2 + $0x18] sm:$0xff]
        %v2017 = vld [vmem:[#allocation2 + $0x20] sm:$0xff]
        %v2018 = vld [vmem:[#allocation2 + $0x28] sm:$0xff]
        %v2019 = vld [vmem:[#allocation2 + $0x30] sm:$0xff]
        %v2020 = vld [vmem:[#allocation2 + $0x38] sm:$0xff]
        %v2021 = vld [vmem:[#allocation2 + $0x40] sm:$0xff]
        %v2022 = vld [vmem:[#allocation2 + $0x48] sm:$0xff]
        %v2023 = vld [vmem:[#allocation2 + $0x50] sm:$0xff]
        %v2024 = vld [vmem:[#allocation2 + $0x58] sm:$0xff]
        %v2025 = vld [vmem:[#allocation2 + $0x60] sm:$0xff]
        %v2026 = vld [vmem:[#allocation2 + $0x68] sm:$0xff]
        %v2027 = vld [vmem:[#allocation2 + $0x70] sm:$0xff]
        %v2028 = vld [vmem:[#allocation2 + $0x78] sm:$0xff]
        %v2029 = vld [vmem:[#allocation2 + $0x80] sm:$0xff]
        %v2030 = vld [vmem:[#allocation2 + $0x88] sm:$0xff]
        %v2031 = vld [vmem:[#allocation2 + $0x90] sm:$0xff]
        %v2032 = vld [vmem:[#allocation2 + $0x98] sm:$0xff]
        %v2033 = vld [vmem:[#allocation2 + $0xa0] sm:$0xff]
        %v2034 = vld [vmem:[#allocation2 + $0xa8] sm:$0xff]
        %v2035 = vld [vmem:[#allocation2 + $0xb0] sm:$0xff]
        %v2036 = vld [vmem:[#allocation2 + $0xb8] sm:$0xff]
        %v2037 = vld [vmem:[#allocation2 + $0xc0] sm:$0xff]
        %v2038 = vld [vmem:[#allocation2 + $0xc8] sm:$0xff]
        %v2039 = vld [vmem:[#allocation2 + $0xd0] sm:$0xff]
        %v2040 = vld [vmem:[#allocation2 + $0xd8] sm:$0xff]
        %v2041 = vld [vmem:[#allocation2 + $0xe0] sm:$0xff]
        %v2042 = vld [vmem:[#allocation2 + $0xe8] sm:$0xff]
        %v2043 = vld [vmem:[#allocation2 + $0xf0] sm:$0xff]
        %v2044 = vld [vmem:[#allocation2 + $0xf8] sm:$0xff]
        %v2045 = vld [vmem:[#allocation2 + $0x100] sm:$0xff]
        %v2046 = vld [vmem:[#allocation2 + $0x108] sm:$0xff]
        %v2047 = vld [vmem:[#allocation2 + $0x110] sm:$0xff]
        %v2048 = vld [vmem:[#allocation2 + $0x118] sm:$0xff]
        %v2049 = vld [vmem:[#allocation2 + $0x120] sm:$0xff]
        %v2050 = vld [vmem:[#allocation2 + $0x128] sm:$0xff]
        %v2051 = vld [vmem:[#allocation2 + $0x130] sm:$0xff]
        %v2052 = vld [vmem:[#allocation2 + $0x138] sm:$0xff]
        %v2053 = vld [vmem:[#allocation2 + $0x140] sm:$0xff]
        %v2054 = vld [vmem:[#allocation2 + $0x148] sm:$0xff]
        %v2055 = vld [vmem:[#allocation2 + $0x150] sm:$0xff]
        %v2056 = vld [vmem:[#allocation2 + $0x158] sm:$0xff]
        %v2057 = vld [vmem:[#allocation2 + $0x160] sm:$0xff]
        %v2058 = vld [vmem:[#allocation2 + $0x168] sm:$0xff]
        %v2059 = vld [vmem:[#allocation2 + $0x170] sm:$0xff]
        %v2060 = vld [vmem:[#allocation2 + $0x178] sm:$0xff]
        %v2061 = vld [vmem:[#allocation2 + $0x180] sm:$0xff]
        %v2062 = vld [vmem:[#allocation2 + $0x188] sm:$0xff]
        %v2063 = vld [vmem:[#allocation2 + $0x190] sm:$0xff]
        %v2064 = vld [vmem:[#allocation2 + $0x198] sm:$0xff]
        %v2065 = vld [vmem:[#allocation2 + $0x1a0] sm:$0xff]
        %v2066 = vld [vmem:[#allocation2 + $0x1a8] sm:$0xff]
        %v2067 = vld [vmem:[#allocation2 + $0x1b0] sm:$0xff]
        %v2068 = vld [vmem:[#allocation2 + $0x1b8] sm:$0xff]
        %v2069 = vld [vmem:[#allocation2 + $0x1c0] sm:$0xff]
        %v2070 = vld [vmem:[#allocation2 + $0x1c8] sm:$0xff]
        %v2071 = vld [vmem:[#allocation2 + $0x1d0] sm:$0xff]
        %v2072 = vld [vmem:[#allocation2 + $0x1d8] sm:$0xff]
        %v2073 = vld [vmem:[#allocation2 + $0x1e0] sm:$0xff]
        %v2074 = vld [vmem:[#allocation2 + $0x1e8] sm:$0xff]
        %v2075 = vld [vmem:[#allocation2 + $0x1f0] sm:$0xff]
        %v2076 = vld [vmem:[#allocation2 + $0x1f8] sm:$0xff]
        %v2077 = vmax.f32 %v1342, %v1344
        %v2078 = vmax.f32 %v2077, %v1695
        %v2079 = vmax.f32 %v2078, %v1697
        %2080 = vmax.xlane.f32.xlu0 %v2079
        %v2081 = vpop.xlane.xlu0 %2080
        %v2082 = vmax.f32 %v1346, %v1348
        %v2083 = vmax.f32 %v2082, %v1699
        %v2084 = vmax.f32 %v2083, %v1701
        %2085 = vmax.xlane.f32.xlu0 %v2084
        %v2086 = vpop.xlane.xlu0 %2085
        %v2087 = vmax.f32 %v1352, %v1354
        %v2088 = vmax.f32 %v2087, %v1705
        %v2089 = vmax.f32 %v2088, %v1707
        %2090 = vmax.xlane.f32.xlu0 %v2089
        %v2091 = vpop.xlane.xlu0 %2090
        %v2092 = vmax.f32 %v1356, %v1358
        %v2093 = vmax.f32 %v2092, %v1709
        %v2094 = vmax.f32 %v2093, %v1711
        %2095 = vmax.xlane.f32.xlu0 %v2094
        %v2096 = vpop.xlane.xlu0 %2095
        %v2097 = vmax.f32 %v1362, %v1364
        %v2098 = vmax.f32 %v2097, %v1715
        %v2099 = vmax.f32 %v2098, %v1717
        %2100 = vmax.xlane.f32.xlu0 %v2099
        %v2101 = vpop.xlane.xlu0 %2100
        %v2102 = vmax.f32 %v1366, %v1368
        %v2103 = vmax.f32 %v2102, %v1719
        %v2104 = vmax.f32 %v2103, %v1721
        %2105 = vmax.xlane.f32.xlu0 %v2104
        %v2106 = vpop.xlane.xlu0 %2105
        %v2107 = vmax.f32 %v1372, %v1374
        %v2108 = vmax.f32 %v2107, %v1725
        %v2109 = vmax.f32 %v2108, %v1727
        %2110 = vmax.xlane.f32.xlu0 %v2109
        %v2111 = vpop.xlane.xlu0 %2110
        %v2112 = vmax.f32 %v1376, %v1378
        %v2113 = vmax.f32 %v2112, %v1729
        %v2114 = vmax.f32 %v2113, %v1731
        %2115 = vmax.xlane.f32.xlu0 %v2114
        %v2116 = vpop.xlane.xlu0 %2115
        %v2117 = vmax.f32 %v1382, %v1384
        %v2118 = vmax.f32 %v2117, %v1735
        %v2119 = vmax.f32 %v2118, %v1737
        %2120 = vmax.xlane.f32.xlu0 %v2119
        %v2121 = vpop.xlane.xlu0 %2120
        %v2122 = vmax.f32 %v1386, %v1388
        %v2123 = vmax.f32 %v2122, %v1739
        %v2124 = vmax.f32 %v2123, %v1741
        %2125 = vmax.xlane.f32.xlu0 %v2124
        %v2126 = vpop.xlane.xlu0 %2125
        %v2127 = vmax.f32 %v1392, %v1394
        %v2128 = vmax.f32 %v2127, %v1745
        %v2129 = vmax.f32 %v2128, %v1747
        %2130 = vmax.xlane.f32.xlu0 %v2129
        %v2131 = vpop.xlane.xlu0 %2130
        %v2132 = vmax.f32 %v1396, %v1398
        %v2133 = vmax.f32 %v2132, %v1749
        %v2134 = vmax.f32 %v2133, %v1751
        %2135 = vmax.xlane.f32.xlu0 %v2134
        %v2136 = vpop.xlane.xlu0 %2135
        %v2137 = vmax.f32 %v1402, %v1404
        %v2138 = vmax.f32 %v2137, %v1755
        %v2139 = vmax.f32 %v2138, %v1757
        %2140 = vmax.xlane.f32.xlu0 %v2139
        %v2141 = vpop.xlane.xlu0 %2140
        %v2142 = vmax.f32 %v1406, %v1408
        %v2143 = vmax.f32 %v2142, %v1759
        %v2144 = vmax.f32 %v2143, %v1761
        %2145 = vmax.xlane.f32.xlu0 %v2144
        %v2146 = vpop.xlane.xlu0 %2145
        %v2147 = vmax.f32 %v1412, %v1414
        %v2148 = vmax.f32 %v2147, %v1765
        %v2149 = vmax.f32 %v2148, %v1767
        %2150 = vmax.xlane.f32.xlu0 %v2149
        %v2151 = vpop.xlane.xlu0 %2150
        %v2152 = vmax.f32 %v1416, %v1418
        %v2153 = vmax.f32 %v2152, %v1769
        %v2154 = vmax.f32 %v2153, %v1771
        %2155 = vmax.xlane.f32.xlu0 %v2154
        %v2156 = vpop.xlane.xlu0 %2155
        %v2157 = vmax.f32 %v1422, %v1424
        %v2158 = vmax.f32 %v2157, %v1775
        %v2159 = vmax.f32 %v2158, %v1777
        %2160 = vmax.xlane.f32.xlu0 %v2159
        %v2161 = vpop.xlane.xlu0 %2160
        %v2162 = vmax.f32 %v1426, %v1428
        %v2163 = vmax.f32 %v2162, %v1779
        %v2164 = vmax.f32 %v2163, %v1781
        %2165 = vmax.xlane.f32.xlu0 %v2164
        %v2166 = vpop.xlane.xlu0 %2165
        %v2167 = vmax.f32 %v1432, %v1434
        %v2168 = vmax.f32 %v2167, %v1785
        %v2169 = vmax.f32 %v2168, %v1787
        %2170 = vmax.xlane.f32.xlu0 %v2169
        %v2171 = vpop.xlane.xlu0 %2170
        %v2172 = vmax.f32 %v1436, %v1438
        %v2173 = vmax.f32 %v2172, %v1789
        %v2174 = vmax.f32 %v2173, %v1791
        %2175 = vmax.xlane.f32.xlu0 %v2174
        %v2176 = vpop.xlane.xlu0 %2175
        %v2177 = vmax.f32 %v1442, %v1444
        %v2178 = vmax.f32 %v2177, %v1795
        %v2179 = vmax.f32 %v2178, %v1797
        %2180 = vmax.xlane.f32.xlu0 %v2179
        %v2181 = vpop.xlane.xlu0 %2180
        %v2182 = vmax.f32 %v1446, %v1448
        %v2183 = vmax.f32 %v2182, %v1799
        %v2184 = vmax.f32 %v2183, %v1801
        %2185 = vmax.xlane.f32.xlu0 %v2184
        %v2186 = vpop.xlane.xlu0 %2185
        %v2187 = vmax.f32 %v1452, %v1454
        %v2188 = vmax.f32 %v2187, %v1805
        %v2189 = vmax.f32 %v2188, %v1807
        %2190 = vmax.xlane.f32.xlu0 %v2189
        %v2191 = vpop.xlane.xlu0 %2190
        %v2192 = vmax.f32 %v1456, %v1458
        %v2193 = vmax.f32 %v2192, %v1809
        %v2194 = vmax.f32 %v2193, %v1811
        %2195 = vmax.xlane.f32.xlu0 %v2194
        %v2196 = vpop.xlane.xlu0 %2195
        %v2197 = vmax.f32 %v1462, %v1464
        %v2198 = vmax.f32 %v2197, %v1815
        %v2199 = vmax.f32 %v2198, %v1817
        %2200 = vmax.xlane.f32.xlu0 %v2199
        %v2201 = vpop.xlane.xlu0 %2200
        %v2202 = vmax.f32 %v1466, %v1468
        %v2203 = vmax.f32 %v2202, %v1819
        %v2204 = vmax.f32 %v2203, %v1821
        %2205 = vmax.xlane.f32.xlu0 %v2204
        %v2206 = vpop.xlane.xlu0 %2205
        %v2207 = vmax.f32 %v1472, %v1474
        %v2208 = vmax.f32 %v2207, %v1825
        %v2209 = vmax.f32 %v2208, %v1827
        %2210 = vmax.xlane.f32.xlu0 %v2209
        %v2211 = vpop.xlane.xlu0 %2210
        %v2212 = vmax.f32 %v1476, %v1478
        %v2213 = vmax.f32 %v2212, %v1829
        %v2214 = vmax.f32 %v2213, %v1831
        %2215 = vmax.xlane.f32.xlu0 %v2214
        %v2216 = vpop.xlane.xlu0 %2215
        %v2217 = vmax.f32 %v1482, %v1484
        %v2218 = vmax.f32 %v2217, %v1835
        %v2219 = vmax.f32 %v2218, %v1837
        %2220 = vmax.xlane.f32.xlu0 %v2219
        %v2221 = vpop.xlane.xlu0 %2220
        %v2222 = vmax.f32 %v1486, %v1488
        %v2223 = vmax.f32 %v2222, %v1839
        %v2224 = vmax.f32 %v2223, %v1841
        %2225 = vmax.xlane.f32.xlu0 %v2224
        %v2226 = vpop.xlane.xlu0 %2225
        %v2227 = vmax.f32 %v1492, %v1494
        %v2228 = vmax.f32 %v2227, %v1845
        %v2229 = vmax.f32 %v2228, %v1847
        %2230 = vmax.xlane.f32.xlu0 %v2229
        %v2231 = vpop.xlane.xlu0 %2230
        %v2232 = vmax.f32 %v1496, %v1498
        %v2233 = vmax.f32 %v2232, %v1849
        %v2234 = vmax.f32 %v2233, %v1851
        %2235 = vmax.xlane.f32.xlu0 %v2234
        %v2236 = vpop.xlane.xlu0 %2235
        %v2237 = vmax.f32 %v1502, %v1504
        %v2238 = vmax.f32 %v2237, %v1855
        %v2239 = vmax.f32 %v2238, %v1857
        %2240 = vmax.xlane.f32.xlu0 %v2239
        %v2241 = vpop.xlane.xlu0 %2240
        %v2242 = vmax.f32 %v1506, %v1508
        %v2243 = vmax.f32 %v2242, %v1859
        %v2244 = vmax.f32 %v2243, %v1861
        %2245 = vmax.xlane.f32.xlu0 %v2244
        %v2246 = vpop.xlane.xlu0 %2245
        %v2247 = vmax.f32 %v1512, %v1514
        %v2248 = vmax.f32 %v2247, %v1865
        %v2249 = vmax.f32 %v2248, %v1867
        %2250 = vmax.xlane.f32.xlu0 %v2249
        %v2251 = vpop.xlane.xlu0 %2250
        %v2252 = vmax.f32 %v1516, %v1518
        %v2253 = vmax.f32 %v2252, %v1869
        %v2254 = vmax.f32 %v2253, %v1871
        %2255 = vmax.xlane.f32.xlu0 %v2254
        %v2256 = vpop.xlane.xlu0 %2255
        %v2257 = vmax.f32 %v1522, %v1524
        %v2258 = vmax.f32 %v2257, %v1875
        %v2259 = vmax.f32 %v2258, %v1877
        %2260 = vmax.xlane.f32.xlu0 %v2259
        %v2261 = vpop.xlane.xlu0 %2260
        %v2262 = vmax.f32 %v1526, %v1528
        %v2263 = vmax.f32 %v2262, %v1879
        %v2264 = vmax.f32 %v2263, %v1881
        %2265 = vmax.xlane.f32.xlu0 %v2264
        %v2266 = vpop.xlane.xlu0 %2265
        %v2267 = vmax.f32 %v1532, %v1534
        %v2268 = vmax.f32 %v2267, %v1885
        %v2269 = vmax.f32 %v2268, %v1887
        %2270 = vmax.xlane.f32.xlu0 %v2269
        %v2271 = vpop.xlane.xlu0 %2270
        %v2272 = vmax.f32 %v1536, %v1538
        %v2273 = vmax.f32 %v2272, %v1889
        %v2274 = vmax.f32 %v2273, %v1891
        %2275 = vmax.xlane.f32.xlu0 %v2274
        %v2276 = vpop.xlane.xlu0 %2275
        %v2277 = vmax.f32 %v1542, %v1544
        %v2278 = vmax.f32 %v2277, %v1895
        %v2279 = vmax.f32 %v2278, %v1897
        %2280 = vmax.xlane.f32.xlu0 %v2279
        %v2281 = vpop.xlane.xlu0 %2280
        %v2282 = vmax.f32 %v1546, %v1548
        %v2283 = vmax.f32 %v2282, %v1899
        %v2284 = vmax.f32 %v2283, %v1901
        %2285 = vmax.xlane.f32.xlu0 %v2284
        %v2286 = vpop.xlane.xlu0 %2285
        %v2287 = vmax.f32 %v1552, %v1554
        %v2288 = vmax.f32 %v2287, %v1905
        %v2289 = vmax.f32 %v2288, %v1907
        %2290 = vmax.xlane.f32.xlu0 %v2289
        %v2291 = vpop.xlane.xlu0 %2290
        %v2292 = vmax.f32 %v1556, %v1558
        %v2293 = vmax.f32 %v2292, %v1909
        %v2294 = vmax.f32 %v2293, %v1911
        %2295 = vmax.xlane.f32.xlu0 %v2294
        %v2296 = vpop.xlane.xlu0 %2295
        %v2297 = vmax.f32 %v1562, %v1564
        %v2298 = vmax.f32 %v2297, %v1915
        %v2299 = vmax.f32 %v2298, %v1917
        %2300 = vmax.xlane.f32.xlu0 %v2299
        %v2301 = vpop.xlane.xlu0 %2300
        %v2302 = vmax.f32 %v1566, %v1568
        %v2303 = vmax.f32 %v2302, %v1919
        %v2304 = vmax.f32 %v2303, %v1921
        %2305 = vmax.xlane.f32.xlu0 %v2304
        %v2306 = vpop.xlane.xlu0 %2305
        %v2307 = vmax.f32 %v1572, %v1574
        %v2308 = vmax.f32 %v2307, %v1925
        %v2309 = vmax.f32 %v2308, %v1927
        %2310 = vmax.xlane.f32.xlu0 %v2309
        %v2311 = vpop.xlane.xlu0 %2310
        %v2312 = vmax.f32 %v1576, %v1578
        %v2313 = vmax.f32 %v2312, %v1929
        %v2314 = vmax.f32 %v2313, %v1931
        %2315 = vmax.xlane.f32.xlu0 %v2314
        %v2316 = vpop.xlane.xlu0 %2315
        %v2317 = vmax.f32 %v1582, %v1584
        %v2318 = vmax.f32 %v2317, %v1935
        %v2319 = vmax.f32 %v2318, %v1937
        %2320 = vmax.xlane.f32.xlu0 %v2319
        %v2321 = vpop.xlane.xlu0 %2320
        %v2322 = vmax.f32 %v1586, %v1588
        %v2323 = vmax.f32 %v2322, %v1939
        %v2324 = vmax.f32 %v2323, %v1941
        %2325 = vmax.xlane.f32.xlu0 %v2324
        %v2326 = vpop.xlane.xlu0 %2325
        %v2327 = vmax.f32 %v1592, %v1594
        %v2328 = vmax.f32 %v2327, %v1945
        %v2329 = vmax.f32 %v2328, %v1947
        %2330 = vmax.xlane.f32.xlu0 %v2329
        %v2331 = vpop.xlane.xlu0 %2330
        %v2332 = vmax.f32 %v1596, %v1598
        %v2333 = vmax.f32 %v2332, %v1949
        %v2334 = vmax.f32 %v2333, %v1951
        %2335 = vmax.xlane.f32.xlu0 %v2334
        %v2336 = vpop.xlane.xlu0 %2335
        %v2337 = vmax.f32 %v1602, %v1604
        %v2338 = vmax.f32 %v2337, %v1955
        %v2339 = vmax.f32 %v2338, %v1957
        %2340 = vmax.xlane.f32.xlu0 %v2339
        %v2341 = vpop.xlane.xlu0 %2340
        %v2342 = vmax.f32 %v1606, %v1608
        %v2343 = vmax.f32 %v2342, %v1959
        %v2344 = vmax.f32 %v2343, %v1961
        %2345 = vmax.xlane.f32.xlu0 %v2344
        %v2346 = vpop.xlane.xlu0 %2345
        %v2347 = vmax.f32 %v1612, %v1614
        %v2348 = vmax.f32 %v2347, %v1965
        %v2349 = vmax.f32 %v2348, %v1967
        %2350 = vmax.xlane.f32.xlu0 %v2349
        %v2351 = vpop.xlane.xlu0 %2350
        %v2352 = vmax.f32 %v1616, %v1618
        %v2353 = vmax.f32 %v2352, %v1969
        %v2354 = vmax.f32 %v2353, %v1971
        %2355 = vmax.xlane.f32.xlu0 %v2354
        %v2356 = vpop.xlane.xlu0 %2355
        %v2357 = vmax.f32 %v1622, %v1624
        %v2358 = vmax.f32 %v2357, %v1975
        %v2359 = vmax.f32 %v2358, %v1977
        %2360 = vmax.xlane.f32.xlu0 %v2359
        %v2361 = vpop.xlane.xlu0 %2360
        %v2362 = vmax.f32 %v1626, %v1628
        %v2363 = vmax.f32 %v2362, %v1979
        %v2364 = vmax.f32 %v2363, %v1981
        %2365 = vmax.xlane.f32.xlu0 %v2364
        %v2366 = vpop.xlane.xlu0 %2365
        %v2367 = vmax.f32 %v1632, %v1634
        %v2368 = vmax.f32 %v2367, %v1985
        %v2369 = vmax.f32 %v2368, %v1987
        %2370 = vmax.xlane.f32.xlu0 %v2369
        %v2371 = vpop.xlane.xlu0 %2370
        %v2372 = vmax.f32 %v1636, %v1638
        %v2373 = vmax.f32 %v2372, %v1989
        %v2374 = vmax.f32 %v2373, %v1991
        %2375 = vmax.xlane.f32.xlu0 %v2374
        %v2376 = vpop.xlane.xlu0 %2375
        %v2377 = vmax.f32 %v1642, %v1644
        %v2378 = vmax.f32 %v2377, %v1995
        %v2379 = vmax.f32 %v2378, %v1997
        %2380 = vmax.xlane.f32.xlu0 %v2379
        %v2381 = vpop.xlane.xlu0 %2380
        %v2382 = vmax.f32 %v1646, %v1648
        %v2383 = vmax.f32 %v2382, %v1999
        %v2384 = vmax.f32 %v2383, %v2001
        %2385 = vmax.xlane.f32.xlu0 %v2384
        %v2386 = vpop.xlane.xlu0 %2385
        %v2387 = vmax.f32 %v1652, %v1654
        %v2388 = vmax.f32 %v2387, %v2005
        %v2389 = vmax.f32 %v2388, %v2007
        %2390 = vmax.xlane.f32.xlu0 %v2389
        %v2391 = vpop.xlane.xlu0 %2390
        %v2392 = vmax.f32 %v1656, %v1658
        %v2393 = vmax.f32 %v2392, %v2009
        %v2394 = vmax.f32 %v2393, %v2011
        %2395 = vmax.xlane.f32.xlu0 %v2394
        %v2396 = vpop.xlane.xlu0 %2395
        %v2397 = vmax.f32 %v2013, %v2081
        %v2398 = vmax.f32 %v2014, %v2086
        %v2399 = vmax.f32 %v2015, %v2091
        %v2400 = vmax.f32 %v2016, %v2096
        %v2401 = vmax.f32 %v2017, %v2101
        %v2402 = vmax.f32 %v2018, %v2106
        %v2403 = vmax.f32 %v2019, %v2111
        %v2404 = vmax.f32 %v2020, %v2116
        %v2405 = vmax.f32 %v2021, %v2121
        %v2406 = vmax.f32 %v2022, %v2126
        %v2407 = vmax.f32 %v2023, %v2131
        %v2408 = vmax.f32 %v2024, %v2136
        %v2409 = vmax.f32 %v2025, %v2141
        %v2410 = vmax.f32 %v2026, %v2146
        %v2411 = vmax.f32 %v2027, %v2151
        %v2412 = vmax.f32 %v2028, %v2156
        %v2413 = vmax.f32 %v2029, %v2161
        %v2414 = vmax.f32 %v2030, %v2166
        %v2415 = vmax.f32 %v2031, %v2171
        %v2416 = vmax.f32 %v2032, %v2176
        %v2417 = vmax.f32 %v2033, %v2181
        %v2418 = vmax.f32 %v2034, %v2186
        %v2419 = vmax.f32 %v2035, %v2191
        %v2420 = vmax.f32 %v2036, %v2196
        %v2421 = vmax.f32 %v2037, %v2201
        %v2422 = vmax.f32 %v2038, %v2206
        %v2423 = vmax.f32 %v2039, %v2211
        %v2424 = vmax.f32 %v2040, %v2216
        %v2425 = vmax.f32 %v2041, %v2221
        %v2426 = vmax.f32 %v2042, %v2226
        %v2427 = vmax.f32 %v2043, %v2231
        %v2428 = vmax.f32 %v2044, %v2236
        %v2429 = vmax.f32 %v2045, %v2241
        %v2430 = vmax.f32 %v2046, %v2246
        %v2431 = vmax.f32 %v2047, %v2251
        %v2432 = vmax.f32 %v2048, %v2256
        %v2433 = vmax.f32 %v2049, %v2261
        %v2434 = vmax.f32 %v2050, %v2266
        %v2435 = vmax.f32 %v2051, %v2271
        %v2436 = vmax.f32 %v2052, %v2276
        %v2437 = vmax.f32 %v2053, %v2281
        %v2438 = vmax.f32 %v2054, %v2286
        %v2439 = vmax.f32 %v2055, %v2291
        %v2440 = vmax.f32 %v2056, %v2296
        %v2441 = vmax.f32 %v2057, %v2301
        %v2442 = vmax.f32 %v2058, %v2306
        %v2443 = vmax.f32 %v2059, %v2311
        %v2444 = vmax.f32 %v2060, %v2316
        %v2445 = vmax.f32 %v2061, %v2321
        %v2446 = vmax.f32 %v2062, %v2326
        %v2447 = vmax.f32 %v2063, %v2331
        %v2448 = vmax.f32 %v2064, %v2336
        %v2449 = vmax.f32 %v2065, %v2341
        %v2450 = vmax.f32 %v2066, %v2346
        %v2451 = vmax.f32 %v2067, %v2351
        %v2452 = vmax.f32 %v2068, %v2356
        %v2453 = vmax.f32 %v2069, %v2361
        %v2454 = vmax.f32 %v2070, %v2366
        %v2455 = vmax.f32 %v2071, %v2371
        %v2456 = vmax.f32 %v2072, %v2376
        %v2457 = vmax.f32 %v2073, %v2381
        %v2458 = vmax.f32 %v2074, %v2386
        %v2459 = vmax.f32 %v2075, %v2391
        %v2460 = vmax.f32 %v2076, %v2396
        %v2461 = vsub.f32 %v2013, %v2397
        %v2462 = vsub.f32 %v2014, %v2398
        %v2463 = vsub.f32 %v2015, %v2399
        %v2464 = vsub.f32 %v2016, %v2400
        %v2465 = vsub.f32 %v2017, %v2401
        %v2466 = vsub.f32 %v2018, %v2402
        %v2467 = vsub.f32 %v2019, %v2403
        %v2468 = vsub.f32 %v2020, %v2404
        %v2469 = vsub.f32 %v2021, %v2405
        %v2470 = vsub.f32 %v2022, %v2406
        %v2471 = vsub.f32 %v2023, %v2407
        %v2472 = vsub.f32 %v2024, %v2408
        %v2473 = vsub.f32 %v2025, %v2409
        %v2474 = vsub.f32 %v2026, %v2410
        %v2475 = vsub.f32 %v2027, %v2411
        %v2476 = vsub.f32 %v2028, %v2412
        %v2477 = vsub.f32 %v2029, %v2413
        %v2478 = vsub.f32 %v2030, %v2414
        %v2479 = vsub.f32 %v2031, %v2415
        %v2480 = vsub.f32 %v2032, %v2416
        %v2481 = vsub.f32 %v2033, %v2417
        %v2482 = vsub.f32 %v2034, %v2418
        %v2483 = vsub.f32 %v2035, %v2419
        %v2484 = vsub.f32 %v2036, %v2420
        %v2485 = vsub.f32 %v2037, %v2421
        %v2486 = vsub.f32 %v2038, %v2422
        %v2487 = vsub.f32 %v2039, %v2423
        %v2488 = vsub.f32 %v2040, %v2424
        %v2489 = vsub.f32 %v2041, %v2425
        %v2490 = vsub.f32 %v2042, %v2426
        %v2491 = vsub.f32 %v2043, %v2427
        %v2492 = vsub.f32 %v2044, %v2428
        %v2493 = vsub.f32 %v2045, %v2429
        %v2494 = vsub.f32 %v2046, %v2430
        %v2495 = vsub.f32 %v2047, %v2431
        %v2496 = vsub.f32 %v2048, %v2432
        %v2497 = vsub.f32 %v2049, %v2433
        %v2498 = vsub.f32 %v2050, %v2434
        %v2499 = vsub.f32 %v2051, %v2435
        %v2500 = vsub.f32 %v2052, %v2436
        %v2501 = vsub.f32 %v2053, %v2437
        %v2502 = vsub.f32 %v2054, %v2438
        %v2503 = vsub.f32 %v2055, %v2439
        %v2504 = vsub.f32 %v2056, %v2440
        %v2505 = vsub.f32 %v2057, %v2441
        %v2506 = vsub.f32 %v2058, %v2442
        %v2507 = vsub.f32 %v2059, %v2443
        %v2508 = vsub.f32 %v2060, %v2444
        %v2509 = vsub.f32 %v2061, %v2445
        %v2510 = vsub.f32 %v2062, %v2446
        %v2511 = vsub.f32 %v2063, %v2447
        %v2512 = vsub.f32 %v2064, %v2448
        %v2513 = vsub.f32 %v2065, %v2449
        %v2514 = vsub.f32 %v2066, %v2450
        %v2515 = vsub.f32 %v2067, %v2451
        %v2516 = vsub.f32 %v2068, %v2452
        %v2517 = vsub.f32 %v2069, %v2453
        %v2518 = vsub.f32 %v2070, %v2454
        %v2519 = vsub.f32 %v2071, %v2455
        %v2520 = vsub.f32 %v2072, %v2456
        %v2521 = vsub.f32 %v2073, %v2457
        %v2522 = vsub.f32 %v2074, %v2458
        %v2523 = vsub.f32 %v2075, %v2459
        %v2524 = vsub.f32 %v2076, %v2460
        %v2525 = vmul.f32 %v2461, 1.442695
        %v2526 = vpow.pop %v2525
        %v2527 = vmul.f32 %v2462, 1.442695
        %v2528 = vpow.pop %v2527
        %v2529 = vmul.f32 %v2463, 1.442695
        %v2530 = vpow.pop %v2529
        %v2531 = vmul.f32 %v2464, 1.442695
        %v2532 = vpow.pop %v2531
        %v2533 = vmul.f32 %v2465, 1.442695
        %v2534 = vpow.pop %v2533
        %v2535 = vmul.f32 %v2466, 1.442695
        %v2536 = vpow.pop %v2535
        %v2537 = vmul.f32 %v2467, 1.442695
        %v2538 = vpow.pop %v2537
        %v2539 = vmul.f32 %v2468, 1.442695
        %v2540 = vpow.pop %v2539
        %v2541 = vmul.f32 %v2469, 1.442695
        %v2542 = vpow.pop %v2541
        %v2543 = vmul.f32 %v2470, 1.442695
        %v2544 = vpow.pop %v2543
        %v2545 = vmul.f32 %v2471, 1.442695
        %v2546 = vpow.pop %v2545
        %v2547 = vmul.f32 %v2472, 1.442695
        %v2548 = vpow.pop %v2547
        %v2549 = vmul.f32 %v2473, 1.442695
        %v2550 = vpow.pop %v2549
        %v2551 = vmul.f32 %v2474, 1.442695
        %v2552 = vpow.pop %v2551
        %v2553 = vmul.f32 %v2475, 1.442695
        %v2554 = vpow.pop %v2553
        %v2555 = vmul.f32 %v2476, 1.442695
        %v2556 = vpow.pop %v2555
        %v2557 = vmul.f32 %v2477, 1.442695
        %v2558 = vpow.pop %v2557
        %v2559 = vmul.f32 %v2478, 1.442695
        %v2560 = vpow.pop %v2559
        %v2561 = vmul.f32 %v2479, 1.442695
        %v2562 = vpow.pop %v2561
        %v2563 = vmul.f32 %v2480, 1.442695
        %v2564 = vpow.pop %v2563
        %v2565 = vmul.f32 %v2481, 1.442695
        %v2566 = vpow.pop %v2565
        %v2567 = vmul.f32 %v2482, 1.442695
        %v2568 = vpow.pop %v2567
        %v2569 = vmul.f32 %v2483, 1.442695
        %v2570 = vpow.pop %v2569
        %v2571 = vmul.f32 %v2484, 1.442695
        %v2572 = vpow.pop %v2571
        %v2573 = vmul.f32 %v2485, 1.442695
        %v2574 = vpow.pop %v2573
        %v2575 = vmul.f32 %v2486, 1.442695
        %v2576 = vpow.pop %v2575
        %v2577 = vmul.f32 %v2487, 1.442695
        %v2578 = vpow.pop %v2577
        %v2579 = vmul.f32 %v2488, 1.442695
        %v2580 = vpow.pop %v2579
        %v2581 = vmul.f32 %v2489, 1.442695
        %v2582 = vpow.pop %v2581
        %v2583 = vmul.f32 %v2490, 1.442695
        %v2584 = vpow.pop %v2583
        %v2585 = vmul.f32 %v2491, 1.442695
        %v2586 = vpow.pop %v2585
        %v2587 = vmul.f32 %v2492, 1.442695
        %v2588 = vpow.pop %v2587
        %v2589 = vmul.f32 %v2493, 1.442695
        %v2590 = vpow.pop %v2589
        %v2591 = vmul.f32 %v2494, 1.442695
        %v2592 = vpow.pop %v2591
        %v2593 = vmul.f32 %v2495, 1.442695
        %v2594 = vpow.pop %v2593
        %v2595 = vmul.f32 %v2496, 1.442695
        %v2596 = vpow.pop %v2595
        %v2597 = vmul.f32 %v2497, 1.442695
        %v2598 = vpow.pop %v2597
        %v2599 = vmul.f32 %v2498, 1.442695
        %v2600 = vpow.pop %v2599
        %v2601 = vmul.f32 %v2499, 1.442695
        %v2602 = vpow.pop %v2601
        %v2603 = vmul.f32 %v2500, 1.442695
        %v2604 = vpow.pop %v2603
        %v2605 = vmul.f32 %v2501, 1.442695
        %v2606 = vpow.pop %v2605
        %v2607 = vmul.f32 %v2502, 1.442695
        %v2608 = vpow.pop %v2607
        %v2609 = vmul.f32 %v2503, 1.442695
        %v2610 = vpow.pop %v2609
        %v2611 = vmul.f32 %v2504, 1.442695
        %v2612 = vpow.pop %v2611
        %v2613 = vmul.f32 %v2505, 1.442695
        %v2614 = vpow.pop %v2613
        %v2615 = vmul.f32 %v2506, 1.442695
        %v2616 = vpow.pop %v2615
        %v2617 = vmul.f32 %v2507, 1.442695
        %v2618 = vpow.pop %v2617
        %v2619 = vmul.f32 %v2508, 1.442695
        %v2620 = vpow.pop %v2619
        %v2621 = vmul.f32 %v2509, 1.442695
        %v2622 = vpow.pop %v2621
        %v2623 = vmul.f32 %v2510, 1.442695
        %v2624 = vpow.pop %v2623
        %v2625 = vmul.f32 %v2511, 1.442695
        %v2626 = vpow.pop %v2625
        %v2627 = vmul.f32 %v2512, 1.442695
        %v2628 = vpow.pop %v2627
        %v2629 = vmul.f32 %v2513, 1.442695
        %v2630 = vpow.pop %v2629
        %v2631 = vmul.f32 %v2514, 1.442695
        %v2632 = vpow.pop %v2631
        %v2633 = vmul.f32 %v2515, 1.442695
        %v2634 = vpow.pop %v2633
        %v2635 = vmul.f32 %v2516, 1.442695
        %v2636 = vpow.pop %v2635
        %v2637 = vmul.f32 %v2517, 1.442695
        %v2638 = vpow.pop %v2637
        %v2639 = vmul.f32 %v2518, 1.442695
        %v2640 = vpow.pop %v2639
        %v2641 = vmul.f32 %v2519, 1.442695
        %v2642 = vpow.pop %v2641
        %v2643 = vmul.f32 %v2520, 1.442695
        %v2644 = vpow.pop %v2643
        %v2645 = vmul.f32 %v2521, 1.442695
        %v2646 = vpow.pop %v2645
        %v2647 = vmul.f32 %v2522, 1.442695
        %v2648 = vpow.pop %v2647
        %v2649 = vmul.f32 %v2523, 1.442695
        %v2650 = vpow.pop %v2649
        %v2651 = vmul.f32 %v2524, 1.442695
        %v2652 = vpow.pop %v2651
        %v2653 = vsub.f32 %v1342, %v2397
        %v2654 = vsub.f32 %v1344, %v2397
        %v2655 = vsub.f32 %v1695, %v2397
        %v2656 = vsub.f32 %v1697, %v2397
        %v2657 = vsub.f32 %v1346, %v2398
        %v2658 = vsub.f32 %v1348, %v2398
        %v2659 = vsub.f32 %v1699, %v2398
        %v2660 = vsub.f32 %v1701, %v2398
        %v2661 = vsub.f32 %v1352, %v2399
        %v2662 = vsub.f32 %v1354, %v2399
        %v2663 = vsub.f32 %v1705, %v2399
        %v2664 = vsub.f32 %v1707, %v2399
        %v2665 = vsub.f32 %v1356, %v2400
        %v2666 = vsub.f32 %v1358, %v2400
        %v2667 = vsub.f32 %v1709, %v2400
        %v2668 = vsub.f32 %v1711, %v2400
        %v2669 = vsub.f32 %v1362, %v2401
        %v2670 = vsub.f32 %v1364, %v2401
        %v2671 = vsub.f32 %v1715, %v2401
        %v2672 = vsub.f32 %v1717, %v2401
        %v2673 = vsub.f32 %v1366, %v2402
        %v2674 = vsub.f32 %v1368, %v2402
        %v2675 = vsub.f32 %v1719, %v2402
        %v2676 = vsub.f32 %v1721, %v2402
        %v2677 = vsub.f32 %v1372, %v2403
        %v2678 = vsub.f32 %v1374, %v2403
        %v2679 = vsub.f32 %v1725, %v2403
        %v2680 = vsub.f32 %v1727, %v2403
        %v2681 = vsub.f32 %v1376, %v2404
        %v2682 = vsub.f32 %v1378, %v2404
        %v2683 = vsub.f32 %v1729, %v2404
        %v2684 = vsub.f32 %v1731, %v2404
        %v2685 = vsub.f32 %v1382, %v2405
        %v2686 = vsub.f32 %v1384, %v2405
        %v2687 = vsub.f32 %v1735, %v2405
        %v2688 = vsub.f32 %v1737, %v2405
        %v2689 = vsub.f32 %v1386, %v2406
        %v2690 = vsub.f32 %v1388, %v2406
        %v2691 = vsub.f32 %v1739, %v2406
        %v2692 = vsub.f32 %v1741, %v2406
        %v2693 = vsub.f32 %v1392, %v2407
        %v2694 = vsub.f32 %v1394, %v2407
        %v2695 = vsub.f32 %v1745, %v2407
        %v2696 = vsub.f32 %v1747, %v2407
        %v2697 = vsub.f32 %v1396, %v2408
        %v2698 = vsub.f32 %v1398, %v2408
        %v2699 = vsub.f32 %v1749, %v2408
        %v2700 = vsub.f32 %v1751, %v2408
        %v2701 = vsub.f32 %v1402, %v2409
        %v2702 = vsub.f32 %v1404, %v2409
        %v2703 = vsub.f32 %v1755, %v2409
        %v2704 = vsub.f32 %v1757, %v2409
        %v2705 = vsub.f32 %v1406, %v2410
        %v2706 = vsub.f32 %v1408, %v2410
        %v2707 = vsub.f32 %v1759, %v2410
        %v2708 = vsub.f32 %v1761, %v2410
        %v2709 = vsub.f32 %v1412, %v2411
        %v2710 = vsub.f32 %v1414, %v2411
        %v2711 = vsub.f32 %v1765, %v2411
        %v2712 = vsub.f32 %v1767, %v2411
        %v2713 = vsub.f32 %v1416, %v2412
        %v2714 = vsub.f32 %v1418, %v2412
        %v2715 = vsub.f32 %v1769, %v2412
        %v2716 = vsub.f32 %v1771, %v2412
        %v2717 = vsub.f32 %v1422, %v2413
        %v2718 = vsub.f32 %v1424, %v2413
        %v2719 = vsub.f32 %v1775, %v2413
        %v2720 = vsub.f32 %v1777, %v2413
        %v2721 = vsub.f32 %v1426, %v2414
        %v2722 = vsub.f32 %v1428, %v2414
        %v2723 = vsub.f32 %v1779, %v2414
        %v2724 = vsub.f32 %v1781, %v2414
        %v2725 = vsub.f32 %v1432, %v2415
        %v2726 = vsub.f32 %v1434, %v2415
        %v2727 = vsub.f32 %v1785, %v2415
        %v2728 = vsub.f32 %v1787, %v2415
        %v2729 = vsub.f32 %v1436, %v2416
        %v2730 = vsub.f32 %v1438, %v2416
        %v2731 = vsub.f32 %v1789, %v2416
        %v2732 = vsub.f32 %v1791, %v2416
        %v2733 = vsub.f32 %v1442, %v2417
        %v2734 = vsub.f32 %v1444, %v2417
        %v2735 = vsub.f32 %v1795, %v2417
        %v2736 = vsub.f32 %v1797, %v2417
        %v2737 = vsub.f32 %v1446, %v2418
        %v2738 = vsub.f32 %v1448, %v2418
        %v2739 = vsub.f32 %v1799, %v2418
        %v2740 = vsub.f32 %v1801, %v2418
        %v2741 = vsub.f32 %v1452, %v2419
        %v2742 = vsub.f32 %v1454, %v2419
        %v2743 = vsub.f32 %v1805, %v2419
        %v2744 = vsub.f32 %v1807, %v2419
        %v2745 = vsub.f32 %v1456, %v2420
        %v2746 = vsub.f32 %v1458, %v2420
        %v2747 = vsub.f32 %v1809, %v2420
        %v2748 = vsub.f32 %v1811, %v2420
        %v2749 = vsub.f32 %v1462, %v2421
        %v2750 = vsub.f32 %v1464, %v2421
        %v2751 = vsub.f32 %v1815, %v2421
        %v2752 = vsub.f32 %v1817, %v2421
        %v2753 = vsub.f32 %v1466, %v2422
        %v2754 = vsub.f32 %v1468, %v2422
        %v2755 = vsub.f32 %v1819, %v2422
        %v2756 = vsub.f32 %v1821, %v2422
        %v2757 = vsub.f32 %v1472, %v2423
        %v2758 = vsub.f32 %v1474, %v2423
        %v2759 = vsub.f32 %v1825, %v2423
        %v2760 = vsub.f32 %v1827, %v2423
        %v2761 = vsub.f32 %v1476, %v2424
        %v2762 = vsub.f32 %v1478, %v2424
        %v2763 = vsub.f32 %v1829, %v2424
        %v2764 = vsub.f32 %v1831, %v2424
        %v2765 = vsub.f32 %v1482, %v2425
        %v2766 = vsub.f32 %v1484, %v2425
        %v2767 = vsub.f32 %v1835, %v2425
        %v2768 = vsub.f32 %v1837, %v2425
        %v2769 = vsub.f32 %v1486, %v2426
        %v2770 = vsub.f32 %v1488, %v2426
        %v2771 = vsub.f32 %v1839, %v2426
        %v2772 = vsub.f32 %v1841, %v2426
        %v2773 = vsub.f32 %v1492, %v2427
        %v2774 = vsub.f32 %v1494, %v2427
        %v2775 = vsub.f32 %v1845, %v2427
        %v2776 = vsub.f32 %v1847, %v2427
        %v2777 = vsub.f32 %v1496, %v2428
        %v2778 = vsub.f32 %v1498, %v2428
        %v2779 = vsub.f32 %v1849, %v2428
        %v2780 = vsub.f32 %v1851, %v2428
        %v2781 = vsub.f32 %v1502, %v2429
        %v2782 = vsub.f32 %v1504, %v2429
        %v2783 = vsub.f32 %v1855, %v2429
        %v2784 = vsub.f32 %v1857, %v2429
        %v2785 = vsub.f32 %v1506, %v2430
        %v2786 = vsub.f32 %v1508, %v2430
        %v2787 = vsub.f32 %v1859, %v2430
        %v2788 = vsub.f32 %v1861, %v2430
        %v2789 = vsub.f32 %v1512, %v2431
        %v2790 = vsub.f32 %v1514, %v2431
        %v2791 = vsub.f32 %v1865, %v2431
        %v2792 = vsub.f32 %v1867, %v2431
        %v2793 = vsub.f32 %v1516, %v2432
        %v2794 = vsub.f32 %v1518, %v2432
        %v2795 = vsub.f32 %v1869, %v2432
        %v2796 = vsub.f32 %v1871, %v2432
        %v2797 = vsub.f32 %v1522, %v2433
        %v2798 = vsub.f32 %v1524, %v2433
        %v2799 = vsub.f32 %v1875, %v2433
        %v2800 = vsub.f32 %v1877, %v2433
        %v2801 = vsub.f32 %v1526, %v2434
        %v2802 = vsub.f32 %v1528, %v2434
        %v2803 = vsub.f32 %v1879, %v2434
        %v2804 = vsub.f32 %v1881, %v2434
        %v2805 = vsub.f32 %v1532, %v2435
        %v2806 = vsub.f32 %v1534, %v2435
        %v2807 = vsub.f32 %v1885, %v2435
        %v2808 = vsub.f32 %v1887, %v2435
        %v2809 = vsub.f32 %v1536, %v2436
        %v2810 = vsub.f32 %v1538, %v2436
        %v2811 = vsub.f32 %v1889, %v2436
        %v2812 = vsub.f32 %v1891, %v2436
        %v2813 = vsub.f32 %v1542, %v2437
        %v2814 = vsub.f32 %v1544, %v2437
        %v2815 = vsub.f32 %v1895, %v2437
        %v2816 = vsub.f32 %v1897, %v2437
        %v2817 = vsub.f32 %v1546, %v2438
        %v2818 = vsub.f32 %v1548, %v2438
        %v2819 = vsub.f32 %v1899, %v2438
        %v2820 = vsub.f32 %v1901, %v2438
        %v2821 = vsub.f32 %v1552, %v2439
        %v2822 = vsub.f32 %v1554, %v2439
        %v2823 = vsub.f32 %v1905, %v2439
        %v2824 = vsub.f32 %v1907, %v2439
        %v2825 = vsub.f32 %v1556, %v2440
        %v2826 = vsub.f32 %v1558, %v2440
        %v2827 = vsub.f32 %v1909, %v2440
        %v2828 = vsub.f32 %v1911, %v2440
        %v2829 = vsub.f32 %v1562, %v2441
        %v2830 = vsub.f32 %v1564, %v2441
        %v2831 = vsub.f32 %v1915, %v2441
        %v2832 = vsub.f32 %v1917, %v2441
        %v2833 = vsub.f32 %v1566, %v2442
        %v2834 = vsub.f32 %v1568, %v2442
        %v2835 = vsub.f32 %v1919, %v2442
        %v2836 = vsub.f32 %v1921, %v2442
        %v2837 = vsub.f32 %v1572, %v2443
        %v2838 = vsub.f32 %v1574, %v2443
        %v2839 = vsub.f32 %v1925, %v2443
        %v2840 = vsub.f32 %v1927, %v2443
        %v2841 = vsub.f32 %v1576, %v2444
        %v2842 = vsub.f32 %v1578, %v2444
        %v2843 = vsub.f32 %v1929, %v2444
        %v2844 = vsub.f32 %v1931, %v2444
        %v2845 = vsub.f32 %v1582, %v2445
        %v2846 = vsub.f32 %v1584, %v2445
        %v2847 = vsub.f32 %v1935, %v2445
        %v2848 = vsub.f32 %v1937, %v2445
        %v2849 = vsub.f32 %v1586, %v2446
        %v2850 = vsub.f32 %v1588, %v2446
        %v2851 = vsub.f32 %v1939, %v2446
        %v2852 = vsub.f32 %v1941, %v2446
        %v2853 = vsub.f32 %v1592, %v2447
        %v2854 = vsub.f32 %v1594, %v2447
        %v2855 = vsub.f32 %v1945, %v2447
        %v2856 = vsub.f32 %v1947, %v2447
        %v2857 = vsub.f32 %v1596, %v2448
        %v2858 = vsub.f32 %v1598, %v2448
        %v2859 = vsub.f32 %v1949, %v2448
        %v2860 = vsub.f32 %v1951, %v2448
        %v2861 = vsub.f32 %v1602, %v2449
        %v2862 = vsub.f32 %v1604, %v2449
        %v2863 = vsub.f32 %v1955, %v2449
        %v2864 = vsub.f32 %v1957, %v2449
        %v2865 = vsub.f32 %v1606, %v2450
        %v2866 = vsub.f32 %v1608, %v2450
        %v2867 = vsub.f32 %v1959, %v2450
        %v2868 = vsub.f32 %v1961, %v2450
        %v2869 = vsub.f32 %v1612, %v2451
        %v2870 = vsub.f32 %v1614, %v2451
        %v2871 = vsub.f32 %v1965, %v2451
        %v2872 = vsub.f32 %v1967, %v2451
        %v2873 = vsub.f32 %v1616, %v2452
        %v2874 = vsub.f32 %v1618, %v2452
        %v2875 = vsub.f32 %v1969, %v2452
        %v2876 = vsub.f32 %v1971, %v2452
        %v2877 = vsub.f32 %v1622, %v2453
        %v2878 = vsub.f32 %v1624, %v2453
        %v2879 = vsub.f32 %v1975, %v2453
        %v2880 = vsub.f32 %v1977, %v2453
        %v2881 = vsub.f32 %v1626, %v2454
        %v2882 = vsub.f32 %v1628, %v2454
        %v2883 = vsub.f32 %v1979, %v2454
        %v2884 = vsub.f32 %v1981, %v2454
        %v2885 = vsub.f32 %v1632, %v2455
        %v2886 = vsub.f32 %v1634, %v2455
        %v2887 = vsub.f32 %v1985, %v2455
        %v2888 = vsub.f32 %v1987, %v2455
        %v2889 = vsub.f32 %v1636, %v2456
        %v2890 = vsub.f32 %v1638, %v2456
        %v2891 = vsub.f32 %v1989, %v2456
        %v2892 = vsub.f32 %v1991, %v2456
        %v2893 = vsub.f32 %v1642, %v2457
        %v2894 = vsub.f32 %v1644, %v2457
        %v2895 = vsub.f32 %v1995, %v2457
        %v2896 = vsub.f32 %v1997, %v2457
        %v2897 = vsub.f32 %v1646, %v2458
        %v2898 = vsub.f32 %v1648, %v2458
        %v2899 = vsub.f32 %v1999, %v2458
        %v2900 = vsub.f32 %v2001, %v2458
        %v2901 = vsub.f32 %v1652, %v2459
        %v2902 = vsub.f32 %v1654, %v2459
        %v2903 = vsub.f32 %v2005, %v2459
        %v2904 = vsub.f32 %v2007, %v2459
        %v2905 = vsub.f32 %v1656, %v2460
        %v2906 = vsub.f32 %v1658, %v2460
        %v2907 = vsub.f32 %v2009, %v2460
        %v2908 = vsub.f32 %v2011, %v2460
        %v2909 = vmul.f32 %v2653, 1.442695
        %v2910 = vpow.pop %v2909
        %v2911 = vmul.f32 %v2654, 1.442695
        %v2912 = vpow.pop %v2911
        %v2913 = vmul.f32 %v2655, 1.442695
        %v2914 = vpow.pop %v2913
        %v2915 = vmul.f32 %v2656, 1.442695
        %v2916 = vpow.pop %v2915
        %v2917 = vmul.f32 %v2657, 1.442695
        %v2918 = vpow.pop %v2917
        %v2919 = vmul.f32 %v2658, 1.442695
        %v2920 = vpow.pop %v2919
        %v2921 = vmul.f32 %v2659, 1.442695
        %v2922 = vpow.pop %v2921
        %v2923 = vmul.f32 %v2660, 1.442695
        %v2924 = vpow.pop %v2923
        %v2925 = vmul.f32 %v2661, 1.442695
        %v2926 = vpow.pop %v2925
        %v2927 = vmul.f32 %v2662, 1.442695
        %v2928 = vpow.pop %v2927
        %v2929 = vmul.f32 %v2663, 1.442695
        %v2930 = vpow.pop %v2929
        %v2931 = vmul.f32 %v2664, 1.442695
        %v2932 = vpow.pop %v2931
        %v2933 = vmul.f32 %v2665, 1.442695
        %v2934 = vpow.pop %v2933
        %v2935 = vmul.f32 %v2666, 1.442695
        %v2936 = vpow.pop %v2935
        %v2937 = vmul.f32 %v2667, 1.442695
        %v2938 = vpow.pop %v2937
        %v2939 = vmul.f32 %v2668, 1.442695
        %v2940 = vpow.pop %v2939
        %v2941 = vmul.f32 %v2669, 1.442695
        %v2942 = vpow.pop %v2941
        %v2943 = vmul.f32 %v2670, 1.442695
        %v2944 = vpow.pop %v2943
        %v2945 = vmul.f32 %v2671, 1.442695
        %v2946 = vpow.pop %v2945
        %v2947 = vmul.f32 %v2672, 1.442695
        %v2948 = vpow.pop %v2947
        %v2949 = vmul.f32 %v2673, 1.442695
        %v2950 = vpow.pop %v2949
        %v2951 = vmul.f32 %v2674, 1.442695
        %v2952 = vpow.pop %v2951
        %v2953 = vmul.f32 %v2675, 1.442695
        %v2954 = vpow.pop %v2953
        %v2955 = vmul.f32 %v2676, 1.442695
        %v2956 = vpow.pop %v2955
        %v2957 = vmul.f32 %v2677, 1.442695
        %v2958 = vpow.pop %v2957
        %v2959 = vmul.f32 %v2678, 1.442695
        %v2960 = vpow.pop %v2959
        %v2961 = vmul.f32 %v2679, 1.442695
        %v2962 = vpow.pop %v2961
        %v2963 = vmul.f32 %v2680, 1.442695
        %v2964 = vpow.pop %v2963
        %v2965 = vmul.f32 %v2681, 1.442695
        %v2966 = vpow.pop %v2965
        %v2967 = vmul.f32 %v2682, 1.442695
        %v2968 = vpow.pop %v2967
        %v2969 = vmul.f32 %v2683, 1.442695
        %v2970 = vpow.pop %v2969
        %v2971 = vmul.f32 %v2684, 1.442695
        %v2972 = vpow.pop %v2971
        %v2973 = vmul.f32 %v2685, 1.442695
        %v2974 = vpow.pop %v2973
        %v2975 = vmul.f32 %v2686, 1.442695
        %v2976 = vpow.pop %v2975
        %v2977 = vmul.f32 %v2687, 1.442695
        %v2978 = vpow.pop %v2977
        %v2979 = vmul.f32 %v2688, 1.442695
        %v2980 = vpow.pop %v2979
        %v2981 = vmul.f32 %v2689, 1.442695
        %v2982 = vpow.pop %v2981
        %v2983 = vmul.f32 %v2690, 1.442695
        %v2984 = vpow.pop %v2983
        %v2985 = vmul.f32 %v2691, 1.442695
        %v2986 = vpow.pop %v2985
        %v2987 = vmul.f32 %v2692, 1.442695
        %v2988 = vpow.pop %v2987
        %v2989 = vmul.f32 %v2693, 1.442695
        %v2990 = vpow.pop %v2989
        %v2991 = vmul.f32 %v2694, 1.442695
        %v2992 = vpow.pop %v2991
        %v2993 = vmul.f32 %v2695, 1.442695
        %v2994 = vpow.pop %v2993
        %v2995 = vmul.f32 %v2696, 1.442695
        %v2996 = vpow.pop %v2995
        %v2997 = vmul.f32 %v2697, 1.442695
        %v2998 = vpow.pop %v2997
        %v2999 = vmul.f32 %v2698, 1.442695
        %v3000 = vpow.pop %v2999
        %v3001 = vmul.f32 %v2699, 1.442695
        %v3002 = vpow.pop %v3001
        %v3003 = vmul.f32 %v2700, 1.442695
        %v3004 = vpow.pop %v3003
        %v3005 = vmul.f32 %v2701, 1.442695
        %v3006 = vpow.pop %v3005
        %v3007 = vmul.f32 %v2702, 1.442695
        %v3008 = vpow.pop %v3007
        %v3009 = vmul.f32 %v2703, 1.442695
        %v3010 = vpow.pop %v3009
        %v3011 = vmul.f32 %v2704, 1.442695
        %v3012 = vpow.pop %v3011
        %v3013 = vmul.f32 %v2705, 1.442695
        %v3014 = vpow.pop %v3013
        %v3015 = vmul.f32 %v2706, 1.442695
        %v3016 = vpow.pop %v3015
        %v3017 = vmul.f32 %v2707, 1.442695
        %v3018 = vpow.pop %v3017
        %v3019 = vmul.f32 %v2708, 1.442695
        %v3020 = vpow.pop %v3019
        %v3021 = vmul.f32 %v2709, 1.442695
        %v3022 = vpow.pop %v3021
        %v3023 = vmul.f32 %v2710, 1.442695
        %v3024 = vpow.pop %v3023
        %v3025 = vmul.f32 %v2711, 1.442695
        %v3026 = vpow.pop %v3025
        %v3027 = vmul.f32 %v2712, 1.442695
        %v3028 = vpow.pop %v3027
        %v3029 = vmul.f32 %v2713, 1.442695
        %v3030 = vpow.pop %v3029
        %v3031 = vmul.f32 %v2714, 1.442695
        %v3032 = vpow.pop %v3031
        %v3033 = vmul.f32 %v2715, 1.442695
        %v3034 = vpow.pop %v3033
        %v3035 = vmul.f32 %v2716, 1.442695
        %v3036 = vpow.pop %v3035
        %v3037 = vmul.f32 %v2717, 1.442695
        %v3038 = vpow.pop %v3037
        %v3039 = vmul.f32 %v2718, 1.442695
        %v3040 = vpow.pop %v3039
        %v3041 = vmul.f32 %v2719, 1.442695
        %v3042 = vpow.pop %v3041
        %v3043 = vmul.f32 %v2720, 1.442695
        %v3044 = vpow.pop %v3043
        %v3045 = vmul.f32 %v2721, 1.442695
        %v3046 = vpow.pop %v3045
        %v3047 = vmul.f32 %v2722, 1.442695
        %v3048 = vpow.pop %v3047
        %v3049 = vmul.f32 %v2723, 1.442695
        %v3050 = vpow.pop %v3049
        %v3051 = vmul.f32 %v2724, 1.442695
        %v3052 = vpow.pop %v3051
        %v3053 = vmul.f32 %v2725, 1.442695
        %v3054 = vpow.pop %v3053
        %v3055 = vmul.f32 %v2726, 1.442695
        %v3056 = vpow.pop %v3055
        %v3057 = vmul.f32 %v2727, 1.442695
        %v3058 = vpow.pop %v3057
        %v3059 = vmul.f32 %v2728, 1.442695
        %v3060 = vpow.pop %v3059
        %v3061 = vmul.f32 %v2729, 1.442695
        %v3062 = vpow.pop %v3061
        %v3063 = vmul.f32 %v2730, 1.442695
        %v3064 = vpow.pop %v3063
        %v3065 = vmul.f32 %v2731, 1.442695
        %v3066 = vpow.pop %v3065
        %v3067 = vmul.f32 %v2732, 1.442695
        %v3068 = vpow.pop %v3067
        %v3069 = vmul.f32 %v2733, 1.442695
        %v3070 = vpow.pop %v3069
        %v3071 = vmul.f32 %v2734, 1.442695
        %v3072 = vpow.pop %v3071
        %v3073 = vmul.f32 %v2735, 1.442695
        %v3074 = vpow.pop %v3073
        %v3075 = vmul.f32 %v2736, 1.442695
        %v3076 = vpow.pop %v3075
        %v3077 = vmul.f32 %v2737, 1.442695
        %v3078 = vpow.pop %v3077
        %v3079 = vmul.f32 %v2738, 1.442695
        %v3080 = vpow.pop %v3079
        %v3081 = vmul.f32 %v2739, 1.442695
        %v3082 = vpow.pop %v3081
        %v3083 = vmul.f32 %v2740, 1.442695
        %v3084 = vpow.pop %v3083
        %v3085 = vmul.f32 %v2741, 1.442695
        %v3086 = vpow.pop %v3085
        %v3087 = vmul.f32 %v2742, 1.442695
        %v3088 = vpow.pop %v3087
        %v3089 = vmul.f32 %v2743, 1.442695
        %v3090 = vpow.pop %v3089
        %v3091 = vmul.f32 %v2744, 1.442695
        %v3092 = vpow.pop %v3091
        %v3093 = vmul.f32 %v2745, 1.442695
        %v3094 = vpow.pop %v3093
        %v3095 = vmul.f32 %v2746, 1.442695
        %v3096 = vpow.pop %v3095
        %v3097 = vmul.f32 %v2747, 1.442695
        %v3098 = vpow.pop %v3097
        %v3099 = vmul.f32 %v2748, 1.442695
        %v3100 = vpow.pop %v3099
        %v3101 = vmul.f32 %v2749, 1.442695
        %v3102 = vpow.pop %v3101
        %v3103 = vmul.f32 %v2750, 1.442695
        %v3104 = vpow.pop %v3103
        %v3105 = vmul.f32 %v2751, 1.442695
        %v3106 = vpow.pop %v3105
        %v3107 = vmul.f32 %v2752, 1.442695
        %v3108 = vpow.pop %v3107
        %v3109 = vmul.f32 %v2753, 1.442695
        %v3110 = vpow.pop %v3109
        %v3111 = vmul.f32 %v2754, 1.442695
        %v3112 = vpow.pop %v3111
        %v3113 = vmul.f32 %v2755, 1.442695
        %v3114 = vpow.pop %v3113
        %v3115 = vmul.f32 %v2756, 1.442695
        %v3116 = vpow.pop %v3115
        %v3117 = vmul.f32 %v2757, 1.442695
        %v3118 = vpow.pop %v3117
        %v3119 = vmul.f32 %v2758, 1.442695
        %v3120 = vpow.pop %v3119
        %v3121 = vmul.f32 %v2759, 1.442695
        %v3122 = vpow.pop %v3121
        %v3123 = vmul.f32 %v2760, 1.442695
        %v3124 = vpow.pop %v3123
        %v3125 = vmul.f32 %v2761, 1.442695
        %v3126 = vpow.pop %v3125
        %v3127 = vmul.f32 %v2762, 1.442695
        %v3128 = vpow.pop %v3127
        %v3129 = vmul.f32 %v2763, 1.442695
        %v3130 = vpow.pop %v3129
        %v3131 = vmul.f32 %v2764, 1.442695
        %v3132 = vpow.pop %v3131
        %v3133 = vmul.f32 %v2765, 1.442695
        %v3134 = vpow.pop %v3133
        %v3135 = vmul.f32 %v2766, 1.442695
        %v3136 = vpow.pop %v3135
        %v3137 = vmul.f32 %v2767, 1.442695
        %v3138 = vpow.pop %v3137
        %v3139 = vmul.f32 %v2768, 1.442695
        %v3140 = vpow.pop %v3139
        %v3141 = vmul.f32 %v2769, 1.442695
        %v3142 = vpow.pop %v3141
        %v3143 = vmul.f32 %v2770, 1.442695
        %v3144 = vpow.pop %v3143
        %v3145 = vmul.f32 %v2771, 1.442695
        %v3146 = vpow.pop %v3145
        %v3147 = vmul.f32 %v2772, 1.442695
        %v3148 = vpow.pop %v3147
        %v3149 = vmul.f32 %v2773, 1.442695
        %v3150 = vpow.pop %v3149
        %v3151 = vmul.f32 %v2774, 1.442695
        %v3152 = vpow.pop %v3151
        %v3153 = vmul.f32 %v2775, 1.442695
        %v3154 = vpow.pop %v3153
        %v3155 = vmul.f32 %v2776, 1.442695
        %v3156 = vpow.pop %v3155
        %v3157 = vmul.f32 %v2777, 1.442695
        %v3158 = vpow.pop %v3157
        %v3159 = vmul.f32 %v2778, 1.442695
        %v3160 = vpow.pop %v3159
        %v3161 = vmul.f32 %v2779, 1.442695
        %v3162 = vpow.pop %v3161
        %v3163 = vmul.f32 %v2780, 1.442695
        %v3164 = vpow.pop %v3163
        %v3165 = vmul.f32 %v2781, 1.442695
        %v3166 = vpow.pop %v3165
        %v3167 = vmul.f32 %v2782, 1.442695
        %v3168 = vpow.pop %v3167
        %v3169 = vmul.f32 %v2783, 1.442695
        %v3170 = vpow.pop %v3169
        %v3171 = vmul.f32 %v2784, 1.442695
        %v3172 = vpow.pop %v3171
        %v3173 = vmul.f32 %v2785, 1.442695
        %v3174 = vpow.pop %v3173
        %v3175 = vmul.f32 %v2786, 1.442695
        %v3176 = vpow.pop %v3175
        %v3177 = vmul.f32 %v2787, 1.442695
        %v3178 = vpow.pop %v3177
        %v3179 = vmul.f32 %v2788, 1.442695
        %v3180 = vpow.pop %v3179
        %v3181 = vmul.f32 %v2789, 1.442695
        %v3182 = vpow.pop %v3181
        %v3183 = vmul.f32 %v2790, 1.442695
        %v3184 = vpow.pop %v3183
        %v3185 = vmul.f32 %v2791, 1.442695
        %v3186 = vpow.pop %v3185
        %v3187 = vmul.f32 %v2792, 1.442695
        %v3188 = vpow.pop %v3187
        %v3189 = vmul.f32 %v2793, 1.442695
        %v3190 = vpow.pop %v3189
        %v3191 = vmul.f32 %v2794, 1.442695
        %v3192 = vpow.pop %v3191
        %v3193 = vmul.f32 %v2795, 1.442695
        %v3194 = vpow.pop %v3193
        %v3195 = vmul.f32 %v2796, 1.442695
        %v3196 = vpow.pop %v3195
        %v3197 = vmul.f32 %v2797, 1.442695
        %v3198 = vpow.pop %v3197
        %v3199 = vmul.f32 %v2798, 1.442695
        %v3200 = vpow.pop %v3199
        %v3201 = vmul.f32 %v2799, 1.442695
        %v3202 = vpow.pop %v3201
        %v3203 = vmul.f32 %v2800, 1.442695
        %v3204 = vpow.pop %v3203
        %v3205 = vmul.f32 %v2801, 1.442695
        %v3206 = vpow.pop %v3205
        %v3207 = vmul.f32 %v2802, 1.442695
        %v3208 = vpow.pop %v3207
        %v3209 = vmul.f32 %v2803, 1.442695
        %v3210 = vpow.pop %v3209
        %v3211 = vmul.f32 %v2804, 1.442695
        %v3212 = vpow.pop %v3211
        %v3213 = vmul.f32 %v2805, 1.442695
        %v3214 = vpow.pop %v3213
        %v3215 = vmul.f32 %v2806, 1.442695
        %v3216 = vpow.pop %v3215
        %v3217 = vmul.f32 %v2807, 1.442695
        %v3218 = vpow.pop %v3217
        %v3219 = vmul.f32 %v2808, 1.442695
        %v3220 = vpow.pop %v3219
        %v3221 = vmul.f32 %v2809, 1.442695
        %v3222 = vpow.pop %v3221
        %v3223 = vmul.f32 %v2810, 1.442695
        %v3224 = vpow.pop %v3223
        %v3225 = vmul.f32 %v2811, 1.442695
        %v3226 = vpow.pop %v3225
        %v3227 = vmul.f32 %v2812, 1.442695
        %v3228 = vpow.pop %v3227
        %v3229 = vmul.f32 %v2813, 1.442695
        %v3230 = vpow.pop %v3229
        %v3231 = vmul.f32 %v2814, 1.442695
        %v3232 = vpow.pop %v3231
        %v3233 = vmul.f32 %v2815, 1.442695
        %v3234 = vpow.pop %v3233
        %v3235 = vmul.f32 %v2816, 1.442695
        %v3236 = vpow.pop %v3235
        %v3237 = vmul.f32 %v2817, 1.442695
        %v3238 = vpow.pop %v3237
        %v3239 = vmul.f32 %v2818, 1.442695
        %v3240 = vpow.pop %v3239
        %v3241 = vmul.f32 %v2819, 1.442695
        %v3242 = vpow.pop %v3241
        %v3243 = vmul.f32 %v2820, 1.442695
        %v3244 = vpow.pop %v3243
        %v3245 = vmul.f32 %v2821, 1.442695
        %v3246 = vpow.pop %v3245
        %v3247 = vmul.f32 %v2822, 1.442695
        %v3248 = vpow.pop %v3247
        %v3249 = vmul.f32 %v2823, 1.442695
        %v3250 = vpow.pop %v3249
        %v3251 = vmul.f32 %v2824, 1.442695
        %v3252 = vpow.pop %v3251
        %v3253 = vmul.f32 %v2825, 1.442695
        %v3254 = vpow.pop %v3253
        %v3255 = vmul.f32 %v2826, 1.442695
        %v3256 = vpow.pop %v3255
        %v3257 = vmul.f32 %v2827, 1.442695
        %v3258 = vpow.pop %v3257
        %v3259 = vmul.f32 %v2828, 1.442695
        %v3260 = vpow.pop %v3259
        %v3261 = vmul.f32 %v2829, 1.442695
        %v3262 = vpow.pop %v3261
        %v3263 = vmul.f32 %v2830, 1.442695
        %v3264 = vpow.pop %v3263
        %v3265 = vmul.f32 %v2831, 1.442695
        %v3266 = vpow.pop %v3265
        %v3267 = vmul.f32 %v2832, 1.442695
        %v3268 = vpow.pop %v3267
        %v3269 = vmul.f32 %v2833, 1.442695
        %v3270 = vpow.pop %v3269
        %v3271 = vmul.f32 %v2834, 1.442695
        %v3272 = vpow.pop %v3271
        %v3273 = vmul.f32 %v2835, 1.442695
        %v3274 = vpow.pop %v3273
        %v3275 = vmul.f32 %v2836, 1.442695
        %v3276 = vpow.pop %v3275
        %v3277 = vmul.f32 %v2837, 1.442695
        %v3278 = vpow.pop %v3277
        %v3279 = vmul.f32 %v2838, 1.442695
        %v3280 = vpow.pop %v3279
        %v3281 = vmul.f32 %v2839, 1.442695
        %v3282 = vpow.pop %v3281
        %v3283 = vmul.f32 %v2840, 1.442695
        %v3284 = vpow.pop %v3283
        %v3285 = vmul.f32 %v2841, 1.442695
        %v3286 = vpow.pop %v3285
        %v3287 = vmul.f32 %v2842, 1.442695
        %v3288 = vpow.pop %v3287
        %v3289 = vmul.f32 %v2843, 1.442695
        %v3290 = vpow.pop %v3289
        %v3291 = vmul.f32 %v2844, 1.442695
        %v3292 = vpow.pop %v3291
        %v3293 = vmul.f32 %v2845, 1.442695
        %v3294 = vpow.pop %v3293
        %v3295 = vmul.f32 %v2846, 1.442695
        %v3296 = vpow.pop %v3295
        %v3297 = vmul.f32 %v2847, 1.442695
        %v3298 = vpow.pop %v3297
        %v3299 = vmul.f32 %v2848, 1.442695
        %v3300 = vpow.pop %v3299
        %v3301 = vmul.f32 %v2849, 1.442695
        %v3302 = vpow.pop %v3301
        %v3303 = vmul.f32 %v2850, 1.442695
        %v3304 = vpow.pop %v3303
        %v3305 = vmul.f32 %v2851, 1.442695
        %v3306 = vpow.pop %v3305
        %v3307 = vmul.f32 %v2852, 1.442695
        %v3308 = vpow.pop %v3307
        %v3309 = vmul.f32 %v2853, 1.442695
        %v3310 = vpow.pop %v3309
        %v3311 = vmul.f32 %v2854, 1.442695
        %v3312 = vpow.pop %v3311
        %v3313 = vmul.f32 %v2855, 1.442695
        %v3314 = vpow.pop %v3313
        %v3315 = vmul.f32 %v2856, 1.442695
        %v3316 = vpow.pop %v3315
        %v3317 = vmul.f32 %v2857, 1.442695
        %v3318 = vpow.pop %v3317
        %v3319 = vmul.f32 %v2858, 1.442695
        %v3320 = vpow.pop %v3319
        %v3321 = vmul.f32 %v2859, 1.442695
        %v3322 = vpow.pop %v3321
        %v3323 = vmul.f32 %v2860, 1.442695
        %v3324 = vpow.pop %v3323
        %v3325 = vmul.f32 %v2861, 1.442695
        %v3326 = vpow.pop %v3325
        %v3327 = vmul.f32 %v2862, 1.442695
        %v3328 = vpow.pop %v3327
        %v3329 = vmul.f32 %v2863, 1.442695
        %v3330 = vpow.pop %v3329
        %v3331 = vmul.f32 %v2864, 1.442695
        %v3332 = vpow.pop %v3331
        %v3333 = vmul.f32 %v2865, 1.442695
        %v3334 = vpow.pop %v3333
        %v3335 = vmul.f32 %v2866, 1.442695
        %v3336 = vpow.pop %v3335
        %v3337 = vmul.f32 %v2867, 1.442695
        %v3338 = vpow.pop %v3337
        %v3339 = vmul.f32 %v2868, 1.442695
        %v3340 = vpow.pop %v3339
        %v3341 = vmul.f32 %v2869, 1.442695
        %v3342 = vpow.pop %v3341
        %v3343 = vmul.f32 %v2870, 1.442695
        %v3344 = vpow.pop %v3343
        %v3345 = vmul.f32 %v2871, 1.442695
        %v3346 = vpow.pop %v3345
        %v3347 = vmul.f32 %v2872, 1.442695
        %v3348 = vpow.pop %v3347
        %v3349 = vmul.f32 %v2873, 1.442695
        %v3350 = vpow.pop %v3349
        %v3351 = vmul.f32 %v2874, 1.442695
        %v3352 = vpow.pop %v3351
        %v3353 = vmul.f32 %v2875, 1.442695
        %v3354 = vpow.pop %v3353
        %v3355 = vmul.f32 %v2876, 1.442695
        %v3356 = vpow.pop %v3355
        %v3357 = vmul.f32 %v2877, 1.442695
        %v3358 = vpow.pop %v3357
        %v3359 = vmul.f32 %v2878, 1.442695
        %v3360 = vpow.pop %v3359
        %v3361 = vmul.f32 %v2879, 1.442695
        %v3362 = vpow.pop %v3361
        %v3363 = vmul.f32 %v2880, 1.442695
        %v3364 = vpow.pop %v3363
        %v3365 = vmul.f32 %v2881, 1.442695
        %v3366 = vpow.pop %v3365
        %v3367 = vmul.f32 %v2882, 1.442695
        %v3368 = vpow.pop %v3367
        %v3369 = vmul.f32 %v2883, 1.442695
        %v3370 = vpow.pop %v3369
        %v3371 = vmul.f32 %v2884, 1.442695
        %v3372 = vpow.pop %v3371
        %v3373 = vmul.f32 %v2885, 1.442695
        %v3374 = vpow.pop %v3373
        %v3375 = vmul.f32 %v2886, 1.442695
        %v3376 = vpow.pop %v3375
        %v3377 = vmul.f32 %v2887, 1.442695
        %v3378 = vpow.pop %v3377
        %v3379 = vmul.f32 %v2888, 1.442695
        %v3380 = vpow.pop %v3379
        %v3381 = vmul.f32 %v2889, 1.442695
        %v3382 = vpow.pop %v3381
        %v3383 = vmul.f32 %v2890, 1.442695
        %v3384 = vpow.pop %v3383
        %v3385 = vmul.f32 %v2891, 1.442695
        %v3386 = vpow.pop %v3385
        %v3387 = vmul.f32 %v2892, 1.442695
        %v3388 = vpow.pop %v3387
        %v3389 = vmul.f32 %v2893, 1.442695
        %v3390 = vpow.pop %v3389
        %v3391 = vmul.f32 %v2894, 1.442695
        %v3392 = vpow.pop %v3391
        %v3393 = vmul.f32 %v2895, 1.442695
        %v3394 = vpow.pop %v3393
        %v3395 = vmul.f32 %v2896, 1.442695
        %v3396 = vpow.pop %v3395
        %v3397 = vmul.f32 %v2897, 1.442695
        %v3398 = vpow.pop %v3397
        %v3399 = vmul.f32 %v2898, 1.442695
        %v3400 = vpow.pop %v3399
        %v3401 = vmul.f32 %v2899, 1.442695
        %v3402 = vpow.pop %v3401
        %v3403 = vmul.f32 %v2900, 1.442695
        %v3404 = vpow.pop %v3403
        %v3405 = vmul.f32 %v2901, 1.442695
        %v3406 = vpow.pop %v3405
        %v3407 = vmul.f32 %v2902, 1.442695
        %v3408 = vpow.pop %v3407
        %v3409 = vmul.f32 %v2903, 1.442695
        %v3410 = vpow.pop %v3409
        %v3411 = vmul.f32 %v2904, 1.442695
        %v3412 = vpow.pop %v3411
        %v3413 = vmul.f32 %v2905, 1.442695
        %v3414 = vpow.pop %v3413
        %v3415 = vmul.f32 %v2906, 1.442695
        %v3416 = vpow.pop %v3415
        %v3417 = vmul.f32 %v2907, 1.442695
        %v3418 = vpow.pop %v3417
        %v3419 = vmul.f32 %v2908, 1.442695
        %v3420 = vpow.pop %v3419
        %v3421 = vld [vmem:[#allocation3] sm:$0xff]
        %v3422 = vld [vmem:[#allocation3 + $0x8] sm:$0xff]
        %v3423 = vld [vmem:[#allocation3 + $0x10] sm:$0xff]
        %v3424 = vld [vmem:[#allocation3 + $0x18] sm:$0xff]
        %v3425 = vld [vmem:[#allocation3 + $0x20] sm:$0xff]
        %v3426 = vld [vmem:[#allocation3 + $0x28] sm:$0xff]
        %v3427 = vld [vmem:[#allocation3 + $0x30] sm:$0xff]
        %v3428 = vld [vmem:[#allocation3 + $0x38] sm:$0xff]
        %v3429 = vld [vmem:[#allocation3 + $0x40] sm:$0xff]
        %v3430 = vld [vmem:[#allocation3 + $0x48] sm:$0xff]
        %v3431 = vld [vmem:[#allocation3 + $0x50] sm:$0xff]
        %v3432 = vld [vmem:[#allocation3 + $0x58] sm:$0xff]
        %v3433 = vld [vmem:[#allocation3 + $0x60] sm:$0xff]
        %v3434 = vld [vmem:[#allocation3 + $0x68] sm:$0xff]
        %v3435 = vld [vmem:[#allocation3 + $0x70] sm:$0xff]
        %v3436 = vld [vmem:[#allocation3 + $0x78] sm:$0xff]
        %v3437 = vld [vmem:[#allocation3 + $0x80] sm:$0xff]
        %v3438 = vld [vmem:[#allocation3 + $0x88] sm:$0xff]
        %v3439 = vld [vmem:[#allocation3 + $0x90] sm:$0xff]
        %v3440 = vld [vmem:[#allocation3 + $0x98] sm:$0xff]
        %v3441 = vld [vmem:[#allocation3 + $0xa0] sm:$0xff]
        %v3442 = vld [vmem:[#allocation3 + $0xa8] sm:$0xff]
        %v3443 = vld [vmem:[#allocation3 + $0xb0] sm:$0xff]
        %v3444 = vld [vmem:[#allocation3 + $0xb8] sm:$0xff]
        %v3445 = vld [vmem:[#allocation3 + $0xc0] sm:$0xff]
        %v3446 = vld [vmem:[#allocation3 + $0xc8] sm:$0xff]
        %v3447 = vld [vmem:[#allocation3 + $0xd0] sm:$0xff]
        %v3448 = vld [vmem:[#allocation3 + $0xd8] sm:$0xff]
        %v3449 = vld [vmem:[#allocation3 + $0xe0] sm:$0xff]
        %v3450 = vld [vmem:[#allocation3 + $0xe8] sm:$0xff]
        %v3451 = vld [vmem:[#allocation3 + $0xf0] sm:$0xff]
        %v3452 = vld [vmem:[#allocation3 + $0xf8] sm:$0xff]
        %v3453 = vld [vmem:[#allocation3 + $0x100] sm:$0xff]
        %v3454 = vld [vmem:[#allocation3 + $0x108] sm:$0xff]
        %v3455 = vld [vmem:[#allocation3 + $0x110] sm:$0xff]
        %v3456 = vld [vmem:[#allocation3 + $0x118] sm:$0xff]
        %v3457 = vld [vmem:[#allocation3 + $0x120] sm:$0xff]
        %v3458 = vld [vmem:[#allocation3 + $0x128] sm:$0xff]
        %v3459 = vld [vmem:[#allocation3 + $0x130] sm:$0xff]
        %v3460 = vld [vmem:[#allocation3 + $0x138] sm:$0xff]
        %v3461 = vld [vmem:[#allocation3 + $0x140] sm:$0xff]
        %v3462 = vld [vmem:[#allocation3 + $0x148] sm:$0xff]
        %v3463 = vld [vmem:[#allocation3 + $0x150] sm:$0xff]
        %v3464 = vld [vmem:[#allocation3 + $0x158] sm:$0xff]
        %v3465 = vld [vmem:[#allocation3 + $0x160] sm:$0xff]
        %v3466 = vld [vmem:[#allocation3 + $0x168] sm:$0xff]
        %v3467 = vld [vmem:[#allocation3 + $0x170] sm:$0xff]
        %v3468 = vld [vmem:[#allocation3 + $0x178] sm:$0xff]
        %v3469 = vld [vmem:[#allocation3 + $0x180] sm:$0xff]
        %v3470 = vld [vmem:[#allocation3 + $0x188] sm:$0xff]
        %v3471 = vld [vmem:[#allocation3 + $0x190] sm:$0xff]
        %v3472 = vld [vmem:[#allocation3 + $0x198] sm:$0xff]
        %v3473 = vld [vmem:[#allocation3 + $0x1a0] sm:$0xff]
        %v3474 = vld [vmem:[#allocation3 + $0x1a8] sm:$0xff]
        %v3475 = vld [vmem:[#allocation3 + $0x1b0] sm:$0xff]
        %v3476 = vld [vmem:[#allocation3 + $0x1b8] sm:$0xff]
        %v3477 = vld [vmem:[#allocation3 + $0x1c0] sm:$0xff]
        %v3478 = vld [vmem:[#allocation3 + $0x1c8] sm:$0xff]
        %v3479 = vld [vmem:[#allocation3 + $0x1d0] sm:$0xff]
        %v3480 = vld [vmem:[#allocation3 + $0x1d8] sm:$0xff]
        %v3481 = vld [vmem:[#allocation3 + $0x1e0] sm:$0xff]
        %v3482 = vld [vmem:[#allocation3 + $0x1e8] sm:$0xff]
        %v3483 = vld [vmem:[#allocation3 + $0x1f0] sm:$0xff]
        %v3484 = vld [vmem:[#allocation3 + $0x1f8] sm:$0xff]
        %v3485 = vmul.f32 %v2526, %v3421
        %v3486 = vmul.f32 %v2528, %v3422
        %v3487 = vmul.f32 %v2530, %v3423
        %v3488 = vmul.f32 %v2532, %v3424
        %v3489 = vmul.f32 %v2534, %v3425
        %v3490 = vmul.f32 %v2536, %v3426
        %v3491 = vmul.f32 %v2538, %v3427
        %v3492 = vmul.f32 %v2540, %v3428
        %v3493 = vmul.f32 %v2542, %v3429
        %v3494 = vmul.f32 %v2544, %v3430
        %v3495 = vmul.f32 %v2546, %v3431
        %v3496 = vmul.f32 %v2548, %v3432
        %v3497 = vmul.f32 %v2550, %v3433
        %v3498 = vmul.f32 %v2552, %v3434
        %v3499 = vmul.f32 %v2554, %v3435
        %v3500 = vmul.f32 %v2556, %v3436
        %v3501 = vmul.f32 %v2558, %v3437
        %v3502 = vmul.f32 %v2560, %v3438
        %v3503 = vmul.f32 %v2562, %v3439
        %v3504 = vmul.f32 %v2564, %v3440
        %v3505 = vmul.f32 %v2566, %v3441
        %v3506 = vmul.f32 %v2568, %v3442
        %v3507 = vmul.f32 %v2570, %v3443
        %v3508 = vmul.f32 %v2572, %v3444
        %v3509 = vmul.f32 %v2574, %v3445
        %v3510 = vmul.f32 %v2576, %v3446
        %v3511 = vmul.f32 %v2578, %v3447
        %v3512 = vmul.f32 %v2580, %v3448
        %v3513 = vmul.f32 %v2582, %v3449
        %v3514 = vmul.f32 %v2584, %v3450
        %v3515 = vmul.f32 %v2586, %v3451
        %v3516 = vmul.f32 %v2588, %v3452
        %v3517 = vmul.f32 %v2590, %v3453
        %v3518 = vmul.f32 %v2592, %v3454
        %v3519 = vmul.f32 %v2594, %v3455
        %v3520 = vmul.f32 %v2596, %v3456
        %v3521 = vmul.f32 %v2598, %v3457
        %v3522 = vmul.f32 %v2600, %v3458
        %v3523 = vmul.f32 %v2602, %v3459
        %v3524 = vmul.f32 %v2604, %v3460
        %v3525 = vmul.f32 %v2606, %v3461
        %v3526 = vmul.f32 %v2608, %v3462
        %v3527 = vmul.f32 %v2610, %v3463
        %v3528 = vmul.f32 %v2612, %v3464
        %v3529 = vmul.f32 %v2614, %v3465
        %v3530 = vmul.f32 %v2616, %v3466
        %v3531 = vmul.f32 %v2618, %v3467
        %v3532 = vmul.f32 %v2620, %v3468
        %v3533 = vmul.f32 %v2622, %v3469
        %v3534 = vmul.f32 %v2624, %v3470
        %v3535 = vmul.f32 %v2626, %v3471
        %v3536 = vmul.f32 %v2628, %v3472
        %v3537 = vmul.f32 %v2630, %v3473
        %v3538 = vmul.f32 %v2632, %v3474
        %v3539 = vmul.f32 %v2634, %v3475
        %v3540 = vmul.f32 %v2636, %v3476
        %v3541 = vmul.f32 %v2638, %v3477
        %v3542 = vmul.f32 %v2640, %v3478
        %v3543 = vmul.f32 %v2642, %v3479
        %v3544 = vmul.f32 %v2644, %v3480
        %v3545 = vmul.f32 %v2646, %v3481
        %v3546 = vmul.f32 %v2648, %v3482
        %v3547 = vmul.f32 %v2650, %v3483
        %v3548 = vmul.f32 %v2652, %v3484
        %v3549 = vadd.f32 %v2910, %v2912
        %v3550 = vadd.f32 %v3549, %v2914
        %v3551 = vadd.f32 %v3550, %v2916
        %3552 = vadd.xlane.f32.xlu0 %v3551
        %v3553 = vpop.xlane.xlu0 %3552
        %v3554 = vadd.f32 %v2918, %v2920
        %v3555 = vadd.f32 %v3554, %v2922
        %v3556 = vadd.f32 %v3555, %v2924
        %3557 = vadd.xlane.f32.xlu0 %v3556
        %v3558 = vpop.xlane.xlu0 %3557
        %v3559 = vadd.f32 %v2926, %v2928
        %v3560 = vadd.f32 %v3559, %v2930
        %v3561 = vadd.f32 %v3560, %v2932
        %3562 = vadd.xlane.f32.xlu0 %v3561
        %v3563 = vpop.xlane.xlu0 %3562
        %v3564 = vadd.f32 %v2934, %v2936
        %v3565 = vadd.f32 %v3564, %v2938
        %v3566 = vadd.f32 %v3565, %v2940
        %3567 = vadd.xlane.f32.xlu0 %v3566
        %v3568 = vpop.xlane.xlu0 %3567
        %v3569 = vadd.f32 %v2942, %v2944
        %v3570 = vadd.f32 %v3569, %v2946
        %v3571 = vadd.f32 %v3570, %v2948
        %3572 = vadd.xlane.f32.xlu0 %v3571
        %v3573 = vpop.xlane.xlu0 %3572
        %v3574 = vadd.f32 %v2950, %v2952
        %v3575 = vadd.f32 %v3574, %v2954
        %v3576 = vadd.f32 %v3575, %v2956
        %3577 = vadd.xlane.f32.xlu0 %v3576
        %v3578 = vpop.xlane.xlu0 %3577
        %v3579 = vadd.f32 %v2958, %v2960
        %v3580 = vadd.f32 %v3579, %v2962
        %v3581 = vadd.f32 %v3580, %v2964
        %3582 = vadd.xlane.f32.xlu0 %v3581
        %v3583 = vpop.xlane.xlu0 %3582
        %v3584 = vadd.f32 %v2966, %v2968
        %v3585 = vadd.f32 %v3584, %v2970
        %v3586 = vadd.f32 %v3585, %v2972
        %3587 = vadd.xlane.f32.xlu0 %v3586
        %v3588 = vpop.xlane.xlu0 %3587
        %v3589 = vadd.f32 %v2974, %v2976
        %v3590 = vadd.f32 %v3589, %v2978
        %v3591 = vadd.f32 %v3590, %v2980
        %3592 = vadd.xlane.f32.xlu0 %v3591
        %v3593 = vpop.xlane.xlu0 %3592
        %v3594 = vadd.f32 %v2982, %v2984
        %v3595 = vadd.f32 %v3594, %v2986
        %v3596 = vadd.f32 %v3595, %v2988
        %3597 = vadd.xlane.f32.xlu0 %v3596
        %v3598 = vpop.xlane.xlu0 %3597
        %v3599 = vadd.f32 %v2990, %v2992
        %v3600 = vadd.f32 %v3599, %v2994
        %v3601 = vadd.f32 %v3600, %v2996
        %3602 = vadd.xlane.f32.xlu0 %v3601
        %v3603 = vpop.xlane.xlu0 %3602
        %v3604 = vadd.f32 %v2998, %v3000
        %v3605 = vadd.f32 %v3604, %v3002
        %v3606 = vadd.f32 %v3605, %v3004
        %3607 = vadd.xlane.f32.xlu0 %v3606
        %v3608 = vpop.xlane.xlu0 %3607
        %v3609 = vadd.f32 %v3006, %v3008
        %v3610 = vadd.f32 %v3609, %v3010
        %v3611 = vadd.f32 %v3610, %v3012
        %3612 = vadd.xlane.f32.xlu0 %v3611
        %v3613 = vpop.xlane.xlu0 %3612
        %v3614 = vadd.f32 %v3014, %v3016
        %v3615 = vadd.f32 %v3614, %v3018
        %v3616 = vadd.f32 %v3615, %v3020
        %3617 = vadd.xlane.f32.xlu0 %v3616
        %v3618 = vpop.xlane.xlu0 %3617
        %v3619 = vadd.f32 %v3022, %v3024
        %v3620 = vadd.f32 %v3619, %v3026
        %v3621 = vadd.f32 %v3620, %v3028
        %3622 = vadd.xlane.f32.xlu0 %v3621
        %v3623 = vpop.xlane.xlu0 %3622
        %v3624 = vadd.f32 %v3030, %v3032
        %v3625 = vadd.f32 %v3624, %v3034
        %v3626 = vadd.f32 %v3625, %v3036
        %3627 = vadd.xlane.f32.xlu0 %v3626
        %v3628 = vpop.xlane.xlu0 %3627
        %v3629 = vadd.f32 %v3038, %v3040
        %v3630 = vadd.f32 %v3629, %v3042
        %v3631 = vadd.f32 %v3630, %v3044
        %3632 = vadd.xlane.f32.xlu0 %v3631
        %v3633 = vpop.xlane.xlu0 %3632
        %v3634 = vadd.f32 %v3046, %v3048
        %v3635 = vadd.f32 %v3634, %v3050
        %v3636 = vadd.f32 %v3635, %v3052
        %3637 = vadd.xlane.f32.xlu0 %v3636
        %v3638 = vpop.xlane.xlu0 %3637
        %v3639 = vadd.f32 %v3054, %v3056
        %v3640 = vadd.f32 %v3639, %v3058
        %v3641 = vadd.f32 %v3640, %v3060
        %3642 = vadd.xlane.f32.xlu0 %v3641
        %v3643 = vpop.xlane.xlu0 %3642
        %v3644 = vadd.f32 %v3062, %v3064
        %v3645 = vadd.f32 %v3644, %v3066
        %v3646 = vadd.f32 %v3645, %v3068
        %3647 = vadd.xlane.f32.xlu0 %v3646
        %v3648 = vpop.xlane.xlu0 %3647
        %v3649 = vadd.f32 %v3070, %v3072
        %v3650 = vadd.f32 %v3649, %v3074
        %v3651 = vadd.f32 %v3650, %v3076
        %3652 = vadd.xlane.f32.xlu0 %v3651
        %v3653 = vpop.xlane.xlu0 %3652
        %v3654 = vadd.f32 %v3078, %v3080
        %v3655 = vadd.f32 %v3654, %v3082
        %v3656 = vadd.f32 %v3655, %v3084
        %3657 = vadd.xlane.f32.xlu0 %v3656
        %v3658 = vpop.xlane.xlu0 %3657
        %v3659 = vadd.f32 %v3086, %v3088
        %v3660 = vadd.f32 %v3659, %v3090
        %v3661 = vadd.f32 %v3660, %v3092
        %3662 = vadd.xlane.f32.xlu0 %v3661
        %v3663 = vpop.xlane.xlu0 %3662
        %v3664 = vadd.f32 %v3094, %v3096
        %v3665 = vadd.f32 %v3664, %v3098
        %v3666 = vadd.f32 %v3665, %v3100
        %3667 = vadd.xlane.f32.xlu0 %v3666
        %v3668 = vpop.xlane.xlu0 %3667
        %v3669 = vadd.f32 %v3102, %v3104
        %v3670 = vadd.f32 %v3669, %v3106
        %v3671 = vadd.f32 %v3670, %v3108
        %3672 = vadd.xlane.f32.xlu0 %v3671
        %v3673 = vpop.xlane.xlu0 %3672
        %v3674 = vadd.f32 %v3110, %v3112
        %v3675 = vadd.f32 %v3674, %v3114
        %v3676 = vadd.f32 %v3675, %v3116
        %3677 = vadd.xlane.f32.xlu0 %v3676
        %v3678 = vpop.xlane.xlu0 %3677
        %v3679 = vadd.f32 %v3118, %v3120
        %v3680 = vadd.f32 %v3679, %v3122
        %v3681 = vadd.f32 %v3680, %v3124
        %3682 = vadd.xlane.f32.xlu0 %v3681
        %v3683 = vpop.xlane.xlu0 %3682
        %v3684 = vadd.f32 %v3126, %v3128
        %v3685 = vadd.f32 %v3684, %v3130
        %v3686 = vadd.f32 %v3685, %v3132
        %3687 = vadd.xlane.f32.xlu0 %v3686
        %v3688 = vpop.xlane.xlu0 %3687
        %v3689 = vadd.f32 %v3134, %v3136
        %v3690 = vadd.f32 %v3689, %v3138
        %v3691 = vadd.f32 %v3690, %v3140
        %3692 = vadd.xlane.f32.xlu0 %v3691
        %v3693 = vpop.xlane.xlu0 %3692
        %v3694 = vadd.f32 %v3142, %v3144
        %v3695 = vadd.f32 %v3694, %v3146
        %v3696 = vadd.f32 %v3695, %v3148
        %3697 = vadd.xlane.f32.xlu0 %v3696
        %v3698 = vpop.xlane.xlu0 %3697
        %v3699 = vadd.f32 %v3150, %v3152
        %v3700 = vadd.f32 %v3699, %v3154
        %v3701 = vadd.f32 %v3700, %v3156
        %3702 = vadd.xlane.f32.xlu0 %v3701
        %v3703 = vpop.xlane.xlu0 %3702
        %v3704 = vadd.f32 %v3158, %v3160
        %v3705 = vadd.f32 %v3704, %v3162
        %v3706 = vadd.f32 %v3705, %v3164
        %3707 = vadd.xlane.f32.xlu0 %v3706
        %v3708 = vpop.xlane.xlu0 %3707
        %v3709 = vadd.f32 %v3166, %v3168
        %v3710 = vadd.f32 %v3709, %v3170
        %v3711 = vadd.f32 %v3710, %v3172
        %3712 = vadd.xlane.f32.xlu0 %v3711
        %v3713 = vpop.xlane.xlu0 %3712
        %v3714 = vadd.f32 %v3174, %v3176
        %v3715 = vadd.f32 %v3714, %v3178
        %v3716 = vadd.f32 %v3715, %v3180
        %3717 = vadd.xlane.f32.xlu0 %v3716
        %v3718 = vpop.xlane.xlu0 %3717
        %v3719 = vadd.f32 %v3182, %v3184
        %v3720 = vadd.f32 %v3719, %v3186
        %v3721 = vadd.f32 %v3720, %v3188
        %3722 = vadd.xlane.f32.xlu0 %v3721
        %v3723 = vpop.xlane.xlu0 %3722
        %v3724 = vadd.f32 %v3190, %v3192
        %v3725 = vadd.f32 %v3724, %v3194
        %v3726 = vadd.f32 %v3725, %v3196
        %3727 = vadd.xlane.f32.xlu0 %v3726
        %v3728 = vpop.xlane.xlu0 %3727
        %v3729 = vadd.f32 %v3198, %v3200
        %v3730 = vadd.f32 %v3729, %v3202
        %v3731 = vadd.f32 %v3730, %v3204
        %3732 = vadd.xlane.f32.xlu0 %v3731
        %v3733 = vpop.xlane.xlu0 %3732
        %v3734 = vadd.f32 %v3206, %v3208
        %v3735 = vadd.f32 %v3734, %v3210
        %v3736 = vadd.f32 %v3735, %v3212
        %3737 = vadd.xlane.f32.xlu0 %v3736
        %v3738 = vpop.xlane.xlu0 %3737
        %v3739 = vadd.f32 %v3214, %v3216
        %v3740 = vadd.f32 %v3739, %v3218
        %v3741 = vadd.f32 %v3740, %v3220
        %3742 = vadd.xlane.f32.xlu0 %v3741
        %v3743 = vpop.xlane.xlu0 %3742
        %v3744 = vadd.f32 %v3222, %v3224
        %v3745 = vadd.f32 %v3744, %v3226
        %v3746 = vadd.f32 %v3745, %v3228
        %3747 = vadd.xlane.f32.xlu0 %v3746
        %v3748 = vpop.xlane.xlu0 %3747
        %v3749 = vadd.f32 %v3230, %v3232
        %v3750 = vadd.f32 %v3749, %v3234
        %v3751 = vadd.f32 %v3750, %v3236
        %3752 = vadd.xlane.f32.xlu0 %v3751
        %v3753 = vpop.xlane.xlu0 %3752
        %v3754 = vadd.f32 %v3238, %v3240
        %v3755 = vadd.f32 %v3754, %v3242
        %v3756 = vadd.f32 %v3755, %v3244
        %3757 = vadd.xlane.f32.xlu0 %v3756
        %v3758 = vpop.xlane.xlu0 %3757
        %v3759 = vadd.f32 %v3246, %v3248
        %v3760 = vadd.f32 %v3759, %v3250
        %v3761 = vadd.f32 %v3760, %v3252
        %3762 = vadd.xlane.f32.xlu0 %v3761
        %v3763 = vpop.xlane.xlu0 %3762
        %v3764 = vadd.f32 %v3254, %v3256
        %v3765 = vadd.f32 %v3764, %v3258
        %v3766 = vadd.f32 %v3765, %v3260
        %3767 = vadd.xlane.f32.xlu0 %v3766
        %v3768 = vpop.xlane.xlu0 %3767
        %v3769 = vadd.f32 %v3262, %v3264
        %v3770 = vadd.f32 %v3769, %v3266
        %v3771 = vadd.f32 %v3770, %v3268
        %3772 = vadd.xlane.f32.xlu0 %v3771
        %v3773 = vpop.xlane.xlu0 %3772
        %v3774 = vadd.f32 %v3270, %v3272
        %v3775 = vadd.f32 %v3774, %v3274
        %v3776 = vadd.f32 %v3775, %v3276
        %3777 = vadd.xlane.f32.xlu0 %v3776
        %v3778 = vpop.xlane.xlu0 %3777
        %v3779 = vadd.f32 %v3278, %v3280
        %v3780 = vadd.f32 %v3779, %v3282
        %v3781 = vadd.f32 %v3780, %v3284
        %3782 = vadd.xlane.f32.xlu0 %v3781
        %v3783 = vpop.xlane.xlu0 %3782
        %v3784 = vadd.f32 %v3286, %v3288
        %v3785 = vadd.f32 %v3784, %v3290
        %v3786 = vadd.f32 %v3785, %v3292
        %3787 = vadd.xlane.f32.xlu0 %v3786
        %v3788 = vpop.xlane.xlu0 %3787
        %v3789 = vadd.f32 %v3294, %v3296
        %v3790 = vadd.f32 %v3789, %v3298
        %v3791 = vadd.f32 %v3790, %v3300
        %3792 = vadd.xlane.f32.xlu0 %v3791
        %v3793 = vpop.xlane.xlu0 %3792
        %v3794 = vadd.f32 %v3302, %v3304
        %v3795 = vadd.f32 %v3794, %v3306
        %v3796 = vadd.f32 %v3795, %v3308
        %3797 = vadd.xlane.f32.xlu0 %v3796
        %v3798 = vpop.xlane.xlu0 %3797
        %v3799 = vadd.f32 %v3310, %v3312
        %v3800 = vadd.f32 %v3799, %v3314
        %v3801 = vadd.f32 %v3800, %v3316
        %3802 = vadd.xlane.f32.xlu0 %v3801
        %v3803 = vpop.xlane.xlu0 %3802
        %v3804 = vadd.f32 %v3318, %v3320
        %v3805 = vadd.f32 %v3804, %v3322
        %v3806 = vadd.f32 %v3805, %v3324
        %3807 = vadd.xlane.f32.xlu0 %v3806
        %v3808 = vpop.xlane.xlu0 %3807
        %v3809 = vadd.f32 %v3326, %v3328
        %v3810 = vadd.f32 %v3809, %v3330
        %v3811 = vadd.f32 %v3810, %v3332
        %3812 = vadd.xlane.f32.xlu0 %v3811
        %v3813 = vpop.xlane.xlu0 %3812
        %v3814 = vadd.f32 %v3334, %v3336
        %v3815 = vadd.f32 %v3814, %v3338
        %v3816 = vadd.f32 %v3815, %v3340
        %3817 = vadd.xlane.f32.xlu0 %v3816
        %v3818 = vpop.xlane.xlu0 %3817
        %v3819 = vadd.f32 %v3342, %v3344
        %v3820 = vadd.f32 %v3819, %v3346
        %v3821 = vadd.f32 %v3820, %v3348
        %3822 = vadd.xlane.f32.xlu0 %v3821
        %v3823 = vpop.xlane.xlu0 %3822
        %v3824 = vadd.f32 %v3350, %v3352
        %v3825 = vadd.f32 %v3824, %v3354
        %v3826 = vadd.f32 %v3825, %v3356
        %3827 = vadd.xlane.f32.xlu0 %v3826
        %v3828 = vpop.xlane.xlu0 %3827
        %v3829 = vadd.f32 %v3358, %v3360
        %v3830 = vadd.f32 %v3829, %v3362
        %v3831 = vadd.f32 %v3830, %v3364
        %3832 = vadd.xlane.f32.xlu0 %v3831
        %v3833 = vpop.xlane.xlu0 %3832
        %v3834 = vadd.f32 %v3366, %v3368
        %v3835 = vadd.f32 %v3834, %v3370
        %v3836 = vadd.f32 %v3835, %v3372
        %3837 = vadd.xlane.f32.xlu0 %v3836
        %v3838 = vpop.xlane.xlu0 %3837
        %v3839 = vadd.f32 %v3374, %v3376
        %v3840 = vadd.f32 %v3839, %v3378
        %v3841 = vadd.f32 %v3840, %v3380
        %3842 = vadd.xlane.f32.xlu0 %v3841
        %v3843 = vpop.xlane.xlu0 %3842
        %v3844 = vadd.f32 %v3382, %v3384
        %v3845 = vadd.f32 %v3844, %v3386
        %v3846 = vadd.f32 %v3845, %v3388
        %3847 = vadd.xlane.f32.xlu0 %v3846
        %v3848 = vpop.xlane.xlu0 %3847
        %v3849 = vadd.f32 %v3390, %v3392
        %v3850 = vadd.f32 %v3849, %v3394
        %v3851 = vadd.f32 %v3850, %v3396
        %3852 = vadd.xlane.f32.xlu0 %v3851
        %v3853 = vpop.xlane.xlu0 %3852
        %v3854 = vadd.f32 %v3398, %v3400
        %v3855 = vadd.f32 %v3854, %v3402
        %v3856 = vadd.f32 %v3855, %v3404
        %3857 = vadd.xlane.f32.xlu0 %v3856
        %v3858 = vpop.xlane.xlu0 %3857
        %v3859 = vadd.f32 %v3406, %v3408
        %v3860 = vadd.f32 %v3859, %v3410
        %v3861 = vadd.f32 %v3860, %v3412
        %3862 = vadd.xlane.f32.xlu0 %v3861
        %v3863 = vpop.xlane.xlu0 %3862
        %v3864 = vadd.f32 %v3414, %v3416
        %v3865 = vadd.f32 %v3864, %v3418
        %v3866 = vadd.f32 %v3865, %v3420
        %3867 = vadd.xlane.f32.xlu0 %v3866
        %v3868 = vpop.xlane.xlu0 %3867
        %v3869 = vadd.f32 %v3485, %v3553
        %v3870 = vadd.f32 %v3486, %v3558
        %v3871 = vadd.f32 %v3487, %v3563
        %v3872 = vadd.f32 %v3488, %v3568
        %v3873 = vadd.f32 %v3489, %v3573
        %v3874 = vadd.f32 %v3490, %v3578
        %v3875 = vadd.f32 %v3491, %v3583
        %v3876 = vadd.f32 %v3492, %v3588
        %v3877 = vadd.f32 %v3493, %v3593
        %v3878 = vadd.f32 %v3494, %v3598
        %v3879 = vadd.f32 %v3495, %v3603
        %v3880 = vadd.f32 %v3496, %v3608
        %v3881 = vadd.f32 %v3497, %v3613
        %v3882 = vadd.f32 %v3498, %v3618
        %v3883 = vadd.f32 %v3499, %v3623
        %v3884 = vadd.f32 %v3500, %v3628
        %v3885 = vadd.f32 %v3501, %v3633
        %v3886 = vadd.f32 %v3502, %v3638
        %v3887 = vadd.f32 %v3503, %v3643
        %v3888 = vadd.f32 %v3504, %v3648
        %v3889 = vadd.f32 %v3505, %v3653
        %v3890 = vadd.f32 %v3506, %v3658
        %v3891 = vadd.f32 %v3507, %v3663
        %v3892 = vadd.f32 %v3508, %v3668
        %v3893 = vadd.f32 %v3509, %v3673
        %v3894 = vadd.f32 %v3510, %v3678
        %v3895 = vadd.f32 %v3511, %v3683
        %v3896 = vadd.f32 %v3512, %v3688
        %v3897 = vadd.f32 %v3513, %v3693
        %v3898 = vadd.f32 %v3514, %v3698
        %v3899 = vadd.f32 %v3515, %v3703
        %v3900 = vadd.f32 %v3516, %v3708
        %v3901 = vadd.f32 %v3517, %v3713
        %v3902 = vadd.f32 %v3518, %v3718
        %v3903 = vadd.f32 %v3519, %v3723
        %v3904 = vadd.f32 %v3520, %v3728
        %v3905 = vadd.f32 %v3521, %v3733
        %v3906 = vadd.f32 %v3522, %v3738
        %v3907 = vadd.f32 %v3523, %v3743
        %v3908 = vadd.f32 %v3524, %v3748
        %v3909 = vadd.f32 %v3525, %v3753
        %v3910 = vadd.f32 %v3526, %v3758
        %v3911 = vadd.f32 %v3527, %v3763
        %v3912 = vadd.f32 %v3528, %v3768
        %v3913 = vadd.f32 %v3529, %v3773
        %v3914 = vadd.f32 %v3530, %v3778
        %v3915 = vadd.f32 %v3531, %v3783
        %v3916 = vadd.f32 %v3532, %v3788
        %v3917 = vadd.f32 %v3533, %v3793
        %v3918 = vadd.f32 %v3534, %v3798
        %v3919 = vadd.f32 %v3535, %v3803
        %v3920 = vadd.f32 %v3536, %v3808
        %v3921 = vadd.f32 %v3537, %v3813
        %v3922 = vadd.f32 %v3538, %v3818
        %v3923 = vadd.f32 %v3539, %v3823
        %v3924 = vadd.f32 %v3540, %v3828
        %v3925 = vadd.f32 %v3541, %v3833
        %v3926 = vadd.f32 %v3542, %v3838
        %v3927 = vadd.f32 %v3543, %v3843
        %v3928 = vadd.f32 %v3544, %v3848
        %v3929 = vadd.f32 %v3545, %v3853
        %v3930 = vadd.f32 %v3546, %v3858
        %v3931 = vadd.f32 %v3547, %v3863
        %v3932 = vadd.f32 %v3548, %v3868
        %3933 = vst [vmem:[#allocation3] sm:$0xff] %v3869
        %3934 = vst [vmem:[#allocation3 + $0x8] sm:$0xff] %v3870
        %3935 = vst [vmem:[#allocation3 + $0x10] sm:$0xff] %v3871
        %3936 = vst [vmem:[#allocation3 + $0x18] sm:$0xff] %v3872
        %3937 = vst [vmem:[#allocation3 + $0x20] sm:$0xff] %v3873
        %3938 = vst [vmem:[#allocation3 + $0x28] sm:$0xff] %v3874
        %3939 = vst [vmem:[#allocation3 + $0x30] sm:$0xff] %v3875
        %3940 = vst [vmem:[#allocation3 + $0x38] sm:$0xff] %v3876
        %3941 = vst [vmem:[#allocation3 + $0x40] sm:$0xff] %v3877
        %3942 = vst [vmem:[#allocation3 + $0x48] sm:$0xff] %v3878
        %3943 = vst [vmem:[#allocation3 + $0x50] sm:$0xff] %v3879
        %3944 = vst [vmem:[#allocation3 + $0x58] sm:$0xff] %v3880
        %3945 = vst [vmem:[#allocation3 + $0x60] sm:$0xff] %v3881
        %3946 = vst [vmem:[#allocation3 + $0x68] sm:$0xff] %v3882
        %3947 = vst [vmem:[#allocation3 + $0x70] sm:$0xff] %v3883
        %3948 = vst [vmem:[#allocation3 + $0x78] sm:$0xff] %v3884
        %3949 = vst [vmem:[#allocation3 + $0x80] sm:$0xff] %v3885
        %3950 = vst [vmem:[#allocation3 + $0x88] sm:$0xff] %v3886
        %3951 = vst [vmem:[#allocation3 + $0x90] sm:$0xff] %v3887
        %3952 = vst [vmem:[#allocation3 + $0x98] sm:$0xff] %v3888
        %3953 = vst [vmem:[#allocation3 + $0xa0] sm:$0xff] %v3889
        %3954 = vst [vmem:[#allocation3 + $0xa8] sm:$0xff] %v3890
        %3955 = vst [vmem:[#allocation3 + $0xb0] sm:$0xff] %v3891
        %3956 = vst [vmem:[#allocation3 + $0xb8] sm:$0xff] %v3892
        %3957 = vst [vmem:[#allocation3 + $0xc0] sm:$0xff] %v3893
        %3958 = vst [vmem:[#allocation3 + $0xc8] sm:$0xff] %v3894
        %3959 = vst [vmem:[#allocation3 + $0xd0] sm:$0xff] %v3895
        %3960 = vst [vmem:[#allocation3 + $0xd8] sm:$0xff] %v3896
        %3961 = vst [vmem:[#allocation3 + $0xe0] sm:$0xff] %v3897
        %3962 = vst [vmem:[#allocation3 + $0xe8] sm:$0xff] %v3898
        %3963 = vst [vmem:[#allocation3 + $0xf0] sm:$0xff] %v3899
        %3964 = vst [vmem:[#allocation3 + $0xf8] sm:$0xff] %v3900
        %3965 = vst [vmem:[#allocation3 + $0x100] sm:$0xff] %v3901
        %3966 = vst [vmem:[#allocation3 + $0x108] sm:$0xff] %v3902
        %3967 = vst [vmem:[#allocation3 + $0x110] sm:$0xff] %v3903
        %3968 = vst [vmem:[#allocation3 + $0x118] sm:$0xff] %v3904
        %3969 = vst [vmem:[#allocation3 + $0x120] sm:$0xff] %v3905
        %3970 = vst [vmem:[#allocation3 + $0x128] sm:$0xff] %v3906
        %3971 = vst [vmem:[#allocation3 + $0x130] sm:$0xff] %v3907
        %3972 = vst [vmem:[#allocation3 + $0x138] sm:$0xff] %v3908
        %3973 = vst [vmem:[#allocation3 + $0x140] sm:$0xff] %v3909
        %3974 = vst [vmem:[#allocation3 + $0x148] sm:$0xff] %v3910
        %3975 = vst [vmem:[#allocation3 + $0x150] sm:$0xff] %v3911
        %3976 = vst [vmem:[#allocation3 + $0x158] sm:$0xff] %v3912
        %3977 = vst [vmem:[#allocation3 + $0x160] sm:$0xff] %v3913
        %3978 = vst [vmem:[#allocation3 + $0x168] sm:$0xff] %v3914
        %3979 = vst [vmem:[#allocation3 + $0x170] sm:$0xff] %v3915
        %3980 = vst [vmem:[#allocation3 + $0x178] sm:$0xff] %v3916
        %3981 = vst [vmem:[#allocation3 + $0x180] sm:$0xff] %v3917
        %3982 = vst [vmem:[#allocation3 + $0x188] sm:$0xff] %v3918
        %3983 = vst [vmem:[#allocation3 + $0x190] sm:$0xff] %v3919
        %3984 = vst [vmem:[#allocation3 + $0x198] sm:$0xff] %v3920
        %3985 = vst [vmem:[#allocation3 + $0x1a0] sm:$0xff] %v3921
        %3986 = vst [vmem:[#allocation3 + $0x1a8] sm:$0xff] %v3922
        %3987 = vst [vmem:[#allocation3 + $0x1b0] sm:$0xff] %v3923
        %3988 = vst [vmem:[#allocation3 + $0x1b8] sm:$0xff] %v3924
        %3989 = vst [vmem:[#allocation3 + $0x1c0] sm:$0xff] %v3925
        %3990 = vst [vmem:[#allocation3 + $0x1c8] sm:$0xff] %v3926
        %3991 = vst [vmem:[#allocation3 + $0x1d0] sm:$0xff] %v3927
        %3992 = vst [vmem:[#allocation3 + $0x1d8] sm:$0xff] %v3928
        %3993 = vst [vmem:[#allocation3 + $0x1e0] sm:$0xff] %v3929
        %3994 = vst [vmem:[#allocation3 + $0x1e8] sm:$0xff] %v3930
        %3995 = vst [vmem:[#allocation3 + $0x1f0] sm:$0xff] %v3931
        %3996 = vst [vmem:[#allocation3 + $0x1f8] sm:$0xff] %v3932
        %v3997 = vld [vmem:[#allocation4] sm:$0xff]
        %v3998 = vld [vmem:[#allocation4 + $0x8] sm:$0xff]
        %v3999 = vld [vmem:[#allocation4 + $0x10] sm:$0xff]
        %v4000 = vld [vmem:[#allocation4 + $0x18] sm:$0xff]
        %v4001 = vld [vmem:[#allocation4 + $0x20] sm:$0xff]
        %v4002 = vld [vmem:[#allocation4 + $0x28] sm:$0xff]
        %v4003 = vld [vmem:[#allocation4 + $0x30] sm:$0xff]
        %v4004 = vld [vmem:[#allocation4 + $0x38] sm:$0xff]
        %v4005 = vld [vmem:[#allocation4 + $0x40] sm:$0xff]
        %v4006 = vld [vmem:[#allocation4 + $0x48] sm:$0xff]
        %v4007 = vld [vmem:[#allocation4 + $0x50] sm:$0xff]
        %v4008 = vld [vmem:[#allocation4 + $0x58] sm:$0xff]
        %v4009 = vld [vmem:[#allocation4 + $0x60] sm:$0xff]
        %v4010 = vld [vmem:[#allocation4 + $0x68] sm:$0xff]
        %v4011 = vld [vmem:[#allocation4 + $0x70] sm:$0xff]
        %v4012 = vld [vmem:[#allocation4 + $0x78] sm:$0xff]
        %v4013 = vld [vmem:[#allocation4 + $0x80] sm:$0xff]
        %v4014 = vld [vmem:[#allocation4 + $0x88] sm:$0xff]
        %v4015 = vld [vmem:[#allocation4 + $0x90] sm:$0xff]
        %v4016 = vld [vmem:[#allocation4 + $0x98] sm:$0xff]
        %v4017 = vld [vmem:[#allocation4 + $0xa0] sm:$0xff]
        %v4018 = vld [vmem:[#allocation4 + $0xa8] sm:$0xff]
        %v4019 = vld [vmem:[#allocation4 + $0xb0] sm:$0xff]
        %v4020 = vld [vmem:[#allocation4 + $0xb8] sm:$0xff]
        %v4021 = vld [vmem:[#allocation4 + $0xc0] sm:$0xff]
        %v4022 = vld [vmem:[#allocation4 + $0xc8] sm:$0xff]
        %v4023 = vld [vmem:[#allocation4 + $0xd0] sm:$0xff]
        %v4024 = vld [vmem:[#allocation4 + $0xd8] sm:$0xff]
        %v4025 = vld [vmem:[#allocation4 + $0xe0] sm:$0xff]
        %v4026 = vld [vmem:[#allocation4 + $0xe8] sm:$0xff]
        %v4027 = vld [vmem:[#allocation4 + $0xf0] sm:$0xff]
        %v4028 = vld [vmem:[#allocation4 + $0xf8] sm:$0xff]
        %v4029 = vld [vmem:[#allocation4 + $0x100] sm:$0xff]
        %v4030 = vld [vmem:[#allocation4 + $0x108] sm:$0xff]
        %v4031 = vld [vmem:[#allocation4 + $0x110] sm:$0xff]
        %v4032 = vld [vmem:[#allocation4 + $0x118] sm:$0xff]
        %v4033 = vld [vmem:[#allocation4 + $0x120] sm:$0xff]
        %v4034 = vld [vmem:[#allocation4 + $0x128] sm:$0xff]
        %v4035 = vld [vmem:[#allocation4 + $0x130] sm:$0xff]
        %v4036 = vld [vmem:[#allocation4 + $0x138] sm:$0xff]
        %v4037 = vld [vmem:[#allocation4 + $0x140] sm:$0xff]
        %v4038 = vld [vmem:[#allocation4 + $0x148] sm:$0xff]
        %v4039 = vld [vmem:[#allocation4 + $0x150] sm:$0xff]
        %v4040 = vld [vmem:[#allocation4 + $0x158] sm:$0xff]
        %v4041 = vld [vmem:[#allocation4 + $0x160] sm:$0xff]
        %v4042 = vld [vmem:[#allocation4 + $0x168] sm:$0xff]
        %v4043 = vld [vmem:[#allocation4 + $0x170] sm:$0xff]
        %v4044 = vld [vmem:[#allocation4 + $0x178] sm:$0xff]
        %v4045 = vld [vmem:[#allocation4 + $0x180] sm:$0xff]
        %v4046 = vld [vmem:[#allocation4 + $0x188] sm:$0xff]
        %v4047 = vld [vmem:[#allocation4 + $0x190] sm:$0xff]
        %v4048 = vld [vmem:[#allocation4 + $0x198] sm:$0xff]
        %v4049 = vld [vmem:[#allocation4 + $0x1a0] sm:$0xff]
        %v4050 = vld [vmem:[#allocation4 + $0x1a8] sm:$0xff]
        %v4051 = vld [vmem:[#allocation4 + $0x1b0] sm:$0xff]
        %v4052 = vld [vmem:[#allocation4 + $0x1b8] sm:$0xff]
        %v4053 = vld [vmem:[#allocation4 + $0x1c0] sm:$0xff]
        %v4054 = vld [vmem:[#allocation4 + $0x1c8] sm:$0xff]
        %v4055 = vld [vmem:[#allocation4 + $0x1d0] sm:$0xff]
        %v4056 = vld [vmem:[#allocation4 + $0x1d8] sm:$0xff]
        %v4057 = vld [vmem:[#allocation4 + $0x1e0] sm:$0xff]
        %v4058 = vld [vmem:[#allocation4 + $0x1e8] sm:$0xff]
        %v4059 = vld [vmem:[#allocation4 + $0x1f0] sm:$0xff]
        %v4060 = vld [vmem:[#allocation4 + $0x1f8] sm:$0xff]
        %v4061 = vmul.f32 %v3997, %v2526
        %v4062 = vmul.f32 %v3998, %v2528
        %v4063 = vmul.f32 %v3999, %v2530
        %v4064 = vmul.f32 %v4000, %v2532
        %v4065 = vmul.f32 %v4001, %v2534
        %v4066 = vmul.f32 %v4002, %v2536
        %v4067 = vmul.f32 %v4003, %v2538
        %v4068 = vmul.f32 %v4004, %v2540
        %v4069 = vmul.f32 %v4005, %v2542
        %v4070 = vmul.f32 %v4006, %v2544
        %v4071 = vmul.f32 %v4007, %v2546
        %v4072 = vmul.f32 %v4008, %v2548
        %v4073 = vmul.f32 %v4009, %v2550
        %v4074 = vmul.f32 %v4010, %v2552
        %v4075 = vmul.f32 %v4011, %v2554
        %v4076 = vmul.f32 %v4012, %v2556
        %v4077 = vmul.f32 %v4013, %v2558
        %v4078 = vmul.f32 %v4014, %v2560
        %v4079 = vmul.f32 %v4015, %v2562
        %v4080 = vmul.f32 %v4016, %v2564
        %v4081 = vmul.f32 %v4017, %v2566
        %v4082 = vmul.f32 %v4018, %v2568
        %v4083 = vmul.f32 %v4019, %v2570
        %v4084 = vmul.f32 %v4020, %v2572
        %v4085 = vmul.f32 %v4021, %v2574
        %v4086 = vmul.f32 %v4022, %v2576
        %v4087 = vmul.f32 %v4023, %v2578
        %v4088 = vmul.f32 %v4024, %v2580
        %v4089 = vmul.f32 %v4025, %v2582
        %v4090 = vmul.f32 %v4026, %v2584
        %v4091 = vmul.f32 %v4027, %v2586
        %v4092 = vmul.f32 %v4028, %v2588
        %v4093 = vmul.f32 %v4029, %v2590
        %v4094 = vmul.f32 %v4030, %v2592
        %v4095 = vmul.f32 %v4031, %v2594
        %v4096 = vmul.f32 %v4032, %v2596
        %v4097 = vmul.f32 %v4033, %v2598
        %v4098 = vmul.f32 %v4034, %v2600
        %v4099 = vmul.f32 %v4035, %v2602
        %v4100 = vmul.f32 %v4036, %v2604
        %v4101 = vmul.f32 %v4037, %v2606
        %v4102 = vmul.f32 %v4038, %v2608
        %v4103 = vmul.f32 %v4039, %v2610
        %v4104 = vmul.f32 %v4040, %v2612
        %v4105 = vmul.f32 %v4041, %v2614
        %v4106 = vmul.f32 %v4042, %v2616
        %v4107 = vmul.f32 %v4043, %v2618
        %v4108 = vmul.f32 %v4044, %v2620
        %v4109 = vmul.f32 %v4045, %v2622
        %v4110 = vmul.f32 %v4046, %v2624
        %v4111 = vmul.f32 %v4047, %v2626
        %v4112 = vmul.f32 %v4048, %v2628
        %v4113 = vmul.f32 %v4049, %v2630
        %v4114 = vmul.f32 %v4050, %v2632
        %v4115 = vmul.f32 %v4051, %v2634
        %v4116 = vmul.f32 %v4052, %v2636
        %v4117 = vmul.f32 %v4053, %v2638
        %v4118 = vmul.f32 %v4054, %v2640
        %v4119 = vmul.f32 %v4055, %v2642
        %v4120 = vmul.f32 %v4056, %v2644
        %v4121 = vmul.f32 %v4057, %v2646
        %v4122 = vmul.f32 %v4058, %v2648
        %v4123 = vmul.f32 %v4059, %v2650
        %v4124 = vmul.f32 %v4060, %v2652
        %v4125 = vpack.c.bf16 %v2918, %v2910
        %v4126 = vpack.c.bf16 %v2920, %v2912
        %v4127 = vpack.c.bf16 %v2922, %v2914
        %v4128 = vpack.c.bf16 %v2924, %v2916
        %v4129 = vpack.c.bf16 %v2934, %v2926
        %v4130 = vpack.c.bf16 %v2936, %v2928
        %v4131 = vpack.c.bf16 %v2938, %v2930
        %v4132 = vpack.c.bf16 %v2940, %v2932
        %v4133 = vpack.c.bf16 %v2950, %v2942
        %v4134 = vpack.c.bf16 %v2952, %v2944
        %v4135 = vpack.c.bf16 %v2954, %v2946
        %v4136 = vpack.c.bf16 %v2956, %v2948
        %v4137 = vpack.c.bf16 %v2966, %v2958
        %v4138 = vpack.c.bf16 %v2968, %v2960
        %v4139 = vpack.c.bf16 %v2970, %v2962
        %v4140 = vpack.c.bf16 %v2972, %v2964
        %v4141 = vpack.c.bf16 %v2982, %v2974
        %v4142 = vpack.c.bf16 %v2984, %v2976
        %v4143 = vpack.c.bf16 %v2986, %v2978
        %v4144 = vpack.c.bf16 %v2988, %v2980
        %v4145 = vpack.c.bf16 %v2998, %v2990
        %v4146 = vpack.c.bf16 %v3000, %v2992
        %v4147 = vpack.c.bf16 %v3002, %v2994
        %v4148 = vpack.c.bf16 %v3004, %v2996
        %v4149 = vpack.c.bf16 %v3014, %v3006
        %v4150 = vpack.c.bf16 %v3016, %v3008
        %v4151 = vpack.c.bf16 %v3018, %v3010
        %v4152 = vpack.c.bf16 %v3020, %v3012
        %v4153 = vpack.c.bf16 %v3030, %v3022
        %v4154 = vpack.c.bf16 %v3032, %v3024
        %v4155 = vpack.c.bf16 %v3034, %v3026
        %v4156 = vpack.c.bf16 %v3036, %v3028
        %v4157 = vpack.c.bf16 %v3046, %v3038
        %v4158 = vpack.c.bf16 %v3048, %v3040
        %v4159 = vpack.c.bf16 %v3050, %v3042
        %v4160 = vpack.c.bf16 %v3052, %v3044
        %v4161 = vpack.c.bf16 %v3062, %v3054
        %v4162 = vpack.c.bf16 %v3064, %v3056
        %v4163 = vpack.c.bf16 %v3066, %v3058
        %v4164 = vpack.c.bf16 %v3068, %v3060
        %v4165 = vpack.c.bf16 %v3078, %v3070
        %v4166 = vpack.c.bf16 %v3080, %v3072
        %v4167 = vpack.c.bf16 %v3082, %v3074
        %v4168 = vpack.c.bf16 %v3084, %v3076
        %v4169 = vpack.c.bf16 %v3094, %v3086
        %v4170 = vpack.c.bf16 %v3096, %v3088
        %v4171 = vpack.c.bf16 %v3098, %v3090
        %v4172 = vpack.c.bf16 %v3100, %v3092
        %v4173 = vpack.c.bf16 %v3110, %v3102
        %v4174 = vpack.c.bf16 %v3112, %v3104
        %v4175 = vpack.c.bf16 %v3114, %v3106
        %v4176 = vpack.c.bf16 %v3116, %v3108
        %v4177 = vpack.c.bf16 %v3126, %v3118
        %v4178 = vpack.c.bf16 %v3128, %v3120
        %v4179 = vpack.c.bf16 %v3130, %v3122
        %v4180 = vpack.c.bf16 %v3132, %v3124
        %v4181 = vpack.c.bf16 %v3142, %v3134
        %v4182 = vpack.c.bf16 %v3144, %v3136
        %v4183 = vpack.c.bf16 %v3146, %v3138
        %v4184 = vpack.c.bf16 %v3148, %v3140
        %v4185 = vpack.c.bf16 %v3158, %v3150
        %v4186 = vpack.c.bf16 %v3160, %v3152
        %v4187 = vpack.c.bf16 %v3162, %v3154
        %v4188 = vpack.c.bf16 %v3164, %v3156
        %v4189 = vpack.c.bf16 %v3174, %v3166
        %v4190 = vpack.c.bf16 %v3176, %v3168
        %v4191 = vpack.c.bf16 %v3178, %v3170
        %v4192 = vpack.c.bf16 %v3180, %v3172
        %v4193 = vpack.c.bf16 %v3190, %v3182
        %v4194 = vpack.c.bf16 %v3192, %v3184
        %v4195 = vpack.c.bf16 %v3194, %v3186
        %v4196 = vpack.c.bf16 %v3196, %v3188
        %v4197 = vpack.c.bf16 %v3206, %v3198
        %v4198 = vpack.c.bf16 %v3208, %v3200
        %v4199 = vpack.c.bf16 %v3210, %v3202
        %v4200 = vpack.c.bf16 %v3212, %v3204
        %v4201 = vpack.c.bf16 %v3222, %v3214
        %v4202 = vpack.c.bf16 %v3224, %v3216
        %v4203 = vpack.c.bf16 %v3226, %v3218
        %v4204 = vpack.c.bf16 %v3228, %v3220
        %v4205 = vpack.c.bf16 %v3238, %v3230
        %v4206 = vpack.c.bf16 %v3240, %v3232
        %v4207 = vpack.c.bf16 %v3242, %v3234
        %v4208 = vpack.c.bf16 %v3244, %v3236
        %v4209 = vpack.c.bf16 %v3254, %v3246
        %v4210 = vpack.c.bf16 %v3256, %v3248
        %v4211 = vpack.c.bf16 %v3258, %v3250
        %v4212 = vpack.c.bf16 %v3260, %v3252
        %v4213 = vpack.c.bf16 %v3270, %v3262
        %v4214 = vpack.c.bf16 %v3272, %v3264
        %v4215 = vpack.c.bf16 %v3274, %v3266
        %v4216 = vpack.c.bf16 %v3276, %v3268
        %v4217 = vpack.c.bf16 %v3286, %v3278
        %v4218 = vpack.c.bf16 %v3288, %v3280
        %v4219 = vpack.c.bf16 %v3290, %v3282
        %v4220 = vpack.c.bf16 %v3292, %v3284
        %v4221 = vpack.c.bf16 %v3302, %v3294
        %v4222 = vpack.c.bf16 %v3304, %v3296
        %v4223 = vpack.c.bf16 %v3306, %v3298
        %v4224 = vpack.c.bf16 %v3308, %v3300
        %v4225 = vpack.c.bf16 %v3318, %v3310
        %v4226 = vpack.c.bf16 %v3320, %v3312
        %v4227 = vpack.c.bf16 %v3322, %v3314
        %v4228 = vpack.c.bf16 %v3324, %v3316
        %v4229 = vpack.c.bf16 %v3334, %v3326
        %v4230 = vpack.c.bf16 %v3336, %v3328
        %v4231 = vpack.c.bf16 %v3338, %v3330
        %v4232 = vpack.c.bf16 %v3340, %v3332
        %v4233 = vpack.c.bf16 %v3350, %v3342
        %v4234 = vpack.c.bf16 %v3352, %v3344
        %v4235 = vpack.c.bf16 %v3354, %v3346
        %v4236 = vpack.c.bf16 %v3356, %v3348
        %v4237 = vpack.c.bf16 %v3366, %v3358
        %v4238 = vpack.c.bf16 %v3368, %v3360
        %v4239 = vpack.c.bf16 %v3370, %v3362
        %v4240 = vpack.c.bf16 %v3372, %v3364
        %v4241 = vpack.c.bf16 %v3382, %v3374
        %v4242 = vpack.c.bf16 %v3384, %v3376
        %v4243 = vpack.c.bf16 %v3386, %v3378
        %v4244 = vpack.c.bf16 %v3388, %v3380
        %v4245 = vpack.c.bf16 %v3398, %v3390
        %v4246 = vpack.c.bf16 %v3400, %v3392
        %v4247 = vpack.c.bf16 %v3402, %v3394
        %v4248 = vpack.c.bf16 %v3404, %v3396
        %v4249 = vpack.c.bf16 %v3414, %v3406
        %v4250 = vpack.c.bf16 %v3416, %v3408
        %v4251 = vpack.c.bf16 %v3418, %v3410
        %v4252 = vpack.c.bf16 %v3420, %v3412
        %v4317 = vunpack.c.l.b16 %v891
        %v4318 = vunpack.c.l.b16 %v892
        %v4319 = vunpack.c.l.b16 %v893
        %v4320 = vunpack.c.l.b16 %v894
        %v4321 = vunpack.c.l.b16 %v895
        %v4322 = vunpack.c.l.b16 %v896
        %v4323 = vunpack.c.l.b16 %v897
        %v4324 = vunpack.c.l.b16 %v898
        %v4325 = vunpack.c.l.b16 %v899
        %v4326 = vunpack.c.l.b16 %v900
        %v4327 = vunpack.c.l.b16 %v901
        %v4328 = vunpack.c.l.b16 %v902
        %v4329 = vunpack.c.l.b16 %v903
        %v4330 = vunpack.c.l.b16 %v904
        %v4331 = vunpack.c.l.b16 %v905
        %v4332 = vunpack.c.l.b16 %v906
        %v4333 = vunpack.c.l.b16 %v907
        %v4334 = vunpack.c.l.b16 %v908
        %v4335 = vunpack.c.l.b16 %v909
        %v4336 = vunpack.c.l.b16 %v910
        %v4337 = vunpack.c.l.b16 %v911
        %v4338 = vunpack.c.l.b16 %v912
        %v4339 = vunpack.c.l.b16 %v913
        %v4340 = vunpack.c.l.b16 %v914
        %v4341 = vunpack.c.l.b16 %v915
        %v4342 = vunpack.c.l.b16 %v916
        %v4343 = vunpack.c.l.b16 %v917
        %v4344 = vunpack.c.l.b16 %v918
        %v4345 = vunpack.c.l.b16 %v919
        %v4346 = vunpack.c.l.b16 %v920
        %v4347 = vunpack.c.l.b16 %v921
        %v4348 = vunpack.c.l.b16 %v922
        %v4349 = vunpack.c.l.b16 %v923
        %v4350 = vunpack.c.l.b16 %v924
        %v4351 = vunpack.c.l.b16 %v925
        %v4352 = vunpack.c.l.b16 %v926
        %v4353 = vunpack.c.l.b16 %v927
        %v4354 = vunpack.c.l.b16 %v928
        %v4355 = vunpack.c.l.b16 %v929
        %v4356 = vunpack.c.l.b16 %v930
        %v4357 = vunpack.c.l.b16 %v931
        %v4358 = vunpack.c.l.b16 %v932
        %v4359 = vunpack.c.l.b16 %v933
        %v4360 = vunpack.c.l.b16 %v934
        %v4361 = vunpack.c.l.b16 %v935
        %v4362 = vunpack.c.l.b16 %v936
        %v4363 = vunpack.c.l.b16 %v937
        %v4364 = vunpack.c.l.b16 %v938
        %v4365 = vunpack.c.l.b16 %v939
        %v4366 = vunpack.c.l.b16 %v940
        %v4367 = vunpack.c.l.b16 %v941
        %v4368 = vunpack.c.l.b16 %v942
        %v4369 = vunpack.c.l.b16 %v943
        %v4370 = vunpack.c.l.b16 %v944
        %v4371 = vunpack.c.l.b16 %v945
        %v4372 = vunpack.c.l.b16 %v946
        %v4373 = vunpack.c.l.b16 %v947
        %v4374 = vunpack.c.l.b16 %v948
        %v4375 = vunpack.c.l.b16 %v949
        %v4376 = vunpack.c.l.b16 %v950
        %v4377 = vunpack.c.l.b16 %v951
        %v4378 = vunpack.c.l.b16 %v952
        %v4379 = vunpack.c.l.b16 %v953
        %v4380 = vunpack.c.l.b16 %v954
        %v4381 = vpack.c.b16 %v4318, %v4317
        %v4382 = vpack.c.b16 %v4320, %v4319
        %v4383 = vpack.c.b16 %v4322, %v4321
        %v4384 = vpack.c.b16 %v4324, %v4323
        %v4385 = vpack.c.b16 %v4326, %v4325
        %v4386 = vpack.c.b16 %v4328, %v4327
        %v4387 = vpack.c.b16 %v4330, %v4329
        %v4388 = vpack.c.b16 %v4332, %v4331
        %v4389 = vpack.c.b16 %v4334, %v4333
        %v4390 = vpack.c.b16 %v4336, %v4335
        %v4391 = vpack.c.b16 %v4338, %v4337
        %v4392 = vpack.c.b16 %v4340, %v4339
        %v4393 = vpack.c.b16 %v4342, %v4341
        %v4394 = vpack.c.b16 %v4344, %v4343
        %v4395 = vpack.c.b16 %v4346, %v4345
        %v4396 = vpack.c.b16 %v4348, %v4347
        %v4397 = vpack.c.b16 %v4350, %v4349
        %v4398 = vpack.c.b16 %v4352, %v4351
        %v4399 = vpack.c.b16 %v4354, %v4353
        %v4400 = vpack.c.b16 %v4356, %v4355
        %v4401 = vpack.c.b16 %v4358, %v4357
        %v4402 = vpack.c.b16 %v4360, %v4359
        %v4403 = vpack.c.b16 %v4362, %v4361
        %v4404 = vpack.c.b16 %v4364, %v4363
        %v4405 = vpack.c.b16 %v4366, %v4365
        %v4406 = vpack.c.b16 %v4368, %v4367
        %v4407 = vpack.c.b16 %v4370, %v4369
        %v4408 = vpack.c.b16 %v4372, %v4371
        %v4409 = vpack.c.b16 %v4374, %v4373
        %v4410 = vpack.c.b16 %v4376, %v4375
        %v4411 = vpack.c.b16 %v4378, %v4377
        %v4412 = vpack.c.b16 %v4380, %v4379
        %4445 = vmatprep.subr.bf16.mxu0 0
        %4446 = vmatpush1.bf16.msra.mxu0 %v4388
        %4447 = vmatprep.subr.bf16.mxu0 0
        %4448 = vmatpush1.bf16.msra.mxu0 %v4387
        %4449 = vmatprep.subr.bf16.mxu0 0
        %4450 = vmatpush1.bf16.msra.mxu0 %v4386
        %4451 = vmatprep.subr.bf16.mxu0 0
        %4452 = vmatpush1.bf16.msra.mxu0 %v4385
        %4453 = vmatprep.subr.bf16.mxu0 0
        %4454 = vmatpush1.bf16.msra.mxu0 %v4384
        %4455 = vmatprep.subr.bf16.mxu0 0
        %4456 = vmatpush1.bf16.msra.mxu0 %v4383
        %4457 = vmatprep.subr.bf16.mxu0 0
        %4458 = vmatpush1.bf16.msra.mxu0 %v4382
        %4459 = vmatprep.subr.bf16.mxu0 0
        %4460 = vmatpush1.bf16.msra.mxu0 %v4381
        %4461 = vmatprep.subr.bf16.mxu0 0
        %4462 = vmatpush2.bf16.msra.mxu0 %v4396
        %4463 = vmatprep.subr.bf16.mxu0 0
        %4464 = vmatpush2.bf16.msra.mxu0 %v4395
        %4465 = vmatprep.subr.bf16.mxu0 0
        %4466 = vmatpush2.bf16.msra.mxu0 %v4394
        %4467 = vmatprep.subr.bf16.mxu0 0
        %4468 = vmatpush2.bf16.msra.mxu0 %v4393
        %4469 = vmatprep.subr.bf16.mxu0 0
        %4470 = vmatpush2.bf16.msra.mxu0 %v4392
        %4471 = vmatprep.subr.bf16.mxu0 0
        %4472 = vmatpush2.bf16.msra.mxu0 %v4391
        %4473 = vmatprep.subr.bf16.mxu0 0
        %4474 = vmatpush2.bf16.msra.mxu0 %v4390
        %4475 = vmatprep.subr.bf16.mxu0 0
        %4476 = vmatpush2.bf16.msra.mxu0 %v4389
        %4477 = vmatprep.mubr.bf16.mxu0 %v4126
        %4478 = vmatmul.mubr.bf16.gmra.mxu0 %v4125
        %v4479 = vpop.f32.mrf.mxu0
        %v4480 = vadd.f32 0.0, %v4479
        %v4481 = vpop.f32.mrf.mxu0
        %v4482 = vpop.f32.mrf.mxu0
        %v4483 = vadd.f32 0.0, %v4482
        %v4484 = vpop.f32.mrf.mxu0
        %4485 = vmatprep.mubr.bf16.mxu0 %v4130
        %4486 = vmatmul.mubr.bf16.gmra.mxu0 %v4129
        %v4487 = vpop.f32.mrf.mxu0
        %v4488 = vadd.f32 0.0, %v4487
        %v4489 = vpop.f32.mrf.mxu0
        %v4490 = vpop.f32.mrf.mxu0
        %v4491 = vadd.f32 0.0, %v4490
        %v4492 = vpop.f32.mrf.mxu0
        %4493 = vmatprep.mubr.bf16.mxu0 %v4134
        %4494 = vmatmul.mubr.bf16.gmra.mxu0 %v4133
        %v4495 = vpop.f32.mrf.mxu0
        %v4496 = vadd.f32 0.0, %v4495
        %v4497 = vpop.f32.mrf.mxu0
        %v4498 = vpop.f32.mrf.mxu0
        %v4499 = vadd.f32 0.0, %v4498
        %v4500 = vpop.f32.mrf.mxu0
        %4501 = vmatprep.mubr.bf16.mxu0 %v4138
        %4502 = vmatmul.mubr.bf16.gmra.mxu0 %v4137
        %v4503 = vpop.f32.mrf.mxu0
        %v4504 = vadd.f32 0.0, %v4503
        %v4505 = vpop.f32.mrf.mxu0
        %v4506 = vpop.f32.mrf.mxu0
        %v4507 = vadd.f32 0.0, %v4506
        %v4508 = vpop.f32.mrf.mxu0
        %4509 = vmatprep.mubr.bf16.mxu0 %v4142
        %4510 = vmatmul.mubr.bf16.gmra.mxu0 %v4141
        %v4511 = vpop.f32.mrf.mxu0
        %v4512 = vadd.f32 0.0, %v4511
        %v4513 = vpop.f32.mrf.mxu0
        %v4514 = vpop.f32.mrf.mxu0
        %v4515 = vadd.f32 0.0, %v4514
        %v4516 = vpop.f32.mrf.mxu0
        %4517 = vmatprep.mubr.bf16.mxu0 %v4146
        %4518 = vmatmul.mubr.bf16.gmra.mxu0 %v4145
        %v4519 = vpop.f32.mrf.mxu0
        %v4520 = vadd.f32 0.0, %v4519
        %v4521 = vpop.f32.mrf.mxu0
        %v4522 = vpop.f32.mrf.mxu0
        %v4523 = vadd.f32 0.0, %v4522
        %v4524 = vpop.f32.mrf.mxu0
        %4525 = vmatprep.mubr.bf16.mxu0 %v4150
        %4526 = vmatmul.mubr.bf16.gmra.mxu0 %v4149
        %v4527 = vpop.f32.mrf.mxu0
        %v4528 = vadd.f32 0.0, %v4527
        %v4529 = vpop.f32.mrf.mxu0
        %v4530 = vpop.f32.mrf.mxu0
        %v4531 = vadd.f32 0.0, %v4530
        %v4532 = vpop.f32.mrf.mxu0
        %4533 = vmatprep.mubr.bf16.mxu0 %v4154
        %4534 = vmatmul.mubr.bf16.gmra.mxu0 %v4153
        %v4535 = vpop.f32.mrf.mxu0
        %v4536 = vadd.f32 0.0, %v4535
        %v4537 = vpop.f32.mrf.mxu0
        %v4538 = vpop.f32.mrf.mxu0
        %v4539 = vadd.f32 0.0, %v4538
        %v4540 = vpop.f32.mrf.mxu0
        %4541 = vmatprep.mubr.bf16.mxu0 %v4158
        %4542 = vmatmul.mubr.bf16.gmra.mxu0 %v4157
        %v4543 = vpop.f32.mrf.mxu0
        %v4544 = vadd.f32 0.0, %v4543
        %v4545 = vpop.f32.mrf.mxu0
        %v4546 = vpop.f32.mrf.mxu0
        %v4547 = vadd.f32 0.0, %v4546
        %v4548 = vpop.f32.mrf.mxu0
        %4549 = vmatprep.mubr.bf16.mxu0 %v4162
        %4550 = vmatmul.mubr.bf16.gmra.mxu0 %v4161
        %v4551 = vpop.f32.mrf.mxu0
        %v4552 = vadd.f32 0.0, %v4551
        %v4553 = vpop.f32.mrf.mxu0
        %v4554 = vpop.f32.mrf.mxu0
        %v4555 = vadd.f32 0.0, %v4554
        %v4556 = vpop.f32.mrf.mxu0
        %4557 = vmatprep.mubr.bf16.mxu0 %v4166
        %4558 = vmatmul.mubr.bf16.gmra.mxu0 %v4165
        %v4559 = vpop.f32.mrf.mxu0
        %v4560 = vadd.f32 0.0, %v4559
        %v4561 = vpop.f32.mrf.mxu0
        %v4562 = vpop.f32.mrf.mxu0
        %v4563 = vadd.f32 0.0, %v4562
        %v4564 = vpop.f32.mrf.mxu0
        %4565 = vmatprep.mubr.bf16.mxu0 %v4170
        %4566 = vmatmul.mubr.bf16.gmra.mxu0 %v4169
        %v4567 = vpop.f32.mrf.mxu0
        %v4568 = vadd.f32 0.0, %v4567
        %v4569 = vpop.f32.mrf.mxu0
        %v4570 = vpop.f32.mrf.mxu0
        %v4571 = vadd.f32 0.0, %v4570
        %v4572 = vpop.f32.mrf.mxu0
        %4573 = vmatprep.mubr.bf16.mxu0 %v4174
        %4574 = vmatmul.mubr.bf16.gmra.mxu0 %v4173
        %v4575 = vpop.f32.mrf.mxu0
        %v4576 = vadd.f32 0.0, %v4575
        %v4577 = vpop.f32.mrf.mxu0
        %v4578 = vpop.f32.mrf.mxu0
        %v4579 = vadd.f32 0.0, %v4578
        %v4580 = vpop.f32.mrf.mxu0
        %4581 = vmatprep.mubr.bf16.mxu0 %v4178
        %4582 = vmatmul.mubr.bf16.gmra.mxu0 %v4177
        %v4583 = vpop.f32.mrf.mxu0
        %v4584 = vadd.f32 0.0, %v4583
        %v4585 = vpop.f32.mrf.mxu0
        %v4586 = vpop.f32.mrf.mxu0
        %v4587 = vadd.f32 0.0, %v4586
        %v4588 = vpop.f32.mrf.mxu0
        %4589 = vmatprep.mubr.bf16.mxu0 %v4182
        %4590 = vmatmul.mubr.bf16.gmra.mxu0 %v4181
        %v4591 = vpop.f32.mrf.mxu0
        %v4592 = vadd.f32 0.0, %v4591
        %v4593 = vpop.f32.mrf.mxu0
        %v4594 = vpop.f32.mrf.mxu0
        %v4595 = vadd.f32 0.0, %v4594
        %v4596 = vpop.f32.mrf.mxu0
        %4597 = vmatprep.mubr.bf16.mxu0 %v4186
        %4598 = vmatmul.mubr.bf16.gmra.mxu0 %v4185
        %v4599 = vpop.f32.mrf.mxu0
        %v4600 = vadd.f32 0.0, %v4599
        %v4601 = vpop.f32.mrf.mxu0
        %v4602 = vpop.f32.mrf.mxu0
        %v4603 = vadd.f32 0.0, %v4602
        %v4604 = vpop.f32.mrf.mxu0
        %4605 = vmatprep.mubr.bf16.mxu0 %v4190
        %4606 = vmatmul.mubr.bf16.gmra.mxu0 %v4189
        %v4607 = vpop.f32.mrf.mxu0
        %v4608 = vadd.f32 0.0, %v4607
        %v4609 = vpop.f32.mrf.mxu0
        %v4610 = vpop.f32.mrf.mxu0
        %v4611 = vadd.f32 0.0, %v4610
        %v4612 = vpop.f32.mrf.mxu0
        %4613 = vmatprep.mubr.bf16.mxu0 %v4194
        %4614 = vmatmul.mubr.bf16.gmra.mxu0 %v4193
        %v4615 = vpop.f32.mrf.mxu0
        %v4616 = vadd.f32 0.0, %v4615
        %v4617 = vpop.f32.mrf.mxu0
        %v4618 = vpop.f32.mrf.mxu0
        %v4619 = vadd.f32 0.0, %v4618
        %v4620 = vpop.f32.mrf.mxu0
        %4621 = vmatprep.mubr.bf16.mxu0 %v4198
        %4622 = vmatmul.mubr.bf16.gmra.mxu0 %v4197
        %v4623 = vpop.f32.mrf.mxu0
        %v4624 = vadd.f32 0.0, %v4623
        %v4625 = vpop.f32.mrf.mxu0
        %v4626 = vpop.f32.mrf.mxu0
        %v4627 = vadd.f32 0.0, %v4626
        %v4628 = vpop.f32.mrf.mxu0
        %4629 = vmatprep.mubr.bf16.mxu0 %v4202
        %4630 = vmatmul.mubr.bf16.gmra.mxu0 %v4201
        %v4631 = vpop.f32.mrf.mxu0
        %v4632 = vadd.f32 0.0, %v4631
        %v4633 = vpop.f32.mrf.mxu0
        %v4634 = vpop.f32.mrf.mxu0
        %v4635 = vadd.f32 0.0, %v4634
        %v4636 = vpop.f32.mrf.mxu0
        %4637 = vmatprep.mubr.bf16.mxu0 %v4206
        %4638 = vmatmul.mubr.bf16.gmra.mxu0 %v4205
        %v4639 = vpop.f32.mrf.mxu0
        %v4640 = vadd.f32 0.0, %v4639
        %v4641 = vpop.f32.mrf.mxu0
        %v4642 = vpop.f32.mrf.mxu0
        %v4643 = vadd.f32 0.0, %v4642
        %v4644 = vpop.f32.mrf.mxu0
        %4645 = vmatprep.mubr.bf16.mxu0 %v4210
        %4646 = vmatmul.mubr.bf16.gmra.mxu0 %v4209
        %v4647 = vpop.f32.mrf.mxu0
        %v4648 = vadd.f32 0.0, %v4647
        %v4649 = vpop.f32.mrf.mxu0
        %v4650 = vpop.f32.mrf.mxu0
        %v4651 = vadd.f32 0.0, %v4650
        %v4652 = vpop.f32.mrf.mxu0
        %4653 = vmatprep.mubr.bf16.mxu0 %v4214
        %4654 = vmatmul.mubr.bf16.gmra.mxu0 %v4213
        %v4655 = vpop.f32.mrf.mxu0
        %v4656 = vadd.f32 0.0, %v4655
        %v4657 = vpop.f32.mrf.mxu0
        %v4658 = vpop.f32.mrf.mxu0
        %v4659 = vadd.f32 0.0, %v4658
        %v4660 = vpop.f32.mrf.mxu0
        %4661 = vmatprep.mubr.bf16.mxu0 %v4218
        %4662 = vmatmul.mubr.bf16.gmra.mxu0 %v4217
        %v4663 = vpop.f32.mrf.mxu0
        %v4664 = vadd.f32 0.0, %v4663
        %v4665 = vpop.f32.mrf.mxu0
        %v4666 = vpop.f32.mrf.mxu0
        %v4667 = vadd.f32 0.0, %v4666
        %v4668 = vpop.f32.mrf.mxu0
        %4669 = vmatprep.mubr.bf16.mxu0 %v4222
        %4670 = vmatmul.mubr.bf16.gmra.mxu0 %v4221
        %v4671 = vpop.f32.mrf.mxu0
        %v4672 = vadd.f32 0.0, %v4671
        %v4673 = vpop.f32.mrf.mxu0
        %v4674 = vpop.f32.mrf.mxu0
        %v4675 = vadd.f32 0.0, %v4674
        %v4676 = vpop.f32.mrf.mxu0
        %4677 = vmatprep.mubr.bf16.mxu0 %v4226
        %4678 = vmatmul.mubr.bf16.gmra.mxu0 %v4225
        %v4679 = vpop.f32.mrf.mxu0
        %v4680 = vadd.f32 0.0, %v4679
        %v4681 = vpop.f32.mrf.mxu0
        %v4682 = vpop.f32.mrf.mxu0
        %v4683 = vadd.f32 0.0, %v4682
        %v4684 = vpop.f32.mrf.mxu0
        %4685 = vmatprep.mubr.bf16.mxu0 %v4230
        %4686 = vmatmul.mubr.bf16.gmra.mxu0 %v4229
        %v4687 = vpop.f32.mrf.mxu0
        %v4688 = vadd.f32 0.0, %v4687
        %v4689 = vpop.f32.mrf.mxu0
        %v4690 = vpop.f32.mrf.mxu0
        %v4691 = vadd.f32 0.0, %v4690
        %v4692 = vpop.f32.mrf.mxu0
        %4693 = vmatprep.mubr.bf16.mxu0 %v4234
        %4694 = vmatmul.mubr.bf16.gmra.mxu0 %v4233
        %v4695 = vpop.f32.mrf.mxu0
        %v4696 = vadd.f32 0.0, %v4695
        %v4697 = vpop.f32.mrf.mxu0
        %v4698 = vpop.f32.mrf.mxu0
        %v4699 = vadd.f32 0.0, %v4698
        %v4700 = vpop.f32.mrf.mxu0
        %4701 = vmatprep.mubr.bf16.mxu0 %v4238
        %4702 = vmatmul.mubr.bf16.gmra.mxu0 %v4237
        %v4703 = vpop.f32.mrf.mxu0
        %v4704 = vadd.f32 0.0, %v4703
        %v4705 = vpop.f32.mrf.mxu0
        %v4706 = vpop.f32.mrf.mxu0
        %v4707 = vadd.f32 0.0, %v4706
        %v4708 = vpop.f32.mrf.mxu0
        %4709 = vmatprep.mubr.bf16.mxu0 %v4242
        %4710 = vmatmul.mubr.bf16.gmra.mxu0 %v4241
        %v4711 = vpop.f32.mrf.mxu0
        %v4712 = vadd.f32 0.0, %v4711
        %v4713 = vpop.f32.mrf.mxu0
        %v4714 = vpop.f32.mrf.mxu0
        %v4715 = vadd.f32 0.0, %v4714
        %v4716 = vpop.f32.mrf.mxu0
        %4717 = vmatprep.mubr.bf16.mxu0 %v4246
        %4718 = vmatmul.mubr.bf16.gmra.mxu0 %v4245
        %v4719 = vpop.f32.mrf.mxu0
        %v4720 = vadd.f32 0.0, %v4719
        %v4721 = vpop.f32.mrf.mxu0
        %v4722 = vpop.f32.mrf.mxu0
        %v4723 = vadd.f32 0.0, %v4722
        %v4724 = vpop.f32.mrf.mxu0
        %4725 = vmatprep.mubr.bf16.mxu0 %v4250
        %4726 = vmatmul.mubr.bf16.gmra.mxu0 %v4249
        %v4727 = vpop.f32.mrf.mxu0
        %v4728 = vadd.f32 0.0, %v4727
        %v4729 = vpop.f32.mrf.mxu0
        %v4730 = vpop.f32.mrf.mxu0
        %v4731 = vadd.f32 0.0, %v4730
        %v4732 = vpop.f32.mrf.mxu0
        %4733 = vdwg.mxu0
        %4734 = vmatprep.subr.bf16.mxu0 0
        %4735 = vmatpush1.bf16.msra.mxu0 %v4404
        %4736 = vmatprep.subr.bf16.mxu0 0
        %4737 = vmatpush1.bf16.msra.mxu0 %v4403
        %4738 = vmatprep.subr.bf16.mxu0 0
        %4739 = vmatpush1.bf16.msra.mxu0 %v4402
        %4740 = vmatprep.subr.bf16.mxu0 0
        %4741 = vmatpush1.bf16.msra.mxu0 %v4401
        %4742 = vmatprep.subr.bf16.mxu0 0
        %4743 = vmatpush1.bf16.msra.mxu0 %v4400
        %4744 = vmatprep.subr.bf16.mxu0 0
        %4745 = vmatpush1.bf16.msra.mxu0 %v4399
        %4746 = vmatprep.subr.bf16.mxu0 0
        %4747 = vmatpush1.bf16.msra.mxu0 %v4398
        %4748 = vmatprep.subr.bf16.mxu0 0
        %4749 = vmatpush1.bf16.msra.mxu0 %v4397
        %4750 = vmatprep.subr.bf16.mxu0 0
        %4751 = vmatpush2.bf16.msra.mxu0 %v4412
        %4752 = vmatprep.subr.bf16.mxu0 0
        %4753 = vmatpush2.bf16.msra.mxu0 %v4411
        %4754 = vmatprep.subr.bf16.mxu0 0
        %4755 = vmatpush2.bf16.msra.mxu0 %v4410
        %4756 = vmatprep.subr.bf16.mxu0 0
        %4757 = vmatpush2.bf16.msra.mxu0 %v4409
        %4758 = vmatprep.subr.bf16.mxu0 0
        %4759 = vmatpush2.bf16.msra.mxu0 %v4408
        %4760 = vmatprep.subr.bf16.mxu0 0
        %4761 = vmatpush2.bf16.msra.mxu0 %v4407
        %4762 = vmatprep.subr.bf16.mxu0 0
        %4763 = vmatpush2.bf16.msra.mxu0 %v4406
        %4764 = vmatprep.subr.bf16.mxu0 0
        %4765 = vmatpush2.bf16.msra.mxu0 %v4405
        %4766 = vmatprep.mubr.bf16.mxu0 %v4128
        %4767 = vmatmul.mubr.bf16.gmra.mxu0 %v4127
        %v4768 = vpop.f32.mrf.mxu0
        %v4769 = vadd.f32 %v4480, %v4768
        %v4770 = vpop.f32.mrf.mxu0
        %v4771 = vpop.f32.mrf.mxu0
        %v4772 = vadd.f32 %v4483, %v4771
        %v4773 = vpop.f32.mrf.mxu0
        %4774 = vmatprep.mubr.bf16.mxu0 %v4132
        %4775 = vmatmul.mubr.bf16.gmra.mxu0 %v4131
        %v4776 = vpop.f32.mrf.mxu0
        %v4777 = vadd.f32 %v4488, %v4776
        %v4778 = vpop.f32.mrf.mxu0
        %v4779 = vpop.f32.mrf.mxu0
        %v4780 = vadd.f32 %v4491, %v4779
        %v4781 = vpop.f32.mrf.mxu0
        %4782 = vmatprep.mubr.bf16.mxu0 %v4136
        %4783 = vmatmul.mubr.bf16.gmra.mxu0 %v4135
        %v4784 = vpop.f32.mrf.mxu0
        %v4785 = vadd.f32 %v4496, %v4784
        %v4786 = vpop.f32.mrf.mxu0
        %v4787 = vpop.f32.mrf.mxu0
        %v4788 = vadd.f32 %v4499, %v4787
        %v4789 = vpop.f32.mrf.mxu0
        %4790 = vmatprep.mubr.bf16.mxu0 %v4140
        %4791 = vmatmul.mubr.bf16.gmra.mxu0 %v4139
        %v4792 = vpop.f32.mrf.mxu0
        %v4793 = vadd.f32 %v4504, %v4792
        %v4794 = vpop.f32.mrf.mxu0
        %v4795 = vpop.f32.mrf.mxu0
        %v4796 = vadd.f32 %v4507, %v4795
        %v4797 = vpop.f32.mrf.mxu0
        %4798 = vmatprep.mubr.bf16.mxu0 %v4144
        %4799 = vmatmul.mubr.bf16.gmra.mxu0 %v4143
        %v4800 = vpop.f32.mrf.mxu0
        %v4801 = vadd.f32 %v4512, %v4800
        %v4802 = vpop.f32.mrf.mxu0
        %v4803 = vpop.f32.mrf.mxu0
        %v4804 = vadd.f32 %v4515, %v4803
        %v4805 = vpop.f32.mrf.mxu0
        %4806 = vmatprep.mubr.bf16.mxu0 %v4148
        %4807 = vmatmul.mubr.bf16.gmra.mxu0 %v4147
        %v4808 = vpop.f32.mrf.mxu0
        %v4809 = vadd.f32 %v4520, %v4808
        %v4810 = vpop.f32.mrf.mxu0
        %v4811 = vpop.f32.mrf.mxu0
        %v4812 = vadd.f32 %v4523, %v4811
        %v4813 = vpop.f32.mrf.mxu0
        %4814 = vmatprep.mubr.bf16.mxu0 %v4152
        %4815 = vmatmul.mubr.bf16.gmra.mxu0 %v4151
        %v4816 = vpop.f32.mrf.mxu0
        %v4817 = vadd.f32 %v4528, %v4816
        %v4818 = vpop.f32.mrf.mxu0
        %v4819 = vpop.f32.mrf.mxu0
        %v4820 = vadd.f32 %v4531, %v4819
        %v4821 = vpop.f32.mrf.mxu0
        %4822 = vmatprep.mubr.bf16.mxu0 %v4156
        %4823 = vmatmul.mubr.bf16.gmra.mxu0 %v4155
        %v4824 = vpop.f32.mrf.mxu0
        %v4825 = vadd.f32 %v4536, %v4824
        %v4826 = vpop.f32.mrf.mxu0
        %v4827 = vpop.f32.mrf.mxu0
        %v4828 = vadd.f32 %v4539, %v4827
        %v4829 = vpop.f32.mrf.mxu0
        %4830 = vmatprep.mubr.bf16.mxu0 %v4160
        %4831 = vmatmul.mubr.bf16.gmra.mxu0 %v4159
        %v4832 = vpop.f32.mrf.mxu0
        %v4833 = vadd.f32 %v4544, %v4832
        %v4834 = vpop.f32.mrf.mxu0
        %v4835 = vpop.f32.mrf.mxu0
        %v4836 = vadd.f32 %v4547, %v4835
        %v4837 = vpop.f32.mrf.mxu0
        %4838 = vmatprep.mubr.bf16.mxu0 %v4164
        %4839 = vmatmul.mubr.bf16.gmra.mxu0 %v4163
        %v4840 = vpop.f32.mrf.mxu0
        %v4841 = vadd.f32 %v4552, %v4840
        %v4842 = vpop.f32.mrf.mxu0
        %v4843 = vpop.f32.mrf.mxu0
        %v4844 = vadd.f32 %v4555, %v4843
        %v4845 = vpop.f32.mrf.mxu0
        %4846 = vmatprep.mubr.bf16.mxu0 %v4168
        %4847 = vmatmul.mubr.bf16.gmra.mxu0 %v4167
        %v4848 = vpop.f32.mrf.mxu0
        %v4849 = vadd.f32 %v4560, %v4848
        %v4850 = vpop.f32.mrf.mxu0
        %v4851 = vpop.f32.mrf.mxu0
        %v4852 = vadd.f32 %v4563, %v4851
        %v4853 = vpop.f32.mrf.mxu0
        %4854 = vmatprep.mubr.bf16.mxu0 %v4172
        %4855 = vmatmul.mubr.bf16.gmra.mxu0 %v4171
        %v4856 = vpop.f32.mrf.mxu0
        %v4857 = vadd.f32 %v4568, %v4856
        %v4858 = vpop.f32.mrf.mxu0
        %v4859 = vpop.f32.mrf.mxu0
        %v4860 = vadd.f32 %v4571, %v4859
        %v4861 = vpop.f32.mrf.mxu0
        %4862 = vmatprep.mubr.bf16.mxu0 %v4176
        %4863 = vmatmul.mubr.bf16.gmra.mxu0 %v4175
        %v4864 = vpop.f32.mrf.mxu0
        %v4865 = vadd.f32 %v4576, %v4864
        %v4866 = vpop.f32.mrf.mxu0
        %v4867 = vpop.f32.mrf.mxu0
        %v4868 = vadd.f32 %v4579, %v4867
        %v4869 = vpop.f32.mrf.mxu0
        %4870 = vmatprep.mubr.bf16.mxu0 %v4180
        %4871 = vmatmul.mubr.bf16.gmra.mxu0 %v4179
        %v4872 = vpop.f32.mrf.mxu0
        %v4873 = vadd.f32 %v4584, %v4872
        %v4874 = vpop.f32.mrf.mxu0
        %v4875 = vpop.f32.mrf.mxu0
        %v4876 = vadd.f32 %v4587, %v4875
        %v4877 = vpop.f32.mrf.mxu0
        %4878 = vmatprep.mubr.bf16.mxu0 %v4184
        %4879 = vmatmul.mubr.bf16.gmra.mxu0 %v4183
        %v4880 = vpop.f32.mrf.mxu0
        %v4881 = vadd.f32 %v4592, %v4880
        %v4882 = vpop.f32.mrf.mxu0
        %v4883 = vpop.f32.mrf.mxu0
        %v4884 = vadd.f32 %v4595, %v4883
        %v4885 = vpop.f32.mrf.mxu0
        %4886 = vmatprep.mubr.bf16.mxu0 %v4188
        %4887 = vmatmul.mubr.bf16.gmra.mxu0 %v4187
        %v4888 = vpop.f32.mrf.mxu0
        %v4889 = vadd.f32 %v4600, %v4888
        %v4890 = vpop.f32.mrf.mxu0
        %v4891 = vpop.f32.mrf.mxu0
        %v4892 = vadd.f32 %v4603, %v4891
        %v4893 = vpop.f32.mrf.mxu0
        %4894 = vmatprep.mubr.bf16.mxu0 %v4192
        %4895 = vmatmul.mubr.bf16.gmra.mxu0 %v4191
        %v4896 = vpop.f32.mrf.mxu0
        %v4897 = vadd.f32 %v4608, %v4896
        %v4898 = vpop.f32.mrf.mxu0
        %v4899 = vpop.f32.mrf.mxu0
        %v4900 = vadd.f32 %v4611, %v4899
        %v4901 = vpop.f32.mrf.mxu0
        %4902 = vmatprep.mubr.bf16.mxu0 %v4196
        %4903 = vmatmul.mubr.bf16.gmra.mxu0 %v4195
        %v4904 = vpop.f32.mrf.mxu0
        %v4905 = vadd.f32 %v4616, %v4904
        %v4906 = vpop.f32.mrf.mxu0
        %v4907 = vpop.f32.mrf.mxu0
        %v4908 = vadd.f32 %v4619, %v4907
        %v4909 = vpop.f32.mrf.mxu0
        %4910 = vmatprep.mubr.bf16.mxu0 %v4200
        %4911 = vmatmul.mubr.bf16.gmra.mxu0 %v4199
        %v4912 = vpop.f32.mrf.mxu0
        %v4913 = vadd.f32 %v4624, %v4912
        %v4914 = vpop.f32.mrf.mxu0
        %v4915 = vpop.f32.mrf.mxu0
        %v4916 = vadd.f32 %v4627, %v4915
        %v4917 = vpop.f32.mrf.mxu0
        %4918 = vmatprep.mubr.bf16.mxu0 %v4204
        %4919 = vmatmul.mubr.bf16.gmra.mxu0 %v4203
        %v4920 = vpop.f32.mrf.mxu0
        %v4921 = vadd.f32 %v4632, %v4920
        %v4922 = vpop.f32.mrf.mxu0
        %v4923 = vpop.f32.mrf.mxu0
        %v4924 = vadd.f32 %v4635, %v4923
        %v4925 = vpop.f32.mrf.mxu0
        %4926 = vmatprep.mubr.bf16.mxu0 %v4208
        %4927 = vmatmul.mubr.bf16.gmra.mxu0 %v4207
        %v4928 = vpop.f32.mrf.mxu0
        %v4929 = vadd.f32 %v4640, %v4928
        %v4930 = vpop.f32.mrf.mxu0
        %v4931 = vpop.f32.mrf.mxu0
        %v4932 = vadd.f32 %v4643, %v4931
        %v4933 = vpop.f32.mrf.mxu0
        %4934 = vmatprep.mubr.bf16.mxu0 %v4212
        %4935 = vmatmul.mubr.bf16.gmra.mxu0 %v4211
        %v4936 = vpop.f32.mrf.mxu0
        %v4937 = vadd.f32 %v4648, %v4936
        %v4938 = vpop.f32.mrf.mxu0
        %v4939 = vpop.f32.mrf.mxu0
        %v4940 = vadd.f32 %v4651, %v4939
        %v4941 = vpop.f32.mrf.mxu0
        %4942 = vmatprep.mubr.bf16.mxu0 %v4216
        %4943 = vmatmul.mubr.bf16.gmra.mxu0 %v4215
        %v4944 = vpop.f32.mrf.mxu0
        %v4945 = vadd.f32 %v4656, %v4944
        %v4946 = vpop.f32.mrf.mxu0
        %v4947 = vpop.f32.mrf.mxu0
        %v4948 = vadd.f32 %v4659, %v4947
        %v4949 = vpop.f32.mrf.mxu0
        %4950 = vmatprep.mubr.bf16.mxu0 %v4220
        %4951 = vmatmul.mubr.bf16.gmra.mxu0 %v4219
        %v4952 = vpop.f32.mrf.mxu0
        %v4953 = vadd.f32 %v4664, %v4952
        %v4954 = vpop.f32.mrf.mxu0
        %v4955 = vpop.f32.mrf.mxu0
        %v4956 = vadd.f32 %v4667, %v4955
        %v4957 = vpop.f32.mrf.mxu0
        %4958 = vmatprep.mubr.bf16.mxu0 %v4224
        %4959 = vmatmul.mubr.bf16.gmra.mxu0 %v4223
        %v4960 = vpop.f32.mrf.mxu0
        %v4961 = vadd.f32 %v4672, %v4960
        %v4962 = vpop.f32.mrf.mxu0
        %v4963 = vpop.f32.mrf.mxu0
        %v4964 = vadd.f32 %v4675, %v4963
        %v4965 = vpop.f32.mrf.mxu0
        %4966 = vmatprep.mubr.bf16.mxu0 %v4228
        %4967 = vmatmul.mubr.bf16.gmra.mxu0 %v4227
        %v4968 = vpop.f32.mrf.mxu0
        %v4969 = vadd.f32 %v4680, %v4968
        %v4970 = vpop.f32.mrf.mxu0
        %v4971 = vpop.f32.mrf.mxu0
        %v4972 = vadd.f32 %v4683, %v4971
        %v4973 = vpop.f32.mrf.mxu0
        %4974 = vmatprep.mubr.bf16.mxu0 %v4232
        %4975 = vmatmul.mubr.bf16.gmra.mxu0 %v4231
        %v4976 = vpop.f32.mrf.mxu0
        %v4977 = vadd.f32 %v4688, %v4976
        %v4978 = vpop.f32.mrf.mxu0
        %v4979 = vpop.f32.mrf.mxu0
        %v4980 = vadd.f32 %v4691, %v4979
        %v4981 = vpop.f32.mrf.mxu0
        %4982 = vmatprep.mubr.bf16.mxu0 %v4236
        %4983 = vmatmul.mubr.bf16.gmra.mxu0 %v4235
        %v4984 = vpop.f32.mrf.mxu0
        %v4985 = vadd.f32 %v4696, %v4984
        %v4986 = vpop.f32.mrf.mxu0
        %v4987 = vpop.f32.mrf.mxu0
        %v4988 = vadd.f32 %v4699, %v4987
        %v4989 = vpop.f32.mrf.mxu0
        %4990 = vmatprep.mubr.bf16.mxu0 %v4240
        %4991 = vmatmul.mubr.bf16.gmra.mxu0 %v4239
        %v4992 = vpop.f32.mrf.mxu0
        %v4993 = vadd.f32 %v4704, %v4992
        %v4994 = vpop.f32.mrf.mxu0
        %v4995 = vpop.f32.mrf.mxu0
        %v4996 = vadd.f32 %v4707, %v4995
        %v4997 = vpop.f32.mrf.mxu0
        %4998 = vmatprep.mubr.bf16.mxu0 %v4244
        %4999 = vmatmul.mubr.bf16.gmra.mxu0 %v4243
        %v5000 = vpop.f32.mrf.mxu0
        %v5001 = vadd.f32 %v4712, %v5000
        %v5002 = vpop.f32.mrf.mxu0
        %v5003 = vpop.f32.mrf.mxu0
        %v5004 = vadd.f32 %v4715, %v5003
        %v5005 = vpop.f32.mrf.mxu0
        %5006 = vmatprep.mubr.bf16.mxu0 %v4248
        %5007 = vmatmul.mubr.bf16.gmra.mxu0 %v4247
        %v5008 = vpop.f32.mrf.mxu0
        %v5009 = vadd.f32 %v4720, %v5008
        %v5010 = vpop.f32.mrf.mxu0
        %v5011 = vpop.f32.mrf.mxu0
        %v5012 = vadd.f32 %v4723, %v5011
        %v5013 = vpop.f32.mrf.mxu0
        %5014 = vmatprep.mubr.bf16.mxu0 %v4252
        %5015 = vmatmul.mubr.bf16.gmra.mxu0 %v4251
        %v5016 = vpop.f32.mrf.mxu0
        %v5017 = vadd.f32 %v4728, %v5016
        %v5018 = vpop.f32.mrf.mxu0
        %v5019 = vpop.f32.mrf.mxu0
        %v5020 = vadd.f32 %v4731, %v5019
        %v5021 = vpop.f32.mrf.mxu0
        %5022 = vdwg.mxu0
        %v5023 = vadd.f32 %v4061, %v4769
        %v5024 = vadd.f32 %v4062, %v4772
        %v5025 = vadd.f32 %v4063, %v4777
        %v5026 = vadd.f32 %v4064, %v4780
        %v5027 = vadd.f32 %v4065, %v4785
        %v5028 = vadd.f32 %v4066, %v4788
        %v5029 = vadd.f32 %v4067, %v4793
        %v5030 = vadd.f32 %v4068, %v4796
        %v5031 = vadd.f32 %v4069, %v4801
        %v5032 = vadd.f32 %v4070, %v4804
        %v5033 = vadd.f32 %v4071, %v4809
        %v5034 = vadd.f32 %v4072, %v4812
        %v5035 = vadd.f32 %v4073, %v4817
        %v5036 = vadd.f32 %v4074, %v4820
        %v5037 = vadd.f32 %v4075, %v4825
        %v5038 = vadd.f32 %v4076, %v4828
        %v5039 = vadd.f32 %v4077, %v4833
        %v5040 = vadd.f32 %v4078, %v4836
        %v5041 = vadd.f32 %v4079, %v4841
        %v5042 = vadd.f32 %v4080, %v4844
        %v5043 = vadd.f32 %v4081, %v4849
        %v5044 = vadd.f32 %v4082, %v4852
        %v5045 = vadd.f32 %v4083, %v4857
        %v5046 = vadd.f32 %v4084, %v4860
        %v5047 = vadd.f32 %v4085, %v4865
        %v5048 = vadd.f32 %v4086, %v4868
        %v5049 = vadd.f32 %v4087, %v4873
        %v5050 = vadd.f32 %v4088, %v4876
        %v5051 = vadd.f32 %v4089, %v4881
        %v5052 = vadd.f32 %v4090, %v4884
        %v5053 = vadd.f32 %v4091, %v4889
        %v5054 = vadd.f32 %v4092, %v4892
        %v5055 = vadd.f32 %v4093, %v4897
        %v5056 = vadd.f32 %v4094, %v4900
        %v5057 = vadd.f32 %v4095, %v4905
        %v5058 = vadd.f32 %v4096, %v4908
        %v5059 = vadd.f32 %v4097, %v4913
        %v5060 = vadd.f32 %v4098, %v4916
        %v5061 = vadd.f32 %v4099, %v4921
        %v5062 = vadd.f32 %v4100, %v4924
        %v5063 = vadd.f32 %v4101, %v4929
        %v5064 = vadd.f32 %v4102, %v4932
        %v5065 = vadd.f32 %v4103, %v4937
        %v5066 = vadd.f32 %v4104, %v4940
        %v5067 = vadd.f32 %v4105, %v4945
        %v5068 = vadd.f32 %v4106, %v4948
        %v5069 = vadd.f32 %v4107, %v4953
        %v5070 = vadd.f32 %v4108, %v4956
        %v5071 = vadd.f32 %v4109, %v4961
        %v5072 = vadd.f32 %v4110, %v4964
        %v5073 = vadd.f32 %v4111, %v4969
        %v5074 = vadd.f32 %v4112, %v4972
        %v5075 = vadd.f32 %v4113, %v4977
        %v5076 = vadd.f32 %v4114, %v4980
        %v5077 = vadd.f32 %v4115, %v4985
        %v5078 = vadd.f32 %v4116, %v4988
        %v5079 = vadd.f32 %v4117, %v4993
        %v5080 = vadd.f32 %v4118, %v4996
        %v5081 = vadd.f32 %v4119, %v5001
        %v5082 = vadd.f32 %v4120, %v5004
        %v5083 = vadd.f32 %v4121, %v5009
        %v5084 = vadd.f32 %v4122, %v5012
        %v5085 = vadd.f32 %v4123, %v5017
        %v5086 = vadd.f32 %v4124, %v5020
        %5087 = vst [vmem:[#allocation4] sm:$0xff] %v5023
        %5088 = vst [vmem:[#allocation4 + $0x8] sm:$0xff] %v5024
        %5089 = vst [vmem:[#allocation4 + $0x10] sm:$0xff] %v5025
        %5090 = vst [vmem:[#allocation4 + $0x18] sm:$0xff] %v5026
        %5091 = vst [vmem:[#allocation4 + $0x20] sm:$0xff] %v5027
        %5092 = vst [vmem:[#allocation4 + $0x28] sm:$0xff] %v5028
        %5093 = vst [vmem:[#allocation4 + $0x30] sm:$0xff] %v5029
        %5094 = vst [vmem:[#allocation4 + $0x38] sm:$0xff] %v5030
        %5095 = vst [vmem:[#allocation4 + $0x40] sm:$0xff] %v5031
        %5096 = vst [vmem:[#allocation4 + $0x48] sm:$0xff] %v5032
        %5097 = vst [vmem:[#allocation4 + $0x50] sm:$0xff] %v5033
        %5098 = vst [vmem:[#allocation4 + $0x58] sm:$0xff] %v5034
        %5099 = vst [vmem:[#allocation4 + $0x60] sm:$0xff] %v5035
        %5100 = vst [vmem:[#allocation4 + $0x68] sm:$0xff] %v5036
        %5101 = vst [vmem:[#allocation4 + $0x70] sm:$0xff] %v5037
        %5102 = vst [vmem:[#allocation4 + $0x78] sm:$0xff] %v5038
        %5103 = vst [vmem:[#allocation4 + $0x80] sm:$0xff] %v5039
        %5104 = vst [vmem:[#allocation4 + $0x88] sm:$0xff] %v5040
        %5105 = vst [vmem:[#allocation4 + $0x90] sm:$0xff] %v5041
        %5106 = vst [vmem:[#allocation4 + $0x98] sm:$0xff] %v5042
        %5107 = vst [vmem:[#allocation4 + $0xa0] sm:$0xff] %v5043
        %5108 = vst [vmem:[#allocation4 + $0xa8] sm:$0xff] %v5044
        %5109 = vst [vmem:[#allocation4 + $0xb0] sm:$0xff] %v5045
        %5110 = vst [vmem:[#allocation4 + $0xb8] sm:$0xff] %v5046
        %5111 = vst [vmem:[#allocation4 + $0xc0] sm:$0xff] %v5047
        %5112 = vst [vmem:[#allocation4 + $0xc8] sm:$0xff] %v5048
        %5113 = vst [vmem:[#allocation4 + $0xd0] sm:$0xff] %v5049
        %5114 = vst [vmem:[#allocation4 + $0xd8] sm:$0xff] %v5050
        %5115 = vst [vmem:[#allocation4 + $0xe0] sm:$0xff] %v5051
        %5116 = vst [vmem:[#allocation4 + $0xe8] sm:$0xff] %v5052
        %5117 = vst [vmem:[#allocation4 + $0xf0] sm:$0xff] %v5053
        %5118 = vst [vmem:[#allocation4 + $0xf8] sm:$0xff] %v5054
        %5119 = vst [vmem:[#allocation4 + $0x100] sm:$0xff] %v5055
        %5120 = vst [vmem:[#allocation4 + $0x108] sm:$0xff] %v5056
        %5121 = vst [vmem:[#allocation4 + $0x110] sm:$0xff] %v5057
        %5122 = vst [vmem:[#allocation4 + $0x118] sm:$0xff] %v5058
        %5123 = vst [vmem:[#allocation4 + $0x120] sm:$0xff] %v5059
        %5124 = vst [vmem:[#allocation4 + $0x128] sm:$0xff] %v5060
        %5125 = vst [vmem:[#allocation4 + $0x130] sm:$0xff] %v5061
        %5126 = vst [vmem:[#allocation4 + $0x138] sm:$0xff] %v5062
        %5127 = vst [vmem:[#allocation4 + $0x140] sm:$0xff] %v5063
        %5128 = vst [vmem:[#allocation4 + $0x148] sm:$0xff] %v5064
        %5129 = vst [vmem:[#allocation4 + $0x150] sm:$0xff] %v5065
        %5130 = vst [vmem:[#allocation4 + $0x158] sm:$0xff] %v5066
        %5131 = vst [vmem:[#allocation4 + $0x160] sm:$0xff] %v5067
        %5132 = vst [vmem:[#allocation4 + $0x168] sm:$0xff] %v5068
        %5133 = vst [vmem:[#allocation4 + $0x170] sm:$0xff] %v5069
        %5134 = vst [vmem:[#allocation4 + $0x178] sm:$0xff] %v5070
        %5135 = vst [vmem:[#allocation4 + $0x180] sm:$0xff] %v5071
        %5136 = vst [vmem:[#allocation4 + $0x188] sm:$0xff] %v5072
        %5137 = vst [vmem:[#allocation4 + $0x190] sm:$0xff] %v5073
        %5138 = vst [vmem:[#allocation4 + $0x198] sm:$0xff] %v5074
        %5139 = vst [vmem:[#allocation4 + $0x1a0] sm:$0xff] %v5075
        %5140 = vst [vmem:[#allocation4 + $0x1a8] sm:$0xff] %v5076
        %5141 = vst [vmem:[#allocation4 + $0x1b0] sm:$0xff] %v5077
        %5142 = vst [vmem:[#allocation4 + $0x1b8] sm:$0xff] %v5078
        %5143 = vst [vmem:[#allocation4 + $0x1c0] sm:$0xff] %v5079
        %5144 = vst [vmem:[#allocation4 + $0x1c8] sm:$0xff] %v5080
        %5145 = vst [vmem:[#allocation4 + $0x1d0] sm:$0xff] %v5081
        %5146 = vst [vmem:[#allocation4 + $0x1d8] sm:$0xff] %v5082
        %5147 = vst [vmem:[#allocation4 + $0x1e0] sm:$0xff] %v5083
        %5148 = vst [vmem:[#allocation4 + $0x1e8] sm:$0xff] %v5084
        %5149 = vst [vmem:[#allocation4 + $0x1f0] sm:$0xff] %v5085
        %5150 = vst [vmem:[#allocation4 + $0x1f8] sm:$0xff] %v5086
        %5151 = vst [vmem:[#allocation2] sm:$0xff] %v2397
        %5152 = vst [vmem:[#allocation2 + $0x8] sm:$0xff] %v2398
        %5153 = vst [vmem:[#allocation2 + $0x10] sm:$0xff] %v2399
        %5154 = vst [vmem:[#allocation2 + $0x18] sm:$0xff] %v2400
        %5155 = vst [vmem:[#allocation2 + $0x20] sm:$0xff] %v2401
        %5156 = vst [vmem:[#allocation2 + $0x28] sm:$0xff] %v2402
        %5157 = vst [vmem:[#allocation2 + $0x30] sm:$0xff] %v2403
        %5158 = vst [vmem:[#allocation2 + $0x38] sm:$0xff] %v2404
        %5159 = vst [vmem:[#allocation2 + $0x40] sm:$0xff] %v2405
        %5160 = vst [vmem:[#allocation2 + $0x48] sm:$0xff] %v2406
        %5161 = vst [vmem:[#allocation2 + $0x50] sm:$0xff] %v2407
        %5162 = vst [vmem:[#allocation2 + $0x58] sm:$0xff] %v2408
        %5163 = vst [vmem:[#allocation2 + $0x60] sm:$0xff] %v2409
        %5164 = vst [vmem:[#allocation2 + $0x68] sm:$0xff] %v2410
        %5165 = vst [vmem:[#allocation2 + $0x70] sm:$0xff] %v2411
        %5166 = vst [vmem:[#allocation2 + $0x78] sm:$0xff] %v2412
        %5167 = vst [vmem:[#allocation2 + $0x80] sm:$0xff] %v2413
        %5168 = vst [vmem:[#allocation2 + $0x88] sm:$0xff] %v2414
        %5169 = vst [vmem:[#allocation2 + $0x90] sm:$0xff] %v2415
        %5170 = vst [vmem:[#allocation2 + $0x98] sm:$0xff] %v2416
        %5171 = vst [vmem:[#allocation2 + $0xa0] sm:$0xff] %v2417
        %5172 = vst [vmem:[#allocation2 + $0xa8] sm:$0xff] %v2418
        %5173 = vst [vmem:[#allocation2 + $0xb0] sm:$0xff] %v2419
        %5174 = vst [vmem:[#allocation2 + $0xb8] sm:$0xff] %v2420
        %5175 = vst [vmem:[#allocation2 + $0xc0] sm:$0xff] %v2421
        %5176 = vst [vmem:[#allocation2 + $0xc8] sm:$0xff] %v2422
        %5177 = vst [vmem:[#allocation2 + $0xd0] sm:$0xff] %v2423
        %5178 = vst [vmem:[#allocation2 + $0xd8] sm:$0xff] %v2424
        %5179 = vst [vmem:[#allocation2 + $0xe0] sm:$0xff] %v2425
        %5180 = vst [vmem:[#allocation2 + $0xe8] sm:$0xff] %v2426
        %5181 = vst [vmem:[#allocation2 + $0xf0] sm:$0xff] %v2427
        %5182 = vst [vmem:[#allocation2 + $0xf8] sm:$0xff] %v2428
        %5183 = vst [vmem:[#allocation2 + $0x100] sm:$0xff] %v2429
        %5184 = vst [vmem:[#allocation2 + $0x108] sm:$0xff] %v2430
        %5185 = vst [vmem:[#allocation2 + $0x110] sm:$0xff] %v2431
        %5186 = vst [vmem:[#allocation2 + $0x118] sm:$0xff] %v2432
        %5187 = vst [vmem:[#allocation2 + $0x120] sm:$0xff] %v2433
        %5188 = vst [vmem:[#allocation2 + $0x128] sm:$0xff] %v2434
        %5189 = vst [vmem:[#allocation2 + $0x130] sm:$0xff] %v2435
        %5190 = vst [vmem:[#allocation2 + $0x138] sm:$0xff] %v2436
        %5191 = vst [vmem:[#allocation2 + $0x140] sm:$0xff] %v2437
        %5192 = vst [vmem:[#allocation2 + $0x148] sm:$0xff] %v2438
        %5193 = vst [vmem:[#allocation2 + $0x150] sm:$0xff] %v2439
        %5194 = vst [vmem:[#allocation2 + $0x158] sm:$0xff] %v2440
        %5195 = vst [vmem:[#allocation2 + $0x160] sm:$0xff] %v2441
        %5196 = vst [vmem:[#allocation2 + $0x168] sm:$0xff] %v2442
        %5197 = vst [vmem:[#allocation2 + $0x170] sm:$0xff] %v2443
        %5198 = vst [vmem:[#allocation2 + $0x178] sm:$0xff] %v2444
        %5199 = vst [vmem:[#allocation2 + $0x180] sm:$0xff] %v2445
        %5200 = vst [vmem:[#allocation2 + $0x188] sm:$0xff] %v2446
        %5201 = vst [vmem:[#allocation2 + $0x190] sm:$0xff] %v2447
        %5202 = vst [vmem:[#allocation2 + $0x198] sm:$0xff] %v2448
        %5203 = vst [vmem:[#allocation2 + $0x1a0] sm:$0xff] %v2449
        %5204 = vst [vmem:[#allocation2 + $0x1a8] sm:$0xff] %v2450
        %5205 = vst [vmem:[#allocation2 + $0x1b0] sm:$0xff] %v2451
        %5206 = vst [vmem:[#allocation2 + $0x1b8] sm:$0xff] %v2452
        %5207 = vst [vmem:[#allocation2 + $0x1c0] sm:$0xff] %v2453
        %5208 = vst [vmem:[#allocation2 + $0x1c8] sm:$0xff] %v2454
        %5209 = vst [vmem:[#allocation2 + $0x1d0] sm:$0xff] %v2455
        %5210 = vst [vmem:[#allocation2 + $0x1d8] sm:$0xff] %v2456
        %5211 = vst [vmem:[#allocation2 + $0x1e0] sm:$0xff] %v2457
        %5212 = vst [vmem:[#allocation2 + $0x1e8] sm:$0xff] %v2458
        %5213 = vst [vmem:[#allocation2 + $0x1f0] sm:$0xff] %v2459
        %5214 = vst [vmem:[#allocation2 + $0x1f8] sm:$0xff] %v2460
        %p5215 = scmp.eq.s32.totalorder %s24, 1
        // Predicated region
        $region95: #{attn_block_forward.5} parent=81 // pred_check
          %p5216 = pneg %p5215
        $region96: #{attn_block_forward.5} parent=81 // pred_check_branch
          %5218 = sbr.rel (%p5216) target = $region98
        $region97: #{attn_block_forward.5} parent=81 // pred_region
          %v5219 = vld [vmem:[#allocation3] sm:$0xff]
          %v5220 = vld [vmem:[#allocation3 + $0x8] sm:$0xff]
          %v5221 = vld [vmem:[#allocation3 + $0x10] sm:$0xff]
          %v5222 = vld [vmem:[#allocation3 + $0x18] sm:$0xff]
          %v5223 = vld [vmem:[#allocation3 + $0x20] sm:$0xff]
          %v5224 = vld [vmem:[#allocation3 + $0x28] sm:$0xff]
          %v5225 = vld [vmem:[#allocation3 + $0x30] sm:$0xff]
          %v5226 = vld [vmem:[#allocation3 + $0x38] sm:$0xff]
          %v5227 = vld [vmem:[#allocation3 + $0x40] sm:$0xff]
          %v5228 = vld [vmem:[#allocation3 + $0x48] sm:$0xff]
          %v5229 = vld [vmem:[#allocation3 + $0x50] sm:$0xff]
          %v5230 = vld [vmem:[#allocation3 + $0x58] sm:$0xff]
          %v5231 = vld [vmem:[#allocation3 + $0x60] sm:$0xff]
          %v5232 = vld [vmem:[#allocation3 + $0x68] sm:$0xff]
          %v5233 = vld [vmem:[#allocation3 + $0x70] sm:$0xff]
          %v5234 = vld [vmem:[#allocation3 + $0x78] sm:$0xff]
          %v5235 = vld [vmem:[#allocation3 + $0x80] sm:$0xff]
          %v5236 = vld [vmem:[#allocation3 + $0x88] sm:$0xff]
          %v5237 = vld [vmem:[#allocation3 + $0x90] sm:$0xff]
          %v5238 = vld [vmem:[#allocation3 + $0x98] sm:$0xff]
          %v5239 = vld [vmem:[#allocation3 + $0xa0] sm:$0xff]
          %v5240 = vld [vmem:[#allocation3 + $0xa8] sm:$0xff]
          %v5241 = vld [vmem:[#allocation3 + $0xb0] sm:$0xff]
          %v5242 = vld [vmem:[#allocation3 + $0xb8] sm:$0xff]
          %v5243 = vld [vmem:[#allocation3 + $0xc0] sm:$0xff]
          %v5244 = vld [vmem:[#allocation3 + $0xc8] sm:$0xff]
          %v5245 = vld [vmem:[#allocation3 + $0xd0] sm:$0xff]
          %v5246 = vld [vmem:[#allocation3 + $0xd8] sm:$0xff]
          %v5247 = vld [vmem:[#allocation3 + $0xe0] sm:$0xff]
          %v5248 = vld [vmem:[#allocation3 + $0xe8] sm:$0xff]
          %v5249 = vld [vmem:[#allocation3 + $0xf0] sm:$0xff]
          %v5250 = vld [vmem:[#allocation3 + $0xf8] sm:$0xff]
          %v5251 = vld [vmem:[#allocation3 + $0x100] sm:$0xff]
          %v5252 = vld [vmem:[#allocation3 + $0x108] sm:$0xff]
          %v5253 = vld [vmem:[#allocation3 + $0x110] sm:$0xff]
          %v5254 = vld [vmem:[#allocation3 + $0x118] sm:$0xff]
          %v5255 = vld [vmem:[#allocation3 + $0x120] sm:$0xff]
          %v5256 = vld [vmem:[#allocation3 + $0x128] sm:$0xff]
          %v5257 = vld [vmem:[#allocation3 + $0x130] sm:$0xff]
          %v5258 = vld [vmem:[#allocation3 + $0x138] sm:$0xff]
          %v5259 = vld [vmem:[#allocation3 + $0x140] sm:$0xff]
          %v5260 = vld [vmem:[#allocation3 + $0x148] sm:$0xff]
          %v5261 = vld [vmem:[#allocation3 + $0x150] sm:$0xff]
          %v5262 = vld [vmem:[#allocation3 + $0x158] sm:$0xff]
          %v5263 = vld [vmem:[#allocation3 + $0x160] sm:$0xff]
          %v5264 = vld [vmem:[#allocation3 + $0x168] sm:$0xff]
          %v5265 = vld [vmem:[#allocation3 + $0x170] sm:$0xff]
          %v5266 = vld [vmem:[#allocation3 + $0x178] sm:$0xff]
          %v5267 = vld [vmem:[#allocation3 + $0x180] sm:$0xff]
          %v5268 = vld [vmem:[#allocation3 + $0x188] sm:$0xff]
          %v5269 = vld [vmem:[#allocation3 + $0x190] sm:$0xff]
          %v5270 = vld [vmem:[#allocation3 + $0x198] sm:$0xff]
          %v5271 = vld [vmem:[#allocation3 + $0x1a0] sm:$0xff]
          %v5272 = vld [vmem:[#allocation3 + $0x1a8] sm:$0xff]
          %v5273 = vld [vmem:[#allocation3 + $0x1b0] sm:$0xff]
          %v5274 = vld [vmem:[#allocation3 + $0x1b8] sm:$0xff]
          %v5275 = vld [vmem:[#allocation3 + $0x1c0] sm:$0xff]
          %v5276 = vld [vmem:[#allocation3 + $0x1c8] sm:$0xff]
          %v5277 = vld [vmem:[#allocation3 + $0x1d0] sm:$0xff]
          %v5278 = vld [vmem:[#allocation3 + $0x1d8] sm:$0xff]
          %v5279 = vld [vmem:[#allocation3 + $0x1e0] sm:$0xff]
          %v5280 = vld [vmem:[#allocation3 + $0x1e8] sm:$0xff]
          %v5281 = vld [vmem:[#allocation3 + $0x1f0] sm:$0xff]
          %v5282 = vld [vmem:[#allocation3 + $0x1f8] sm:$0xff]
          %v5283 = vrcp.pop %v5219
          %v5284 = vrcp.pop %v5220
          %v5285 = vrcp.pop %v5221
          %v5286 = vrcp.pop %v5222
          %v5287 = vrcp.pop %v5223
          %v5288 = vrcp.pop %v5224
          %v5289 = vrcp.pop %v5225
          %v5290 = vrcp.pop %v5226
          %v5291 = vrcp.pop %v5227
          %v5292 = vrcp.pop %v5228
          %v5293 = vrcp.pop %v5229
          %v5294 = vrcp.pop %v5230
          %v5295 = vrcp.pop %v5231
          %v5296 = vrcp.pop %v5232
          %v5297 = vrcp.pop %v5233
          %v5298 = vrcp.pop %v5234
          %v5299 = vrcp.pop %v5235
          %v5300 = vrcp.pop %v5236
          %v5301 = vrcp.pop %v5237
          %v5302 = vrcp.pop %v5238
          %v5303 = vrcp.pop %v5239
          %v5304 = vrcp.pop %v5240
          %v5305 = vrcp.pop %v5241
          %v5306 = vrcp.pop %v5242
          %v5307 = vrcp.pop %v5243
          %v5308 = vrcp.pop %v5244
          %v5309 = vrcp.pop %v5245
          %v5310 = vrcp.pop %v5246
          %v5311 = vrcp.pop %v5247
          %v5312 = vrcp.pop %v5248
          %v5313 = vrcp.pop %v5249
          %v5314 = vrcp.pop %v5250
          %v5315 = vrcp.pop %v5251
          %v5316 = vrcp.pop %v5252
          %v5317 = vrcp.pop %v5253
          %v5318 = vrcp.pop %v5254
          %v5319 = vrcp.pop %v5255
          %v5320 = vrcp.pop %v5256
          %v5321 = vrcp.pop %v5257
          %v5322 = vrcp.pop %v5258
          %v5323 = vrcp.pop %v5259
          %v5324 = vrcp.pop %v5260
          %v5325 = vrcp.pop %v5261
          %v5326 = vrcp.pop %v5262
          %v5327 = vrcp.pop %v5263
          %v5328 = vrcp.pop %v5264
          %v5329 = vrcp.pop %v5265
          %v5330 = vrcp.pop %v5266
          %v5331 = vrcp.pop %v5267
          %v5332 = vrcp.pop %v5268
          %v5333 = vrcp.pop %v5269
          %v5334 = vrcp.pop %v5270
          %v5335 = vrcp.pop %v5271
          %v5336 = vrcp.pop %v5272
          %v5337 = vrcp.pop %v5273
          %v5338 = vrcp.pop %v5274
          %v5339 = vrcp.pop %v5275
          %v5340 = vrcp.pop %v5276
          %v5341 = vrcp.pop %v5277
          %v5342 = vrcp.pop %v5278
          %v5343 = vrcp.pop %v5279
          %v5344 = vrcp.pop %v5280
          %v5345 = vrcp.pop %v5281
          %v5346 = vrcp.pop %v5282
          %v5347 = vld [vmem:[#allocation4] sm:$0xff]
          %v5348 = vld [vmem:[#allocation4 + $0x8] sm:$0xff]
          %v5349 = vld [vmem:[#allocation4 + $0x10] sm:$0xff]
          %v5350 = vld [vmem:[#allocation4 + $0x18] sm:$0xff]
          %v5351 = vld [vmem:[#allocation4 + $0x20] sm:$0xff]
          %v5352 = vld [vmem:[#allocation4 + $0x28] sm:$0xff]
          %v5353 = vld [vmem:[#allocation4 + $0x30] sm:$0xff]
          %v5354 = vld [vmem:[#allocation4 + $0x38] sm:$0xff]
          %v5355 = vld [vmem:[#allocation4 + $0x40] sm:$0xff]
          %v5356 = vld [vmem:[#allocation4 + $0x48] sm:$0xff]
          %v5357 = vld [vmem:[#allocation4 + $0x50] sm:$0xff]
          %v5358 = vld [vmem:[#allocation4 + $0x58] sm:$0xff]
          %v5359 = vld [vmem:[#allocation4 + $0x60] sm:$0xff]
          %v5360 = vld [vmem:[#allocation4 + $0x68] sm:$0xff]
          %v5361 = vld [vmem:[#allocation4 + $0x70] sm:$0xff]
          %v5362 = vld [vmem:[#allocation4 + $0x78] sm:$0xff]
          %v5363 = vld [vmem:[#allocation4 + $0x80] sm:$0xff]
          %v5364 = vld [vmem:[#allocation4 + $0x88] sm:$0xff]
          %v5365 = vld [vmem:[#allocation4 + $0x90] sm:$0xff]
          %v5366 = vld [vmem:[#allocation4 + $0x98] sm:$0xff]
          %v5367 = vld [vmem:[#allocation4 + $0xa0] sm:$0xff]
          %v5368 = vld [vmem:[#allocation4 + $0xa8] sm:$0xff]
          %v5369 = vld [vmem:[#allocation4 + $0xb0] sm:$0xff]
          %v5370 = vld [vmem:[#allocation4 + $0xb8] sm:$0xff]
          %v5371 = vld [vmem:[#allocation4 + $0xc0] sm:$0xff]
          %v5372 = vld [vmem:[#allocation4 + $0xc8] sm:$0xff]
          %v5373 = vld [vmem:[#allocation4 + $0xd0] sm:$0xff]
          %v5374 = vld [vmem:[#allocation4 + $0xd8] sm:$0xff]
          %v5375 = vld [vmem:[#allocation4 + $0xe0] sm:$0xff]
          %v5376 = vld [vmem:[#allocation4 + $0xe8] sm:$0xff]
          %v5377 = vld [vmem:[#allocation4 + $0xf0] sm:$0xff]
          %v5378 = vld [vmem:[#allocation4 + $0xf8] sm:$0xff]
          %v5379 = vld [vmem:[#allocation4 + $0x100] sm:$0xff]
          %v5380 = vld [vmem:[#allocation4 + $0x108] sm:$0xff]
          %v5381 = vld [vmem:[#allocation4 + $0x110] sm:$0xff]
          %v5382 = vld [vmem:[#allocation4 + $0x118] sm:$0xff]
          %v5383 = vld [vmem:[#allocation4 + $0x120] sm:$0xff]
          %v5384 = vld [vmem:[#allocation4 + $0x128] sm:$0xff]
          %v5385 = vld [vmem:[#allocation4 + $0x130] sm:$0xff]
          %v5386 = vld [vmem:[#allocation4 + $0x138] sm:$0xff]
          %v5387 = vld [vmem:[#allocation4 + $0x140] sm:$0xff]
          %v5388 = vld [vmem:[#allocation4 + $0x148] sm:$0xff]
          %v5389 = vld [vmem:[#allocation4 + $0x150] sm:$0xff]
          %v5390 = vld [vmem:[#allocation4 + $0x158] sm:$0xff]
          %v5391 = vld [vmem:[#allocation4 + $0x160] sm:$0xff]
          %v5392 = vld [vmem:[#allocation4 + $0x168] sm:$0xff]
          %v5393 = vld [vmem:[#allocation4 + $0x170] sm:$0xff]
          %v5394 = vld [vmem:[#allocation4 + $0x178] sm:$0xff]
          %v5395 = vld [vmem:[#allocation4 + $0x180] sm:$0xff]
          %v5396 = vld [vmem:[#allocation4 + $0x188] sm:$0xff]
          %v5397 = vld [vmem:[#allocation4 + $0x190] sm:$0xff]
          %v5398 = vld [vmem:[#allocation4 + $0x198] sm:$0xff]
          %v5399 = vld [vmem:[#allocation4 + $0x1a0] sm:$0xff]
          %v5400 = vld [vmem:[#allocation4 + $0x1a8] sm:$0xff]
          %v5401 = vld [vmem:[#allocation4 + $0x1b0] sm:$0xff]
          %v5402 = vld [vmem:[#allocation4 + $0x1b8] sm:$0xff]
          %v5403 = vld [vmem:[#allocation4 + $0x1c0] sm:$0xff]
          %v5404 = vld [vmem:[#allocation4 + $0x1c8] sm:$0xff]
          %v5405 = vld [vmem:[#allocation4 + $0x1d0] sm:$0xff]
          %v5406 = vld [vmem:[#allocation4 + $0x1d8] sm:$0xff]
          %v5407 = vld [vmem:[#allocation4 + $0x1e0] sm:$0xff]
          %v5408 = vld [vmem:[#allocation4 + $0x1e8] sm:$0xff]
          %v5409 = vld [vmem:[#allocation4 + $0x1f0] sm:$0xff]
          %v5410 = vld [vmem:[#allocation4 + $0x1f8] sm:$0xff]
          %v5411 = vmul.f32 %v5347, %v5283
          %v5412 = vmul.f32 %v5348, %v5284
          %v5413 = vmul.f32 %v5349, %v5285
          %v5414 = vmul.f32 %v5350, %v5286
          %v5415 = vmul.f32 %v5351, %v5287
          %v5416 = vmul.f32 %v5352, %v5288
          %v5417 = vmul.f32 %v5353, %v5289
          %v5418 = vmul.f32 %v5354, %v5290
          %v5419 = vmul.f32 %v5355, %v5291
          %v5420 = vmul.f32 %v5356, %v5292
          %v5421 = vmul.f32 %v5357, %v5293
          %v5422 = vmul.f32 %v5358, %v5294
          %v5423 = vmul.f32 %v5359, %v5295
          %v5424 = vmul.f32 %v5360, %v5296
          %v5425 = vmul.f32 %v5361, %v5297
          %v5426 = vmul.f32 %v5362, %v5298
          %v5427 = vmul.f32 %v5363, %v5299
          %v5428 = vmul.f32 %v5364, %v5300
          %v5429 = vmul.f32 %v5365, %v5301
          %v5430 = vmul.f32 %v5366, %v5302
          %v5431 = vmul.f32 %v5367, %v5303
          %v5432 = vmul.f32 %v5368, %v5304
          %v5433 = vmul.f32 %v5369, %v5305
          %v5434 = vmul.f32 %v5370, %v5306
          %v5435 = vmul.f32 %v5371, %v5307
          %v5436 = vmul.f32 %v5372, %v5308
          %v5437 = vmul.f32 %v5373, %v5309
          %v5438 = vmul.f32 %v5374, %v5310
          %v5439 = vmul.f32 %v5375, %v5311
          %v5440 = vmul.f32 %v5376, %v5312
          %v5441 = vmul.f32 %v5377, %v5313
          %v5442 = vmul.f32 %v5378, %v5314
          %v5443 = vmul.f32 %v5379, %v5315
          %v5444 = vmul.f32 %v5380, %v5316
          %v5445 = vmul.f32 %v5381, %v5317
          %v5446 = vmul.f32 %v5382, %v5318
          %v5447 = vmul.f32 %v5383, %v5319
          %v5448 = vmul.f32 %v5384, %v5320
          %v5449 = vmul.f32 %v5385, %v5321
          %v5450 = vmul.f32 %v5386, %v5322
          %v5451 = vmul.f32 %v5387, %v5323
          %v5452 = vmul.f32 %v5388, %v5324
          %v5453 = vmul.f32 %v5389, %v5325
          %v5454 = vmul.f32 %v5390, %v5326
          %v5455 = vmul.f32 %v5391, %v5327
          %v5456 = vmul.f32 %v5392, %v5328
          %v5457 = vmul.f32 %v5393, %v5329
          %v5458 = vmul.f32 %v5394, %v5330
          %v5459 = vmul.f32 %v5395, %v5331
          %v5460 = vmul.f32 %v5396, %v5332
          %v5461 = vmul.f32 %v5397, %v5333
          %v5462 = vmul.f32 %v5398, %v5334
          %v5463 = vmul.f32 %v5399, %v5335
          %v5464 = vmul.f32 %v5400, %v5336
          %v5465 = vmul.f32 %v5401, %v5337
          %v5466 = vmul.f32 %v5402, %v5338
          %v5467 = vmul.f32 %v5403, %v5339
          %v5468 = vmul.f32 %v5404, %v5340
          %v5469 = vmul.f32 %v5405, %v5341
          %v5470 = vmul.f32 %v5406, %v5342
          %v5471 = vmul.f32 %v5407, %v5343
          %v5472 = vmul.f32 %v5408, %v5344
          %v5473 = vmul.f32 %v5409, %v5345
          %v5474 = vmul.f32 %v5410, %v5346
          %5475 = vxpose.xlu0.b32.start [1/16] %v5411, 128
          %5476 = vxpose.xlu0.b32.cont [2/16] %v5412, 128
          %5477 = vxpose.xlu0.b32.cont [3/16] %v5413, 128
          %5478 = vxpose.xlu0.b32.cont [4/16] %v5414, 128
          %5479 = vxpose.xlu0.b32.cont [5/16] %v5415, 128
          %5480 = vxpose.xlu0.b32.cont [6/16] %v5416, 128
          %5481 = vxpose.xlu0.b32.cont [7/16] %v5417, 128
          %5482 = vxpose.xlu0.b32.cont [8/16] %v5418, 128
          %5483 = vxpose.xlu0.b32.cont [9/16] %v5419, 128
          %5484 = vxpose.xlu0.b32.cont [10/16] %v5420, 128
          %5485 = vxpose.xlu0.b32.cont [11/16] %v5421, 128
          %5486 = vxpose.xlu0.b32.cont [12/16] %v5422, 128
          %5487 = vxpose.xlu0.b32.cont [13/16] %v5423, 128
          %5488 = vxpose.xlu0.b32.cont [14/16] %v5424, 128
          %5489 = vxpose.xlu0.b32.cont [15/16] %v5425, 128
          %5490 = vxpose.xlu0.b32.end [16/16] %v5426, 128
          %v5491 = vpop.trf.xlu0
          %v5492 = vpop.trf.xlu0
          %v5493 = vpop.trf.xlu0
          %v5494 = vpop.trf.xlu0
          %v5495 = vpop.trf.xlu0
          %v5496 = vpop.trf.xlu0
          %v5497 = vpop.trf.xlu0
          %v5498 = vpop.trf.xlu0
          %v5499 = vpop.trf.xlu0
          %v5500 = vpop.trf.xlu0
          %v5501 = vpop.trf.xlu0
          %v5502 = vpop.trf.xlu0
          %v5503 = vpop.trf.xlu0
          %v5504 = vpop.trf.xlu0
          %v5505 = vpop.trf.xlu0
          %v5506 = vpop.trf.xlu0
          %5507 = vxpose.xlu0.b32.start [1/16] %v5427, 128
          %5508 = vxpose.xlu0.b32.cont [2/16] %v5428, 128
          %5509 = vxpose.xlu0.b32.cont [3/16] %v5429, 128
          %5510 = vxpose.xlu0.b32.cont [4/16] %v5430, 128
          %5511 = vxpose.xlu0.b32.cont [5/16] %v5431, 128
          %5512 = vxpose.xlu0.b32.cont [6/16] %v5432, 128
          %5513 = vxpose.xlu0.b32.cont [7/16] %v5433, 128
          %5514 = vxpose.xlu0.b32.cont [8/16] %v5434, 128
          %5515 = vxpose.xlu0.b32.cont [9/16] %v5435, 128
          %5516 = vxpose.xlu0.b32.cont [10/16] %v5436, 128
          %5517 = vxpose.xlu0.b32.cont [11/16] %v5437, 128
          %5518 = vxpose.xlu0.b32.cont [12/16] %v5438, 128
          %5519 = vxpose.xlu0.b32.cont [13/16] %v5439, 128
          %5520 = vxpose.xlu0.b32.cont [14/16] %v5440, 128
          %5521 = vxpose.xlu0.b32.cont [15/16] %v5441, 128
          %5522 = vxpose.xlu0.b32.end [16/16] %v5442, 128
          %v5523 = vpop.trf.xlu0
          %v5524 = vpop.trf.xlu0
          %v5525 = vpop.trf.xlu0
          %v5526 = vpop.trf.xlu0
          %v5527 = vpop.trf.xlu0
          %v5528 = vpop.trf.xlu0
          %v5529 = vpop.trf.xlu0
          %v5530 = vpop.trf.xlu0
          %v5531 = vpop.trf.xlu0
          %v5532 = vpop.trf.xlu0
          %v5533 = vpop.trf.xlu0
          %v5534 = vpop.trf.xlu0
          %v5535 = vpop.trf.xlu0
          %v5536 = vpop.trf.xlu0
          %v5537 = vpop.trf.xlu0
          %v5538 = vpop.trf.xlu0
          %5539 = vxpose.xlu0.b32.start [1/16] %v5443, 128
          %5540 = vxpose.xlu0.b32.cont [2/16] %v5444, 128
          %5541 = vxpose.xlu0.b32.cont [3/16] %v5445, 128
          %5542 = vxpose.xlu0.b32.cont [4/16] %v5446, 128
          %5543 = vxpose.xlu0.b32.cont [5/16] %v5447, 128
          %5544 = vxpose.xlu0.b32.cont [6/16] %v5448, 128
          %5545 = vxpose.xlu0.b32.cont [7/16] %v5449, 128
          %5546 = vxpose.xlu0.b32.cont [8/16] %v5450, 128
          %5547 = vxpose.xlu0.b32.cont [9/16] %v5451, 128
          %5548 = vxpose.xlu0.b32.cont [10/16] %v5452, 128
          %5549 = vxpose.xlu0.b32.cont [11/16] %v5453, 128
          %5550 = vxpose.xlu0.b32.cont [12/16] %v5454, 128
          %5551 = vxpose.xlu0.b32.cont [13/16] %v5455, 128
          %5552 = vxpose.xlu0.b32.cont [14/16] %v5456, 128
          %5553 = vxpose.xlu0.b32.cont [15/16] %v5457, 128
          %5554 = vxpose.xlu0.b32.end [16/16] %v5458, 128
          %v5555 = vpop.trf.xlu0
          %v5556 = vpop.trf.xlu0
          %v5557 = vpop.trf.xlu0
          %v5558 = vpop.trf.xlu0
          %v5559 = vpop.trf.xlu0
          %v5560 = vpop.trf.xlu0
          %v5561 = vpop.trf.xlu0
          %v5562 = vpop.trf.xlu0
          %v5563 = vpop.trf.xlu0
          %v5564 = vpop.trf.xlu0
          %v5565 = vpop.trf.xlu0
          %v5566 = vpop.trf.xlu0
          %v5567 = vpop.trf.xlu0
          %v5568 = vpop.trf.xlu0
          %v5569 = vpop.trf.xlu0
          %v5570 = vpop.trf.xlu0
          %5571 = vxpose.xlu0.b32.start [1/16] %v5459, 128
          %5572 = vxpose.xlu0.b32.cont [2/16] %v5460, 128
          %5573 = vxpose.xlu0.b32.cont [3/16] %v5461, 128
          %5574 = vxpose.xlu0.b32.cont [4/16] %v5462, 128
          %5575 = vxpose.xlu0.b32.cont [5/16] %v5463, 128
          %5576 = vxpose.xlu0.b32.cont [6/16] %v5464, 128
          %5577 = vxpose.xlu0.b32.cont [7/16] %v5465, 128
          %5578 = vxpose.xlu0.b32.cont [8/16] %v5466, 128
          %5579 = vxpose.xlu0.b32.cont [9/16] %v5467, 128
          %5580 = vxpose.xlu0.b32.cont [10/16] %v5468, 128
          %5581 = vxpose.xlu0.b32.cont [11/16] %v5469, 128
          %5582 = vxpose.xlu0.b32.cont [12/16] %v5470, 128
          %5583 = vxpose.xlu0.b32.cont [13/16] %v5471, 128
          %5584 = vxpose.xlu0.b32.cont [14/16] %v5472, 128
          %5585 = vxpose.xlu0.b32.cont [15/16] %v5473, 128
          %5586 = vxpose.xlu0.b32.end [16/16] %v5474, 128
          %v5587 = vpop.trf.xlu0
          %v5588 = vpop.trf.xlu0
          %v5589 = vpop.trf.xlu0
          %v5590 = vpop.trf.xlu0
          %v5591 = vpop.trf.xlu0
          %v5592 = vpop.trf.xlu0
          %v5593 = vpop.trf.xlu0
          %v5594 = vpop.trf.xlu0
          %v5595 = vpop.trf.xlu0
          %v5596 = vpop.trf.xlu0
          %v5597 = vpop.trf.xlu0
          %v5598 = vpop.trf.xlu0
          %v5599 = vpop.trf.xlu0
          %v5600 = vpop.trf.xlu0
          %v5601 = vpop.trf.xlu0
          %v5602 = vpop.trf.xlu0
          %v5603 = vpack.c.bf16 %v5492, %v5491
          %v5604 = vpack.c.bf16 %v5524, %v5523
          %v5605 = vpack.c.bf16 %v5556, %v5555
          %v5606 = vpack.c.bf16 %v5588, %v5587
          %v5607 = vpack.c.bf16 %v5494, %v5493
          %v5608 = vpack.c.bf16 %v5526, %v5525
          %v5609 = vpack.c.bf16 %v5558, %v5557
          %v5610 = vpack.c.bf16 %v5590, %v5589
          %v5611 = vpack.c.bf16 %v5496, %v5495
          %v5612 = vpack.c.bf16 %v5528, %v5527
          %v5613 = vpack.c.bf16 %v5560, %v5559
          %v5614 = vpack.c.bf16 %v5592, %v5591
          %v5615 = vpack.c.bf16 %v5498, %v5497
          %v5616 = vpack.c.bf16 %v5530, %v5529
          %v5617 = vpack.c.bf16 %v5562, %v5561
          %v5618 = vpack.c.bf16 %v5594, %v5593
          %v5619 = vpack.c.bf16 %v5500, %v5499
          %v5620 = vpack.c.bf16 %v5532, %v5531
          %v5621 = vpack.c.bf16 %v5564, %v5563
          %v5622 = vpack.c.bf16 %v5596, %v5595
          %v5623 = vpack.c.bf16 %v5502, %v5501
          %v5624 = vpack.c.bf16 %v5534, %v5533
          %v5625 = vpack.c.bf16 %v5566, %v5565
          %v5626 = vpack.c.bf16 %v5598, %v5597
          %v5627 = vpack.c.bf16 %v5504, %v5503
          %v5628 = vpack.c.bf16 %v5536, %v5535
          %v5629 = vpack.c.bf16 %v5568, %v5567
          %v5630 = vpack.c.bf16 %v5600, %v5599
          %v5631 = vpack.c.bf16 %v5506, %v5505
          %v5632 = vpack.c.bf16 %v5538, %v5537
          %v5633 = vpack.c.bf16 %v5570, %v5569
          %v5634 = vpack.c.bf16 %v5602, %v5601
          %v5635 = vld [vmem:[%s4] sm:$0xf]
          %v5636 = vld [vmem:[%s4 + $0x4] sm:$0xf]
          %v5637 = vld [vmem:[%s4 + $0x8] sm:$0xf]
          %v5638 = vld [vmem:[%s4 + $0xc] sm:$0xf]
          %v5639 = vld [vmem:[%s4 + $0x10] sm:$0xf]
          %v5640 = vld [vmem:[%s4 + $0x14] sm:$0xf]
          %v5641 = vld [vmem:[%s4 + $0x18] sm:$0xf]
          %v5642 = vld [vmem:[%s4 + $0x1c] sm:$0xf]
          %v5643 = vld [vmem:[%s4 + $0x20] sm:$0xf]
          %v5644 = vld [vmem:[%s4 + $0x24] sm:$0xf]
          %v5645 = vld [vmem:[%s4 + $0x28] sm:$0xf]
          %v5646 = vld [vmem:[%s4 + $0x2c] sm:$0xf]
          %v5647 = vld [vmem:[%s4 + $0x30] sm:$0xf]
          %v5648 = vld [vmem:[%s4 + $0x34] sm:$0xf]
          %v5649 = vld [vmem:[%s4 + $0x38] sm:$0xf]
          %v5650 = vld [vmem:[%s4 + $0x3c] sm:$0xf]
          %v5667 = vunpack.c.l.b16 %v5635
          %v5668 = vunpack.c.l.b16 %v5636
          %v5669 = vunpack.c.l.b16 %v5637
          %v5670 = vunpack.c.l.b16 %v5638
          %v5671 = vunpack.c.l.b16 %v5639
          %v5672 = vunpack.c.l.b16 %v5640
          %v5673 = vunpack.c.l.b16 %v5641
          %v5674 = vunpack.c.l.b16 %v5642
          %v5675 = vunpack.c.l.b16 %v5643
          %v5676 = vunpack.c.l.b16 %v5644
          %v5677 = vunpack.c.l.b16 %v5645
          %v5678 = vunpack.c.l.b16 %v5646
          %v5679 = vunpack.c.l.b16 %v5647
          %v5680 = vunpack.c.l.b16 %v5648
          %v5681 = vunpack.c.l.b16 %v5649
          %v5682 = vunpack.c.l.b16 %v5650
          %v5683 = vpack.c.b16 %v5668, %v5667
          %v5684 = vpack.c.b16 %v5670, %v5669
          %v5685 = vpack.c.b16 %v5672, %v5671
          %v5686 = vpack.c.b16 %v5674, %v5673
          %v5687 = vpack.c.b16 %v5676, %v5675
          %v5688 = vpack.c.b16 %v5678, %v5677
          %v5689 = vpack.c.b16 %v5680, %v5679
          %v5690 = vpack.c.b16 %v5682, %v5681
          %5699 = vmatprep.subr.bf16.mxu0 %v5632
          %5700 = vmatpush1.bf16.msra.mxu0 %v5631
          %5701 = vmatprep.subr.bf16.mxu0 %v5628
          %5702 = vmatpush1.bf16.msra.mxu0 %v5627
          %5703 = vmatprep.subr.bf16.mxu0 %v5624
          %5704 = vmatpush1.bf16.msra.mxu0 %v5623
          %5705 = vmatprep.subr.bf16.mxu0 %v5620
          %5706 = vmatpush1.bf16.msra.mxu0 %v5619
          %5707 = vmatprep.subr.bf16.mxu0 %v5616
          %5708 = vmatpush1.bf16.msra.mxu0 %v5615
          %5709 = vmatprep.subr.bf16.mxu0 %v5612
          %5710 = vmatpush1.bf16.msra.mxu0 %v5611
          %5711 = vmatprep.subr.bf16.mxu0 %v5608
          %5712 = vmatpush1.bf16.msra.mxu0 %v5607
          %5713 = vmatprep.subr.bf16.mxu0 %v5604
          %5714 = vmatpush1.bf16.msra.mxu0 %v5603
          %5715 = vmatprep.subr.bf16.mxu0 0
          %5716 = vmatpush2.bf16.msra.mxu0 0
          %5717 = vmatprep.subr.bf16.mxu0 0
          %5718 = vmatpush2.bf16.msra.mxu0 0
          %5719 = vmatprep.subr.bf16.mxu0 0
          %5720 = vmatpush2.bf16.msra.mxu0 0
          %5721 = vmatprep.subr.bf16.mxu0 0
          %5722 = vmatpush2.bf16.msra.mxu0 0
          %5723 = vmatprep.subr.bf16.mxu0 0
          %5724 = vmatpush2.bf16.msra.mxu0 0
          %5725 = vmatprep.subr.bf16.mxu0 0
          %5726 = vmatpush2.bf16.msra.mxu0 0
          %5727 = vmatprep.subr.bf16.mxu0 0
          %5728 = vmatpush2.bf16.msra.mxu0 0
          %5729 = vmatprep.subr.bf16.mxu0 0
          %5730 = vmatpush2.bf16.msra.mxu0 0
          %5731 = vmatprep.mubr.bf16.mxu0 0
          %5732 = vmatmul.mubr.bf16.gmra.mxu0 %v5683
          %v5733 = vpop.f32.mrf.mxu0
          %v5734 = vadd.f32 0.0, %v5733
          %v5735 = vpop.f32.mrf.mxu0
          %v5736 = vadd.f32 0.0, %v5735
          %v5737 = vpop.f32.mrf.mxu0
          %v5738 = vadd.f32 0.0, %v5737
          %v5739 = vpop.f32.mrf.mxu0
          %v5740 = vadd.f32 0.0, %v5739
          %5741 = vmatprep.mubr.bf16.mxu0 0
          %5742 = vmatmul.mubr.bf16.gmra.mxu0 %v5684
          %v5743 = vpop.f32.mrf.mxu0
          %v5744 = vadd.f32 0.0, %v5743
          %v5745 = vpop.f32.mrf.mxu0
          %v5746 = vadd.f32 0.0, %v5745
          %v5747 = vpop.f32.mrf.mxu0
          %v5748 = vadd.f32 0.0, %v5747
          %v5749 = vpop.f32.mrf.mxu0
          %v5750 = vadd.f32 0.0, %v5749
          %5751 = vmatprep.mubr.bf16.mxu0 0
          %5752 = vmatmul.mubr.bf16.gmra.mxu0 %v5685
          %v5753 = vpop.f32.mrf.mxu0
          %v5754 = vadd.f32 0.0, %v5753
          %v5755 = vpop.f32.mrf.mxu0
          %v5756 = vadd.f32 0.0, %v5755
          %v5757 = vpop.f32.mrf.mxu0
          %v5758 = vadd.f32 0.0, %v5757
          %v5759 = vpop.f32.mrf.mxu0
          %v5760 = vadd.f32 0.0, %v5759
          %5761 = vmatprep.mubr.bf16.mxu0 0
          %5762 = vmatmul.mubr.bf16.gmra.mxu0 %v5686
          %v5763 = vpop.f32.mrf.mxu0
          %v5764 = vadd.f32 0.0, %v5763
          %v5765 = vpop.f32.mrf.mxu0
          %v5766 = vadd.f32 0.0, %v5765
          %v5767 = vpop.f32.mrf.mxu0
          %v5768 = vadd.f32 0.0, %v5767
          %v5769 = vpop.f32.mrf.mxu0
          %v5770 = vadd.f32 0.0, %v5769
          %5771 = vmatprep.mubr.bf16.mxu0 0
          %5772 = vmatmul.mubr.bf16.gmra.mxu0 %v5687
          %v5773 = vpop.f32.mrf.mxu0
          %v5774 = vadd.f32 0.0, %v5773
          %v5775 = vpop.f32.mrf.mxu0
          %v5776 = vadd.f32 0.0, %v5775
          %v5777 = vpop.f32.mrf.mxu0
          %v5778 = vadd.f32 0.0, %v5777
          %v5779 = vpop.f32.mrf.mxu0
          %v5780 = vadd.f32 0.0, %v5779
          %5781 = vmatprep.mubr.bf16.mxu0 0
          %5782 = vmatmul.mubr.bf16.gmra.mxu0 %v5688
          %v5783 = vpop.f32.mrf.mxu0
          %v5784 = vadd.f32 0.0, %v5783
          %v5785 = vpop.f32.mrf.mxu0
          %v5786 = vadd.f32 0.0, %v5785
          %v5787 = vpop.f32.mrf.mxu0
          %v5788 = vadd.f32 0.0, %v5787
          %v5789 = vpop.f32.mrf.mxu0
          %v5790 = vadd.f32 0.0, %v5789
          %5791 = vmatprep.mubr.bf16.mxu0 0
          %5792 = vmatmul.mubr.bf16.gmra.mxu0 %v5689
          %v5793 = vpop.f32.mrf.mxu0
          %v5794 = vadd.f32 0.0, %v5793
          %v5795 = vpop.f32.mrf.mxu0
          %v5796 = vadd.f32 0.0, %v5795
          %v5797 = vpop.f32.mrf.mxu0
          %v5798 = vadd.f32 0.0, %v5797
          %v5799 = vpop.f32.mrf.mxu0
          %v5800 = vadd.f32 0.0, %v5799
          %5801 = vmatprep.mubr.bf16.mxu0 0
          %5802 = vmatmul.mubr.bf16.gmra.mxu0 %v5690
          %v5803 = vpop.f32.mrf.mxu0
          %v5804 = vadd.f32 0.0, %v5803
          %v5805 = vpop.f32.mrf.mxu0
          %v5806 = vadd.f32 0.0, %v5805
          %v5807 = vpop.f32.mrf.mxu0
          %v5808 = vadd.f32 0.0, %v5807
          %v5809 = vpop.f32.mrf.mxu0
          %v5810 = vadd.f32 0.0, %v5809
          %5811 = vdwg.mxu0
          %5812 = vmatprep.subr.bf16.mxu0 %v5634
          %5813 = vmatpush1.bf16.msra.mxu0 %v5633
          %5814 = vmatprep.subr.bf16.mxu0 %v5630
          %5815 = vmatpush1.bf16.msra.mxu0 %v5629
          %5816 = vmatprep.subr.bf16.mxu0 %v5626
          %5817 = vmatpush1.bf16.msra.mxu0 %v5625
          %5818 = vmatprep.subr.bf16.mxu0 %v5622
          %5819 = vmatpush1.bf16.msra.mxu0 %v5621
          %5820 = vmatprep.subr.bf16.mxu0 %v5618
          %5821 = vmatpush1.bf16.msra.mxu0 %v5617
          %5822 = vmatprep.subr.bf16.mxu0 %v5614
          %5823 = vmatpush1.bf16.msra.mxu0 %v5613
          %5824 = vmatprep.subr.bf16.mxu0 %v5610
          %5825 = vmatpush1.bf16.msra.mxu0 %v5609
          %5826 = vmatprep.subr.bf16.mxu0 %v5606
          %5827 = vmatpush1.bf16.msra.mxu0 %v5605
          %5828 = vmatprep.subr.bf16.mxu0 0
          %5829 = vmatpush2.bf16.msra.mxu0 0
          %5830 = vmatprep.subr.bf16.mxu0 0
          %5831 = vmatpush2.bf16.msra.mxu0 0
          %5832 = vmatprep.subr.bf16.mxu0 0
          %5833 = vmatpush2.bf16.msra.mxu0 0
          %5834 = vmatprep.subr.bf16.mxu0 0
          %5835 = vmatpush2.bf16.msra.mxu0 0
          %5836 = vmatprep.subr.bf16.mxu0 0
          %5837 = vmatpush2.bf16.msra.mxu0 0
          %5838 = vmatprep.subr.bf16.mxu0 0
          %5839 = vmatpush2.bf16.msra.mxu0 0
          %5840 = vmatprep.subr.bf16.mxu0 0
          %5841 = vmatpush2.bf16.msra.mxu0 0
          %5842 = vmatprep.subr.bf16.mxu0 0
          %5843 = vmatpush2.bf16.msra.mxu0 0
          %5844 = vmatprep.mubr.bf16.mxu0 0
          %5845 = vmatmul.mubr.bf16.gmra.mxu0 %v5683
          %v5846 = vpop.f32.mrf.mxu0
          %v5847 = vadd.f32 0.0, %v5846
          %v5848 = vpop.f32.mrf.mxu0
          %v5849 = vadd.f32 0.0, %v5848
          %v5850 = vpop.f32.mrf.mxu0
          %v5851 = vadd.f32 0.0, %v5850
          %v5852 = vpop.f32.mrf.mxu0
          %v5853 = vadd.f32 0.0, %v5852
          %5854 = vmatprep.mubr.bf16.mxu0 0
          %5855 = vmatmul.mubr.bf16.gmra.mxu0 %v5684
          %v5856 = vpop.f32.mrf.mxu0
          %v5857 = vadd.f32 0.0, %v5856
          %v5858 = vpop.f32.mrf.mxu0
          %v5859 = vadd.f32 0.0, %v5858
          %v5860 = vpop.f32.mrf.mxu0
          %v5861 = vadd.f32 0.0, %v5860
          %v5862 = vpop.f32.mrf.mxu0
          %v5863 = vadd.f32 0.0, %v5862
          %5864 = vmatprep.mubr.bf16.mxu0 0
          %5865 = vmatmul.mubr.bf16.gmra.mxu0 %v5685
          %v5866 = vpop.f32.mrf.mxu0
          %v5867 = vadd.f32 0.0, %v5866
          %v5868 = vpop.f32.mrf.mxu0
          %v5869 = vadd.f32 0.0, %v5868
          %v5870 = vpop.f32.mrf.mxu0
          %v5871 = vadd.f32 0.0, %v5870
          %v5872 = vpop.f32.mrf.mxu0
          %v5873 = vadd.f32 0.0, %v5872
          %5874 = vmatprep.mubr.bf16.mxu0 0
          %5875 = vmatmul.mubr.bf16.gmra.mxu0 %v5686
          %v5876 = vpop.f32.mrf.mxu0
          %v5877 = vadd.f32 0.0, %v5876
          %v5878 = vpop.f32.mrf.mxu0
          %v5879 = vadd.f32 0.0, %v5878
          %v5880 = vpop.f32.mrf.mxu0
          %v5881 = vadd.f32 0.0, %v5880
          %v5882 = vpop.f32.mrf.mxu0
          %v5883 = vadd.f32 0.0, %v5882
          %5884 = vmatprep.mubr.bf16.mxu0 0
          %5885 = vmatmul.mubr.bf16.gmra.mxu0 %v5687
          %v5886 = vpop.f32.mrf.mxu0
          %v5887 = vadd.f32 0.0, %v5886
          %v5888 = vpop.f32.mrf.mxu0
          %v5889 = vadd.f32 0.0, %v5888
          %v5890 = vpop.f32.mrf.mxu0
          %v5891 = vadd.f32 0.0, %v5890
          %v5892 = vpop.f32.mrf.mxu0
          %v5893 = vadd.f32 0.0, %v5892
          %5894 = vmatprep.mubr.bf16.mxu0 0
          %5895 = vmatmul.mubr.bf16.gmra.mxu0 %v5688
          %v5896 = vpop.f32.mrf.mxu0
          %v5897 = vadd.f32 0.0, %v5896
          %v5898 = vpop.f32.mrf.mxu0
          %v5899 = vadd.f32 0.0, %v5898
          %v5900 = vpop.f32.mrf.mxu0
          %v5901 = vadd.f32 0.0, %v5900
          %v5902 = vpop.f32.mrf.mxu0
          %v5903 = vadd.f32 0.0, %v5902
          %5904 = vmatprep.mubr.bf16.mxu0 0
          %5905 = vmatmul.mubr.bf16.gmra.mxu0 %v5689
          %v5906 = vpop.f32.mrf.mxu0
          %v5907 = vadd.f32 0.0, %v5906
          %v5908 = vpop.f32.mrf.mxu0
          %v5909 = vadd.f32 0.0, %v5908
          %v5910 = vpop.f32.mrf.mxu0
          %v5911 = vadd.f32 0.0, %v5910
          %v5912 = vpop.f32.mrf.mxu0
          %v5913 = vadd.f32 0.0, %v5912
          %5914 = vmatprep.mubr.bf16.mxu0 0
          %5915 = vmatmul.mubr.bf16.gmra.mxu0 %v5690
          %v5916 = vpop.f32.mrf.mxu0
          %v5917 = vadd.f32 0.0, %v5916
          %v5918 = vpop.f32.mrf.mxu0
          %v5919 = vadd.f32 0.0, %v5918
          %v5920 = vpop.f32.mrf.mxu0
          %v5921 = vadd.f32 0.0, %v5920
          %v5922 = vpop.f32.mrf.mxu0
          %v5923 = vadd.f32 0.0, %v5922
          %5924 = vdwg.mxu0
          %v5925 = vld [vmem:[%s520] sm:$0xff]
          %v5926 = vld [vmem:[%s520 + $0x8] sm:$0xff]
          %v5927 = vld [vmem:[%s520 + $0x10] sm:$0xff]
          %v5928 = vld [vmem:[%s520 + $0x18] sm:$0xff]
          %v5929 = vld [vmem:[%s520 + $0x20] sm:$0xff]
          %v5930 = vld [vmem:[%s520 + $0x28] sm:$0xff]
          %v5931 = vld [vmem:[%s520 + $0x30] sm:$0xff]
          %v5932 = vld [vmem:[%s520 + $0x38] sm:$0xff]
          %v5933 = vld [vmem:[%s520 + $0x40] sm:$0xff]
          %v5934 = vld [vmem:[%s520 + $0x48] sm:$0xff]
          %v5935 = vld [vmem:[%s520 + $0x50] sm:$0xff]
          %v5936 = vld [vmem:[%s520 + $0x58] sm:$0xff]
          %v5937 = vld [vmem:[%s520 + $0x60] sm:$0xff]
          %v5938 = vld [vmem:[%s520 + $0x68] sm:$0xff]
          %v5939 = vld [vmem:[%s520 + $0x70] sm:$0xff]
          %v5940 = vld [vmem:[%s520 + $0x78] sm:$0xff]
          %v5941 = vld [vmem:[%s520 + $0x80] sm:$0xff]
          %v5942 = vld [vmem:[%s520 + $0x88] sm:$0xff]
          %v5943 = vld [vmem:[%s520 + $0x90] sm:$0xff]
          %v5944 = vld [vmem:[%s520 + $0x98] sm:$0xff]
          %v5945 = vld [vmem:[%s520 + $0xa0] sm:$0xff]
          %v5946 = vld [vmem:[%s520 + $0xa8] sm:$0xff]
          %v5947 = vld [vmem:[%s520 + $0xb0] sm:$0xff]
          %v5948 = vld [vmem:[%s520 + $0xb8] sm:$0xff]
          %v5949 = vld [vmem:[%s520 + $0xc0] sm:$0xff]
          %v5950 = vld [vmem:[%s520 + $0xc8] sm:$0xff]
          %v5951 = vld [vmem:[%s520 + $0xd0] sm:$0xff]
          %v5952 = vld [vmem:[%s520 + $0xd8] sm:$0xff]
          %v5953 = vld [vmem:[%s520 + $0xe0] sm:$0xff]
          %v5954 = vld [vmem:[%s520 + $0xe8] sm:$0xff]
          %v5955 = vld [vmem:[%s520 + $0xf0] sm:$0xff]
          %v5956 = vld [vmem:[%s520 + $0xf8] sm:$0xff]
          %v5957 = vld [vmem:[%s520 + $0x100] sm:$0xff]
          %v5958 = vld [vmem:[%s520 + $0x108] sm:$0xff]
          %v5959 = vld [vmem:[%s520 + $0x110] sm:$0xff]
          %v5960 = vld [vmem:[%s520 + $0x118] sm:$0xff]
          %v5961 = vld [vmem:[%s520 + $0x120] sm:$0xff]
          %v5962 = vld [vmem:[%s520 + $0x128] sm:$0xff]
          %v5963 = vld [vmem:[%s520 + $0x130] sm:$0xff]
          %v5964 = vld [vmem:[%s520 + $0x138] sm:$0xff]
          %v5965 = vld [vmem:[%s520 + $0x140] sm:$0xff]
          %v5966 = vld [vmem:[%s520 + $0x148] sm:$0xff]
          %v5967 = vld [vmem:[%s520 + $0x150] sm:$0xff]
          %v5968 = vld [vmem:[%s520 + $0x158] sm:$0xff]
          %v5969 = vld [vmem:[%s520 + $0x160] sm:$0xff]
          %v5970 = vld [vmem:[%s520 + $0x168] sm:$0xff]
          %v5971 = vld [vmem:[%s520 + $0x170] sm:$0xff]
          %v5972 = vld [vmem:[%s520 + $0x178] sm:$0xff]
          %v5973 = vld [vmem:[%s520 + $0x180] sm:$0xff]
          %v5974 = vld [vmem:[%s520 + $0x188] sm:$0xff]
          %v5975 = vld [vmem:[%s520 + $0x190] sm:$0xff]
          %v5976 = vld [vmem:[%s520 + $0x198] sm:$0xff]
          %v5977 = vld [vmem:[%s520 + $0x1a0] sm:$0xff]
          %v5978 = vld [vmem:[%s520 + $0x1a8] sm:$0xff]
          %v5979 = vld [vmem:[%s520 + $0x1b0] sm:$0xff]
          %v5980 = vld [vmem:[%s520 + $0x1b8] sm:$0xff]
          %v5981 = vld [vmem:[%s520 + $0x1c0] sm:$0xff]
          %v5982 = vld [vmem:[%s520 + $0x1c8] sm:$0xff]
          %v5983 = vld [vmem:[%s520 + $0x1d0] sm:$0xff]
          %v5984 = vld [vmem:[%s520 + $0x1d8] sm:$0xff]
          %v5985 = vld [vmem:[%s520 + $0x1e0] sm:$0xff]
          %v5986 = vld [vmem:[%s520 + $0x1e8] sm:$0xff]
          %v5987 = vld [vmem:[%s520 + $0x1f0] sm:$0xff]
          %v5988 = vld [vmem:[%s520 + $0x1f8] sm:$0xff]
          %v5989 = vadd.f32 %v5925, %v5734
          %v5990 = vadd.f32 %v5926, %v5736
          %v5991 = vadd.f32 %v5927, %v5847
          %v5992 = vadd.f32 %v5928, %v5849
          %v5993 = vadd.f32 %v5929, %v5738
          %v5994 = vadd.f32 %v5930, %v5740
          %v5995 = vadd.f32 %v5931, %v5851
          %v5996 = vadd.f32 %v5932, %v5853
          %v5997 = vadd.f32 %v5933, %v5744
          %v5998 = vadd.f32 %v5934, %v5746
          %v5999 = vadd.f32 %v5935, %v5857
          %v6000 = vadd.f32 %v5936, %v5859
          %v6001 = vadd.f32 %v5937, %v5748
          %v6002 = vadd.f32 %v5938, %v5750
          %v6003 = vadd.f32 %v5939, %v5861
          %v6004 = vadd.f32 %v5940, %v5863
          %v6005 = vadd.f32 %v5941, %v5754
          %v6006 = vadd.f32 %v5942, %v5756
          %v6007 = vadd.f32 %v5943, %v5867
          %v6008 = vadd.f32 %v5944, %v5869
          %v6009 = vadd.f32 %v5945, %v5758
          %v6010 = vadd.f32 %v5946, %v5760
          %v6011 = vadd.f32 %v5947, %v5871
          %v6012 = vadd.f32 %v5948, %v5873
          %v6013 = vadd.f32 %v5949, %v5764
          %v6014 = vadd.f32 %v5950, %v5766
          %v6015 = vadd.f32 %v5951, %v5877
          %v6016 = vadd.f32 %v5952, %v5879
          %v6017 = vadd.f32 %v5953, %v5768
          %v6018 = vadd.f32 %v5954, %v5770
          %v6019 = vadd.f32 %v5955, %v5881
          %v6020 = vadd.f32 %v5956, %v5883
          %v6021 = vadd.f32 %v5957, %v5774
          %v6022 = vadd.f32 %v5958, %v5776
          %v6023 = vadd.f32 %v5959, %v5887
          %v6024 = vadd.f32 %v5960, %v5889
          %v6025 = vadd.f32 %v5961, %v5778
          %v6026 = vadd.f32 %v5962, %v5780
          %v6027 = vadd.f32 %v5963, %v5891
          %v6028 = vadd.f32 %v5964, %v5893
          %v6029 = vadd.f32 %v5965, %v5784
          %v6030 = vadd.f32 %v5966, %v5786
          %v6031 = vadd.f32 %v5967, %v5897
          %v6032 = vadd.f32 %v5968, %v5899
          %v6033 = vadd.f32 %v5969, %v5788
          %v6034 = vadd.f32 %v5970, %v5790
          %v6035 = vadd.f32 %v5971, %v5901
          %v6036 = vadd.f32 %v5972, %v5903
          %v6037 = vadd.f32 %v5973, %v5794
          %v6038 = vadd.f32 %v5974, %v5796
          %v6039 = vadd.f32 %v5975, %v5907
          %v6040 = vadd.f32 %v5976, %v5909
          %v6041 = vadd.f32 %v5977, %v5798
          %v6042 = vadd.f32 %v5978, %v5800
          %v6043 = vadd.f32 %v5979, %v5911
          %v6044 = vadd.f32 %v5980, %v5913
          %v6045 = vadd.f32 %v5981, %v5804
          %v6046 = vadd.f32 %v5982, %v5806
          %v6047 = vadd.f32 %v5983, %v5917
          %v6048 = vadd.f32 %v5984, %v5919
          %v6049 = vadd.f32 %v5985, %v5808
          %v6050 = vadd.f32 %v5986, %v5810
          %v6051 = vadd.f32 %v5987, %v5921
          %v6052 = vadd.f32 %v5988, %v5923
          %v6053 = vld [vmem:[%s5] sm:$0xff]
          %v6054 = vld [vmem:[%s5 + $0x8] sm:$0xff]
          %v6055 = vld [vmem:[%s5 + $0x10] sm:$0xff]
          %v6056 = vld [vmem:[%s5 + $0x18] sm:$0xff]
          %v6057 = vld [vmem:[%s5 + $0x20] sm:$0xff]
          %v6058 = vld [vmem:[%s5 + $0x28] sm:$0xff]
          %v6059 = vld [vmem:[%s5 + $0x30] sm:$0xff]
          %v6060 = vld [vmem:[%s5 + $0x38] sm:$0xff]
          %v6061 = vld [vmem:[%s5 + $0x40] sm:$0xff]
          %v6062 = vld [vmem:[%s5 + $0x48] sm:$0xff]
          %v6063 = vld [vmem:[%s5 + $0x50] sm:$0xff]
          %v6064 = vld [vmem:[%s5 + $0x58] sm:$0xff]
          %v6065 = vld [vmem:[%s5 + $0x60] sm:$0xff]
          %v6066 = vld [vmem:[%s5 + $0x68] sm:$0xff]
          %v6067 = vld [vmem:[%s5 + $0x70] sm:$0xff]
          %v6068 = vld [vmem:[%s5 + $0x78] sm:$0xff]
          %6070 = vset.pattern.permute.xlu0 0
          %6071 = vperm.xlu0 %6070, %v6053
          %v6072 = vpop.permute.xlu0 %6071
          %6075 = vset.pattern.permute.xlu0 0
          %6076 = vperm.xlu0 %6075, %v6054
          %v6077 = vpop.permute.xlu0 %6076
          %6080 = vset.pattern.permute.xlu0 0
          %6081 = vperm.xlu0 %6080, %v6055
          %v6082 = vpop.permute.xlu0 %6081
          %6085 = vset.pattern.permute.xlu0 0
          %6086 = vperm.xlu0 %6085, %v6056
          %v6087 = vpop.permute.xlu0 %6086
          %6090 = vset.pattern.permute.xlu0 0
          %6091 = vperm.xlu0 %6090, %v6057
          %v6092 = vpop.permute.xlu0 %6091
          %6095 = vset.pattern.permute.xlu0 0
          %6096 = vperm.xlu0 %6095, %v6058
          %v6097 = vpop.permute.xlu0 %6096
          %6100 = vset.pattern.permute.xlu0 0
          %6101 = vperm.xlu0 %6100, %v6059
          %v6102 = vpop.permute.xlu0 %6101
          %6105 = vset.pattern.permute.xlu0 0
          %6106 = vperm.xlu0 %6105, %v6060
          %v6107 = vpop.permute.xlu0 %6106
          %6110 = vset.pattern.permute.xlu0 0
          %6111 = vperm.xlu0 %6110, %v6061
          %v6112 = vpop.permute.xlu0 %6111
          %6115 = vset.pattern.permute.xlu0 0
          %6116 = vperm.xlu0 %6115, %v6062
          %v6117 = vpop.permute.xlu0 %6116
          %6120 = vset.pattern.permute.xlu0 0
          %6121 = vperm.xlu0 %6120, %v6063
          %v6122 = vpop.permute.xlu0 %6121
          %6125 = vset.pattern.permute.xlu0 0
          %6126 = vperm.xlu0 %6125, %v6064
          %v6127 = vpop.permute.xlu0 %6126
          %6130 = vset.pattern.permute.xlu0 0
          %6131 = vperm.xlu0 %6130, %v6065
          %v6132 = vpop.permute.xlu0 %6131
          %6135 = vset.pattern.permute.xlu0 0
          %6136 = vperm.xlu0 %6135, %v6066
          %v6137 = vpop.permute.xlu0 %6136
          %6140 = vset.pattern.permute.xlu0 0
          %6141 = vperm.xlu0 %6140, %v6067
          %v6142 = vpop.permute.xlu0 %6141
          %6145 = vset.pattern.permute.xlu0 0
          %6146 = vperm.xlu0 %6145, %v6068
          %v6147 = vpop.permute.xlu0 %6146
          %v6149 = vadd.f32 %v5989, %v6072
          %v6150 = vadd.f32 %v5990, %v6072
          %v6151 = vadd.f32 %v5991, %v6072
          %v6152 = vadd.f32 %v5992, %v6072
          %v6153 = vadd.f32 %v5993, %v6077
          %v6154 = vadd.f32 %v5994, %v6077
          %v6155 = vadd.f32 %v5995, %v6077
          %v6156 = vadd.f32 %v5996, %v6077
          %v6157 = vadd.f32 %v5997, %v6082
          %v6158 = vadd.f32 %v5998, %v6082
          %v6159 = vadd.f32 %v5999, %v6082
          %v6160 = vadd.f32 %v6000, %v6082
          %v6161 = vadd.f32 %v6001, %v6087
          %v6162 = vadd.f32 %v6002, %v6087
          %v6163 = vadd.f32 %v6003, %v6087
          %v6164 = vadd.f32 %v6004, %v6087
          %v6165 = vadd.f32 %v6005, %v6092
          %v6166 = vadd.f32 %v6006, %v6092
          %v6167 = vadd.f32 %v6007, %v6092
          %v6168 = vadd.f32 %v6008, %v6092
          %v6169 = vadd.f32 %v6009, %v6097
          %v6170 = vadd.f32 %v6010, %v6097
          %v6171 = vadd.f32 %v6011, %v6097
          %v6172 = vadd.f32 %v6012, %v6097
          %v6173 = vadd.f32 %v6013, %v6102
          %v6174 = vadd.f32 %v6014, %v6102
          %v6175 = vadd.f32 %v6015, %v6102
          %v6176 = vadd.f32 %v6016, %v6102
          %v6177 = vadd.f32 %v6017, %v6107
          %v6178 = vadd.f32 %v6018, %v6107
          %v6179 = vadd.f32 %v6019, %v6107
          %v6180 = vadd.f32 %v6020, %v6107
          %v6181 = vadd.f32 %v6021, %v6112
          %v6182 = vadd.f32 %v6022, %v6112
          %v6183 = vadd.f32 %v6023, %v6112
          %v6184 = vadd.f32 %v6024, %v6112
          %v6185 = vadd.f32 %v6025, %v6117
          %v6186 = vadd.f32 %v6026, %v6117
          %v6187 = vadd.f32 %v6027, %v6117
          %v6188 = vadd.f32 %v6028, %v6117
          %v6189 = vadd.f32 %v6029, %v6122
          %v6190 = vadd.f32 %v6030, %v6122
          %v6191 = vadd.f32 %v6031, %v6122
          %v6192 = vadd.f32 %v6032, %v6122
          %v6193 = vadd.f32 %v6033, %v6127
          %v6194 = vadd.f32 %v6034, %v6127
          %v6195 = vadd.f32 %v6035, %v6127
          %v6196 = vadd.f32 %v6036, %v6127
          %v6197 = vadd.f32 %v6037, %v6132
          %v6198 = vadd.f32 %v6038, %v6132
          %v6199 = vadd.f32 %v6039, %v6132
          %v6200 = vadd.f32 %v6040, %v6132
          %v6201 = vadd.f32 %v6041, %v6137
          %v6202 = vadd.f32 %v6042, %v6137
          %v6203 = vadd.f32 %v6043, %v6137
          %v6204 = vadd.f32 %v6044, %v6137
          %v6205 = vadd.f32 %v6045, %v6142
          %v6206 = vadd.f32 %v6046, %v6142
          %v6207 = vadd.f32 %v6047, %v6142
          %v6208 = vadd.f32 %v6048, %v6142
          %v6209 = vadd.f32 %v6049, %v6147
          %v6210 = vadd.f32 %v6050, %v6147
          %v6211 = vadd.f32 %v6051, %v6147
          %v6212 = vadd.f32 %v6052, %v6147
          %6213 = vst [vmem:[%s574] sm:$0xff] %v6149
          %6214 = vst [vmem:[%s574 + $0x8] sm:$0xff] %v6150
          %6215 = vst [vmem:[%s574 + $0x10] sm:$0xff] %v6151
          %6216 = vst [vmem:[%s574 + $0x18] sm:$0xff] %v6152
          %6217 = vst [vmem:[%s574 + $0x20] sm:$0xff] %v6153
          %6218 = vst [vmem:[%s574 + $0x28] sm:$0xff] %v6154
          %6219 = vst [vmem:[%s574 + $0x30] sm:$0xff] %v6155
          %6220 = vst [vmem:[%s574 + $0x38] sm:$0xff] %v6156
          %6221 = vst [vmem:[%s574 + $0x40] sm:$0xff] %v6157
          %6222 = vst [vmem:[%s574 + $0x48] sm:$0xff] %v6158
          %6223 = vst [vmem:[%s574 + $0x50] sm:$0xff] %v6159
          %6224 = vst [vmem:[%s574 + $0x58] sm:$0xff] %v6160
          %6225 = vst [vmem:[%s574 + $0x60] sm:$0xff] %v6161
          %6226 = vst [vmem:[%s574 + $0x68] sm:$0xff] %v6162
          %6227 = vst [vmem:[%s574 + $0x70] sm:$0xff] %v6163
          %6228 = vst [vmem:[%s574 + $0x78] sm:$0xff] %v6164
          %6229 = vst [vmem:[%s574 + $0x80] sm:$0xff] %v6165
          %6230 = vst [vmem:[%s574 + $0x88] sm:$0xff] %v6166
          %6231 = vst [vmem:[%s574 + $0x90] sm:$0xff] %v6167
          %6232 = vst [vmem:[%s574 + $0x98] sm:$0xff] %v6168
          %6233 = vst [vmem:[%s574 + $0xa0] sm:$0xff] %v6169
          %6234 = vst [vmem:[%s574 + $0xa8] sm:$0xff] %v6170
          %6235 = vst [vmem:[%s574 + $0xb0] sm:$0xff] %v6171
          %6236 = vst [vmem:[%s574 + $0xb8] sm:$0xff] %v6172
          %6237 = vst [vmem:[%s574 + $0xc0] sm:$0xff] %v6173
          %6238 = vst [vmem:[%s574 + $0xc8] sm:$0xff] %v6174
          %6239 = vst [vmem:[%s574 + $0xd0] sm:$0xff] %v6175
          %6240 = vst [vmem:[%s574 + $0xd8] sm:$0xff] %v6176
          %6241 = vst [vmem:[%s574 + $0xe0] sm:$0xff] %v6177
          %6242 = vst [vmem:[%s574 + $0xe8] sm:$0xff] %v6178
          %6243 = vst [vmem:[%s574 + $0xf0] sm:$0xff] %v6179
          %6244 = vst [vmem:[%s574 + $0xf8] sm:$0xff] %v6180
          %6245 = vst [vmem:[%s574 + $0x100] sm:$0xff] %v6181
          %6246 = vst [vmem:[%s574 + $0x108] sm:$0xff] %v6182
          %6247 = vst [vmem:[%s574 + $0x110] sm:$0xff] %v6183
          %6248 = vst [vmem:[%s574 + $0x118] sm:$0xff] %v6184
          %6249 = vst [vmem:[%s574 + $0x120] sm:$0xff] %v6185
          %6250 = vst [vmem:[%s574 + $0x128] sm:$0xff] %v6186
          %6251 = vst [vmem:[%s574 + $0x130] sm:$0xff] %v6187
          %6252 = vst [vmem:[%s574 + $0x138] sm:$0xff] %v6188
          %6253 = vst [vmem:[%s574 + $0x140] sm:$0xff] %v6189
          %6254 = vst [vmem:[%s574 + $0x148] sm:$0xff] %v6190
          %6255 = vst [vmem:[%s574 + $0x150] sm:$0xff] %v6191
          %6256 = vst [vmem:[%s574 + $0x158] sm:$0xff] %v6192
          %6257 = vst [vmem:[%s574 + $0x160] sm:$0xff] %v6193
          %6258 = vst [vmem:[%s574 + $0x168] sm:$0xff] %v6194
          %6259 = vst [vmem:[%s574 + $0x170] sm:$0xff] %v6195
          %6260 = vst [vmem:[%s574 + $0x178] sm:$0xff] %v6196
          %6261 = vst [vmem:[%s574 + $0x180] sm:$0xff] %v6197
          %6262 = vst [vmem:[%s574 + $0x188] sm:$0xff] %v6198
          %6263 = vst [vmem:[%s574 + $0x190] sm:$0xff] %v6199
          %6264 = vst [vmem:[%s574 + $0x198] sm:$0xff] %v6200
          %6265 = vst [vmem:[%s574 + $0x1a0] sm:$0xff] %v6201
          %6266 = vst [vmem:[%s574 + $0x1a8] sm:$0xff] %v6202
          %6267 = vst [vmem:[%s574 + $0x1b0] sm:$0xff] %v6203
          %6268 = vst [vmem:[%s574 + $0x1b8] sm:$0xff] %v6204
          %6269 = vst [vmem:[%s574 + $0x1c0] sm:$0xff] %v6205
          %6270 = vst [vmem:[%s574 + $0x1c8] sm:$0xff] %v6206
          %6271 = vst [vmem:[%s574 + $0x1d0] sm:$0xff] %v6207
          %6272 = vst [vmem:[%s574 + $0x1d8] sm:$0xff] %v6208
          %6273 = vst [vmem:[%s574 + $0x1e0] sm:$0xff] %v6209
          %6274 = vst [vmem:[%s574 + $0x1e8] sm:$0xff] %v6210
          %6275 = vst [vmem:[%s574 + $0x1f0] sm:$0xff] %v6211
          %6276 = vst [vmem:[%s574 + $0x1f8] sm:$0xff] %v6212
        $region98: #{attn_block_forward.5} parent=81 // pred_fallthru
          _
        %s6277 = sand.u32 %s200, 1
        %s6278 = sand.u32 %s200, 1
        %s6279 = smul.addr %s6278, 512
        %s6280 = scalar_lea.vmem [#allocation7], %s6279
        // Predicated region
        $region99: #{attn_block_forward.5} parent=81 // pred_check
          %p6281 = pneg %p210
        $region100: #{attn_block_forward.5} parent=81 // pred_check_branch
          %6283 = sbr.rel (%p6281) target = $region102
        $region101: #{attn_block_forward.5} parent=81 // pred_region
          %s6284 = smul.u32 4, %s23
          %s6285 = smul.addr %s22, 128
          %s6286 = sadd.s32 %s6284, %s6285
          %s6287 = smul.addr %s6286, 8
          %s6288 = scalar_lea.vmem %s6, %s6287
          // Predicated region
          $region103: #{attn_block_forward.5} parent=101 // pred_check
            _
          $region104: #{attn_block_forward.5} parent=101 // pred_check_branch
            %6290 = sbr.rel (0) target = $region106
          $region105: #{attn_block_forward.5} parent=101 // pred_region
            // Predicated region
            $region107: #{attn_block_forward.5} parent=105 // pred_check
              _
            $region108: #{attn_block_forward.5} parent=105 // pred_check_branch
              %6292 = sbr.rel (0) target = $region110
            $region109: #{attn_block_forward.5} parent=105 // pred_region
              loop: start=0, step=1, limit=1
              $region111: #{attn_block_forward.5} parent=109 // loop_pre_header
                _
              $region112: #{attn_block_forward.5} parent=109 // loop_header
                %s6294 = sphi 0, %s6298
                %p6295 = scmp.ge.s32.totalorder %s6294, 1
                %s6299 = sphi %s6280, %s6280
                %s6300 = sphi %s6288, %s6288
              $region113: #{attn_block_forward.5} parent=109 // loop_header_branch
                %6297 = sbr.rel (%p6295) target = $region117
              $region114: #{attn_block_forward.5} parent=109 // loop_body
                %v6301 = vld [vmem:[%s6299] sm:$0xff]
                %6302 = vst [vmem:[%s6300] sm:$0xff] %v6301
                %v6303 = vld [vmem:[%s6299 + $0x8] sm:$0xff]
                %6304 = vst [vmem:[%s6300 + $0x8] sm:$0xff] %v6303
                %v6305 = vld [vmem:[%s6299 + $0x10] sm:$0xff]
                %6306 = vst [vmem:[%s6300 + $0x10] sm:$0xff] %v6305
                %v6307 = vld [vmem:[%s6299 + $0x18] sm:$0xff]
                %6308 = vst [vmem:[%s6300 + $0x18] sm:$0xff] %v6307
                %v6309 = vld [vmem:[%s6299 + $0x20] sm:$0xff]
                %6310 = vst [vmem:[%s6300 + $0x40] sm:$0xff] %v6309
                %v6311 = vld [vmem:[%s6299 + $0x28] sm:$0xff]
                %6312 = vst [vmem:[%s6300 + $0x48] sm:$0xff] %v6311
                %v6313 = vld [vmem:[%s6299 + $0x30] sm:$0xff]
                %6314 = vst [vmem:[%s6300 + $0x50] sm:$0xff] %v6313
                %v6315 = vld [vmem:[%s6299 + $0x38] sm:$0xff]
                %6316 = vst [vmem:[%s6300 + $0x58] sm:$0xff] %v6315
                %v6317 = vld [vmem:[%s6299 + $0x40] sm:$0xff]
                %6318 = vst [vmem:[%s6300 + $0x80] sm:$0xff] %v6317
                %v6319 = vld [vmem:[%s6299 + $0x48] sm:$0xff]
                %6320 = vst [vmem:[%s6300 + $0x88] sm:$0xff] %v6319
                %v6321 = vld [vmem:[%s6299 + $0x50] sm:$0xff]
                %6322 = vst [vmem:[%s6300 + $0x90] sm:$0xff] %v6321
                %v6323 = vld [vmem:[%s6299 + $0x58] sm:$0xff]
                %6324 = vst [vmem:[%s6300 + $0x98] sm:$0xff] %v6323
                %v6325 = vld [vmem:[%s6299 + $0x60] sm:$0xff]
                %6326 = vst [vmem:[%s6300 + $0xc0] sm:$0xff] %v6325
                %v6327 = vld [vmem:[%s6299 + $0x68] sm:$0xff]
                %6328 = vst [vmem:[%s6300 + $0xc8] sm:$0xff] %v6327
                %v6329 = vld [vmem:[%s6299 + $0x70] sm:$0xff]
                %6330 = vst [vmem:[%s6300 + $0xd0] sm:$0xff] %v6329
                %v6331 = vld [vmem:[%s6299 + $0x78] sm:$0xff]
                %6332 = vst [vmem:[%s6300 + $0xd8] sm:$0xff] %v6331
                %v6333 = vld [vmem:[%s6299 + $0x80] sm:$0xff]
                %6334 = vst [vmem:[%s6300 + $0x100] sm:$0xff] %v6333
                %v6335 = vld [vmem:[%s6299 + $0x88] sm:$0xff]
                %6336 = vst [vmem:[%s6300 + $0x108] sm:$0xff] %v6335
                %v6337 = vld [vmem:[%s6299 + $0x90] sm:$0xff]
                %6338 = vst [vmem:[%s6300 + $0x110] sm:$0xff] %v6337
                %v6339 = vld [vmem:[%s6299 + $0x98] sm:$0xff]
                %6340 = vst [vmem:[%s6300 + $0x118] sm:$0xff] %v6339
                %v6341 = vld [vmem:[%s6299 + $0xa0] sm:$0xff]
                %6342 = vst [vmem:[%s6300 + $0x140] sm:$0xff] %v6341
                %v6343 = vld [vmem:[%s6299 + $0xa8] sm:$0xff]
                %6344 = vst [vmem:[%s6300 + $0x148] sm:$0xff] %v6343
                %v6345 = vld [vmem:[%s6299 + $0xb0] sm:$0xff]
                %6346 = vst [vmem:[%s6300 + $0x150] sm:$0xff] %v6345
                %v6347 = vld [vmem:[%s6299 + $0xb8] sm:$0xff]
                %6348 = vst [vmem:[%s6300 + $0x158] sm:$0xff] %v6347
                %v6349 = vld [vmem:[%s6299 + $0xc0] sm:$0xff]
                %6350 = vst [vmem:[%s6300 + $0x180] sm:$0xff] %v6349
                %v6351 = vld [vmem:[%s6299 + $0xc8] sm:$0xff]
                %6352 = vst [vmem:[%s6300 + $0x188] sm:$0xff] %v6351
                %v6353 = vld [vmem:[%s6299 + $0xd0] sm:$0xff]
                %6354 = vst [vmem:[%s6300 + $0x190] sm:$0xff] %v6353
                %v6355 = vld [vmem:[%s6299 + $0xd8] sm:$0xff]
                %6356 = vst [vmem:[%s6300 + $0x198] sm:$0xff] %v6355
                %v6357 = vld [vmem:[%s6299 + $0xe0] sm:$0xff]
                %6358 = vst [vmem:[%s6300 + $0x1c0] sm:$0xff] %v6357
                %v6359 = vld [vmem:[%s6299 + $0xe8] sm:$0xff]
                %6360 = vst [vmem:[%s6300 + $0x1c8] sm:$0xff] %v6359
                %v6361 = vld [vmem:[%s6299 + $0xf0] sm:$0xff]
                %6362 = vst [vmem:[%s6300 + $0x1d0] sm:$0xff] %v6361
                %v6363 = vld [vmem:[%s6299 + $0xf8] sm:$0xff]
                %6364 = vst [vmem:[%s6300 + $0x1d8] sm:$0xff] %v6363
                %v6365 = vld [vmem:[%s6299 + $0x100] sm:$0xff]
                %6366 = vst [vmem:[%s6300 + $0x200] sm:$0xff] %v6365
                %v6367 = vld [vmem:[%s6299 + $0x108] sm:$0xff]
                %6368 = vst [vmem:[%s6300 + $0x208] sm:$0xff] %v6367
                %v6369 = vld [vmem:[%s6299 + $0x110] sm:$0xff]
                %6370 = vst [vmem:[%s6300 + $0x210] sm:$0xff] %v6369
                %v6371 = vld [vmem:[%s6299 + $0x118] sm:$0xff]
                %6372 = vst [vmem:[%s6300 + $0x218] sm:$0xff] %v6371
                %v6373 = vld [vmem:[%s6299 + $0x120] sm:$0xff]
                %6374 = vst [vmem:[%s6300 + $0x240] sm:$0xff] %v6373
                %v6375 = vld [vmem:[%s6299 + $0x128] sm:$0xff]
                %6376 = vst [vmem:[%s6300 + $0x248] sm:$0xff] %v6375
                %v6377 = vld [vmem:[%s6299 + $0x130] sm:$0xff]
                %6378 = vst [vmem:[%s6300 + $0x250] sm:$0xff] %v6377
                %v6379 = vld [vmem:[%s6299 + $0x138] sm:$0xff]
                %6380 = vst [vmem:[%s6300 + $0x258] sm:$0xff] %v6379
                %v6381 = vld [vmem:[%s6299 + $0x140] sm:$0xff]
                %6382 = vst [vmem:[%s6300 + $0x280] sm:$0xff] %v6381
                %v6383 = vld [vmem:[%s6299 + $0x148] sm:$0xff]
                %6384 = vst [vmem:[%s6300 + $0x288] sm:$0xff] %v6383
                %v6385 = vld [vmem:[%s6299 + $0x150] sm:$0xff]
                %6386 = vst [vmem:[%s6300 + $0x290] sm:$0xff] %v6385
                %v6387 = vld [vmem:[%s6299 + $0x158] sm:$0xff]
                %6388 = vst [vmem:[%s6300 + $0x298] sm:$0xff] %v6387
                %v6389 = vld [vmem:[%s6299 + $0x160] sm:$0xff]
                %6390 = vst [vmem:[%s6300 + $0x2c0] sm:$0xff] %v6389
                %v6391 = vld [vmem:[%s6299 + $0x168] sm:$0xff]
                %6392 = vst [vmem:[%s6300 + $0x2c8] sm:$0xff] %v6391
                %v6393 = vld [vmem:[%s6299 + $0x170] sm:$0xff]
                %6394 = vst [vmem:[%s6300 + $0x2d0] sm:$0xff] %v6393
                %v6395 = vld [vmem:[%s6299 + $0x178] sm:$0xff]
                %6396 = vst [vmem:[%s6300 + $0x2d8] sm:$0xff] %v6395
                %v6397 = vld [vmem:[%s6299 + $0x180] sm:$0xff]
                %6398 = vst [vmem:[%s6300 + $0x300] sm:$0xff] %v6397
                %v6399 = vld [vmem:[%s6299 + $0x188] sm:$0xff]
                %6400 = vst [vmem:[%s6300 + $0x308] sm:$0xff] %v6399
                %v6401 = vld [vmem:[%s6299 + $0x190] sm:$0xff]
                %6402 = vst [vmem:[%s6300 + $0x310] sm:$0xff] %v6401
                %v6403 = vld [vmem:[%s6299 + $0x198] sm:$0xff]
                %6404 = vst [vmem:[%s6300 + $0x318] sm:$0xff] %v6403
                %v6405 = vld [vmem:[%s6299 + $0x1a0] sm:$0xff]
                %6406 = vst [vmem:[%s6300 + $0x340] sm:$0xff] %v6405
                %v6407 = vld [vmem:[%s6299 + $0x1a8] sm:$0xff]
                %6408 = vst [vmem:[%s6300 + $0x348] sm:$0xff] %v6407
                %v6409 = vld [vmem:[%s6299 + $0x1b0] sm:$0xff]
                %6410 = vst [vmem:[%s6300 + $0x350] sm:$0xff] %v6409
                %v6411 = vld [vmem:[%s6299 + $0x1b8] sm:$0xff]
                %6412 = vst [vmem:[%s6300 + $0x358] sm:$0xff] %v6411
                %v6413 = vld [vmem:[%s6299 + $0x1c0] sm:$0xff]
                %6414 = vst [vmem:[%s6300 + $0x380] sm:$0xff] %v6413
                %v6415 = vld [vmem:[%s6299 + $0x1c8] sm:$0xff]
                %6416 = vst [vmem:[%s6300 + $0x388] sm:$0xff] %v6415
                %v6417 = vld [vmem:[%s6299 + $0x1d0] sm:$0xff]
                %6418 = vst [vmem:[%s6300 + $0x390] sm:$0xff] %v6417
                %v6419 = vld [vmem:[%s6299 + $0x1d8] sm:$0xff]
                %6420 = vst [vmem:[%s6300 + $0x398] sm:$0xff] %v6419
                %v6421 = vld [vmem:[%s6299 + $0x1e0] sm:$0xff]
                %6422 = vst [vmem:[%s6300 + $0x3c0] sm:$0xff] %v6421
                %v6423 = vld [vmem:[%s6299 + $0x1e8] sm:$0xff]
                %6424 = vst [vmem:[%s6300 + $0x3c8] sm:$0xff] %v6423
                %v6425 = vld [vmem:[%s6299 + $0x1f0] sm:$0xff]
                %6426 = vst [vmem:[%s6300 + $0x3d0] sm:$0xff] %v6425
                %v6427 = vld [vmem:[%s6299 + $0x1f8] sm:$0xff]
                %6428 = vst [vmem:[%s6300 + $0x3d8] sm:$0xff] %v6427
              $region115: #{attn_block_forward.5} parent=109 // loop_footer
                %s6298 = sadd.s32 1, %s6294
              $region116: #{attn_block_forward.5} parent=109 // loop_footer_branch
                %6293 = sbr.rel target = $region112
              $region117: #{attn_block_forward.5} parent=109 // loop_exit
                _
            $region110: #{attn_block_forward.5} parent=105 // pred_fallthru
              _
            // Predicated region
            $region118: #{attn_block_forward.5} parent=105 // pred_check
              _
            $region119: #{attn_block_forward.5} parent=105 // pred_check_branch
              %6430 = sbr.rel target = $region121
            $region120: #{attn_block_forward.5} parent=105 // pred_region
              _
            $region121: #{attn_block_forward.5} parent=105 // pred_fallthru
              _
          $region106: #{attn_block_forward.5} parent=101 // pred_fallthru
            _
          %6431 = vnop
        $region102: #{attn_block_forward.5} parent=81 // pred_fallthru
          _
      $region82: #{attn_block_forward.5} parent=5 // pred_fallthru
        _
      %p6432 = scmp.le.s32.totalorder 2, %s12
      // Predicated region
      $region122: #{attn_block_forward.5} parent=5 // pred_check
        %p6433 = pneg %p6432
      $region123: #{attn_block_forward.5} parent=5 // pred_check_branch
        %6435 = sbr.rel (%p6433) target = $region125
      $region124: #{attn_block_forward.5} parent=5 // pred_region
        %s6436 = ssub.s32 %s12, 2
        // Predicated region
        $region126: #{attn_block_forward.5} parent=124 // pred_check
          %p6437 = pneg %p216
        $region127: #{attn_block_forward.5} parent=124 // pred_check_branch
          %6439 = sbr.rel (%p6437) target = $region129
        $region128: #{attn_block_forward.5} parent=124 // pred_region
          %s6440 = sand.u32 %s201, 1
          %s6441 = sand.u32 %s201, 1
          %s6442 = smul.addr %s6441, 512
          %s6443 = scalar_lea.vmem [#allocation7], %s6442
        $region129: #{attn_block_forward.5} parent=124 // pred_fallthru
          _
      $region125: #{attn_block_forward.5} parent=5 // pred_fallthru
        _
    $region6: #{attn_block_forward.5} parent=1 // loop_footer
      %s16 = sadd.s32 1, %s12
    $region7: #{attn_block_forward.5} parent=1 // loop_footer_branch
      %11 = sbr.rel target = $region3
    $region8: #{attn_block_forward.5} parent=1 // loop_exit
      _

</llo_original>
